<compile_context>
chip_gen: v7x
topology: tpu7x:2x2x1
jax: 0.10.0
libtpu: 0.0.40
codegen_flags: <defaults>
</compile_context>

<pallas_src>
import functools

import numpy as np

import jax
import jax.numpy as jnp
from jax.experimental import pallas as pl
from jax.experimental.pallas import tpu as pltpu

HIDDEN = 1024
LANE = 128


def _round_up(x, m):
    return ((x + m - 1) // m) * m


def _predictor_kernel(x_ref, w1_ref, b1_ref, w2_ref, b2_ref, wh_ref, bh_ref,
                      out_ref):
    # fc1 + ReLU: bf16 operands on the MXU, f32 accumulation, f32 bias/ReLU.
    h1 = jnp.dot(x_ref[...], w1_ref[...], preferred_element_type=jnp.float32)
    h1 = jnp.maximum(h1 + b1_ref[...], 0.0)
    # fc2 + ReLU.
    h2 = jnp.dot(h1.astype(w2_ref.dtype), w2_ref[...],
                 preferred_element_type=jnp.float32)
    h2 = jnp.maximum(h2 + b2_ref[...], 0.0)
    # Fused cls/bbox heads: single lane-dense matmul + single unmasked store.
    out = jnp.dot(h2.astype(wh_ref.dtype), wh_ref[...],
                  preferred_element_type=jnp.float32)
    out_ref[...] = (out + bh_ref[...]).astype(out_ref.dtype)


@functools.partial(jax.jit, static_argnames=("block_rows", "compute_dtype"))
def custom_predictor(x, params, *, block_rows=256, compute_dtype=jnp.bfloat16):
    """Forward pass of CustomPredictor.

    x: [N, in_channels] float32
    params: dict with w1 [C,1024], b1 [1,1024], w2 [1024,1024], b2 [1,1024],
            wc [1024,K], bc [1,K], wb [1024,4K], bb [1,4K]
    returns (scores [N,K], bbox_deltas [N,4K])
    """
    assert block_rows % 128 == 0, "block_rows must be a multiple of 128"
    n, c = x.shape
    k = params["wc"].shape[1]
    k4 = params["wb"].shape[1]
    k_tot = k + k4
    head_pad = _round_up(k_tot, LANE)

    # ---- row tiling: big MXU-friendly tiles, keep grid >= 2 when possible --
    n128 = _round_up(n, 128)
    bm = min(block_rows, n128)
    if n128 // bm < 2 and n128 >= 256:       # give v7x's 2 TensorCores work
        bm = max(128, ((n128 // 2) // 128) * 128)
    n_pad = _round_up(n, bm)
    grid = (n_pad // bm,)

    # ---- operand prep (layout plumbing only, fused by XLA) ------------------
    x_p = x if n_pad == n else jnp.pad(x, ((0, n_pad - n), (0, 0)))
    x_p = x_p.astype(compute_dtype)

    w1 = params["w1"].astype(compute_dtype)
    w2 = params["w2"].astype(compute_dtype)
    b1 = params["b1"].astype(jnp.float32)
    b2 = params["b2"].astype(jnp.float32)

    # Fuse the two heads into one lane-dense weight/bias, zero-padded to 128.
    wh = jnp.concatenate([params["wc"], params["wb"]], axis=1)
    bh = jnp.concatenate([params["bc"], params["bb"]], axis=1)
    if head_pad != k_tot:
        wh = jnp.pad(wh, ((0, 0), (0, head_pad - k_tot)))
        bh = jnp.pad(bh, ((0, 0), (0, head_pad - k_tot)))
    wh = wh.astype(compute_dtype)
    bh = bh.astype(jnp.float32)

    # ---- cost estimate (advisory, helps XLA scheduling) ---------------------
    w_item = int(np.dtype(compute_dtype).itemsize)
    flops = 2 * n_pad * (c * HIDDEN + HIDDEN * HIDDEN + HIDDEN * head_pad)
    bytes_accessed = (
        n_pad * c * w_item                                           # x
        + (c * HIDDEN + HIDDEN * HIDDEN + HIDDEN * head_pad) * w_item  # weights
        + (HIDDEN + HIDDEN + head_pad) * 4                           # biases
        + n_pad * head_pad * 4)                                      # output

    full = lambda i: (0, 0)   # weights/biases: resident across the row grid
    row = lambda i: (i, 0)    # x / output: move with the grid index

    fused = pl.pallas_call(
        _predictor_kernel,
        grid_spec=pltpu.PrefetchScalarGridSpec(
            num_scalar_prefetch=0,
            grid=grid,
            in_specs=[
                pl.BlockSpec((bm, c), row),               # x tile
                pl.BlockSpec((c, HIDDEN), full),          # w1
                pl.BlockSpec((1, HIDDEN), full),          # b1
                pl.BlockSpec((HIDDEN, HIDDEN), full),     # w2
                pl.BlockSpec((1, HIDDEN), full),          # b2
                pl.BlockSpec((HIDDEN, head_pad), full),   # fused head weight
                pl.BlockSpec((1, head_pad), full),        # fused head bias
            ],
            out_specs=pl.BlockSpec((bm, head_pad), row),  # lane-dense output
        ),
        out_shape=jax.ShapeDtypeStruct((n_pad, head_pad), jnp.float32),
        compiler_params=pltpu.CompilerParams(
            dimension_semantics=("parallel",),
            vmem_limit_bytes=48 * 1024 * 1024,
        ),
        cost_estimate=pl.CostEstimate(
            flops=flops, transcendentals=0, bytes_accessed=bytes_accessed),
    )(x_p, w1, b1, w2, b2, wh, bh)

    scores = fused[:n, :k].astype(x.dtype)
    bbox_deltas = fused[:n, k:k_tot].astype(x.dtype)
    return scores, bbox_deltas


def init_params(key, in_channels, num_classes):
    """Deterministic init mimicking PyTorch nn.Linear default U(-1/sqrt(fan_in), +)."""
    def linear(key, fan_in, fan_out):
        kw, kb = jax.random.split(key)
        bound = 1.0 / jnp.sqrt(fan_in)
        w = jax.random.uniform(kw, (fan_in, fan_out), jnp.float32, -bound, bound)
        b = jax.random.uniform(kb, (1, fan_out), jnp.float32, -bound, bound)
        return w, b

    k1, k2, k3, k4 = jax.random.split(key, 4)
    w1, b1 = linear(k1, in_channels, HIDDEN)
    w2, b2 = linear(k2, HIDDEN, HIDDEN)
    wc, bc = linear(k3, HIDDEN, num_classes)
    wb, bb = linear(k4, HIDDEN, num_classes * 4)
    return dict(w1=w1, b1=b1, w2=w2, b2=b2, wc=wc, bc=bc, wb=wb, bb=bb)


def reference_bf16(x, p):
    """Same dtype policy as the kernel (bf16 operands, f32 accumulation)."""
    f32, bf = jnp.float32, jnp.bfloat16
    h1 = jnp.maximum(
        jnp.dot(x.astype(bf), p["w1"].astype(bf), preferred_element_type=f32)
        + p["b1"], 0.0)
    h2 = jnp.maximum(
        jnp.dot(h1.astype(bf), p["w2"].astype(bf), preferred_element_type=f32)
        + p["b2"], 0.0)
    s = jnp.dot(h2.astype(bf), p["wc"].astype(bf), preferred_element_type=f32) + p["bc"]
    b = jnp.dot(h2.astype(bf), p["wb"].astype(bf), preferred_element_type=f32) + p["bb"]
    return s, b


def reference_f32(x, p):
    h1 = jnp.maximum(x @ p["w1"] + p["b1"], 0.0)
    h2 = jnp.maximum(h1 @ p["w2"] + p["b2"], 0.0)
    return h2 @ p["wc"] + p["bc"], h2 @ p["wb"] + p["bb"]


if __name__ == "__main__":
    in_channels = 256
    num_classes = 8
    batch = 8  # number of ROIs / rows

    key = jax.random.PRNGKey(0)
    kx, kp = jax.random.split(key)
    x = jax.random.normal(kx, (batch, in_channels), jnp.float32)
    params = init_params(kp, in_channels, num_classes)

    scores, bbox_deltas = custom_predictor(x, params)
    jax.block_until_ready((scores, bbox_deltas))

    assert scores.shape == (batch, num_classes)
    assert bbox_deltas.shape == (batch, num_classes * 4)

    # Tight check against a reference with the exact same bf16/f32 policy.
    ref_s, ref_b = reference_bf16(x, params)
    assert jnp.allclose(scores, ref_s, atol=1e-3, rtol=1e-3)
    assert jnp.allclose(bbox_deltas, ref_b, atol=1e-3, rtol=1e-3)

    # Loose sanity check against the pure-f32 module math.
    ref_s32, ref_b32 = reference_f32(x, params)
    assert jnp.allclose(scores, ref_s32, atol=5e-2, rtol=5e-2)
    assert jnp.allclose(bbox_deltas, ref_b32, atol=5e-2, rtol=5e-2)

    print("KERNEL_OK")
</pallas_src>

<mosaic_0001>
module attributes {stable_mosaic.version = 11 : i64} {
  func.func @_predictor_kernel(%arg0: i32, %arg1: memref<128x256xbf16, #tpu.memory_space<vmem>>, %arg2: memref<256x1024xbf16, #tpu.memory_space<vmem>>, %arg3: memref<1x1024xf32, #tpu.memory_space<vmem>>, %arg4: memref<1024x1024xbf16, #tpu.memory_space<vmem>>, %arg5: memref<1x1024xf32, #tpu.memory_space<vmem>>, %arg6: memref<1024x128xbf16, #tpu.memory_space<vmem>>, %arg7: memref<1x128xf32, #tpu.memory_space<vmem>>, %arg8: memref<128x128xf32, #tpu.memory_space<vmem>>) attributes {dimension_semantics = [#tpu.dimension_semantics<parallel>], iteration_bounds = array<i64: 1>, scalar_prefetch = 0 : i64, scratch_operands = 0 : i64, tpu.core_type = #tpu.core_type<tc>, window_params = [{transform_indices = @transform_0, window_bounds = array<i64: 128, 256>}, {pipeline_mode = #tpu.pipeline_mode<synchronous>, transform_indices = @transform_1, window_bounds = array<i64: 256, 1024>}, {pipeline_mode = #tpu.pipeline_mode<synchronous>, transform_indices = @transform_2, window_bounds = array<i64: 1, 1024>}, {pipeline_mode = #tpu.pipeline_mode<synchronous>, transform_indices = @transform_3, window_bounds = array<i64: 1024, 1024>}, {pipeline_mode = #tpu.pipeline_mode<synchronous>, transform_indices = @transform_4, window_bounds = array<i64: 1, 1024>}, {pipeline_mode = #tpu.pipeline_mode<synchronous>, transform_indices = @transform_5, window_bounds = array<i64: 1024, 128>}, {pipeline_mode = #tpu.pipeline_mode<synchronous>, transform_indices = @transform_6, window_bounds = array<i64: 1, 128>}, {transform_indices = @transform_7, window_bounds = array<i64: 128, 128>}]} {
    %c0 = arith.constant 0 : index
    %c0_0 = arith.constant 0 : index
    %0 = vector.load %arg1[%c0, %c0_0] : memref<128x256xbf16, #tpu.memory_space<vmem>>, vector<128x256xbf16>
    %c0_1 = arith.constant 0 : index
    %c0_2 = arith.constant 0 : index
    %1 = vector.load %arg2[%c0_1, %c0_2] : memref<256x1024xbf16, #tpu.memory_space<vmem>>, vector<256x1024xbf16>
    %cst = arith.constant dense<0.000000e+00> : vector<128x1024xf32>
    %2 = tpu.matmul %0, %1, %cst {dimension_numbers = #tpu.dot_dimension_numbers<[1], [0], [0], [1], [0, 0, 1, 1], [], []>} : vector<128x256xbf16>, vector<256x1024xbf16>, vector<128x1024xf32> -> vector<128x1024xf32>
    %c0_3 = arith.constant 0 : index
    %c0_4 = arith.constant 0 : index
    %3 = vector.load %arg3[%c0_3, %c0_4] : memref<1x1024xf32, #tpu.memory_space<vmem>>, vector<1x1024xf32>
    %4 = vector.broadcast %3 : vector<1x1024xf32> to vector<128x1024xf32>
    %5 = arith.addf %2, %4 : vector<128x1024xf32>
    %cst_5 = arith.constant 0.000000e+00 : f32
    %6 = vector.broadcast %cst_5 : f32 to vector<128x1024xf32>
    %7 = arith.maximumf %5, %6 : vector<128x1024xf32>
    %8 = arith.truncf %7 : vector<128x1024xf32> to vector<128x1024xbf16>
    %c0_6 = arith.constant 0 : index
    %c0_7 = arith.constant 0 : index
    %9 = vector.load %arg4[%c0_6, %c0_7] : memref<1024x1024xbf16, #tpu.memory_space<vmem>>, vector<1024x1024xbf16>
    %cst_8 = arith.constant dense<0.000000e+00> : vector<128x1024xf32>
    %10 = tpu.matmul %8, %9, %cst_8 {dimension_numbers = #tpu.dot_dimension_numbers<[1], [0], [0], [1], [0, 0, 1, 1], [], []>} : vector<128x1024xbf16>, vector<1024x1024xbf16>, vector<128x1024xf32> -> vector<128x1024xf32>
    %c0_9 = arith.constant 0 : index
    %c0_10 = arith.constant 0 : index
    %11 = vector.load %arg5[%c0_9, %c0_10] : memref<1x1024xf32, #tpu.memory_space<vmem>>, vector<1x1024xf32>
    %12 = vector.broadcast %11 : vector<1x1024xf32> to vector<128x1024xf32>
    %13 = arith.addf %10, %12 : vector<128x1024xf32>
    %cst_11 = arith.constant 0.000000e+00 : f32
    %14 = vector.broadcast %cst_11 : f32 to vector<128x1024xf32>
    %15 = arith.maximumf %13, %14 : vector<128x1024xf32>
    %16 = arith.truncf %15 : vector<128x1024xf32> to vector<128x1024xbf16>
    %c0_12 = arith.constant 0 : index
    %c0_13 = arith.constant 0 : index
    %17 = vector.load %arg6[%c0_12, %c0_13] : memref<1024x128xbf16, #tpu.memory_space<vmem>>, vector<1024x128xbf16>
    %cst_14 = arith.constant dense<0.000000e+00> : vector<128x128xf32>
    %18 = tpu.matmul %16, %17, %cst_14 {dimension_numbers = #tpu.dot_dimension_numbers<[1], [0], [0], [1], [0, 0, 1, 1], [], []>} : vector<128x1024xbf16>, vector<1024x128xbf16>, vector<128x128xf32> -> vector<128x128xf32>
    %c0_15 = arith.constant 0 : index
    %c0_16 = arith.constant 0 : index
    %19 = vector.load %arg7[%c0_15, %c0_16] : memref<1x128xf32, #tpu.memory_space<vmem>>, vector<1x128xf32>
    %20 = vector.broadcast %19 : vector<1x128xf32> to vector<128x128xf32>
    %21 = arith.addf %18, %20 : vector<128x128xf32>
    %c0_17 = arith.constant 0 : index
    %c0_18 = arith.constant 0 : index
    %22 = vector.load %arg8[%c0_17, %c0_18] : memref<128x128xf32, #tpu.memory_space<vmem>>, vector<128x128xf32>
    tpu.vector_store %arg8[%c0_17, %c0_18], %21 {strides = array<i32>} : memref<128x128xf32, #tpu.memory_space<vmem>>, vector<128x128xf32>,
    return
  }
  func.func @transform_0(%arg0: i32) -> (i32, i32) {
    %c0_i32 = arith.constant 0 : i32
    %c0_i32_0 = arith.constant 0 : i32
    return %arg0, %c0_i32 : i32, i32
  }
  func.func @transform_1(%arg0: i32) -> (i32, i32) {
    %c0_i32 = arith.constant 0 : i32
    %c0_i32_0 = arith.constant 0 : i32
    %c0_i32_1 = arith.constant 0 : i32
    return %c0_i32, %c0_i32_0 : i32, i32
  }
  func.func @transform_2(%arg0: i32) -> (i32, i32) {
    %c0_i32 = arith.constant 0 : i32
    %c0_i32_0 = arith.constant 0 : i32
    %c0_i32_1 = arith.constant 0 : i32
    return %c0_i32, %c0_i32_0 : i32, i32
  }
  func.func @transform_3(%arg0: i32) -> (i32, i32) {
    %c0_i32 = arith.constant 0 : i32
    %c0_i32_0 = arith.constant 0 : i32
    %c0_i32_1 = arith.constant 0 : i32
    return %c0_i32, %c0_i32_0 : i32, i32
  }
  func.func @transform_4(%arg0: i32) -> (i32, i32) {
    %c0_i32 = arith.constant 0 : i32
    %c0_i32_0 = arith.constant 0 : i32
    %c0_i32_1 = arith.constant 0 : i32
    return %c0_i32, %c0_i32_0 : i32, i32
  }
  func.func @transform_5(%arg0: i32) -> (i32, i32) {
    %c0_i32 = arith.constant 0 : i32
    %c0_i32_0 = arith.constant 0 : i32
    %c0_i32_1 = arith.constant 0 : i32
    return %c0_i32, %c0_i32_0 : i32, i32
  }
  func.func @transform_6(%arg0: i32) -> (i32, i32) {
    %c0_i32 = arith.constant 0 : i32
    %c0_i32_0 = arith.constant 0 : i32
    %c0_i32_1 = arith.constant 0 : i32
    return %c0_i32, %c0_i32_0 : i32, i32
  }
  func.func @transform_7(%arg0: i32) -> (i32, i32) {
    %c0_i32 = arith.constant 0 : i32
    %c0_i32_0 = arith.constant 0 : i32
    return %arg0, %c0_i32 : i32, i32
  }
}

</mosaic_0001>

<llo_original>
// kernel: custom_predictor.1
$region0: #{custom_predictor.1}
  #allocation0 [shape = 'u32[]', space=smem, size = 0x4, offset = 0x4, fixed_abs, tag = 'smem constant byte address 0x4 - core index']
  #allocation1 [shape = 'u32[144,128]{1,0:T(1,128)}', space=vmem, size = 0x12000, scoped, tag = 'internal scratch']
  %s0 = inlined_call_operand.vmem [shape: bf16[128,256], index: 0, kind: input, shape index: {}]
  %s1 = inlined_call_operand.vmem [shape: bf16[256,1024], index: 1, kind: input, shape index: {}]
  %s2 = inlined_call_operand.vmem [shape: f32[1,1024], index: 2, kind: input, shape index: {}]
  %s3 = inlined_call_operand.vmem [shape: bf16[1024,1024], index: 3, kind: input, shape index: {}]
  %s4 = inlined_call_operand.vmem [shape: f32[1,1024], index: 4, kind: input, shape index: {}]
  %s5 = inlined_call_operand.vmem [shape: bf16[1024,128], index: 5, kind: input, shape index: {}]
  %s6 = inlined_call_operand.vmem [shape: f32[1,128], index: 6, kind: input, shape index: {}]
  %s7 = inlined_call_operand.vmem [shape: f32[128,128], index: 7, kind: output, shape index: {}]
  %s8 = sld [smem:[#allocation0]]
  $region38: #{custom_predictor.1} parent=0
    _
  %s10 = ssub.s32 1, %s8
  %s11 = scalar_select 0, %s10, %s8
  // Predicated region
  $region2: #{custom_predictor.1} parent=0 // pred_check
    _
  $region3: #{custom_predictor.1} parent=0 // pred_check_branch
    %13 = sbr.rel (0) target = $region5
  $region4: #{custom_predictor.1} parent=0 // pred_region
    _
  $region5: #{custom_predictor.1} parent=0 // pred_fallthru
    _
  // Predicated region
  $region6: #{custom_predictor.1} parent=0 // pred_check
    _
  $region7: #{custom_predictor.1} parent=0 // pred_check_branch
    %15 = sbr.rel (0) target = $region9
  $region8: #{custom_predictor.1} parent=0 // pred_region
    _
  $region9: #{custom_predictor.1} parent=0 // pred_fallthru
    _
  // Predicated region
  $region10: #{custom_predictor.1} parent=0 // pred_check
    _
  $region11: #{custom_predictor.1} parent=0 // pred_check_branch
    %17 = sbr.rel (0) target = $region13
  $region12: #{custom_predictor.1} parent=0 // pred_region
    _
  $region13: #{custom_predictor.1} parent=0 // pred_fallthru
    _
  // Predicated region
  $region14: #{custom_predictor.1} parent=0 // pred_check
    _
  $region15: #{custom_predictor.1} parent=0 // pred_check_branch
    %19 = sbr.rel (0) target = $region17
  $region16: #{custom_predictor.1} parent=0 // pred_region
    _
  $region17: #{custom_predictor.1} parent=0 // pred_fallthru
    _
  // Predicated region
  $region18: #{custom_predictor.1} parent=0 // pred_check
    _
  $region19: #{custom_predictor.1} parent=0 // pred_check_branch
    %21 = sbr.rel (0) target = $region21
  $region20: #{custom_predictor.1} parent=0 // pred_region
    _
  $region21: #{custom_predictor.1} parent=0 // pred_fallthru
    _
  // Predicated region
  $region22: #{custom_predictor.1} parent=0 // pred_check
    _
  $region23: #{custom_predictor.1} parent=0 // pred_check_branch
    %23 = sbr.rel (0) target = $region25
  $region24: #{custom_predictor.1} parent=0 // pred_region
    _
  $region25: #{custom_predictor.1} parent=0 // pred_fallthru
    _
  // Predicated region
  $region26: #{custom_predictor.1} parent=0 // pred_check
    _
  $region27: #{custom_predictor.1} parent=0 // pred_check_branch
    %25 = sbr.rel (0) target = $region29
  $region28: #{custom_predictor.1} parent=0 // pred_region
    _
  $region29: #{custom_predictor.1} parent=0 // pred_fallthru
    _
  %v27 = vld [vmem:[%s0] sm:$0xff]
  %v28 = vld [vmem:[%s0 + $0x8] sm:$0xff]
  %v29 = vld [vmem:[%s0 + $0x10] sm:$0xff]
  %v30 = vld [vmem:[%s0 + $0x18] sm:$0xff]
  %v31 = vld [vmem:[%s0 + $0x20] sm:$0xff]
  %v32 = vld [vmem:[%s0 + $0x28] sm:$0xff]
  %v33 = vld [vmem:[%s0 + $0x30] sm:$0xff]
  %v34 = vld [vmem:[%s0 + $0x38] sm:$0xff]
  %v35 = vld [vmem:[%s0 + $0x40] sm:$0xff]
  %v36 = vld [vmem:[%s0 + $0x48] sm:$0xff]
  %v37 = vld [vmem:[%s0 + $0x50] sm:$0xff]
  %v38 = vld [vmem:[%s0 + $0x58] sm:$0xff]
  %v39 = vld [vmem:[%s0 + $0x60] sm:$0xff]
  %v40 = vld [vmem:[%s0 + $0x68] sm:$0xff]
  %v41 = vld [vmem:[%s0 + $0x70] sm:$0xff]
  %v42 = vld [vmem:[%s0 + $0x78] sm:$0xff]
  %v43 = vld [vmem:[%s1] sm:$0xff]
  %v44 = vld [vmem:[%s1 + $0x8] sm:$0xff]
  %v45 = vld [vmem:[%s1 + $0x10] sm:$0xff]
  %v46 = vld [vmem:[%s1 + $0x18] sm:$0xff]
  %v47 = vld [vmem:[%s1 + $0x20] sm:$0xff]
  %v48 = vld [vmem:[%s1 + $0x28] sm:$0xff]
  %v49 = vld [vmem:[%s1 + $0x30] sm:$0xff]
  %v50 = vld [vmem:[%s1 + $0x38] sm:$0xff]
  %v51 = vld [vmem:[%s1 + $0x40] sm:$0xff]
  %v52 = vld [vmem:[%s1 + $0x48] sm:$0xff]
  %v53 = vld [vmem:[%s1 + $0x50] sm:$0xff]
  %v54 = vld [vmem:[%s1 + $0x58] sm:$0xff]
  %v55 = vld [vmem:[%s1 + $0x60] sm:$0xff]
  %v56 = vld [vmem:[%s1 + $0x68] sm:$0xff]
  %v57 = vld [vmem:[%s1 + $0x70] sm:$0xff]
  %v58 = vld [vmem:[%s1 + $0x78] sm:$0xff]
  %v59 = vld [vmem:[%s1 + $0x80] sm:$0xff]
  %v60 = vld [vmem:[%s1 + $0x88] sm:$0xff]
  %v61 = vld [vmem:[%s1 + $0x90] sm:$0xff]
  %v62 = vld [vmem:[%s1 + $0x98] sm:$0xff]
  %v63 = vld [vmem:[%s1 + $0xa0] sm:$0xff]
  %v64 = vld [vmem:[%s1 + $0xa8] sm:$0xff]
  %v65 = vld [vmem:[%s1 + $0xb0] sm:$0xff]
  %v66 = vld [vmem:[%s1 + $0xb8] sm:$0xff]
  %v67 = vld [vmem:[%s1 + $0xc0] sm:$0xff]
  %v68 = vld [vmem:[%s1 + $0xc8] sm:$0xff]
  %v69 = vld [vmem:[%s1 + $0xd0] sm:$0xff]
  %v70 = vld [vmem:[%s1 + $0xd8] sm:$0xff]
  %v71 = vld [vmem:[%s1 + $0xe0] sm:$0xff]
  %v72 = vld [vmem:[%s1 + $0xe8] sm:$0xff]
  %v73 = vld [vmem:[%s1 + $0xf0] sm:$0xff]
  %v74 = vld [vmem:[%s1 + $0xf8] sm:$0xff]
  %v75 = vld [vmem:[%s1 + $0x100] sm:$0xff]
  %v76 = vld [vmem:[%s1 + $0x108] sm:$0xff]
  %v77 = vld [vmem:[%s1 + $0x110] sm:$0xff]
  %v78 = vld [vmem:[%s1 + $0x118] sm:$0xff]
  %v79 = vld [vmem:[%s1 + $0x120] sm:$0xff]
  %v80 = vld [vmem:[%s1 + $0x128] sm:$0xff]
  %v81 = vld [vmem:[%s1 + $0x130] sm:$0xff]
  %v82 = vld [vmem:[%s1 + $0x138] sm:$0xff]
  %v83 = vld [vmem:[%s1 + $0x140] sm:$0xff]
  %v84 = vld [vmem:[%s1 + $0x148] sm:$0xff]
  %v85 = vld [vmem:[%s1 + $0x150] sm:$0xff]
  %v86 = vld [vmem:[%s1 + $0x158] sm:$0xff]
  %v87 = vld [vmem:[%s1 + $0x160] sm:$0xff]
  %v88 = vld [vmem:[%s1 + $0x168] sm:$0xff]
  %v89 = vld [vmem:[%s1 + $0x170] sm:$0xff]
  %v90 = vld [vmem:[%s1 + $0x178] sm:$0xff]
  %v91 = vld [vmem:[%s1 + $0x180] sm:$0xff]
  %v92 = vld [vmem:[%s1 + $0x188] sm:$0xff]
  %v93 = vld [vmem:[%s1 + $0x190] sm:$0xff]
  %v94 = vld [vmem:[%s1 + $0x198] sm:$0xff]
  %v95 = vld [vmem:[%s1 + $0x1a0] sm:$0xff]
  %v96 = vld [vmem:[%s1 + $0x1a8] sm:$0xff]
  %v97 = vld [vmem:[%s1 + $0x1b0] sm:$0xff]
  %v98 = vld [vmem:[%s1 + $0x1b8] sm:$0xff]
  %v99 = vld [vmem:[%s1 + $0x1c0] sm:$0xff]
  %v100 = vld [vmem:[%s1 + $0x1c8] sm:$0xff]
  %v101 = vld [vmem:[%s1 + $0x1d0] sm:$0xff]
  %v102 = vld [vmem:[%s1 + $0x1d8] sm:$0xff]
  %v103 = vld [vmem:[%s1 + $0x1e0] sm:$0xff]
  %v104 = vld [vmem:[%s1 + $0x1e8] sm:$0xff]
  %v105 = vld [vmem:[%s1 + $0x1f0] sm:$0xff]
  %v106 = vld [vmem:[%s1 + $0x1f8] sm:$0xff]
  %v107 = vld [vmem:[%s1 + $0x200] sm:$0xff]
  %v108 = vld [vmem:[%s1 + $0x208] sm:$0xff]
  %v109 = vld [vmem:[%s1 + $0x210] sm:$0xff]
  %v110 = vld [vmem:[%s1 + $0x218] sm:$0xff]
  %v111 = vld [vmem:[%s1 + $0x220] sm:$0xff]
  %v112 = vld [vmem:[%s1 + $0x228] sm:$0xff]
  %v113 = vld [vmem:[%s1 + $0x230] sm:$0xff]
  %v114 = vld [vmem:[%s1 + $0x238] sm:$0xff]
  %v115 = vld [vmem:[%s1 + $0x240] sm:$0xff]
  %v116 = vld [vmem:[%s1 + $0x248] sm:$0xff]
  %v117 = vld [vmem:[%s1 + $0x250] sm:$0xff]
  %v118 = vld [vmem:[%s1 + $0x258] sm:$0xff]
  %v119 = vld [vmem:[%s1 + $0x260] sm:$0xff]
  %v120 = vld [vmem:[%s1 + $0x268] sm:$0xff]
  %v121 = vld [vmem:[%s1 + $0x270] sm:$0xff]
  %v122 = vld [vmem:[%s1 + $0x278] sm:$0xff]
  %v123 = vld [vmem:[%s1 + $0x280] sm:$0xff]
  %v124 = vld [vmem:[%s1 + $0x288] sm:$0xff]
  %v125 = vld [vmem:[%s1 + $0x290] sm:$0xff]
  %v126 = vld [vmem:[%s1 + $0x298] sm:$0xff]
  %v127 = vld [vmem:[%s1 + $0x2a0] sm:$0xff]
  %v128 = vld [vmem:[%s1 + $0x2a8] sm:$0xff]
  %v129 = vld [vmem:[%s1 + $0x2b0] sm:$0xff]
  %v130 = vld [vmem:[%s1 + $0x2b8] sm:$0xff]
  %v131 = vld [vmem:[%s1 + $0x2c0] sm:$0xff]
  %v132 = vld [vmem:[%s1 + $0x2c8] sm:$0xff]
  %v133 = vld [vmem:[%s1 + $0x2d0] sm:$0xff]
  %v134 = vld [vmem:[%s1 + $0x2d8] sm:$0xff]
  %v135 = vld [vmem:[%s1 + $0x2e0] sm:$0xff]
  %v136 = vld [vmem:[%s1 + $0x2e8] sm:$0xff]
  %v137 = vld [vmem:[%s1 + $0x2f0] sm:$0xff]
  %v138 = vld [vmem:[%s1 + $0x2f8] sm:$0xff]
  %v139 = vld [vmem:[%s1 + $0x300] sm:$0xff]
  %v140 = vld [vmem:[%s1 + $0x308] sm:$0xff]
  %v141 = vld [vmem:[%s1 + $0x310] sm:$0xff]
  %v142 = vld [vmem:[%s1 + $0x318] sm:$0xff]
  %v143 = vld [vmem:[%s1 + $0x320] sm:$0xff]
  %v144 = vld [vmem:[%s1 + $0x328] sm:$0xff]
  %v145 = vld [vmem:[%s1 + $0x330] sm:$0xff]
  %v146 = vld [vmem:[%s1 + $0x338] sm:$0xff]
  %v147 = vld [vmem:[%s1 + $0x340] sm:$0xff]
  %v148 = vld [vmem:[%s1 + $0x348] sm:$0xff]
  %v149 = vld [vmem:[%s1 + $0x350] sm:$0xff]
  %v150 = vld [vmem:[%s1 + $0x358] sm:$0xff]
  %v151 = vld [vmem:[%s1 + $0x360] sm:$0xff]
  %v152 = vld [vmem:[%s1 + $0x368] sm:$0xff]
  %v153 = vld [vmem:[%s1 + $0x370] sm:$0xff]
  %v154 = vld [vmem:[%s1 + $0x378] sm:$0xff]
  %v155 = vld [vmem:[%s1 + $0x380] sm:$0xff]
  %v156 = vld [vmem:[%s1 + $0x388] sm:$0xff]
  %v157 = vld [vmem:[%s1 + $0x390] sm:$0xff]
  %v158 = vld [vmem:[%s1 + $0x398] sm:$0xff]
  %v159 = vld [vmem:[%s1 + $0x3a0] sm:$0xff]
  %v160 = vld [vmem:[%s1 + $0x3a8] sm:$0xff]
  %v161 = vld [vmem:[%s1 + $0x3b0] sm:$0xff]
  %v162 = vld [vmem:[%s1 + $0x3b8] sm:$0xff]
  %v163 = vld [vmem:[%s1 + $0x3c0] sm:$0xff]
  %v164 = vld [vmem:[%s1 + $0x3c8] sm:$0xff]
  %v165 = vld [vmem:[%s1 + $0x3d0] sm:$0xff]
  %v166 = vld [vmem:[%s1 + $0x3d8] sm:$0xff]
  %v167 = vld [vmem:[%s1 + $0x3e0] sm:$0xff]
  %v168 = vld [vmem:[%s1 + $0x3e8] sm:$0xff]
  %v169 = vld [vmem:[%s1 + $0x3f0] sm:$0xff]
  %v170 = vld [vmem:[%s1 + $0x3f8] sm:$0xff]
  %v171 = vld [vmem:[%s2] sm:$0xff]
  %v173 = vlaneseq
  %v174 = vshrl.u32 %v173, 7
  %v175 = vsub.s32 0, %v174
  %v176 = vrot.slane %v171, %v175
  %v177 = vlaneseq
  %v178 = vshrl.u32 %v177, 7
  %v179 = vsub.s32 1, %v178
  %v180 = vrot.slane %v171, %v179
  %v181 = vlaneseq
  %v182 = vshrl.u32 %v181, 7
  %v183 = vsub.s32 2, %v182
  %v184 = vrot.slane %v171, %v183
  %v185 = vlaneseq
  %v186 = vshrl.u32 %v185, 7
  %v187 = vsub.s32 3, %v186
  %v188 = vrot.slane %v171, %v187
  %v189 = vlaneseq
  %v190 = vshrl.u32 %v189, 7
  %v191 = vsub.s32 4, %v190
  %v192 = vrot.slane %v171, %v191
  %v193 = vlaneseq
  %v194 = vshrl.u32 %v193, 7
  %v195 = vsub.s32 5, %v194
  %v196 = vrot.slane %v171, %v195
  %v197 = vlaneseq
  %v198 = vshrl.u32 %v197, 7
  %v199 = vsub.s32 6, %v198
  %v200 = vrot.slane %v171, %v199
  %v201 = vlaneseq
  %v202 = vshrl.u32 %v201, 7
  %v203 = vsub.s32 7, %v202
  %v204 = vrot.slane %v171, %v203
  %v229 = vunpack.c.l.b16 %v27
  %v230 = vunpack.c.h.b16 %v27
  %v231 = vunpack.c.l.b16 %v28
  %v232 = vunpack.c.h.b16 %v28
  %v233 = vunpack.c.l.b16 %v29
  %v234 = vunpack.c.h.b16 %v29
  %v235 = vunpack.c.l.b16 %v30
  %v236 = vunpack.c.h.b16 %v30
  %v237 = vunpack.c.l.b16 %v31
  %v238 = vunpack.c.h.b16 %v31
  %v239 = vunpack.c.l.b16 %v32
  %v240 = vunpack.c.h.b16 %v32
  %v241 = vunpack.c.l.b16 %v33
  %v242 = vunpack.c.h.b16 %v33
  %v243 = vunpack.c.l.b16 %v34
  %v244 = vunpack.c.h.b16 %v34
  %v245 = vunpack.c.l.b16 %v35
  %v246 = vunpack.c.h.b16 %v35
  %v247 = vunpack.c.l.b16 %v36
  %v248 = vunpack.c.h.b16 %v36
  %v249 = vunpack.c.l.b16 %v37
  %v250 = vunpack.c.h.b16 %v37
  %v251 = vunpack.c.l.b16 %v38
  %v252 = vunpack.c.h.b16 %v38
  %v253 = vunpack.c.l.b16 %v39
  %v254 = vunpack.c.h.b16 %v39
  %v255 = vunpack.c.l.b16 %v40
  %v256 = vunpack.c.h.b16 %v40
  %v257 = vunpack.c.l.b16 %v41
  %v258 = vunpack.c.h.b16 %v41
  %v259 = vunpack.c.l.b16 %v42
  %v260 = vunpack.c.h.b16 %v42
  %v261 = vpack.c.b16 %v231, %v229
  %v262 = vpack.c.b16 %v232, %v230
  %v263 = vpack.c.b16 %v235, %v233
  %v264 = vpack.c.b16 %v236, %v234
  %v265 = vpack.c.b16 %v239, %v237
  %v266 = vpack.c.b16 %v240, %v238
  %v267 = vpack.c.b16 %v243, %v241
  %v268 = vpack.c.b16 %v244, %v242
  %v269 = vpack.c.b16 %v247, %v245
  %v270 = vpack.c.b16 %v248, %v246
  %v271 = vpack.c.b16 %v251, %v249
  %v272 = vpack.c.b16 %v252, %v250
  %v273 = vpack.c.b16 %v255, %v253
  %v274 = vpack.c.b16 %v256, %v254
  %v275 = vpack.c.b16 %v259, %v257
  %v276 = vpack.c.b16 %v260, %v258
  %v421 = vunpack.c.l.b16 %v43
  %v422 = vunpack.c.h.b16 %v43
  %v423 = vunpack.c.l.b16 %v44
  %v424 = vunpack.c.h.b16 %v44
  %v425 = vunpack.c.l.b16 %v45
  %v426 = vunpack.c.h.b16 %v45
  %v427 = vunpack.c.l.b16 %v46
  %v428 = vunpack.c.h.b16 %v46
  %v429 = vunpack.c.l.b16 %v47
  %v430 = vunpack.c.h.b16 %v47
  %v431 = vunpack.c.l.b16 %v48
  %v432 = vunpack.c.h.b16 %v48
  %v433 = vunpack.c.l.b16 %v49
  %v434 = vunpack.c.h.b16 %v49
  %v435 = vunpack.c.l.b16 %v50
  %v436 = vunpack.c.h.b16 %v50
  %v437 = vunpack.c.l.b16 %v51
  %v438 = vunpack.c.h.b16 %v51
  %v439 = vunpack.c.l.b16 %v52
  %v440 = vunpack.c.h.b16 %v52
  %v441 = vunpack.c.l.b16 %v53
  %v442 = vunpack.c.h.b16 %v53
  %v443 = vunpack.c.l.b16 %v54
  %v444 = vunpack.c.h.b16 %v54
  %v445 = vunpack.c.l.b16 %v55
  %v446 = vunpack.c.h.b16 %v55
  %v447 = vunpack.c.l.b16 %v56
  %v448 = vunpack.c.h.b16 %v56
  %v449 = vunpack.c.l.b16 %v57
  %v450 = vunpack.c.h.b16 %v57
  %v451 = vunpack.c.l.b16 %v58
  %v452 = vunpack.c.h.b16 %v58
  %v453 = vunpack.c.l.b16 %v59
  %v454 = vunpack.c.h.b16 %v59
  %v455 = vunpack.c.l.b16 %v60
  %v456 = vunpack.c.h.b16 %v60
  %v457 = vunpack.c.l.b16 %v61
  %v458 = vunpack.c.h.b16 %v61
  %v459 = vunpack.c.l.b16 %v62
  %v460 = vunpack.c.h.b16 %v62
  %v461 = vunpack.c.l.b16 %v63
  %v462 = vunpack.c.h.b16 %v63
  %v463 = vunpack.c.l.b16 %v64
  %v464 = vunpack.c.h.b16 %v64
  %v465 = vunpack.c.l.b16 %v65
  %v466 = vunpack.c.h.b16 %v65
  %v467 = vunpack.c.l.b16 %v66
  %v468 = vunpack.c.h.b16 %v66
  %v469 = vunpack.c.l.b16 %v67
  %v470 = vunpack.c.h.b16 %v67
  %v471 = vunpack.c.l.b16 %v68
  %v472 = vunpack.c.h.b16 %v68
  %v473 = vunpack.c.l.b16 %v69
  %v474 = vunpack.c.h.b16 %v69
  %v475 = vunpack.c.l.b16 %v70
  %v476 = vunpack.c.h.b16 %v70
  %v477 = vunpack.c.l.b16 %v71
  %v478 = vunpack.c.h.b16 %v71
  %v479 = vunpack.c.l.b16 %v72
  %v480 = vunpack.c.h.b16 %v72
  %v481 = vunpack.c.l.b16 %v73
  %v482 = vunpack.c.h.b16 %v73
  %v483 = vunpack.c.l.b16 %v74
  %v484 = vunpack.c.h.b16 %v74
  %v485 = vunpack.c.l.b16 %v75
  %v486 = vunpack.c.h.b16 %v75
  %v487 = vunpack.c.l.b16 %v76
  %v488 = vunpack.c.h.b16 %v76
  %v489 = vunpack.c.l.b16 %v77
  %v490 = vunpack.c.h.b16 %v77
  %v491 = vunpack.c.l.b16 %v78
  %v492 = vunpack.c.h.b16 %v78
  %v493 = vunpack.c.l.b16 %v79
  %v494 = vunpack.c.h.b16 %v79
  %v495 = vunpack.c.l.b16 %v80
  %v496 = vunpack.c.h.b16 %v80
  %v497 = vunpack.c.l.b16 %v81
  %v498 = vunpack.c.h.b16 %v81
  %v499 = vunpack.c.l.b16 %v82
  %v500 = vunpack.c.h.b16 %v82
  %v501 = vunpack.c.l.b16 %v83
  %v502 = vunpack.c.h.b16 %v83
  %v503 = vunpack.c.l.b16 %v84
  %v504 = vunpack.c.h.b16 %v84
  %v505 = vunpack.c.l.b16 %v85
  %v506 = vunpack.c.h.b16 %v85
  %v507 = vunpack.c.l.b16 %v86
  %v508 = vunpack.c.h.b16 %v86
  %v509 = vunpack.c.l.b16 %v87
  %v510 = vunpack.c.h.b16 %v87
  %v511 = vunpack.c.l.b16 %v88
  %v512 = vunpack.c.h.b16 %v88
  %v513 = vunpack.c.l.b16 %v89
  %v514 = vunpack.c.h.b16 %v89
  %v515 = vunpack.c.l.b16 %v90
  %v516 = vunpack.c.h.b16 %v90
  %v517 = vunpack.c.l.b16 %v91
  %v518 = vunpack.c.h.b16 %v91
  %v519 = vunpack.c.l.b16 %v92
  %v520 = vunpack.c.h.b16 %v92
  %v521 = vunpack.c.l.b16 %v93
  %v522 = vunpack.c.h.b16 %v93
  %v523 = vunpack.c.l.b16 %v94
  %v524 = vunpack.c.h.b16 %v94
  %v525 = vunpack.c.l.b16 %v95
  %v526 = vunpack.c.h.b16 %v95
  %v527 = vunpack.c.l.b16 %v96
  %v528 = vunpack.c.h.b16 %v96
  %v529 = vunpack.c.l.b16 %v97
  %v530 = vunpack.c.h.b16 %v97
  %v531 = vunpack.c.l.b16 %v98
  %v532 = vunpack.c.h.b16 %v98
  %v533 = vunpack.c.l.b16 %v99
  %v534 = vunpack.c.h.b16 %v99
  %v535 = vunpack.c.l.b16 %v100
  %v536 = vunpack.c.h.b16 %v100
  %v537 = vunpack.c.l.b16 %v101
  %v538 = vunpack.c.h.b16 %v101
  %v539 = vunpack.c.l.b16 %v102
  %v540 = vunpack.c.h.b16 %v102
  %v541 = vunpack.c.l.b16 %v103
  %v542 = vunpack.c.h.b16 %v103
  %v543 = vunpack.c.l.b16 %v104
  %v544 = vunpack.c.h.b16 %v104
  %v545 = vunpack.c.l.b16 %v105
  %v546 = vunpack.c.h.b16 %v105
  %v547 = vunpack.c.l.b16 %v106
  %v548 = vunpack.c.h.b16 %v106
  %v549 = vunpack.c.l.b16 %v107
  %v550 = vunpack.c.h.b16 %v107
  %v551 = vunpack.c.l.b16 %v108
  %v552 = vunpack.c.h.b16 %v108
  %v553 = vunpack.c.l.b16 %v109
  %v554 = vunpack.c.h.b16 %v109
  %v555 = vunpack.c.l.b16 %v110
  %v556 = vunpack.c.h.b16 %v110
  %v557 = vunpack.c.l.b16 %v111
  %v558 = vunpack.c.h.b16 %v111
  %v559 = vunpack.c.l.b16 %v112
  %v560 = vunpack.c.h.b16 %v112
  %v561 = vunpack.c.l.b16 %v113
  %v562 = vunpack.c.h.b16 %v113
  %v563 = vunpack.c.l.b16 %v114
  %v564 = vunpack.c.h.b16 %v114
  %v565 = vunpack.c.l.b16 %v115
  %v566 = vunpack.c.h.b16 %v115
  %v567 = vunpack.c.l.b16 %v116
  %v568 = vunpack.c.h.b16 %v116
  %v569 = vunpack.c.l.b16 %v117
  %v570 = vunpack.c.h.b16 %v117
  %v571 = vunpack.c.l.b16 %v118
  %v572 = vunpack.c.h.b16 %v118
  %v573 = vunpack.c.l.b16 %v119
  %v574 = vunpack.c.h.b16 %v119
  %v575 = vunpack.c.l.b16 %v120
  %v576 = vunpack.c.h.b16 %v120
  %v577 = vunpack.c.l.b16 %v121
  %v578 = vunpack.c.h.b16 %v121
  %v579 = vunpack.c.l.b16 %v122
  %v580 = vunpack.c.h.b16 %v122
  %v581 = vunpack.c.l.b16 %v123
  %v582 = vunpack.c.h.b16 %v123
  %v583 = vunpack.c.l.b16 %v124
  %v584 = vunpack.c.h.b16 %v124
  %v585 = vunpack.c.l.b16 %v125
  %v586 = vunpack.c.h.b16 %v125
  %v587 = vunpack.c.l.b16 %v126
  %v588 = vunpack.c.h.b16 %v126
  %v589 = vunpack.c.l.b16 %v127
  %v590 = vunpack.c.h.b16 %v127
  %v591 = vunpack.c.l.b16 %v128
  %v592 = vunpack.c.h.b16 %v128
  %v593 = vunpack.c.l.b16 %v129
  %v594 = vunpack.c.h.b16 %v129
  %v595 = vunpack.c.l.b16 %v130
  %v596 = vunpack.c.h.b16 %v130
  %v597 = vunpack.c.l.b16 %v131
  %v598 = vunpack.c.h.b16 %v131
  %v599 = vunpack.c.l.b16 %v132
  %v600 = vunpack.c.h.b16 %v132
  %v601 = vunpack.c.l.b16 %v133
  %v602 = vunpack.c.h.b16 %v133
  %v603 = vunpack.c.l.b16 %v134
  %v604 = vunpack.c.h.b16 %v134
  %v605 = vunpack.c.l.b16 %v135
  %v606 = vunpack.c.h.b16 %v135
  %v607 = vunpack.c.l.b16 %v136
  %v608 = vunpack.c.h.b16 %v136
  %v609 = vunpack.c.l.b16 %v137
  %v610 = vunpack.c.h.b16 %v137
  %v611 = vunpack.c.l.b16 %v138
  %v612 = vunpack.c.h.b16 %v138
  %v613 = vunpack.c.l.b16 %v139
  %v614 = vunpack.c.h.b16 %v139
  %v615 = vunpack.c.l.b16 %v140
  %v616 = vunpack.c.h.b16 %v140
  %v617 = vunpack.c.l.b16 %v141
  %v618 = vunpack.c.h.b16 %v141
  %v619 = vunpack.c.l.b16 %v142
  %v620 = vunpack.c.h.b16 %v142
  %v621 = vunpack.c.l.b16 %v143
  %v622 = vunpack.c.h.b16 %v143
  %v623 = vunpack.c.l.b16 %v144
  %v624 = vunpack.c.h.b16 %v144
  %v625 = vunpack.c.l.b16 %v145
  %v626 = vunpack.c.h.b16 %v145
  %v627 = vunpack.c.l.b16 %v146
  %v628 = vunpack.c.h.b16 %v146
  %v629 = vunpack.c.l.b16 %v147
  %v630 = vunpack.c.h.b16 %v147
  %v631 = vunpack.c.l.b16 %v148
  %v632 = vunpack.c.h.b16 %v148
  %v633 = vunpack.c.l.b16 %v149
  %v634 = vunpack.c.h.b16 %v149
  %v635 = vunpack.c.l.b16 %v150
  %v636 = vunpack.c.h.b16 %v150
  %v637 = vunpack.c.l.b16 %v151
  %v638 = vunpack.c.h.b16 %v151
  %v639 = vunpack.c.l.b16 %v152
  %v640 = vunpack.c.h.b16 %v152
  %v641 = vunpack.c.l.b16 %v153
  %v642 = vunpack.c.h.b16 %v153
  %v643 = vunpack.c.l.b16 %v154
  %v644 = vunpack.c.h.b16 %v154
  %v645 = vunpack.c.l.b16 %v155
  %v646 = vunpack.c.h.b16 %v155
  %v647 = vunpack.c.l.b16 %v156
  %v648 = vunpack.c.h.b16 %v156
  %v649 = vunpack.c.l.b16 %v157
  %v650 = vunpack.c.h.b16 %v157
  %v651 = vunpack.c.l.b16 %v158
  %v652 = vunpack.c.h.b16 %v158
  %v653 = vunpack.c.l.b16 %v159
  %v654 = vunpack.c.h.b16 %v159
  %v655 = vunpack.c.l.b16 %v160
  %v656 = vunpack.c.h.b16 %v160
  %v657 = vunpack.c.l.b16 %v161
  %v658 = vunpack.c.h.b16 %v161
  %v659 = vunpack.c.l.b16 %v162
  %v660 = vunpack.c.h.b16 %v162
  %v661 = vunpack.c.l.b16 %v163
  %v662 = vunpack.c.h.b16 %v163
  %v663 = vunpack.c.l.b16 %v164
  %v664 = vunpack.c.h.b16 %v164
  %v665 = vunpack.c.l.b16 %v165
  %v666 = vunpack.c.h.b16 %v165
  %v667 = vunpack.c.l.b16 %v166
  %v668 = vunpack.c.h.b16 %v166
  %v669 = vunpack.c.l.b16 %v167
  %v670 = vunpack.c.h.b16 %v167
  %v671 = vunpack.c.l.b16 %v168
  %v672 = vunpack.c.h.b16 %v168
  %v673 = vunpack.c.l.b16 %v169
  %v674 = vunpack.c.h.b16 %v169
  %v675 = vunpack.c.l.b16 %v170
  %v676 = vunpack.c.h.b16 %v170
  %v677 = vpack.c.b16 %v429, %v421
  %v678 = vpack.c.b16 %v430, %v422
  %v679 = vpack.c.b16 %v431, %v423
  %v680 = vpack.c.b16 %v432, %v424
  %v681 = vpack.c.b16 %v433, %v425
  %v682 = vpack.c.b16 %v434, %v426
  %v683 = vpack.c.b16 %v435, %v427
  %v684 = vpack.c.b16 %v436, %v428
  %v685 = vpack.c.b16 %v445, %v437
  %v686 = vpack.c.b16 %v446, %v438
  %v687 = vpack.c.b16 %v447, %v439
  %v688 = vpack.c.b16 %v448, %v440
  %v689 = vpack.c.b16 %v449, %v441
  %v690 = vpack.c.b16 %v450, %v442
  %v691 = vpack.c.b16 %v451, %v443
  %v692 = vpack.c.b16 %v452, %v444
  %v693 = vpack.c.b16 %v461, %v453
  %v694 = vpack.c.b16 %v462, %v454
  %v695 = vpack.c.b16 %v463, %v455
  %v696 = vpack.c.b16 %v464, %v456
  %v697 = vpack.c.b16 %v465, %v457
  %v698 = vpack.c.b16 %v466, %v458
  %v699 = vpack.c.b16 %v467, %v459
  %v700 = vpack.c.b16 %v468, %v460
  %v701 = vpack.c.b16 %v477, %v469
  %v702 = vpack.c.b16 %v478, %v470
  %v703 = vpack.c.b16 %v479, %v471
  %v704 = vpack.c.b16 %v480, %v472
  %v705 = vpack.c.b16 %v481, %v473
  %v706 = vpack.c.b16 %v482, %v474
  %v707 = vpack.c.b16 %v483, %v475
  %v708 = vpack.c.b16 %v484, %v476
  %v709 = vpack.c.b16 %v493, %v485
  %v710 = vpack.c.b16 %v494, %v486
  %v711 = vpack.c.b16 %v495, %v487
  %v712 = vpack.c.b16 %v496, %v488
  %v713 = vpack.c.b16 %v497, %v489
  %v714 = vpack.c.b16 %v498, %v490
  %v715 = vpack.c.b16 %v499, %v491
  %v716 = vpack.c.b16 %v500, %v492
  %v717 = vpack.c.b16 %v509, %v501
  %v718 = vpack.c.b16 %v510, %v502
  %v719 = vpack.c.b16 %v511, %v503
  %v720 = vpack.c.b16 %v512, %v504
  %v721 = vpack.c.b16 %v513, %v505
  %v722 = vpack.c.b16 %v514, %v506
  %v723 = vpack.c.b16 %v515, %v507
  %v724 = vpack.c.b16 %v516, %v508
  %v725 = vpack.c.b16 %v525, %v517
  %v726 = vpack.c.b16 %v526, %v518
  %v727 = vpack.c.b16 %v527, %v519
  %v728 = vpack.c.b16 %v528, %v520
  %v729 = vpack.c.b16 %v529, %v521
  %v730 = vpack.c.b16 %v530, %v522
  %v731 = vpack.c.b16 %v531, %v523
  %v732 = vpack.c.b16 %v532, %v524
  %v733 = vpack.c.b16 %v541, %v533
  %v734 = vpack.c.b16 %v542, %v534
  %v735 = vpack.c.b16 %v543, %v535
  %v736 = vpack.c.b16 %v544, %v536
  %v737 = vpack.c.b16 %v545, %v537
  %v738 = vpack.c.b16 %v546, %v538
  %v739 = vpack.c.b16 %v547, %v539
  %v740 = vpack.c.b16 %v548, %v540
  %v741 = vpack.c.b16 %v557, %v549
  %v742 = vpack.c.b16 %v558, %v550
  %v743 = vpack.c.b16 %v559, %v551
  %v744 = vpack.c.b16 %v560, %v552
  %v745 = vpack.c.b16 %v561, %v553
  %v746 = vpack.c.b16 %v562, %v554
  %v747 = vpack.c.b16 %v563, %v555
  %v748 = vpack.c.b16 %v564, %v556
  %v749 = vpack.c.b16 %v573, %v565
  %v750 = vpack.c.b16 %v574, %v566
  %v751 = vpack.c.b16 %v575, %v567
  %v752 = vpack.c.b16 %v576, %v568
  %v753 = vpack.c.b16 %v577, %v569
  %v754 = vpack.c.b16 %v578, %v570
  %v755 = vpack.c.b16 %v579, %v571
  %v756 = vpack.c.b16 %v580, %v572
  %v757 = vpack.c.b16 %v589, %v581
  %v758 = vpack.c.b16 %v590, %v582
  %v759 = vpack.c.b16 %v591, %v583
  %v760 = vpack.c.b16 %v592, %v584
  %v761 = vpack.c.b16 %v593, %v585
  %v762 = vpack.c.b16 %v594, %v586
  %v763 = vpack.c.b16 %v595, %v587
  %v764 = vpack.c.b16 %v596, %v588
  %v765 = vpack.c.b16 %v605, %v597
  %v766 = vpack.c.b16 %v606, %v598
  %v767 = vpack.c.b16 %v607, %v599
  %v768 = vpack.c.b16 %v608, %v600
  %v769 = vpack.c.b16 %v609, %v601
  %v770 = vpack.c.b16 %v610, %v602
  %v771 = vpack.c.b16 %v611, %v603
  %v772 = vpack.c.b16 %v612, %v604
  %v773 = vpack.c.b16 %v621, %v613
  %v774 = vpack.c.b16 %v622, %v614
  %v775 = vpack.c.b16 %v623, %v615
  %v776 = vpack.c.b16 %v624, %v616
  %v777 = vpack.c.b16 %v625, %v617
  %v778 = vpack.c.b16 %v626, %v618
  %v779 = vpack.c.b16 %v627, %v619
  %v780 = vpack.c.b16 %v628, %v620
  %v781 = vpack.c.b16 %v637, %v629
  %v782 = vpack.c.b16 %v638, %v630
  %v783 = vpack.c.b16 %v639, %v631
  %v784 = vpack.c.b16 %v640, %v632
  %v785 = vpack.c.b16 %v641, %v633
  %v786 = vpack.c.b16 %v642, %v634
  %v787 = vpack.c.b16 %v643, %v635
  %v788 = vpack.c.b16 %v644, %v636
  %v789 = vpack.c.b16 %v653, %v645
  %v790 = vpack.c.b16 %v654, %v646
  %v791 = vpack.c.b16 %v655, %v647
  %v792 = vpack.c.b16 %v656, %v648
  %v793 = vpack.c.b16 %v657, %v649
  %v794 = vpack.c.b16 %v658, %v650
  %v795 = vpack.c.b16 %v659, %v651
  %v796 = vpack.c.b16 %v660, %v652
  %v797 = vpack.c.b16 %v669, %v661
  %v798 = vpack.c.b16 %v670, %v662
  %v799 = vpack.c.b16 %v671, %v663
  %v800 = vpack.c.b16 %v672, %v664
  %v801 = vpack.c.b16 %v673, %v665
  %v802 = vpack.c.b16 %v674, %v666
  %v803 = vpack.c.b16 %v675, %v667
  %v804 = vpack.c.b16 %v676, %v668
  %933 = vmatprep.subr.bf16.mxu0 %v678
  %934 = vmatpush1.bf16.msra.mxu0 %v677
  %935 = vmatprep.subr.bf16.mxu0 %v686
  %936 = vmatpush1.bf16.msra.mxu0 %v685
  %937 = vmatprep.subr.bf16.mxu0 %v694
  %938 = vmatpush1.bf16.msra.mxu0 %v693
  %939 = vmatprep.subr.bf16.mxu0 %v702
  %940 = vmatpush1.bf16.msra.mxu0 %v701
  %941 = vmatprep.subr.bf16.mxu0 %v710
  %942 = vmatpush1.bf16.msra.mxu0 %v709
  %943 = vmatprep.subr.bf16.mxu0 %v718
  %944 = vmatpush1.bf16.msra.mxu0 %v717
  %945 = vmatprep.subr.bf16.mxu0 %v726
  %946 = vmatpush1.bf16.msra.mxu0 %v725
  %947 = vmatprep.subr.bf16.mxu0 %v734
  %948 = vmatpush1.bf16.msra.mxu0 %v733
  %949 = vmatprep.subr.bf16.mxu0 %v742
  %950 = vmatpush1.bf16.msra.mxu0 %v741
  %951 = vmatprep.subr.bf16.mxu0 %v750
  %952 = vmatpush1.bf16.msra.mxu0 %v749
  %953 = vmatprep.subr.bf16.mxu0 %v758
  %954 = vmatpush1.bf16.msra.mxu0 %v757
  %955 = vmatprep.subr.bf16.mxu0 %v766
  %956 = vmatpush1.bf16.msra.mxu0 %v765
  %957 = vmatprep.subr.bf16.mxu0 %v774
  %958 = vmatpush1.bf16.msra.mxu0 %v773
  %959 = vmatprep.subr.bf16.mxu0 %v782
  %960 = vmatpush1.bf16.msra.mxu0 %v781
  %961 = vmatprep.subr.bf16.mxu0 %v790
  %962 = vmatpush1.bf16.msra.mxu0 %v789
  %963 = vmatprep.subr.bf16.mxu0 %v798
  %964 = vmatpush1.bf16.msra.mxu0 %v797
  %965 = vmatprep.mubr.bf16.mxu0 %v262
  %966 = vmatmul.mubr.bf16.gmra.mrb[0].mxu0 %v261
  %v967 = vpop.f32.mrb[0].mxu0
  %v968 = vadd.f32 %v176, %v967
  %v969 = vpop.f32.mrb[0].mxu0
  %v970 = vadd.f32 %v180, %v969
  %v971 = vpop.f32.mrb[0].mxu0
  %v972 = vadd.f32 %v176, %v971
  %v973 = vpop.f32.mrb[0].mxu0
  %v974 = vadd.f32 %v180, %v973
  %975 = vmatprep.mubr.bf16.mxu0 %v264
  %976 = vmatmul.mubr.bf16.gmra.mrb[0].mxu0 %v263
  %v977 = vpop.f32.mrb[0].mxu0
  %v978 = vadd.f32 %v176, %v977
  %v979 = vpop.f32.mrb[0].mxu0
  %v980 = vadd.f32 %v180, %v979
  %v981 = vpop.f32.mrb[0].mxu0
  %v982 = vadd.f32 %v176, %v981
  %v983 = vpop.f32.mrb[0].mxu0
  %v984 = vadd.f32 %v180, %v983
  %985 = vmatprep.mubr.bf16.mxu0 %v266
  %986 = vmatmul.mubr.bf16.gmra.mrb[0].mxu0 %v265
  %v987 = vpop.f32.mrb[0].mxu0
  %v988 = vadd.f32 %v176, %v987
  %v989 = vpop.f32.mrb[0].mxu0
  %v990 = vadd.f32 %v180, %v989
  %v991 = vpop.f32.mrb[0].mxu0
  %v992 = vadd.f32 %v176, %v991
  %v993 = vpop.f32.mrb[0].mxu0
  %v994 = vadd.f32 %v180, %v993
  %995 = vmatprep.mubr.bf16.mxu0 %v268
  %996 = vmatmul.mubr.bf16.gmra.mrb[0].mxu0 %v267
  %v997 = vpop.f32.mrb[0].mxu0
  %v998 = vadd.f32 %v176, %v997
  %v999 = vpop.f32.mrb[0].mxu0
  %v1000 = vadd.f32 %v180, %v999
  %v1001 = vpop.f32.mrb[0].mxu0
  %v1002 = vadd.f32 %v176, %v1001
  %v1003 = vpop.f32.mrb[0].mxu0
  %v1004 = vadd.f32 %v180, %v1003
  %1005 = vmatprep.mubr.bf16.mxu0 %v270
  %1006 = vmatmul.mubr.bf16.gmra.mrb[0].mxu0 %v269
  %v1007 = vpop.f32.mrb[0].mxu0
  %v1008 = vadd.f32 %v176, %v1007
  %v1009 = vpop.f32.mrb[0].mxu0
  %v1010 = vadd.f32 %v180, %v1009
  %v1011 = vpop.f32.mrb[0].mxu0
  %v1012 = vadd.f32 %v176, %v1011
  %v1013 = vpop.f32.mrb[0].mxu0
  %v1014 = vadd.f32 %v180, %v1013
  %1015 = vmatprep.mubr.bf16.mxu0 %v272
  %1016 = vmatmul.mubr.bf16.gmra.mrb[0].mxu0 %v271
  %v1017 = vpop.f32.mrb[0].mxu0
  %v1018 = vadd.f32 %v176, %v1017
  %v1019 = vpop.f32.mrb[0].mxu0
  %v1020 = vadd.f32 %v180, %v1019
  %v1021 = vpop.f32.mrb[0].mxu0
  %v1022 = vadd.f32 %v176, %v1021
  %v1023 = vpop.f32.mrb[0].mxu0
  %v1024 = vadd.f32 %v180, %v1023
  %1025 = vmatprep.mubr.bf16.mxu0 %v274
  %1026 = vmatmul.mubr.bf16.gmra.mrb[0].mxu0 %v273
  %v1027 = vpop.f32.mrb[0].mxu0
  %v1028 = vadd.f32 %v176, %v1027
  %v1029 = vpop.f32.mrb[0].mxu0
  %v1030 = vadd.f32 %v180, %v1029
  %v1031 = vpop.f32.mrb[0].mxu0
  %v1032 = vadd.f32 %v176, %v1031
  %v1033 = vpop.f32.mrb[0].mxu0
  %v1034 = vadd.f32 %v180, %v1033
  %1035 = vmatprep.mubr.bf16.mxu0 %v276
  %1036 = vmatmul.mubr.bf16.gmra.mrb[0].mxu0 %v275
  %v1037 = vpop.f32.mrb[0].mxu0
  %v1038 = vadd.f32 %v176, %v1037
  %v1039 = vpop.f32.mrb[0].mxu0
  %v1040 = vadd.f32 %v180, %v1039
  %v1041 = vpop.f32.mrb[0].mxu0
  %v1042 = vadd.f32 %v176, %v1041
  %v1043 = vpop.f32.mrb[0].mxu0
  %v1044 = vadd.f32 %v180, %v1043
  %1045 = vdwg.mxu0
  %1046 = vmatprep.subr.bf16.mxu0 %v680
  %1047 = vmatpush1.bf16.msra.mxu0 %v679
  %1048 = vmatprep.subr.bf16.mxu0 %v688
  %1049 = vmatpush1.bf16.msra.mxu0 %v687
  %1050 = vmatprep.subr.bf16.mxu0 %v696
  %1051 = vmatpush1.bf16.msra.mxu0 %v695
  %1052 = vmatprep.subr.bf16.mxu0 %v704
  %1053 = vmatpush1.bf16.msra.mxu0 %v703
  %1054 = vmatprep.subr.bf16.mxu0 %v712
  %1055 = vmatpush1.bf16.msra.mxu0 %v711
  %1056 = vmatprep.subr.bf16.mxu0 %v720
  %1057 = vmatpush1.bf16.msra.mxu0 %v719
  %1058 = vmatprep.subr.bf16.mxu0 %v728
  %1059 = vmatpush1.bf16.msra.mxu0 %v727
  %1060 = vmatprep.subr.bf16.mxu0 %v736
  %1061 = vmatpush1.bf16.msra.mxu0 %v735
  %1062 = vmatprep.subr.bf16.mxu0 %v744
  %1063 = vmatpush1.bf16.msra.mxu0 %v743
  %1064 = vmatprep.subr.bf16.mxu0 %v752
  %1065 = vmatpush1.bf16.msra.mxu0 %v751
  %1066 = vmatprep.subr.bf16.mxu0 %v760
  %1067 = vmatpush1.bf16.msra.mxu0 %v759
  %1068 = vmatprep.subr.bf16.mxu0 %v768
  %1069 = vmatpush1.bf16.msra.mxu0 %v767
  %1070 = vmatprep.subr.bf16.mxu0 %v776
  %1071 = vmatpush1.bf16.msra.mxu0 %v775
  %1072 = vmatprep.subr.bf16.mxu0 %v784
  %1073 = vmatpush1.bf16.msra.mxu0 %v783
  %1074 = vmatprep.subr.bf16.mxu0 %v792
  %1075 = vmatpush1.bf16.msra.mxu0 %v791
  %1076 = vmatprep.subr.bf16.mxu0 %v800
  %1077 = vmatpush1.bf16.msra.mxu0 %v799
  %1078 = vmatprep.mubr.bf16.mxu0 %v262
  %1079 = vmatmul.mubr.bf16.gmra.mrb[0].mxu0 %v261
  %v1080 = vpop.f32.mrb[0].mxu0
  %v1081 = vadd.f32 %v184, %v1080
  %v1082 = vpop.f32.mrb[0].mxu0
  %v1083 = vadd.f32 %v188, %v1082
  %v1084 = vpop.f32.mrb[0].mxu0
  %v1085 = vadd.f32 %v184, %v1084
  %v1086 = vpop.f32.mrb[0].mxu0
  %v1087 = vadd.f32 %v188, %v1086
  %1088 = vmatprep.mubr.bf16.mxu0 %v264
  %1089 = vmatmul.mubr.bf16.gmra.mrb[0].mxu0 %v263
  %v1090 = vpop.f32.mrb[0].mxu0
  %v1091 = vadd.f32 %v184, %v1090
  %v1092 = vpop.f32.mrb[0].mxu0
  %v1093 = vadd.f32 %v188, %v1092
  %v1094 = vpop.f32.mrb[0].mxu0
  %v1095 = vadd.f32 %v184, %v1094
  %v1096 = vpop.f32.mrb[0].mxu0
  %v1097 = vadd.f32 %v188, %v1096
  %1098 = vmatprep.mubr.bf16.mxu0 %v266
  %1099 = vmatmul.mubr.bf16.gmra.mrb[0].mxu0 %v265
  %v1100 = vpop.f32.mrb[0].mxu0
  %v1101 = vadd.f32 %v184, %v1100
  %v1102 = vpop.f32.mrb[0].mxu0
  %v1103 = vadd.f32 %v188, %v1102
  %v1104 = vpop.f32.mrb[0].mxu0
  %v1105 = vadd.f32 %v184, %v1104
  %v1106 = vpop.f32.mrb[0].mxu0
  %v1107 = vadd.f32 %v188, %v1106
  %1108 = vmatprep.mubr.bf16.mxu0 %v268
  %1109 = vmatmul.mubr.bf16.gmra.mrb[0].mxu0 %v267
  %v1110 = vpop.f32.mrb[0].mxu0
  %v1111 = vadd.f32 %v184, %v1110
  %v1112 = vpop.f32.mrb[0].mxu0
  %v1113 = vadd.f32 %v188, %v1112
  %v1114 = vpop.f32.mrb[0].mxu0
  %v1115 = vadd.f32 %v184, %v1114
  %v1116 = vpop.f32.mrb[0].mxu0
  %v1117 = vadd.f32 %v188, %v1116
  %1118 = vmatprep.mubr.bf16.mxu0 %v270
  %1119 = vmatmul.mubr.bf16.gmra.mrb[0].mxu0 %v269
  %v1120 = vpop.f32.mrb[0].mxu0
  %v1121 = vadd.f32 %v184, %v1120
  %v1122 = vpop.f32.mrb[0].mxu0
  %v1123 = vadd.f32 %v188, %v1122
  %v1124 = vpop.f32.mrb[0].mxu0
  %v1125 = vadd.f32 %v184, %v1124
  %v1126 = vpop.f32.mrb[0].mxu0
  %v1127 = vadd.f32 %v188, %v1126
  %1128 = vmatprep.mubr.bf16.mxu0 %v272
  %1129 = vmatmul.mubr.bf16.gmra.mrb[0].mxu0 %v271
  %v1130 = vpop.f32.mrb[0].mxu0
  %v1131 = vadd.f32 %v184, %v1130
  %v1132 = vpop.f32.mrb[0].mxu0
  %v1133 = vadd.f32 %v188, %v1132
  %v1134 = vpop.f32.mrb[0].mxu0
  %v1135 = vadd.f32 %v184, %v1134
  %v1136 = vpop.f32.mrb[0].mxu0
  %v1137 = vadd.f32 %v188, %v1136
  %1138 = vmatprep.mubr.bf16.mxu0 %v274
  %1139 = vmatmul.mubr.bf16.gmra.mrb[0].mxu0 %v273
  %v1140 = vpop.f32.mrb[0].mxu0
  %v1141 = vadd.f32 %v184, %v1140
  %v1142 = vpop.f32.mrb[0].mxu0
  %v1143 = vadd.f32 %v188, %v1142
  %v1144 = vpop.f32.mrb[0].mxu0
  %v1145 = vadd.f32 %v184, %v1144
  %v1146 = vpop.f32.mrb[0].mxu0
  %v1147 = vadd.f32 %v188, %v1146
  %1148 = vmatprep.mubr.bf16.mxu0 %v276
  %1149 = vmatmul.mubr.bf16.gmra.mrb[0].mxu0 %v275
  %v1150 = vpop.f32.mrb[0].mxu0
  %v1151 = vadd.f32 %v184, %v1150
  %v1152 = vpop.f32.mrb[0].mxu0
  %v1153 = vadd.f32 %v188, %v1152
  %v1154 = vpop.f32.mrb[0].mxu0
  %v1155 = vadd.f32 %v184, %v1154
  %v1156 = vpop.f32.mrb[0].mxu0
  %v1157 = vadd.f32 %v188, %v1156
  %1158 = vdwg.mxu0
  %1159 = vmatprep.subr.bf16.mxu0 %v682
  %1160 = vmatpush1.bf16.msra.mxu0 %v681
  %1161 = vmatprep.subr.bf16.mxu0 %v690
  %1162 = vmatpush1.bf16.msra.mxu0 %v689
  %1163 = vmatprep.subr.bf16.mxu0 %v698
  %1164 = vmatpush1.bf16.msra.mxu0 %v697
  %1165 = vmatprep.subr.bf16.mxu0 %v706
  %1166 = vmatpush1.bf16.msra.mxu0 %v705
  %1167 = vmatprep.subr.bf16.mxu0 %v714
  %1168 = vmatpush1.bf16.msra.mxu0 %v713
  %1169 = vmatprep.subr.bf16.mxu0 %v722
  %1170 = vmatpush1.bf16.msra.mxu0 %v721
  %1171 = vmatprep.subr.bf16.mxu0 %v730
  %1172 = vmatpush1.bf16.msra.mxu0 %v729
  %1173 = vmatprep.subr.bf16.mxu0 %v738
  %1174 = vmatpush1.bf16.msra.mxu0 %v737
  %1175 = vmatprep.subr.bf16.mxu0 %v746
  %1176 = vmatpush1.bf16.msra.mxu0 %v745
  %1177 = vmatprep.subr.bf16.mxu0 %v754
  %1178 = vmatpush1.bf16.msra.mxu0 %v753
  %1179 = vmatprep.subr.bf16.mxu0 %v762
  %1180 = vmatpush1.bf16.msra.mxu0 %v761
  %1181 = vmatprep.subr.bf16.mxu0 %v770
  %1182 = vmatpush1.bf16.msra.mxu0 %v769
  %1183 = vmatprep.subr.bf16.mxu0 %v778
  %1184 = vmatpush1.bf16.msra.mxu0 %v777
  %1185 = vmatprep.subr.bf16.mxu0 %v786
  %1186 = vmatpush1.bf16.msra.mxu0 %v785
  %1187 = vmatprep.subr.bf16.mxu0 %v794
  %1188 = vmatpush1.bf16.msra.mxu0 %v793
  %1189 = vmatprep.subr.bf16.mxu0 %v802
  %1190 = vmatpush1.bf16.msra.mxu0 %v801
  %1191 = vmatprep.mubr.bf16.mxu0 %v262
  %1192 = vmatmul.mubr.bf16.gmra.mrb[0].mxu0 %v261
  %v1193 = vpop.f32.mrb[0].mxu0
  %v1194 = vadd.f32 %v192, %v1193
  %v1195 = vpop.f32.mrb[0].mxu0
  %v1196 = vadd.f32 %v196, %v1195
  %v1197 = vpop.f32.mrb[0].mxu0
  %v1198 = vadd.f32 %v192, %v1197
  %v1199 = vpop.f32.mrb[0].mxu0
  %v1200 = vadd.f32 %v196, %v1199
  %1201 = vmatprep.mubr.bf16.mxu0 %v264
  %1202 = vmatmul.mubr.bf16.gmra.mrb[0].mxu0 %v263
  %v1203 = vpop.f32.mrb[0].mxu0
  %v1204 = vadd.f32 %v192, %v1203
  %v1205 = vpop.f32.mrb[0].mxu0
  %v1206 = vadd.f32 %v196, %v1205
  %v1207 = vpop.f32.mrb[0].mxu0
  %v1208 = vadd.f32 %v192, %v1207
  %v1209 = vpop.f32.mrb[0].mxu0
  %v1210 = vadd.f32 %v196, %v1209
  %1211 = vmatprep.mubr.bf16.mxu0 %v266
  %1212 = vmatmul.mubr.bf16.gmra.mrb[0].mxu0 %v265
  %v1213 = vpop.f32.mrb[0].mxu0
  %v1214 = vadd.f32 %v192, %v1213
  %v1215 = vpop.f32.mrb[0].mxu0
  %v1216 = vadd.f32 %v196, %v1215
  %v1217 = vpop.f32.mrb[0].mxu0
  %v1218 = vadd.f32 %v192, %v1217
  %v1219 = vpop.f32.mrb[0].mxu0
  %v1220 = vadd.f32 %v196, %v1219
  %1221 = vmatprep.mubr.bf16.mxu0 %v268
  %1222 = vmatmul.mubr.bf16.gmra.mrb[0].mxu0 %v267
  %v1223 = vpop.f32.mrb[0].mxu0
  %v1224 = vadd.f32 %v192, %v1223
  %v1225 = vpop.f32.mrb[0].mxu0
  %v1226 = vadd.f32 %v196, %v1225
  %v1227 = vpop.f32.mrb[0].mxu0
  %v1228 = vadd.f32 %v192, %v1227
  %v1229 = vpop.f32.mrb[0].mxu0
  %v1230 = vadd.f32 %v196, %v1229
  %1231 = vmatprep.mubr.bf16.mxu0 %v270
  %1232 = vmatmul.mubr.bf16.gmra.mrb[0].mxu0 %v269
  %v1233 = vpop.f32.mrb[0].mxu0
  %v1234 = vadd.f32 %v192, %v1233
  %v1235 = vpop.f32.mrb[0].mxu0
  %v1236 = vadd.f32 %v196, %v1235
  %v1237 = vpop.f32.mrb[0].mxu0
  %v1238 = vadd.f32 %v192, %v1237
  %v1239 = vpop.f32.mrb[0].mxu0
  %v1240 = vadd.f32 %v196, %v1239
  %1241 = vmatprep.mubr.bf16.mxu0 %v272
  %1242 = vmatmul.mubr.bf16.gmra.mrb[0].mxu0 %v271
  %v1243 = vpop.f32.mrb[0].mxu0
  %v1244 = vadd.f32 %v192, %v1243
  %v1245 = vpop.f32.mrb[0].mxu0
  %v1246 = vadd.f32 %v196, %v1245
  %v1247 = vpop.f32.mrb[0].mxu0
  %v1248 = vadd.f32 %v192, %v1247
  %v1249 = vpop.f32.mrb[0].mxu0
  %v1250 = vadd.f32 %v196, %v1249
  %1251 = vmatprep.mubr.bf16.mxu0 %v274
  %1252 = vmatmul.mubr.bf16.gmra.mrb[0].mxu0 %v273
  %v1253 = vpop.f32.mrb[0].mxu0
  %v1254 = vadd.f32 %v192, %v1253
  %v1255 = vpop.f32.mrb[0].mxu0
  %v1256 = vadd.f32 %v196, %v1255
  %v1257 = vpop.f32.mrb[0].mxu0
  %v1258 = vadd.f32 %v192, %v1257
  %v1259 = vpop.f32.mrb[0].mxu0
  %v1260 = vadd.f32 %v196, %v1259
  %1261 = vmatprep.mubr.bf16.mxu0 %v276
  %1262 = vmatmul.mubr.bf16.gmra.mrb[0].mxu0 %v275
  %v1263 = vpop.f32.mrb[0].mxu0
  %v1264 = vadd.f32 %v192, %v1263
  %v1265 = vpop.f32.mrb[0].mxu0
  %v1266 = vadd.f32 %v196, %v1265
  %v1267 = vpop.f32.mrb[0].mxu0
  %v1268 = vadd.f32 %v192, %v1267
  %v1269 = vpop.f32.mrb[0].mxu0
  %v1270 = vadd.f32 %v196, %v1269
  %1271 = vdwg.mxu0
  %1272 = vmatprep.subr.bf16.mxu0 %v684
  %1273 = vmatpush1.bf16.msra.mxu0 %v683
  %1274 = vmatprep.subr.bf16.mxu0 %v692
  %1275 = vmatpush1.bf16.msra.mxu0 %v691
  %1276 = vmatprep.subr.bf16.mxu0 %v700
  %1277 = vmatpush1.bf16.msra.mxu0 %v699
  %1278 = vmatprep.subr.bf16.mxu0 %v708
  %1279 = vmatpush1.bf16.msra.mxu0 %v707
  %1280 = vmatprep.subr.bf16.mxu0 %v716
  %1281 = vmatpush1.bf16.msra.mxu0 %v715
  %1282 = vmatprep.subr.bf16.mxu0 %v724
  %1283 = vmatpush1.bf16.msra.mxu0 %v723
  %1284 = vmatprep.subr.bf16.mxu0 %v732
  %1285 = vmatpush1.bf16.msra.mxu0 %v731
  %1286 = vmatprep.subr.bf16.mxu0 %v740
  %1287 = vmatpush1.bf16.msra.mxu0 %v739
  %1288 = vmatprep.subr.bf16.mxu0 %v748
  %1289 = vmatpush1.bf16.msra.mxu0 %v747
  %1290 = vmatprep.subr.bf16.mxu0 %v756
  %1291 = vmatpush1.bf16.msra.mxu0 %v755
  %1292 = vmatprep.subr.bf16.mxu0 %v764
  %1293 = vmatpush1.bf16.msra.mxu0 %v763
  %1294 = vmatprep.subr.bf16.mxu0 %v772
  %1295 = vmatpush1.bf16.msra.mxu0 %v771
  %1296 = vmatprep.subr.bf16.mxu0 %v780
  %1297 = vmatpush1.bf16.msra.mxu0 %v779
  %1298 = vmatprep.subr.bf16.mxu0 %v788
  %1299 = vmatpush1.bf16.msra.mxu0 %v787
  %1300 = vmatprep.subr.bf16.mxu0 %v796
  %1301 = vmatpush1.bf16.msra.mxu0 %v795
  %1302 = vmatprep.subr.bf16.mxu0 %v804
  %1303 = vmatpush1.bf16.msra.mxu0 %v803
  %1304 = vmatprep.mubr.bf16.mxu0 %v262
  %1305 = vmatmul.mubr.bf16.gmra.mrb[0].mxu0 %v261
  %v1306 = vpop.f32.mrb[0].mxu0
  %v1307 = vadd.f32 %v200, %v1306
  %v1308 = vpop.f32.mrb[0].mxu0
  %v1309 = vadd.f32 %v204, %v1308
  %v1310 = vpop.f32.mrb[0].mxu0
  %v1311 = vadd.f32 %v200, %v1310
  %v1312 = vpop.f32.mrb[0].mxu0
  %v1313 = vadd.f32 %v204, %v1312
  %1314 = vmatprep.mubr.bf16.mxu0 %v264
  %1315 = vmatmul.mubr.bf16.gmra.mrb[0].mxu0 %v263
  %v1316 = vpop.f32.mrb[0].mxu0
  %v1317 = vadd.f32 %v200, %v1316
  %v1318 = vpop.f32.mrb[0].mxu0
  %v1319 = vadd.f32 %v204, %v1318
  %v1320 = vpop.f32.mrb[0].mxu0
  %v1321 = vadd.f32 %v200, %v1320
  %v1322 = vpop.f32.mrb[0].mxu0
  %v1323 = vadd.f32 %v204, %v1322
  %1324 = vmatprep.mubr.bf16.mxu0 %v266
  %1325 = vmatmul.mubr.bf16.gmra.mrb[0].mxu0 %v265
  %v1326 = vpop.f32.mrb[0].mxu0
  %v1327 = vadd.f32 %v200, %v1326
  %v1328 = vpop.f32.mrb[0].mxu0
  %v1329 = vadd.f32 %v204, %v1328
  %v1330 = vpop.f32.mrb[0].mxu0
  %v1331 = vadd.f32 %v200, %v1330
  %v1332 = vpop.f32.mrb[0].mxu0
  %v1333 = vadd.f32 %v204, %v1332
  %1334 = vmatprep.mubr.bf16.mxu0 %v268
  %1335 = vmatmul.mubr.bf16.gmra.mrb[0].mxu0 %v267
  %v1336 = vpop.f32.mrb[0].mxu0
  %v1337 = vadd.f32 %v200, %v1336
  %v1338 = vpop.f32.mrb[0].mxu0
  %v1339 = vadd.f32 %v204, %v1338
  %v1340 = vpop.f32.mrb[0].mxu0
  %v1341 = vadd.f32 %v200, %v1340
  %v1342 = vpop.f32.mrb[0].mxu0
  %v1343 = vadd.f32 %v204, %v1342
  %1344 = vmatprep.mubr.bf16.mxu0 %v270
  %1345 = vmatmul.mubr.bf16.gmra.mrb[0].mxu0 %v269
  %v1346 = vpop.f32.mrb[0].mxu0
  %v1347 = vadd.f32 %v200, %v1346
  %v1348 = vpop.f32.mrb[0].mxu0
  %v1349 = vadd.f32 %v204, %v1348
  %v1350 = vpop.f32.mrb[0].mxu0
  %v1351 = vadd.f32 %v200, %v1350
  %v1352 = vpop.f32.mrb[0].mxu0
  %v1353 = vadd.f32 %v204, %v1352
  %1354 = vmatprep.mubr.bf16.mxu0 %v272
  %1355 = vmatmul.mubr.bf16.gmra.mrb[0].mxu0 %v271
  %v1356 = vpop.f32.mrb[0].mxu0
  %v1357 = vadd.f32 %v200, %v1356
  %v1358 = vpop.f32.mrb[0].mxu0
  %v1359 = vadd.f32 %v204, %v1358
  %v1360 = vpop.f32.mrb[0].mxu0
  %v1361 = vadd.f32 %v200, %v1360
  %v1362 = vpop.f32.mrb[0].mxu0
  %v1363 = vadd.f32 %v204, %v1362
  %1364 = vmatprep.mubr.bf16.mxu0 %v274
  %1365 = vmatmul.mubr.bf16.gmra.mrb[0].mxu0 %v273
  %v1366 = vpop.f32.mrb[0].mxu0
  %v1367 = vadd.f32 %v200, %v1366
  %v1368 = vpop.f32.mrb[0].mxu0
  %v1369 = vadd.f32 %v204, %v1368
  %v1370 = vpop.f32.mrb[0].mxu0
  %v1371 = vadd.f32 %v200, %v1370
  %v1372 = vpop.f32.mrb[0].mxu0
  %v1373 = vadd.f32 %v204, %v1372
  %1374 = vmatprep.mubr.bf16.mxu0 %v276
  %1375 = vmatmul.mubr.bf16.gmra.mrb[0].mxu0 %v275
  %v1376 = vpop.f32.mrb[0].mxu0
  %v1377 = vadd.f32 %v200, %v1376
  %v1378 = vpop.f32.mrb[0].mxu0
  %v1379 = vadd.f32 %v204, %v1378
  %v1380 = vpop.f32.mrb[0].mxu0
  %v1381 = vadd.f32 %v200, %v1380
  %v1382 = vpop.f32.mrb[0].mxu0
  %v1383 = vadd.f32 %v204, %v1382
  %1384 = vdwg.mxu0
  %v1385 = vmax.f32 %v968, 0.0
  %v1386 = vmax.f32 %v970, 0.0
  %v1387 = vmax.f32 %v1081, 0.0
  %v1388 = vmax.f32 %v1083, 0.0
  %v1389 = vmax.f32 %v1194, 0.0
  %v1390 = vmax.f32 %v1196, 0.0
  %v1391 = vmax.f32 %v1307, 0.0
  %v1392 = vmax.f32 %v1309, 0.0
  %v1393 = vmax.f32 %v972, 0.0
  %v1394 = vmax.f32 %v974, 0.0
  %v1395 = vmax.f32 %v1085, 0.0
  %v1396 = vmax.f32 %v1087, 0.0
  %v1397 = vmax.f32 %v1198, 0.0
  %v1398 = vmax.f32 %v1200, 0.0
  %v1399 = vmax.f32 %v1311, 0.0
  %v1400 = vmax.f32 %v1313, 0.0
  %v1401 = vmax.f32 %v978, 0.0
  %v1402 = vmax.f32 %v980, 0.0
  %v1403 = vmax.f32 %v1091, 0.0
  %v1404 = vmax.f32 %v1093, 0.0
  %v1405 = vmax.f32 %v1204, 0.0
  %v1406 = vmax.f32 %v1206, 0.0
  %v1407 = vmax.f32 %v1317, 0.0
  %v1408 = vmax.f32 %v1319, 0.0
  %v1409 = vmax.f32 %v982, 0.0
  %v1410 = vmax.f32 %v984, 0.0
  %v1411 = vmax.f32 %v1095, 0.0
  %v1412 = vmax.f32 %v1097, 0.0
  %v1413 = vmax.f32 %v1208, 0.0
  %v1414 = vmax.f32 %v1210, 0.0
  %v1415 = vmax.f32 %v1321, 0.0
  %v1416 = vmax.f32 %v1323, 0.0
  %v1417 = vmax.f32 %v988, 0.0
  %v1418 = vmax.f32 %v990, 0.0
  %v1419 = vmax.f32 %v1101, 0.0
  %v1420 = vmax.f32 %v1103, 0.0
  %v1421 = vmax.f32 %v1214, 0.0
  %v1422 = vmax.f32 %v1216, 0.0
  %v1423 = vmax.f32 %v1327, 0.0
  %v1424 = vmax.f32 %v1329, 0.0
  %v1425 = vmax.f32 %v992, 0.0
  %v1426 = vmax.f32 %v994, 0.0
  %v1427 = vmax.f32 %v1105, 0.0
  %v1428 = vmax.f32 %v1107, 0.0
  %v1429 = vmax.f32 %v1218, 0.0
  %v1430 = vmax.f32 %v1220, 0.0
  %v1431 = vmax.f32 %v1331, 0.0
  %v1432 = vmax.f32 %v1333, 0.0
  %v1433 = vmax.f32 %v998, 0.0
  %v1434 = vmax.f32 %v1000, 0.0
  %v1435 = vmax.f32 %v1111, 0.0
  %v1436 = vmax.f32 %v1113, 0.0
  %v1437 = vmax.f32 %v1224, 0.0
  %v1438 = vmax.f32 %v1226, 0.0
  %v1439 = vmax.f32 %v1337, 0.0
  %v1440 = vmax.f32 %v1339, 0.0
  %v1441 = vmax.f32 %v1002, 0.0
  %v1442 = vmax.f32 %v1004, 0.0
  %v1443 = vmax.f32 %v1115, 0.0
  %v1444 = vmax.f32 %v1117, 0.0
  %v1445 = vmax.f32 %v1228, 0.0
  %v1446 = vmax.f32 %v1230, 0.0
  %v1447 = vmax.f32 %v1341, 0.0
  %v1448 = vmax.f32 %v1343, 0.0
  %v1449 = vmax.f32 %v1008, 0.0
  %v1450 = vmax.f32 %v1010, 0.0
  %v1451 = vmax.f32 %v1121, 0.0
  %v1452 = vmax.f32 %v1123, 0.0
  %v1453 = vmax.f32 %v1234, 0.0
  %v1454 = vmax.f32 %v1236, 0.0
  %v1455 = vmax.f32 %v1347, 0.0
  %v1456 = vmax.f32 %v1349, 0.0
  %v1457 = vmax.f32 %v1012, 0.0
  %v1458 = vmax.f32 %v1014, 0.0
  %v1459 = vmax.f32 %v1125, 0.0
  %v1460 = vmax.f32 %v1127, 0.0
  %v1461 = vmax.f32 %v1238, 0.0
  %v1462 = vmax.f32 %v1240, 0.0
  %v1463 = vmax.f32 %v1351, 0.0
  %v1464 = vmax.f32 %v1353, 0.0
  %v1465 = vmax.f32 %v1018, 0.0
  %v1466 = vmax.f32 %v1020, 0.0
  %v1467 = vmax.f32 %v1131, 0.0
  %v1468 = vmax.f32 %v1133, 0.0
  %v1469 = vmax.f32 %v1244, 0.0
  %v1470 = vmax.f32 %v1246, 0.0
  %v1471 = vmax.f32 %v1357, 0.0
  %v1472 = vmax.f32 %v1359, 0.0
  %v1473 = vmax.f32 %v1022, 0.0
  %v1474 = vmax.f32 %v1024, 0.0
  %v1475 = vmax.f32 %v1135, 0.0
  %v1476 = vmax.f32 %v1137, 0.0
  %v1477 = vmax.f32 %v1248, 0.0
  %v1478 = vmax.f32 %v1250, 0.0
  %v1479 = vmax.f32 %v1361, 0.0
  %v1480 = vmax.f32 %v1363, 0.0
  %v1481 = vmax.f32 %v1028, 0.0
  %v1482 = vmax.f32 %v1030, 0.0
  %v1483 = vmax.f32 %v1141, 0.0
  %v1484 = vmax.f32 %v1143, 0.0
  %v1485 = vmax.f32 %v1254, 0.0
  %v1486 = vmax.f32 %v1256, 0.0
  %v1487 = vmax.f32 %v1367, 0.0
  %v1488 = vmax.f32 %v1369, 0.0
  %v1489 = vmax.f32 %v1032, 0.0
  %v1490 = vmax.f32 %v1034, 0.0
  %v1491 = vmax.f32 %v1145, 0.0
  %v1492 = vmax.f32 %v1147, 0.0
  %v1493 = vmax.f32 %v1258, 0.0
  %v1494 = vmax.f32 %v1260, 0.0
  %v1495 = vmax.f32 %v1371, 0.0
  %v1496 = vmax.f32 %v1373, 0.0
  %v1497 = vmax.f32 %v1038, 0.0
  %v1498 = vmax.f32 %v1040, 0.0
  %v1499 = vmax.f32 %v1151, 0.0
  %v1500 = vmax.f32 %v1153, 0.0
  %v1501 = vmax.f32 %v1264, 0.0
  %v1502 = vmax.f32 %v1266, 0.0
  %v1503 = vmax.f32 %v1377, 0.0
  %v1504 = vmax.f32 %v1379, 0.0
  %v1505 = vmax.f32 %v1042, 0.0
  %v1506 = vmax.f32 %v1044, 0.0
  %v1507 = vmax.f32 %v1155, 0.0
  %v1508 = vmax.f32 %v1157, 0.0
  %v1509 = vmax.f32 %v1268, 0.0
  %v1510 = vmax.f32 %v1270, 0.0
  %v1511 = vmax.f32 %v1381, 0.0
  %v1512 = vmax.f32 %v1383, 0.0
  %v1513 = vpack.c.bf16 %v1393, %v1385
  %v1514 = vpack.c.bf16 %v1394, %v1386
  %v1515 = vpack.c.bf16 %v1395, %v1387
  %v1516 = vpack.c.bf16 %v1396, %v1388
  %v1517 = vpack.c.bf16 %v1397, %v1389
  %v1518 = vpack.c.bf16 %v1398, %v1390
  %v1519 = vpack.c.bf16 %v1399, %v1391
  %v1520 = vpack.c.bf16 %v1400, %v1392
  %v1521 = vpack.c.bf16 %v1409, %v1401
  %v1522 = vpack.c.bf16 %v1410, %v1402
  %v1523 = vpack.c.bf16 %v1411, %v1403
  %v1524 = vpack.c.bf16 %v1412, %v1404
  %v1525 = vpack.c.bf16 %v1413, %v1405
  %v1526 = vpack.c.bf16 %v1414, %v1406
  %v1527 = vpack.c.bf16 %v1415, %v1407
  %v1528 = vpack.c.bf16 %v1416, %v1408
  %v1529 = vpack.c.bf16 %v1425, %v1417
  %v1530 = vpack.c.bf16 %v1426, %v1418
  %v1531 = vpack.c.bf16 %v1427, %v1419
  %v1532 = vpack.c.bf16 %v1428, %v1420
  %v1533 = vpack.c.bf16 %v1429, %v1421
  %v1534 = vpack.c.bf16 %v1430, %v1422
  %v1535 = vpack.c.bf16 %v1431, %v1423
  %v1536 = vpack.c.bf16 %v1432, %v1424
  %v1537 = vpack.c.bf16 %v1441, %v1433
  %v1538 = vpack.c.bf16 %v1442, %v1434
  %v1539 = vpack.c.bf16 %v1443, %v1435
  %v1540 = vpack.c.bf16 %v1444, %v1436
  %v1541 = vpack.c.bf16 %v1445, %v1437
  %v1542 = vpack.c.bf16 %v1446, %v1438
  %v1543 = vpack.c.bf16 %v1447, %v1439
  %v1544 = vpack.c.bf16 %v1448, %v1440
  %v1545 = vpack.c.bf16 %v1457, %v1449
  %v1546 = vpack.c.bf16 %v1458, %v1450
  %v1547 = vpack.c.bf16 %v1459, %v1451
  %v1548 = vpack.c.bf16 %v1460, %v1452
  %v1549 = vpack.c.bf16 %v1461, %v1453
  %v1550 = vpack.c.bf16 %v1462, %v1454
  %v1551 = vpack.c.bf16 %v1463, %v1455
  %v1552 = vpack.c.bf16 %v1464, %v1456
  %v1553 = vpack.c.bf16 %v1473, %v1465
  %v1554 = vpack.c.bf16 %v1474, %v1466
  %v1555 = vpack.c.bf16 %v1475, %v1467
  %v1556 = vpack.c.bf16 %v1476, %v1468
  %v1557 = vpack.c.bf16 %v1477, %v1469
  %v1558 = vpack.c.bf16 %v1478, %v1470
  %v1559 = vpack.c.bf16 %v1479, %v1471
  %v1560 = vpack.c.bf16 %v1480, %v1472
  %v1561 = vpack.c.bf16 %v1489, %v1481
  %v1562 = vpack.c.bf16 %v1490, %v1482
  %v1563 = vpack.c.bf16 %v1491, %v1483
  %v1564 = vpack.c.bf16 %v1492, %v1484
  %v1565 = vpack.c.bf16 %v1493, %v1485
  %v1566 = vpack.c.bf16 %v1494, %v1486
  %v1567 = vpack.c.bf16 %v1495, %v1487
  %v1568 = vpack.c.bf16 %v1496, %v1488
  %v1569 = vpack.c.bf16 %v1505, %v1497
  %v1570 = vpack.c.bf16 %v1506, %v1498
  %v1571 = vpack.c.bf16 %v1507, %v1499
  %v1572 = vpack.c.bf16 %v1508, %v1500
  %v1573 = vpack.c.bf16 %v1509, %v1501
  %v1574 = vpack.c.bf16 %v1510, %v1502
  %v1575 = vpack.c.bf16 %v1511, %v1503
  %v1576 = vpack.c.bf16 %v1512, %v1504
  %v1577 = vld [vmem:[%s3] sm:$0xff]
  %v1578 = vld [vmem:[%s3 + $0x8] sm:$0xff]
  %v1579 = vld [vmem:[%s3 + $0x10] sm:$0xff]
  %v1580 = vld [vmem:[%s3 + $0x18] sm:$0xff]
  %v1581 = vld [vmem:[%s3 + $0x20] sm:$0xff]
  %v1582 = vld [vmem:[%s3 + $0x28] sm:$0xff]
  %v1583 = vld [vmem:[%s3 + $0x30] sm:$0xff]
  %v1584 = vld [vmem:[%s3 + $0x38] sm:$0xff]
  %v1585 = vld [vmem:[%s3 + $0x40] sm:$0xff]
  %v1586 = vld [vmem:[%s3 + $0x48] sm:$0xff]
  %v1587 = vld [vmem:[%s3 + $0x50] sm:$0xff]
  %v1588 = vld [vmem:[%s3 + $0x58] sm:$0xff]
  %v1589 = vld [vmem:[%s3 + $0x60] sm:$0xff]
  %v1590 = vld [vmem:[%s3 + $0x68] sm:$0xff]
  %v1591 = vld [vmem:[%s3 + $0x70] sm:$0xff]
  %v1592 = vld [vmem:[%s3 + $0x78] sm:$0xff]
  %v1593 = vld [vmem:[%s3 + $0x80] sm:$0xff]
  %v1594 = vld [vmem:[%s3 + $0x88] sm:$0xff]
  %v1595 = vld [vmem:[%s3 + $0x90] sm:$0xff]
  %v1596 = vld [vmem:[%s3 + $0x98] sm:$0xff]
  %v1597 = vld [vmem:[%s3 + $0xa0] sm:$0xff]
  %v1598 = vld [vmem:[%s3 + $0xa8] sm:$0xff]
  %v1599 = vld [vmem:[%s3 + $0xb0] sm:$0xff]
  %v1600 = vld [vmem:[%s3 + $0xb8] sm:$0xff]
  %v1601 = vld [vmem:[%s3 + $0xc0] sm:$0xff]
  %v1602 = vld [vmem:[%s3 + $0xc8] sm:$0xff]
  %v1603 = vld [vmem:[%s3 + $0xd0] sm:$0xff]
  %v1604 = vld [vmem:[%s3 + $0xd8] sm:$0xff]
  %v1605 = vld [vmem:[%s3 + $0xe0] sm:$0xff]
  %v1606 = vld [vmem:[%s3 + $0xe8] sm:$0xff]
  %v1607 = vld [vmem:[%s3 + $0xf0] sm:$0xff]
  %v1608 = vld [vmem:[%s3 + $0xf8] sm:$0xff]
  %v1609 = vld [vmem:[%s3 + $0x100] sm:$0xff]
  %v1610 = vld [vmem:[%s3 + $0x108] sm:$0xff]
  %v1611 = vld [vmem:[%s3 + $0x110] sm:$0xff]
  %v1612 = vld [vmem:[%s3 + $0x118] sm:$0xff]
  %v1613 = vld [vmem:[%s3 + $0x120] sm:$0xff]
  %v1614 = vld [vmem:[%s3 + $0x128] sm:$0xff]
  %v1615 = vld [vmem:[%s3 + $0x130] sm:$0xff]
  %v1616 = vld [vmem:[%s3 + $0x138] sm:$0xff]
  %v1617 = vld [vmem:[%s3 + $0x140] sm:$0xff]
  %v1618 = vld [vmem:[%s3 + $0x148] sm:$0xff]
  %v1619 = vld [vmem:[%s3 + $0x150] sm:$0xff]
  %v1620 = vld [vmem:[%s3 + $0x158] sm:$0xff]
  %v1621 = vld [vmem:[%s3 + $0x160] sm:$0xff]
  %v1622 = vld [vmem:[%s3 + $0x168] sm:$0xff]
  %v1623 = vld [vmem:[%s3 + $0x170] sm:$0xff]
  %v1624 = vld [vmem:[%s3 + $0x178] sm:$0xff]
  %v1625 = vld [vmem:[%s3 + $0x180] sm:$0xff]
  %v1626 = vld [vmem:[%s3 + $0x188] sm:$0xff]
  %v1627 = vld [vmem:[%s3 + $0x190] sm:$0xff]
  %v1628 = vld [vmem:[%s3 + $0x198] sm:$0xff]
  %v1629 = vld [vmem:[%s3 + $0x1a0] sm:$0xff]
  %v1630 = vld [vmem:[%s3 + $0x1a8] sm:$0xff]
  %v1631 = vld [vmem:[%s3 + $0x1b0] sm:$0xff]
  %v1632 = vld [vmem:[%s3 + $0x1b8] sm:$0xff]
  %v1633 = vld [vmem:[%s3 + $0x1c0] sm:$0xff]
  %v1634 = vld [vmem:[%s3 + $0x1c8] sm:$0xff]
  %v1635 = vld [vmem:[%s3 + $0x1d0] sm:$0xff]
  %v1636 = vld [vmem:[%s3 + $0x1d8] sm:$0xff]
  %v1637 = vld [vmem:[%s3 + $0x1e0] sm:$0xff]
  %v1638 = vld [vmem:[%s3 + $0x1e8] sm:$0xff]
  %v1639 = vld [vmem:[%s3 + $0x1f0] sm:$0xff]
  %v1640 = vld [vmem:[%s3 + $0x1f8] sm:$0xff]
  %v1641 = vld [vmem:[%s3 + $0x200] sm:$0xff]
  %v1642 = vld [vmem:[%s3 + $0x208] sm:$0xff]
  %v1643 = vld [vmem:[%s3 + $0x210] sm:$0xff]
  %v1644 = vld [vmem:[%s3 + $0x218] sm:$0xff]
  %v1645 = vld [vmem:[%s3 + $0x220] sm:$0xff]
  %v1646 = vld [vmem:[%s3 + $0x228] sm:$0xff]
  %v1647 = vld [vmem:[%s3 + $0x230] sm:$0xff]
  %v1648 = vld [vmem:[%s3 + $0x238] sm:$0xff]
  %v1649 = vld [vmem:[%s3 + $0x240] sm:$0xff]
  %v1650 = vld [vmem:[%s3 + $0x248] sm:$0xff]
  %v1651 = vld [vmem:[%s3 + $0x250] sm:$0xff]
  %v1652 = vld [vmem:[%s3 + $0x258] sm:$0xff]
  %v1653 = vld [vmem:[%s3 + $0x260] sm:$0xff]
  %v1654 = vld [vmem:[%s3 + $0x268] sm:$0xff]
  %v1655 = vld [vmem:[%s3 + $0x270] sm:$0xff]
  %v1656 = vld [vmem:[%s3 + $0x278] sm:$0xff]
  %v1657 = vld [vmem:[%s3 + $0x280] sm:$0xff]
  %v1658 = vld [vmem:[%s3 + $0x288] sm:$0xff]
  %v1659 = vld [vmem:[%s3 + $0x290] sm:$0xff]
  %v1660 = vld [vmem:[%s3 + $0x298] sm:$0xff]
  %v1661 = vld [vmem:[%s3 + $0x2a0] sm:$0xff]
  %v1662 = vld [vmem:[%s3 + $0x2a8] sm:$0xff]
  %v1663 = vld [vmem:[%s3 + $0x2b0] sm:$0xff]
  %v1664 = vld [vmem:[%s3 + $0x2b8] sm:$0xff]
  %v1665 = vld [vmem:[%s3 + $0x2c0] sm:$0xff]
  %v1666 = vld [vmem:[%s3 + $0x2c8] sm:$0xff]
  %v1667 = vld [vmem:[%s3 + $0x2d0] sm:$0xff]
  %v1668 = vld [vmem:[%s3 + $0x2d8] sm:$0xff]
  %v1669 = vld [vmem:[%s3 + $0x2e0] sm:$0xff]
  %v1670 = vld [vmem:[%s3 + $0x2e8] sm:$0xff]
  %v1671 = vld [vmem:[%s3 + $0x2f0] sm:$0xff]
  %v1672 = vld [vmem:[%s3 + $0x2f8] sm:$0xff]
  %v1673 = vld [vmem:[%s3 + $0x300] sm:$0xff]
  %v1674 = vld [vmem:[%s3 + $0x308] sm:$0xff]
  %v1675 = vld [vmem:[%s3 + $0x310] sm:$0xff]
  %v1676 = vld [vmem:[%s3 + $0x318] sm:$0xff]
  %v1677 = vld [vmem:[%s3 + $0x320] sm:$0xff]
  %v1678 = vld [vmem:[%s3 + $0x328] sm:$0xff]
  %v1679 = vld [vmem:[%s3 + $0x330] sm:$0xff]
  %v1680 = vld [vmem:[%s3 + $0x338] sm:$0xff]
  %v1681 = vld [vmem:[%s3 + $0x340] sm:$0xff]
  %v1682 = vld [vmem:[%s3 + $0x348] sm:$0xff]
  %v1683 = vld [vmem:[%s3 + $0x350] sm:$0xff]
  %v1684 = vld [vmem:[%s3 + $0x358] sm:$0xff]
  %v1685 = vld [vmem:[%s3 + $0x360] sm:$0xff]
  %v1686 = vld [vmem:[%s3 + $0x368] sm:$0xff]
  %v1687 = vld [vmem:[%s3 + $0x370] sm:$0xff]
  %v1688 = vld [vmem:[%s3 + $0x378] sm:$0xff]
  %v1689 = vld [vmem:[%s3 + $0x380] sm:$0xff]
  %v1690 = vld [vmem:[%s3 + $0x388] sm:$0xff]
  %v1691 = vld [vmem:[%s3 + $0x390] sm:$0xff]
  %v1692 = vld [vmem:[%s3 + $0x398] sm:$0xff]
  %v1693 = vld [vmem:[%s3 + $0x3a0] sm:$0xff]
  %v1694 = vld [vmem:[%s3 + $0x3a8] sm:$0xff]
  %v1695 = vld [vmem:[%s3 + $0x3b0] sm:$0xff]
  %v1696 = vld [vmem:[%s3 + $0x3b8] sm:$0xff]
  %v1697 = vld [vmem:[%s3 + $0x3c0] sm:$0xff]
  %v1698 = vld [vmem:[%s3 + $0x3c8] sm:$0xff]
  %v1699 = vld [vmem:[%s3 + $0x3d0] sm:$0xff]
  %v1700 = vld [vmem:[%s3 + $0x3d8] sm:$0xff]
  %v1701 = vld [vmem:[%s3 + $0x3e0] sm:$0xff]
  %v1702 = vld [vmem:[%s3 + $0x3e8] sm:$0xff]
  %v1703 = vld [vmem:[%s3 + $0x3f0] sm:$0xff]
  %v1704 = vld [vmem:[%s3 + $0x3f8] sm:$0xff]
  %v1705 = vld [vmem:[%s3 + $0x400] sm:$0xff]
  %v1706 = vld [vmem:[%s3 + $0x408] sm:$0xff]
  %v1707 = vld [vmem:[%s3 + $0x410] sm:$0xff]
  %v1708 = vld [vmem:[%s3 + $0x418] sm:$0xff]
  %v1709 = vld [vmem:[%s3 + $0x420] sm:$0xff]
  %v1710 = vld [vmem:[%s3 + $0x428] sm:$0xff]
  %v1711 = vld [vmem:[%s3 + $0x430] sm:$0xff]
  %v1712 = vld [vmem:[%s3 + $0x438] sm:$0xff]
  %v1713 = vld [vmem:[%s3 + $0x440] sm:$0xff]
  %v1714 = vld [vmem:[%s3 + $0x448] sm:$0xff]
  %v1715 = vld [vmem:[%s3 + $0x450] sm:$0xff]
  %v1716 = vld [vmem:[%s3 + $0x458] sm:$0xff]
  %v1717 = vld [vmem:[%s3 + $0x460] sm:$0xff]
  %v1718 = vld [vmem:[%s3 + $0x468] sm:$0xff]
  %v1719 = vld [vmem:[%s3 + $0x470] sm:$0xff]
  %v1720 = vld [vmem:[%s3 + $0x478] sm:$0xff]
  %v1721 = vld [vmem:[%s3 + $0x480] sm:$0xff]
  %v1722 = vld [vmem:[%s3 + $0x488] sm:$0xff]
  %v1723 = vld [vmem:[%s3 + $0x490] sm:$0xff]
  %v1724 = vld [vmem:[%s3 + $0x498] sm:$0xff]
  %v1725 = vld [vmem:[%s3 + $0x4a0] sm:$0xff]
  %v1726 = vld [vmem:[%s3 + $0x4a8] sm:$0xff]
  %v1727 = vld [vmem:[%s3 + $0x4b0] sm:$0xff]
  %v1728 = vld [vmem:[%s3 + $0x4b8] sm:$0xff]
  %v1729 = vld [vmem:[%s3 + $0x4c0] sm:$0xff]
  %v1730 = vld [vmem:[%s3 + $0x4c8] sm:$0xff]
  %v1731 = vld [vmem:[%s3 + $0x4d0] sm:$0xff]
  %v1732 = vld [vmem:[%s3 + $0x4d8] sm:$0xff]
  %v1733 = vld [vmem:[%s3 + $0x4e0] sm:$0xff]
  %v1734 = vld [vmem:[%s3 + $0x4e8] sm:$0xff]
  %v1735 = vld [vmem:[%s3 + $0x4f0] sm:$0xff]
  %v1736 = vld [vmem:[%s3 + $0x4f8] sm:$0xff]
  %v1737 = vld [vmem:[%s3 + $0x500] sm:$0xff]
  %v1738 = vld [vmem:[%s3 + $0x508] sm:$0xff]
  %v1739 = vld [vmem:[%s3 + $0x510] sm:$0xff]
  %v1740 = vld [vmem:[%s3 + $0x518] sm:$0xff]
  %v1741 = vld [vmem:[%s3 + $0x520] sm:$0xff]
  %v1742 = vld [vmem:[%s3 + $0x528] sm:$0xff]
  %v1743 = vld [vmem:[%s3 + $0x530] sm:$0xff]
  %v1744 = vld [vmem:[%s3 + $0x538] sm:$0xff]
  %v1745 = vld [vmem:[%s3 + $0x540] sm:$0xff]
  %v1746 = vld [vmem:[%s3 + $0x548] sm:$0xff]
  %v1747 = vld [vmem:[%s3 + $0x550] sm:$0xff]
  %v1748 = vld [vmem:[%s3 + $0x558] sm:$0xff]
  %v1749 = vld [vmem:[%s3 + $0x560] sm:$0xff]
  %v1750 = vld [vmem:[%s3 + $0x568] sm:$0xff]
  %v1751 = vld [vmem:[%s3 + $0x570] sm:$0xff]
  %v1752 = vld [vmem:[%s3 + $0x578] sm:$0xff]
  %v1753 = vld [vmem:[%s3 + $0x580] sm:$0xff]
  %v1754 = vld [vmem:[%s3 + $0x588] sm:$0xff]
  %v1755 = vld [vmem:[%s3 + $0x590] sm:$0xff]
  %v1756 = vld [vmem:[%s3 + $0x598] sm:$0xff]
  %v1757 = vld [vmem:[%s3 + $0x5a0] sm:$0xff]
  %v1758 = vld [vmem:[%s3 + $0x5a8] sm:$0xff]
  %v1759 = vld [vmem:[%s3 + $0x5b0] sm:$0xff]
  %v1760 = vld [vmem:[%s3 + $0x5b8] sm:$0xff]
  %v1761 = vld [vmem:[%s3 + $0x5c0] sm:$0xff]
  %v1762 = vld [vmem:[%s3 + $0x5c8] sm:$0xff]
  %v1763 = vld [vmem:[%s3 + $0x5d0] sm:$0xff]
  %v1764 = vld [vmem:[%s3 + $0x5d8] sm:$0xff]
  %v1765 = vld [vmem:[%s3 + $0x5e0] sm:$0xff]
  %v1766 = vld [vmem:[%s3 + $0x5e8] sm:$0xff]
  %v1767 = vld [vmem:[%s3 + $0x5f0] sm:$0xff]
  %v1768 = vld [vmem:[%s3 + $0x5f8] sm:$0xff]
  %v1769 = vld [vmem:[%s3 + $0x600] sm:$0xff]
  %v1770 = vld [vmem:[%s3 + $0x608] sm:$0xff]
  %v1771 = vld [vmem:[%s3 + $0x610] sm:$0xff]
  %v1772 = vld [vmem:[%s3 + $0x618] sm:$0xff]
  %v1773 = vld [vmem:[%s3 + $0x620] sm:$0xff]
  %v1774 = vld [vmem:[%s3 + $0x628] sm:$0xff]
  %v1775 = vld [vmem:[%s3 + $0x630] sm:$0xff]
  %v1776 = vld [vmem:[%s3 + $0x638] sm:$0xff]
  %v1777 = vld [vmem:[%s3 + $0x640] sm:$0xff]
  %v1778 = vld [vmem:[%s3 + $0x648] sm:$0xff]
  %v1779 = vld [vmem:[%s3 + $0x650] sm:$0xff]
  %v1780 = vld [vmem:[%s3 + $0x658] sm:$0xff]
  %v1781 = vld [vmem:[%s3 + $0x660] sm:$0xff]
  %v1782 = vld [vmem:[%s3 + $0x668] sm:$0xff]
  %v1783 = vld [vmem:[%s3 + $0x670] sm:$0xff]
  %v1784 = vld [vmem:[%s3 + $0x678] sm:$0xff]
  %v1785 = vld [vmem:[%s3 + $0x680] sm:$0xff]
  %v1786 = vld [vmem:[%s3 + $0x688] sm:$0xff]
  %v1787 = vld [vmem:[%s3 + $0x690] sm:$0xff]
  %v1788 = vld [vmem:[%s3 + $0x698] sm:$0xff]
  %v1789 = vld [vmem:[%s3 + $0x6a0] sm:$0xff]
  %v1790 = vld [vmem:[%s3 + $0x6a8] sm:$0xff]
  %v1791 = vld [vmem:[%s3 + $0x6b0] sm:$0xff]
  %v1792 = vld [vmem:[%s3 + $0x6b8] sm:$0xff]
  %v1793 = vld [vmem:[%s3 + $0x6c0] sm:$0xff]
  %v1794 = vld [vmem:[%s3 + $0x6c8] sm:$0xff]
  %v1795 = vld [vmem:[%s3 + $0x6d0] sm:$0xff]
  %v1796 = vld [vmem:[%s3 + $0x6d8] sm:$0xff]
  %v1797 = vld [vmem:[%s3 + $0x6e0] sm:$0xff]
  %v1798 = vld [vmem:[%s3 + $0x6e8] sm:$0xff]
  %v1799 = vld [vmem:[%s3 + $0x6f0] sm:$0xff]
  %v1800 = vld [vmem:[%s3 + $0x6f8] sm:$0xff]
  %v1801 = vld [vmem:[%s3 + $0x700] sm:$0xff]
  %v1802 = vld [vmem:[%s3 + $0x708] sm:$0xff]
  %v1803 = vld [vmem:[%s3 + $0x710] sm:$0xff]
  %v1804 = vld [vmem:[%s3 + $0x718] sm:$0xff]
  %v1805 = vld [vmem:[%s3 + $0x720] sm:$0xff]
  %v1806 = vld [vmem:[%s3 + $0x728] sm:$0xff]
  %v1807 = vld [vmem:[%s3 + $0x730] sm:$0xff]
  %v1808 = vld [vmem:[%s3 + $0x738] sm:$0xff]
  %v1809 = vld [vmem:[%s3 + $0x740] sm:$0xff]
  %v1810 = vld [vmem:[%s3 + $0x748] sm:$0xff]
  %v1811 = vld [vmem:[%s3 + $0x750] sm:$0xff]
  %v1812 = vld [vmem:[%s3 + $0x758] sm:$0xff]
  %v1813 = vld [vmem:[%s3 + $0x760] sm:$0xff]
  %v1814 = vld [vmem:[%s3 + $0x768] sm:$0xff]
  %v1815 = vld [vmem:[%s3 + $0x770] sm:$0xff]
  %v1816 = vld [vmem:[%s3 + $0x778] sm:$0xff]
  %v1817 = vld [vmem:[%s3 + $0x780] sm:$0xff]
  %v1818 = vld [vmem:[%s3 + $0x788] sm:$0xff]
  %v1819 = vld [vmem:[%s3 + $0x790] sm:$0xff]
  %v1820 = vld [vmem:[%s3 + $0x798] sm:$0xff]
  %v1821 = vld [vmem:[%s3 + $0x7a0] sm:$0xff]
  %v1822 = vld [vmem:[%s3 + $0x7a8] sm:$0xff]
  %v1823 = vld [vmem:[%s3 + $0x7b0] sm:$0xff]
  %v1824 = vld [vmem:[%s3 + $0x7b8] sm:$0xff]
  %v1825 = vld [vmem:[%s3 + $0x7c0] sm:$0xff]
  %v1826 = vld [vmem:[%s3 + $0x7c8] sm:$0xff]
  %v1827 = vld [vmem:[%s3 + $0x7d0] sm:$0xff]
  %v1828 = vld [vmem:[%s3 + $0x7d8] sm:$0xff]
  %v1829 = vld [vmem:[%s3 + $0x7e0] sm:$0xff]
  %v1830 = vld [vmem:[%s3 + $0x7e8] sm:$0xff]
  %v1831 = vld [vmem:[%s3 + $0x7f0] sm:$0xff]
  %v1832 = vld [vmem:[%s3 + $0x7f8] sm:$0xff]
  %v1833 = vld [vmem:[%s3 + $0x800] sm:$0xff]
  %v1834 = vld [vmem:[%s3 + $0x808] sm:$0xff]
  %v1835 = vld [vmem:[%s3 + $0x810] sm:$0xff]
  %v1836 = vld [vmem:[%s3 + $0x818] sm:$0xff]
  %v1837 = vld [vmem:[%s3 + $0x820] sm:$0xff]
  %v1838 = vld [vmem:[%s3 + $0x828] sm:$0xff]
  %v1839 = vld [vmem:[%s3 + $0x830] sm:$0xff]
  %v1840 = vld [vmem:[%s3 + $0x838] sm:$0xff]
  %v1841 = vld [vmem:[%s3 + $0x840] sm:$0xff]
  %v1842 = vld [vmem:[%s3 + $0x848] sm:$0xff]
  %v1843 = vld [vmem:[%s3 + $0x850] sm:$0xff]
  %v1844 = vld [vmem:[%s3 + $0x858] sm:$0xff]
  %v1845 = vld [vmem:[%s3 + $0x860] sm:$0xff]
  %v1846 = vld [vmem:[%s3 + $0x868] sm:$0xff]
  %v1847 = vld [vmem:[%s3 + $0x870] sm:$0xff]
  %v1848 = vld [vmem:[%s3 + $0x878] sm:$0xff]
  %v1849 = vld [vmem:[%s3 + $0x880] sm:$0xff]
  %v1850 = vld [vmem:[%s3 + $0x888] sm:$0xff]
  %v1851 = vld [vmem:[%s3 + $0x890] sm:$0xff]
  %v1852 = vld [vmem:[%s3 + $0x898] sm:$0xff]
  %v1853 = vld [vmem:[%s3 + $0x8a0] sm:$0xff]
  %v1854 = vld [vmem:[%s3 + $0x8a8] sm:$0xff]
  %v1855 = vld [vmem:[%s3 + $0x8b0] sm:$0xff]
  %v1856 = vld [vmem:[%s3 + $0x8b8] sm:$0xff]
  %v1857 = vld [vmem:[%s3 + $0x8c0] sm:$0xff]
  %v1858 = vld [vmem:[%s3 + $0x8c8] sm:$0xff]
  %v1859 = vld [vmem:[%s3 + $0x8d0] sm:$0xff]
  %v1860 = vld [vmem:[%s3 + $0x8d8] sm:$0xff]
  %v1861 = vld [vmem:[%s3 + $0x8e0] sm:$0xff]
  %v1862 = vld [vmem:[%s3 + $0x8e8] sm:$0xff]
  %v1863 = vld [vmem:[%s3 + $0x8f0] sm:$0xff]
  %v1864 = vld [vmem:[%s3 + $0x8f8] sm:$0xff]
  %v1865 = vld [vmem:[%s3 + $0x900] sm:$0xff]
  %v1866 = vld [vmem:[%s3 + $0x908] sm:$0xff]
  %v1867 = vld [vmem:[%s3 + $0x910] sm:$0xff]
  %v1868 = vld [vmem:[%s3 + $0x918] sm:$0xff]
  %v1869 = vld [vmem:[%s3 + $0x920] sm:$0xff]
  %v1870 = vld [vmem:[%s3 + $0x928] sm:$0xff]
  %v1871 = vld [vmem:[%s3 + $0x930] sm:$0xff]
  %v1872 = vld [vmem:[%s3 + $0x938] sm:$0xff]
  %v1873 = vld [vmem:[%s3 + $0x940] sm:$0xff]
  %v1874 = vld [vmem:[%s3 + $0x948] sm:$0xff]
  %v1875 = vld [vmem:[%s3 + $0x950] sm:$0xff]
  %v1876 = vld [vmem:[%s3 + $0x958] sm:$0xff]
  %v1877 = vld [vmem:[%s3 + $0x960] sm:$0xff]
  %v1878 = vld [vmem:[%s3 + $0x968] sm:$0xff]
  %v1879 = vld [vmem:[%s3 + $0x970] sm:$0xff]
  %v1880 = vld [vmem:[%s3 + $0x978] sm:$0xff]
  %v1881 = vld [vmem:[%s3 + $0x980] sm:$0xff]
  %v1882 = vld [vmem:[%s3 + $0x988] sm:$0xff]
  %v1883 = vld [vmem:[%s3 + $0x990] sm:$0xff]
  %v1884 = vld [vmem:[%s3 + $0x998] sm:$0xff]
  %v1885 = vld [vmem:[%s3 + $0x9a0] sm:$0xff]
  %v1886 = vld [vmem:[%s3 + $0x9a8] sm:$0xff]
  %v1887 = vld [vmem:[%s3 + $0x9b0] sm:$0xff]
  %v1888 = vld [vmem:[%s3 + $0x9b8] sm:$0xff]
  %v1889 = vld [vmem:[%s3 + $0x9c0] sm:$0xff]
  %v1890 = vld [vmem:[%s3 + $0x9c8] sm:$0xff]
  %v1891 = vld [vmem:[%s3 + $0x9d0] sm:$0xff]
  %v1892 = vld [vmem:[%s3 + $0x9d8] sm:$0xff]
  %v1893 = vld [vmem:[%s3 + $0x9e0] sm:$0xff]
  %v1894 = vld [vmem:[%s3 + $0x9e8] sm:$0xff]
  %v1895 = vld [vmem:[%s3 + $0x9f0] sm:$0xff]
  %v1896 = vld [vmem:[%s3 + $0x9f8] sm:$0xff]
  %v1897 = vld [vmem:[%s3 + $0xa00] sm:$0xff]
  %v1898 = vld [vmem:[%s3 + $0xa08] sm:$0xff]
  %v1899 = vld [vmem:[%s3 + $0xa10] sm:$0xff]
  %v1900 = vld [vmem:[%s3 + $0xa18] sm:$0xff]
  %v1901 = vld [vmem:[%s3 + $0xa20] sm:$0xff]
  %v1902 = vld [vmem:[%s3 + $0xa28] sm:$0xff]
  %v1903 = vld [vmem:[%s3 + $0xa30] sm:$0xff]
  %v1904 = vld [vmem:[%s3 + $0xa38] sm:$0xff]
  %v1905 = vld [vmem:[%s3 + $0xa40] sm:$0xff]
  %v1906 = vld [vmem:[%s3 + $0xa48] sm:$0xff]
  %v1907 = vld [vmem:[%s3 + $0xa50] sm:$0xff]
  %v1908 = vld [vmem:[%s3 + $0xa58] sm:$0xff]
  %v1909 = vld [vmem:[%s3 + $0xa60] sm:$0xff]
  %v1910 = vld [vmem:[%s3 + $0xa68] sm:$0xff]
  %v1911 = vld [vmem:[%s3 + $0xa70] sm:$0xff]
  %v1912 = vld [vmem:[%s3 + $0xa78] sm:$0xff]
  %v1913 = vld [vmem:[%s3 + $0xa80] sm:$0xff]
  %v1914 = vld [vmem:[%s3 + $0xa88] sm:$0xff]
  %v1915 = vld [vmem:[%s3 + $0xa90] sm:$0xff]
  %v1916 = vld [vmem:[%s3 + $0xa98] sm:$0xff]
  %v1917 = vld [vmem:[%s3 + $0xaa0] sm:$0xff]
  %v1918 = vld [vmem:[%s3 + $0xaa8] sm:$0xff]
  %v1919 = vld [vmem:[%s3 + $0xab0] sm:$0xff]
  %v1920 = vld [vmem:[%s3 + $0xab8] sm:$0xff]
  %v1921 = vld [vmem:[%s3 + $0xac0] sm:$0xff]
  %v1922 = vld [vmem:[%s3 + $0xac8] sm:$0xff]
  %v1923 = vld [vmem:[%s3 + $0xad0] sm:$0xff]
  %v1924 = vld [vmem:[%s3 + $0xad8] sm:$0xff]
  %v1925 = vld [vmem:[%s3 + $0xae0] sm:$0xff]
  %v1926 = vld [vmem:[%s3 + $0xae8] sm:$0xff]
  %v1927 = vld [vmem:[%s3 + $0xaf0] sm:$0xff]
  %v1928 = vld [vmem:[%s3 + $0xaf8] sm:$0xff]
  %v1929 = vld [vmem:[%s3 + $0xb00] sm:$0xff]
  %v1930 = vld [vmem:[%s3 + $0xb08] sm:$0xff]
  %v1931 = vld [vmem:[%s3 + $0xb10] sm:$0xff]
  %v1932 = vld [vmem:[%s3 + $0xb18] sm:$0xff]
  %v1933 = vld [vmem:[%s3 + $0xb20] sm:$0xff]
  %v1934 = vld [vmem:[%s3 + $0xb28] sm:$0xff]
  %v1935 = vld [vmem:[%s3 + $0xb30] sm:$0xff]
  %v1936 = vld [vmem:[%s3 + $0xb38] sm:$0xff]
  %v1937 = vld [vmem:[%s3 + $0xb40] sm:$0xff]
  %v1938 = vld [vmem:[%s3 + $0xb48] sm:$0xff]
  %v1939 = vld [vmem:[%s3 + $0xb50] sm:$0xff]
  %v1940 = vld [vmem:[%s3 + $0xb58] sm:$0xff]
  %v1941 = vld [vmem:[%s3 + $0xb60] sm:$0xff]
  %v1942 = vld [vmem:[%s3 + $0xb68] sm:$0xff]
  %v1943 = vld [vmem:[%s3 + $0xb70] sm:$0xff]
  %v1944 = vld [vmem:[%s3 + $0xb78] sm:$0xff]
  %v1945 = vld [vmem:[%s3 + $0xb80] sm:$0xff]
  %v1946 = vld [vmem:[%s3 + $0xb88] sm:$0xff]
  %v1947 = vld [vmem:[%s3 + $0xb90] sm:$0xff]
  %v1948 = vld [vmem:[%s3 + $0xb98] sm:$0xff]
  %v1949 = vld [vmem:[%s3 + $0xba0] sm:$0xff]
  %v1950 = vld [vmem:[%s3 + $0xba8] sm:$0xff]
  %v1951 = vld [vmem:[%s3 + $0xbb0] sm:$0xff]
  %v1952 = vld [vmem:[%s3 + $0xbb8] sm:$0xff]
  %v1953 = vld [vmem:[%s3 + $0xbc0] sm:$0xff]
  %v1954 = vld [vmem:[%s3 + $0xbc8] sm:$0xff]
  %v1955 = vld [vmem:[%s3 + $0xbd0] sm:$0xff]
  %v1956 = vld [vmem:[%s3 + $0xbd8] sm:$0xff]
  %v1957 = vld [vmem:[%s3 + $0xbe0] sm:$0xff]
  %v1958 = vld [vmem:[%s3 + $0xbe8] sm:$0xff]
  %v1959 = vld [vmem:[%s3 + $0xbf0] sm:$0xff]
  %v1960 = vld [vmem:[%s3 + $0xbf8] sm:$0xff]
  %v1961 = vld [vmem:[%s3 + $0xc00] sm:$0xff]
  %v1962 = vld [vmem:[%s3 + $0xc08] sm:$0xff]
  %v1963 = vld [vmem:[%s3 + $0xc10] sm:$0xff]
  %v1964 = vld [vmem:[%s3 + $0xc18] sm:$0xff]
  %v1965 = vld [vmem:[%s3 + $0xc20] sm:$0xff]
  %v1966 = vld [vmem:[%s3 + $0xc28] sm:$0xff]
  %v1967 = vld [vmem:[%s3 + $0xc30] sm:$0xff]
  %v1968 = vld [vmem:[%s3 + $0xc38] sm:$0xff]
  %v1969 = vld [vmem:[%s3 + $0xc40] sm:$0xff]
  %v1970 = vld [vmem:[%s3 + $0xc48] sm:$0xff]
  %v1971 = vld [vmem:[%s3 + $0xc50] sm:$0xff]
  %v1972 = vld [vmem:[%s3 + $0xc58] sm:$0xff]
  %v1973 = vld [vmem:[%s3 + $0xc60] sm:$0xff]
  %v1974 = vld [vmem:[%s3 + $0xc68] sm:$0xff]
  %v1975 = vld [vmem:[%s3 + $0xc70] sm:$0xff]
  %v1976 = vld [vmem:[%s3 + $0xc78] sm:$0xff]
  %v1977 = vld [vmem:[%s3 + $0xc80] sm:$0xff]
  %v1978 = vld [vmem:[%s3 + $0xc88] sm:$0xff]
  %v1979 = vld [vmem:[%s3 + $0xc90] sm:$0xff]
  %v1980 = vld [vmem:[%s3 + $0xc98] sm:$0xff]
  %v1981 = vld [vmem:[%s3 + $0xca0] sm:$0xff]
  %v1982 = vld [vmem:[%s3 + $0xca8] sm:$0xff]
  %v1983 = vld [vmem:[%s3 + $0xcb0] sm:$0xff]
  %v1984 = vld [vmem:[%s3 + $0xcb8] sm:$0xff]
  %v1985 = vld [vmem:[%s3 + $0xcc0] sm:$0xff]
  %v1986 = vld [vmem:[%s3 + $0xcc8] sm:$0xff]
  %v1987 = vld [vmem:[%s3 + $0xcd0] sm:$0xff]
  %v1988 = vld [vmem:[%s3 + $0xcd8] sm:$0xff]
  %v1989 = vld [vmem:[%s3 + $0xce0] sm:$0xff]
  %v1990 = vld [vmem:[%s3 + $0xce8] sm:$0xff]
  %v1991 = vld [vmem:[%s3 + $0xcf0] sm:$0xff]
  %v1992 = vld [vmem:[%s3 + $0xcf8] sm:$0xff]
  %v1993 = vld [vmem:[%s3 + $0xd00] sm:$0xff]
  %v1994 = vld [vmem:[%s3 + $0xd08] sm:$0xff]
  %v1995 = vld [vmem:[%s3 + $0xd10] sm:$0xff]
  %v1996 = vld [vmem:[%s3 + $0xd18] sm:$0xff]
  %v1997 = vld [vmem:[%s3 + $0xd20] sm:$0xff]
  %v1998 = vld [vmem:[%s3 + $0xd28] sm:$0xff]
  %v1999 = vld [vmem:[%s3 + $0xd30] sm:$0xff]
  %v2000 = vld [vmem:[%s3 + $0xd38] sm:$0xff]
  %v2001 = vld [vmem:[%s3 + $0xd40] sm:$0xff]
  %v2002 = vld [vmem:[%s3 + $0xd48] sm:$0xff]
  %v2003 = vld [vmem:[%s3 + $0xd50] sm:$0xff]
  %v2004 = vld [vmem:[%s3 + $0xd58] sm:$0xff]
  %v2005 = vld [vmem:[%s3 + $0xd60] sm:$0xff]
  %v2006 = vld [vmem:[%s3 + $0xd68] sm:$0xff]
  %v2007 = vld [vmem:[%s3 + $0xd70] sm:$0xff]
  %v2008 = vld [vmem:[%s3 + $0xd78] sm:$0xff]
  %v2009 = vld [vmem:[%s3 + $0xd80] sm:$0xff]
  %v2010 = vld [vmem:[%s3 + $0xd88] sm:$0xff]
  %v2011 = vld [vmem:[%s3 + $0xd90] sm:$0xff]
  %v2012 = vld [vmem:[%s3 + $0xd98] sm:$0xff]
  %v2013 = vld [vmem:[%s3 + $0xda0] sm:$0xff]
  %v2014 = vld [vmem:[%s3 + $0xda8] sm:$0xff]
  %v2015 = vld [vmem:[%s3 + $0xdb0] sm:$0xff]
  %v2016 = vld [vmem:[%s3 + $0xdb8] sm:$0xff]
  %v2017 = vld [vmem:[%s3 + $0xdc0] sm:$0xff]
  %v2018 = vld [vmem:[%s3 + $0xdc8] sm:$0xff]
  %v2019 = vld [vmem:[%s3 + $0xdd0] sm:$0xff]
  %v2020 = vld [vmem:[%s3 + $0xdd8] sm:$0xff]
  %v2021 = vld [vmem:[%s3 + $0xde0] sm:$0xff]
  %v2022 = vld [vmem:[%s3 + $0xde8] sm:$0xff]
  %v2023 = vld [vmem:[%s3 + $0xdf0] sm:$0xff]
  %v2024 = vld [vmem:[%s3 + $0xdf8] sm:$0xff]
  %v2025 = vld [vmem:[%s3 + $0xe00] sm:$0xff]
  %v2026 = vld [vmem:[%s3 + $0xe08] sm:$0xff]
  %v2027 = vld [vmem:[%s3 + $0xe10] sm:$0xff]
  %v2028 = vld [vmem:[%s3 + $0xe18] sm:$0xff]
  %v2029 = vld [vmem:[%s3 + $0xe20] sm:$0xff]
  %v2030 = vld [vmem:[%s3 + $0xe28] sm:$0xff]
  %v2031 = vld [vmem:[%s3 + $0xe30] sm:$0xff]
  %v2032 = vld [vmem:[%s3 + $0xe38] sm:$0xff]
  %v2033 = vld [vmem:[%s3 + $0xe40] sm:$0xff]
  %v2034 = vld [vmem:[%s3 + $0xe48] sm:$0xff]
  %v2035 = vld [vmem:[%s3 + $0xe50] sm:$0xff]
  %v2036 = vld [vmem:[%s3 + $0xe58] sm:$0xff]
  %v2037 = vld [vmem:[%s3 + $0xe60] sm:$0xff]
  %v2038 = vld [vmem:[%s3 + $0xe68] sm:$0xff]
  %v2039 = vld [vmem:[%s3 + $0xe70] sm:$0xff]
  %v2040 = vld [vmem:[%s3 + $0xe78] sm:$0xff]
  %v2041 = vld [vmem:[%s3 + $0xe80] sm:$0xff]
  %v2042 = vld [vmem:[%s3 + $0xe88] sm:$0xff]
  %v2043 = vld [vmem:[%s3 + $0xe90] sm:$0xff]
  %v2044 = vld [vmem:[%s3 + $0xe98] sm:$0xff]
  %v2045 = vld [vmem:[%s3 + $0xea0] sm:$0xff]
  %v2046 = vld [vmem:[%s3 + $0xea8] sm:$0xff]
  %v2047 = vld [vmem:[%s3 + $0xeb0] sm:$0xff]
  %v2048 = vld [vmem:[%s3 + $0xeb8] sm:$0xff]
  %v2049 = vld [vmem:[%s3 + $0xec0] sm:$0xff]
  %v2050 = vld [vmem:[%s3 + $0xec8] sm:$0xff]
  %v2051 = vld [vmem:[%s3 + $0xed0] sm:$0xff]
  %v2052 = vld [vmem:[%s3 + $0xed8] sm:$0xff]
  %v2053 = vld [vmem:[%s3 + $0xee0] sm:$0xff]
  %v2054 = vld [vmem:[%s3 + $0xee8] sm:$0xff]
  %v2055 = vld [vmem:[%s3 + $0xef0] sm:$0xff]
  %v2056 = vld [vmem:[%s3 + $0xef8] sm:$0xff]
  %v2057 = vld [vmem:[%s3 + $0xf00] sm:$0xff]
  %v2058 = vld [vmem:[%s3 + $0xf08] sm:$0xff]
  %v2059 = vld [vmem:[%s3 + $0xf10] sm:$0xff]
  %v2060 = vld [vmem:[%s3 + $0xf18] sm:$0xff]
  %v2061 = vld [vmem:[%s3 + $0xf20] sm:$0xff]
  %v2062 = vld [vmem:[%s3 + $0xf28] sm:$0xff]
  %v2063 = vld [vmem:[%s3 + $0xf30] sm:$0xff]
  %v2064 = vld [vmem:[%s3 + $0xf38] sm:$0xff]
  %v2065 = vld [vmem:[%s3 + $0xf40] sm:$0xff]
  %v2066 = vld [vmem:[%s3 + $0xf48] sm:$0xff]
  %v2067 = vld [vmem:[%s3 + $0xf50] sm:$0xff]
  %v2068 = vld [vmem:[%s3 + $0xf58] sm:$0xff]
  %v2069 = vld [vmem:[%s3 + $0xf60] sm:$0xff]
  %v2070 = vld [vmem:[%s3 + $0xf68] sm:$0xff]
  %v2071 = vld [vmem:[%s3 + $0xf70] sm:$0xff]
  %v2072 = vld [vmem:[%s3 + $0xf78] sm:$0xff]
  %v2073 = vld [vmem:[%s3 + $0xf80] sm:$0xff]
  %v2074 = vld [vmem:[%s3 + $0xf88] sm:$0xff]
  %v2075 = vld [vmem:[%s3 + $0xf90] sm:$0xff]
  %v2076 = vld [vmem:[%s3 + $0xf98] sm:$0xff]
  %v2077 = vld [vmem:[%s3 + $0xfa0] sm:$0xff]
  %v2078 = vld [vmem:[%s3 + $0xfa8] sm:$0xff]
  %v2079 = vld [vmem:[%s3 + $0xfb0] sm:$0xff]
  %v2080 = vld [vmem:[%s3 + $0xfb8] sm:$0xff]
  %v2081 = vld [vmem:[%s3 + $0xfc0] sm:$0xff]
  %v2082 = vld [vmem:[%s3 + $0xfc8] sm:$0xff]
  %v2083 = vld [vmem:[%s3 + $0xfd0] sm:$0xff]
  %v2084 = vld [vmem:[%s3 + $0xfd8] sm:$0xff]
  %v2085 = vld [vmem:[%s3 + $0xfe0] sm:$0xff]
  %v2086 = vld [vmem:[%s3 + $0xfe8] sm:$0xff]
  %v2087 = vld [vmem:[%s3 + $0xff0] sm:$0xff]
  %v2088 = vld [vmem:[%s3 + $0xff8] sm:$0xff]
  %v2089 = vld [vmem:[%s4] sm:$0xff]
  %v2091 = vlaneseq
  %v2092 = vshrl.u32 %v2091, 7
  %v2093 = vsub.s32 0, %v2092
  %v2094 = vrot.slane %v2089, %v2093
  %v2095 = vlaneseq
  %v2096 = vshrl.u32 %v2095, 7
  %v2097 = vsub.s32 1, %v2096
  %v2098 = vrot.slane %v2089, %v2097
  %v2099 = vlaneseq
  %v2100 = vshrl.u32 %v2099, 7
  %v2101 = vsub.s32 2, %v2100
  %v2102 = vrot.slane %v2089, %v2101
  %v2103 = vlaneseq
  %v2104 = vshrl.u32 %v2103, 7
  %v2105 = vsub.s32 3, %v2104
  %v2106 = vrot.slane %v2089, %v2105
  %v2107 = vlaneseq
  %v2108 = vshrl.u32 %v2107, 7
  %v2109 = vsub.s32 4, %v2108
  %v2110 = vrot.slane %v2089, %v2109
  %v2111 = vlaneseq
  %v2112 = vshrl.u32 %v2111, 7
  %v2113 = vsub.s32 5, %v2112
  %v2114 = vrot.slane %v2089, %v2113
  %v2115 = vlaneseq
  %v2116 = vshrl.u32 %v2115, 7
  %v2117 = vsub.s32 6, %v2116
  %v2118 = vrot.slane %v2089, %v2117
  %v2119 = vlaneseq
  %v2120 = vshrl.u32 %v2119, 7
  %v2121 = vsub.s32 7, %v2120
  %v2122 = vrot.slane %v2089, %v2121
  %v2643 = vunpack.c.l.b16 %v1577
  %v2644 = vunpack.c.h.b16 %v1577
  %v2645 = vunpack.c.l.b16 %v1578
  %v2646 = vunpack.c.h.b16 %v1578
  %v2647 = vunpack.c.l.b16 %v1579
  %v2648 = vunpack.c.h.b16 %v1579
  %v2649 = vunpack.c.l.b16 %v1580
  %v2650 = vunpack.c.h.b16 %v1580
  %v2651 = vunpack.c.l.b16 %v1581
  %v2652 = vunpack.c.h.b16 %v1581
  %v2653 = vunpack.c.l.b16 %v1582
  %v2654 = vunpack.c.h.b16 %v1582
  %v2655 = vunpack.c.l.b16 %v1583
  %v2656 = vunpack.c.h.b16 %v1583
  %v2657 = vunpack.c.l.b16 %v1584
  %v2658 = vunpack.c.h.b16 %v1584
  %v2659 = vunpack.c.l.b16 %v1585
  %v2660 = vunpack.c.h.b16 %v1585
  %v2661 = vunpack.c.l.b16 %v1586
  %v2662 = vunpack.c.h.b16 %v1586
  %v2663 = vunpack.c.l.b16 %v1587
  %v2664 = vunpack.c.h.b16 %v1587
  %v2665 = vunpack.c.l.b16 %v1588
  %v2666 = vunpack.c.h.b16 %v1588
  %v2667 = vunpack.c.l.b16 %v1589
  %v2668 = vunpack.c.h.b16 %v1589
  %v2669 = vunpack.c.l.b16 %v1590
  %v2670 = vunpack.c.h.b16 %v1590
  %v2671 = vunpack.c.l.b16 %v1591
  %v2672 = vunpack.c.h.b16 %v1591
  %v2673 = vunpack.c.l.b16 %v1592
  %v2674 = vunpack.c.h.b16 %v1592
  %v2675 = vunpack.c.l.b16 %v1593
  %v2676 = vunpack.c.h.b16 %v1593
  %v2677 = vunpack.c.l.b16 %v1594
  %v2678 = vunpack.c.h.b16 %v1594
  %v2679 = vunpack.c.l.b16 %v1595
  %v2680 = vunpack.c.h.b16 %v1595
  %v2681 = vunpack.c.l.b16 %v1596
  %v2682 = vunpack.c.h.b16 %v1596
  %v2683 = vunpack.c.l.b16 %v1597
  %v2684 = vunpack.c.h.b16 %v1597
  %v2685 = vunpack.c.l.b16 %v1598
  %v2686 = vunpack.c.h.b16 %v1598
  %v2687 = vunpack.c.l.b16 %v1599
  %v2688 = vunpack.c.h.b16 %v1599
  %v2689 = vunpack.c.l.b16 %v1600
  %v2690 = vunpack.c.h.b16 %v1600
  %v2691 = vunpack.c.l.b16 %v1601
  %v2692 = vunpack.c.h.b16 %v1601
  %v2693 = vunpack.c.l.b16 %v1602
  %v2694 = vunpack.c.h.b16 %v1602
  %v2695 = vunpack.c.l.b16 %v1603
  %v2696 = vunpack.c.h.b16 %v1603
  %v2697 = vunpack.c.l.b16 %v1604
  %v2698 = vunpack.c.h.b16 %v1604
  %v2699 = vunpack.c.l.b16 %v1605
  %v2700 = vunpack.c.h.b16 %v1605
  %v2701 = vunpack.c.l.b16 %v1606
  %v2702 = vunpack.c.h.b16 %v1606
  %v2703 = vunpack.c.l.b16 %v1607
  %v2704 = vunpack.c.h.b16 %v1607
  %v2705 = vunpack.c.l.b16 %v1608
  %v2706 = vunpack.c.h.b16 %v1608
  %v2707 = vunpack.c.l.b16 %v1609
  %v2708 = vunpack.c.h.b16 %v1609
  %v2709 = vunpack.c.l.b16 %v1610
  %v2710 = vunpack.c.h.b16 %v1610
  %v2711 = vunpack.c.l.b16 %v1611
  %v2712 = vunpack.c.h.b16 %v1611
  %v2713 = vunpack.c.l.b16 %v1612
  %v2714 = vunpack.c.h.b16 %v1612
  %v2715 = vunpack.c.l.b16 %v1613
  %v2716 = vunpack.c.h.b16 %v1613
  %v2717 = vunpack.c.l.b16 %v1614
  %v2718 = vunpack.c.h.b16 %v1614
  %v2719 = vunpack.c.l.b16 %v1615
  %v2720 = vunpack.c.h.b16 %v1615
  %v2721 = vunpack.c.l.b16 %v1616
  %v2722 = vunpack.c.h.b16 %v1616
  %v2723 = vunpack.c.l.b16 %v1617
  %v2724 = vunpack.c.h.b16 %v1617
  %v2725 = vunpack.c.l.b16 %v1618
  %v2726 = vunpack.c.h.b16 %v1618
  %v2727 = vunpack.c.l.b16 %v1619
  %v2728 = vunpack.c.h.b16 %v1619
  %v2729 = vunpack.c.l.b16 %v1620
  %v2730 = vunpack.c.h.b16 %v1620
  %v2731 = vunpack.c.l.b16 %v1621
  %v2732 = vunpack.c.h.b16 %v1621
  %v2733 = vunpack.c.l.b16 %v1622
  %v2734 = vunpack.c.h.b16 %v1622
  %v2735 = vunpack.c.l.b16 %v1623
  %v2736 = vunpack.c.h.b16 %v1623
  %v2737 = vunpack.c.l.b16 %v1624
  %v2738 = vunpack.c.h.b16 %v1624
  %v2739 = vunpack.c.l.b16 %v1625
  %v2740 = vunpack.c.h.b16 %v1625
  %v2741 = vunpack.c.l.b16 %v1626
  %v2742 = vunpack.c.h.b16 %v1626
  %v2743 = vunpack.c.l.b16 %v1627
  %v2744 = vunpack.c.h.b16 %v1627
  %v2745 = vunpack.c.l.b16 %v1628
  %v2746 = vunpack.c.h.b16 %v1628
  %v2747 = vunpack.c.l.b16 %v1629
  %v2748 = vunpack.c.h.b16 %v1629
  %v2749 = vunpack.c.l.b16 %v1630
  %v2750 = vunpack.c.h.b16 %v1630
  %v2751 = vunpack.c.l.b16 %v1631
  %v2752 = vunpack.c.h.b16 %v1631
  %v2753 = vunpack.c.l.b16 %v1632
  %v2754 = vunpack.c.h.b16 %v1632
  %v2755 = vunpack.c.l.b16 %v1633
  %v2756 = vunpack.c.h.b16 %v1633
  %v2757 = vunpack.c.l.b16 %v1634
  %v2758 = vunpack.c.h.b16 %v1634
  %v2759 = vunpack.c.l.b16 %v1635
  %v2760 = vunpack.c.h.b16 %v1635
  %v2761 = vunpack.c.l.b16 %v1636
  %v2762 = vunpack.c.h.b16 %v1636
  %v2763 = vunpack.c.l.b16 %v1637
  %v2764 = vunpack.c.h.b16 %v1637
  %v2765 = vunpack.c.l.b16 %v1638
  %v2766 = vunpack.c.h.b16 %v1638
  %v2767 = vunpack.c.l.b16 %v1639
  %v2768 = vunpack.c.h.b16 %v1639
  %v2769 = vunpack.c.l.b16 %v1640
  %v2770 = vunpack.c.h.b16 %v1640
  %v2771 = vunpack.c.l.b16 %v1641
  %v2772 = vunpack.c.h.b16 %v1641
  %v2773 = vunpack.c.l.b16 %v1642
  %v2774 = vunpack.c.h.b16 %v1642
  %v2775 = vunpack.c.l.b16 %v1643
  %v2776 = vunpack.c.h.b16 %v1643
  %v2777 = vunpack.c.l.b16 %v1644
  %v2778 = vunpack.c.h.b16 %v1644
  %v2779 = vunpack.c.l.b16 %v1645
  %v2780 = vunpack.c.h.b16 %v1645
  %v2781 = vunpack.c.l.b16 %v1646
  %v2782 = vunpack.c.h.b16 %v1646
  %v2783 = vunpack.c.l.b16 %v1647
  %v2784 = vunpack.c.h.b16 %v1647
  %v2785 = vunpack.c.l.b16 %v1648
  %v2786 = vunpack.c.h.b16 %v1648
  %v2787 = vunpack.c.l.b16 %v1649
  %v2788 = vunpack.c.h.b16 %v1649
  %v2789 = vunpack.c.l.b16 %v1650
  %v2790 = vunpack.c.h.b16 %v1650
  %v2791 = vunpack.c.l.b16 %v1651
  %v2792 = vunpack.c.h.b16 %v1651
  %v2793 = vunpack.c.l.b16 %v1652
  %v2794 = vunpack.c.h.b16 %v1652
  %v2795 = vunpack.c.l.b16 %v1653
  %v2796 = vunpack.c.h.b16 %v1653
  %v2797 = vunpack.c.l.b16 %v1654
  %v2798 = vunpack.c.h.b16 %v1654
  %v2799 = vunpack.c.l.b16 %v1655
  %v2800 = vunpack.c.h.b16 %v1655
  %v2801 = vunpack.c.l.b16 %v1656
  %v2802 = vunpack.c.h.b16 %v1656
  %v2803 = vunpack.c.l.b16 %v1657
  %v2804 = vunpack.c.h.b16 %v1657
  %v2805 = vunpack.c.l.b16 %v1658
  %v2806 = vunpack.c.h.b16 %v1658
  %v2807 = vunpack.c.l.b16 %v1659
  %v2808 = vunpack.c.h.b16 %v1659
  %v2809 = vunpack.c.l.b16 %v1660
  %v2810 = vunpack.c.h.b16 %v1660
  %v2811 = vunpack.c.l.b16 %v1661
  %v2812 = vunpack.c.h.b16 %v1661
  %v2813 = vunpack.c.l.b16 %v1662
  %v2814 = vunpack.c.h.b16 %v1662
  %v2815 = vunpack.c.l.b16 %v1663
  %v2816 = vunpack.c.h.b16 %v1663
  %v2817 = vunpack.c.l.b16 %v1664
  %v2818 = vunpack.c.h.b16 %v1664
  %v2819 = vunpack.c.l.b16 %v1665
  %v2820 = vunpack.c.h.b16 %v1665
  %v2821 = vunpack.c.l.b16 %v1666
  %v2822 = vunpack.c.h.b16 %v1666
  %v2823 = vunpack.c.l.b16 %v1667
  %v2824 = vunpack.c.h.b16 %v1667
  %v2825 = vunpack.c.l.b16 %v1668
  %v2826 = vunpack.c.h.b16 %v1668
  %v2827 = vunpack.c.l.b16 %v1669
  %v2828 = vunpack.c.h.b16 %v1669
  %v2829 = vunpack.c.l.b16 %v1670
  %v2830 = vunpack.c.h.b16 %v1670
  %v2831 = vunpack.c.l.b16 %v1671
  %v2832 = vunpack.c.h.b16 %v1671
  %v2833 = vunpack.c.l.b16 %v1672
  %v2834 = vunpack.c.h.b16 %v1672
  %v2835 = vunpack.c.l.b16 %v1673
  %v2836 = vunpack.c.h.b16 %v1673
  %v2837 = vunpack.c.l.b16 %v1674
  %v2838 = vunpack.c.h.b16 %v1674
  %v2839 = vunpack.c.l.b16 %v1675
  %v2840 = vunpack.c.h.b16 %v1675
  %v2841 = vunpack.c.l.b16 %v1676
  %v2842 = vunpack.c.h.b16 %v1676
  %v2843 = vunpack.c.l.b16 %v1677
  %v2844 = vunpack.c.h.b16 %v1677
  %v2845 = vunpack.c.l.b16 %v1678
  %v2846 = vunpack.c.h.b16 %v1678
  %v2847 = vunpack.c.l.b16 %v1679
  %v2848 = vunpack.c.h.b16 %v1679
  %v2849 = vunpack.c.l.b16 %v1680
  %v2850 = vunpack.c.h.b16 %v1680
  %v2851 = vunpack.c.l.b16 %v1681
  %v2852 = vunpack.c.h.b16 %v1681
  %v2853 = vunpack.c.l.b16 %v1682
  %v2854 = vunpack.c.h.b16 %v1682
  %v2855 = vunpack.c.l.b16 %v1683
  %v2856 = vunpack.c.h.b16 %v1683
  %v2857 = vunpack.c.l.b16 %v1684
  %v2858 = vunpack.c.h.b16 %v1684
  %v2859 = vunpack.c.l.b16 %v1685
  %v2860 = vunpack.c.h.b16 %v1685
  %v2861 = vunpack.c.l.b16 %v1686
  %v2862 = vunpack.c.h.b16 %v1686
  %v2863 = vunpack.c.l.b16 %v1687
  %v2864 = vunpack.c.h.b16 %v1687
  %v2865 = vunpack.c.l.b16 %v1688
  %v2866 = vunpack.c.h.b16 %v1688
  %v2867 = vunpack.c.l.b16 %v1689
  %v2868 = vunpack.c.h.b16 %v1689
  %v2869 = vunpack.c.l.b16 %v1690
  %v2870 = vunpack.c.h.b16 %v1690
  %v2871 = vunpack.c.l.b16 %v1691
  %v2872 = vunpack.c.h.b16 %v1691
  %v2873 = vunpack.c.l.b16 %v1692
  %v2874 = vunpack.c.h.b16 %v1692
  %v2875 = vunpack.c.l.b16 %v1693
  %v2876 = vunpack.c.h.b16 %v1693
  %v2877 = vunpack.c.l.b16 %v1694
  %v2878 = vunpack.c.h.b16 %v1694
  %v2879 = vunpack.c.l.b16 %v1695
  %v2880 = vunpack.c.h.b16 %v1695
  %v2881 = vunpack.c.l.b16 %v1696
  %v2882 = vunpack.c.h.b16 %v1696
  %v2883 = vunpack.c.l.b16 %v1697
  %v2884 = vunpack.c.h.b16 %v1697
  %v2885 = vunpack.c.l.b16 %v1698
  %v2886 = vunpack.c.h.b16 %v1698
  %v2887 = vunpack.c.l.b16 %v1699
  %v2888 = vunpack.c.h.b16 %v1699
  %v2889 = vunpack.c.l.b16 %v1700
  %v2890 = vunpack.c.h.b16 %v1700
  %v2891 = vunpack.c.l.b16 %v1701
  %v2892 = vunpack.c.h.b16 %v1701
  %v2893 = vunpack.c.l.b16 %v1702
  %v2894 = vunpack.c.h.b16 %v1702
  %v2895 = vunpack.c.l.b16 %v1703
  %v2896 = vunpack.c.h.b16 %v1703
  %v2897 = vunpack.c.l.b16 %v1704
  %v2898 = vunpack.c.h.b16 %v1704
  %v2899 = vunpack.c.l.b16 %v1705
  %v2900 = vunpack.c.h.b16 %v1705
  %v2901 = vunpack.c.l.b16 %v1706
  %v2902 = vunpack.c.h.b16 %v1706
  %v2903 = vunpack.c.l.b16 %v1707
  %v2904 = vunpack.c.h.b16 %v1707
  %v2905 = vunpack.c.l.b16 %v1708
  %v2906 = vunpack.c.h.b16 %v1708
  %v2907 = vunpack.c.l.b16 %v1709
  %v2908 = vunpack.c.h.b16 %v1709
  %v2909 = vunpack.c.l.b16 %v1710
  %v2910 = vunpack.c.h.b16 %v1710
  %v2911 = vunpack.c.l.b16 %v1711
  %v2912 = vunpack.c.h.b16 %v1711
  %v2913 = vunpack.c.l.b16 %v1712
  %v2914 = vunpack.c.h.b16 %v1712
  %v2915 = vunpack.c.l.b16 %v1713
  %v2916 = vunpack.c.h.b16 %v1713
  %v2917 = vunpack.c.l.b16 %v1714
  %v2918 = vunpack.c.h.b16 %v1714
  %v2919 = vunpack.c.l.b16 %v1715
  %v2920 = vunpack.c.h.b16 %v1715
  %v2921 = vunpack.c.l.b16 %v1716
  %v2922 = vunpack.c.h.b16 %v1716
  %v2923 = vunpack.c.l.b16 %v1717
  %v2924 = vunpack.c.h.b16 %v1717
  %v2925 = vunpack.c.l.b16 %v1718
  %v2926 = vunpack.c.h.b16 %v1718
  %v2927 = vunpack.c.l.b16 %v1719
  %v2928 = vunpack.c.h.b16 %v1719
  %v2929 = vunpack.c.l.b16 %v1720
  %v2930 = vunpack.c.h.b16 %v1720
  %v2931 = vunpack.c.l.b16 %v1721
  %v2932 = vunpack.c.h.b16 %v1721
  %v2933 = vunpack.c.l.b16 %v1722
  %v2934 = vunpack.c.h.b16 %v1722
  %v2935 = vunpack.c.l.b16 %v1723
  %v2936 = vunpack.c.h.b16 %v1723
  %v2937 = vunpack.c.l.b16 %v1724
  %v2938 = vunpack.c.h.b16 %v1724
  %v2939 = vunpack.c.l.b16 %v1725
  %v2940 = vunpack.c.h.b16 %v1725
  %v2941 = vunpack.c.l.b16 %v1726
  %v2942 = vunpack.c.h.b16 %v1726
  %v2943 = vunpack.c.l.b16 %v1727
  %v2944 = vunpack.c.h.b16 %v1727
  %v2945 = vunpack.c.l.b16 %v1728
  %v2946 = vunpack.c.h.b16 %v1728
  %v2947 = vunpack.c.l.b16 %v1729
  %v2948 = vunpack.c.h.b16 %v1729
  %v2949 = vunpack.c.l.b16 %v1730
  %v2950 = vunpack.c.h.b16 %v1730
  %v2951 = vunpack.c.l.b16 %v1731
  %v2952 = vunpack.c.h.b16 %v1731
  %v2953 = vunpack.c.l.b16 %v1732
  %v2954 = vunpack.c.h.b16 %v1732
  %v2955 = vunpack.c.l.b16 %v1733
  %v2956 = vunpack.c.h.b16 %v1733
  %v2957 = vunpack.c.l.b16 %v1734
  %v2958 = vunpack.c.h.b16 %v1734
  %v2959 = vunpack.c.l.b16 %v1735
  %v2960 = vunpack.c.h.b16 %v1735
  %v2961 = vunpack.c.l.b16 %v1736
  %v2962 = vunpack.c.h.b16 %v1736
  %v2963 = vunpack.c.l.b16 %v1737
  %v2964 = vunpack.c.h.b16 %v1737
  %v2965 = vunpack.c.l.b16 %v1738
  %v2966 = vunpack.c.h.b16 %v1738
  %v2967 = vunpack.c.l.b16 %v1739
  %v2968 = vunpack.c.h.b16 %v1739
  %v2969 = vunpack.c.l.b16 %v1740
  %v2970 = vunpack.c.h.b16 %v1740
  %v2971 = vunpack.c.l.b16 %v1741
  %v2972 = vunpack.c.h.b16 %v1741
  %v2973 = vunpack.c.l.b16 %v1742
  %v2974 = vunpack.c.h.b16 %v1742
  %v2975 = vunpack.c.l.b16 %v1743
  %v2976 = vunpack.c.h.b16 %v1743
  %v2977 = vunpack.c.l.b16 %v1744
  %v2978 = vunpack.c.h.b16 %v1744
  %v2979 = vunpack.c.l.b16 %v1745
  %v2980 = vunpack.c.h.b16 %v1745
  %v2981 = vunpack.c.l.b16 %v1746
  %v2982 = vunpack.c.h.b16 %v1746
  %v2983 = vunpack.c.l.b16 %v1747
  %v2984 = vunpack.c.h.b16 %v1747
  %v2985 = vunpack.c.l.b16 %v1748
  %v2986 = vunpack.c.h.b16 %v1748
  %v2987 = vunpack.c.l.b16 %v1749
  %v2988 = vunpack.c.h.b16 %v1749
  %v2989 = vunpack.c.l.b16 %v1750
  %v2990 = vunpack.c.h.b16 %v1750
  %v2991 = vunpack.c.l.b16 %v1751
  %v2992 = vunpack.c.h.b16 %v1751
  %v2993 = vunpack.c.l.b16 %v1752
  %v2994 = vunpack.c.h.b16 %v1752
  %v2995 = vunpack.c.l.b16 %v1753
  %v2996 = vunpack.c.h.b16 %v1753
  %v2997 = vunpack.c.l.b16 %v1754
  %v2998 = vunpack.c.h.b16 %v1754
  %v2999 = vunpack.c.l.b16 %v1755
  %v3000 = vunpack.c.h.b16 %v1755
  %v3001 = vunpack.c.l.b16 %v1756
  %v3002 = vunpack.c.h.b16 %v1756
  %v3003 = vunpack.c.l.b16 %v1757
  %v3004 = vunpack.c.h.b16 %v1757
  %v3005 = vunpack.c.l.b16 %v1758
  %v3006 = vunpack.c.h.b16 %v1758
  %v3007 = vunpack.c.l.b16 %v1759
  %v3008 = vunpack.c.h.b16 %v1759
  %v3009 = vunpack.c.l.b16 %v1760
  %v3010 = vunpack.c.h.b16 %v1760
  %v3011 = vunpack.c.l.b16 %v1761
  %v3012 = vunpack.c.h.b16 %v1761
  %v3013 = vunpack.c.l.b16 %v1762
  %v3014 = vunpack.c.h.b16 %v1762
  %v3015 = vunpack.c.l.b16 %v1763
  %v3016 = vunpack.c.h.b16 %v1763
  %v3017 = vunpack.c.l.b16 %v1764
  %v3018 = vunpack.c.h.b16 %v1764
  %v3019 = vunpack.c.l.b16 %v1765
  %v3020 = vunpack.c.h.b16 %v1765
  %v3021 = vunpack.c.l.b16 %v1766
  %v3022 = vunpack.c.h.b16 %v1766
  %v3023 = vunpack.c.l.b16 %v1767
  %v3024 = vunpack.c.h.b16 %v1767
  %v3025 = vunpack.c.l.b16 %v1768
  %v3026 = vunpack.c.h.b16 %v1768
  %v3027 = vunpack.c.l.b16 %v1769
  %v3028 = vunpack.c.h.b16 %v1769
  %v3029 = vunpack.c.l.b16 %v1770
  %v3030 = vunpack.c.h.b16 %v1770
  %v3031 = vunpack.c.l.b16 %v1771
  %v3032 = vunpack.c.h.b16 %v1771
  %v3033 = vunpack.c.l.b16 %v1772
  %v3034 = vunpack.c.h.b16 %v1772
  %v3035 = vunpack.c.l.b16 %v1773
  %v3036 = vunpack.c.h.b16 %v1773
  %v3037 = vunpack.c.l.b16 %v1774
  %v3038 = vunpack.c.h.b16 %v1774
  %v3039 = vunpack.c.l.b16 %v1775
  %v3040 = vunpack.c.h.b16 %v1775
  %v3041 = vunpack.c.l.b16 %v1776
  %v3042 = vunpack.c.h.b16 %v1776
  %v3043 = vunpack.c.l.b16 %v1777
  %v3044 = vunpack.c.h.b16 %v1777
  %v3045 = vunpack.c.l.b16 %v1778
  %v3046 = vunpack.c.h.b16 %v1778
  %v3047 = vunpack.c.l.b16 %v1779
  %v3048 = vunpack.c.h.b16 %v1779
  %v3049 = vunpack.c.l.b16 %v1780
  %v3050 = vunpack.c.h.b16 %v1780
  %v3051 = vunpack.c.l.b16 %v1781
  %v3052 = vunpack.c.h.b16 %v1781
  %v3053 = vunpack.c.l.b16 %v1782
  %v3054 = vunpack.c.h.b16 %v1782
  %v3055 = vunpack.c.l.b16 %v1783
  %v3056 = vunpack.c.h.b16 %v1783
  %v3057 = vunpack.c.l.b16 %v1784
  %v3058 = vunpack.c.h.b16 %v1784
  %v3059 = vunpack.c.l.b16 %v1785
  %v3060 = vunpack.c.h.b16 %v1785
  %v3061 = vunpack.c.l.b16 %v1786
  %v3062 = vunpack.c.h.b16 %v1786
  %v3063 = vunpack.c.l.b16 %v1787
  %v3064 = vunpack.c.h.b16 %v1787
  %v3065 = vunpack.c.l.b16 %v1788
  %v3066 = vunpack.c.h.b16 %v1788
  %v3067 = vunpack.c.l.b16 %v1789
  %v3068 = vunpack.c.h.b16 %v1789
  %v3069 = vunpack.c.l.b16 %v1790
  %v3070 = vunpack.c.h.b16 %v1790
  %v3071 = vunpack.c.l.b16 %v1791
  %v3072 = vunpack.c.h.b16 %v1791
  %v3073 = vunpack.c.l.b16 %v1792
  %v3074 = vunpack.c.h.b16 %v1792
  %v3075 = vunpack.c.l.b16 %v1793
  %v3076 = vunpack.c.h.b16 %v1793
  %v3077 = vunpack.c.l.b16 %v1794
  %v3078 = vunpack.c.h.b16 %v1794
  %v3079 = vunpack.c.l.b16 %v1795
  %v3080 = vunpack.c.h.b16 %v1795
  %v3081 = vunpack.c.l.b16 %v1796
  %v3082 = vunpack.c.h.b16 %v1796
  %v3083 = vunpack.c.l.b16 %v1797
  %v3084 = vunpack.c.h.b16 %v1797
  %v3085 = vunpack.c.l.b16 %v1798
  %v3086 = vunpack.c.h.b16 %v1798
  %v3087 = vunpack.c.l.b16 %v1799
  %v3088 = vunpack.c.h.b16 %v1799
  %v3089 = vunpack.c.l.b16 %v1800
  %v3090 = vunpack.c.h.b16 %v1800
  %v3091 = vunpack.c.l.b16 %v1801
  %v3092 = vunpack.c.h.b16 %v1801
  %v3093 = vunpack.c.l.b16 %v1802
  %v3094 = vunpack.c.h.b16 %v1802
  %v3095 = vunpack.c.l.b16 %v1803
  %v3096 = vunpack.c.h.b16 %v1803
  %v3097 = vunpack.c.l.b16 %v1804
  %v3098 = vunpack.c.h.b16 %v1804
  %v3099 = vunpack.c.l.b16 %v1805
  %v3100 = vunpack.c.h.b16 %v1805
  %v3101 = vunpack.c.l.b16 %v1806
  %v3102 = vunpack.c.h.b16 %v1806
  %v3103 = vunpack.c.l.b16 %v1807
  %v3104 = vunpack.c.h.b16 %v1807
  %v3105 = vunpack.c.l.b16 %v1808
  %v3106 = vunpack.c.h.b16 %v1808
  %v3107 = vunpack.c.l.b16 %v1809
  %v3108 = vunpack.c.h.b16 %v1809
  %v3109 = vunpack.c.l.b16 %v1810
  %v3110 = vunpack.c.h.b16 %v1810
  %v3111 = vunpack.c.l.b16 %v1811
  %v3112 = vunpack.c.h.b16 %v1811
  %v3113 = vunpack.c.l.b16 %v1812
  %v3114 = vunpack.c.h.b16 %v1812
  %v3115 = vunpack.c.l.b16 %v1813
  %v3116 = vunpack.c.h.b16 %v1813
  %v3117 = vunpack.c.l.b16 %v1814
  %v3118 = vunpack.c.h.b16 %v1814
  %v3119 = vunpack.c.l.b16 %v1815
  %v3120 = vunpack.c.h.b16 %v1815
  %v3121 = vunpack.c.l.b16 %v1816
  %v3122 = vunpack.c.h.b16 %v1816
  %v3123 = vunpack.c.l.b16 %v1817
  %v3124 = vunpack.c.h.b16 %v1817
  %v3125 = vunpack.c.l.b16 %v1818
  %v3126 = vunpack.c.h.b16 %v1818
  %v3127 = vunpack.c.l.b16 %v1819
  %v3128 = vunpack.c.h.b16 %v1819
  %v3129 = vunpack.c.l.b16 %v1820
  %v3130 = vunpack.c.h.b16 %v1820
  %v3131 = vunpack.c.l.b16 %v1821
  %v3132 = vunpack.c.h.b16 %v1821
  %v3133 = vunpack.c.l.b16 %v1822
  %v3134 = vunpack.c.h.b16 %v1822
  %v3135 = vunpack.c.l.b16 %v1823
  %v3136 = vunpack.c.h.b16 %v1823
  %v3137 = vunpack.c.l.b16 %v1824
  %v3138 = vunpack.c.h.b16 %v1824
  %v3139 = vunpack.c.l.b16 %v1825
  %v3140 = vunpack.c.h.b16 %v1825
  %v3141 = vunpack.c.l.b16 %v1826
  %v3142 = vunpack.c.h.b16 %v1826
  %v3143 = vunpack.c.l.b16 %v1827
  %v3144 = vunpack.c.h.b16 %v1827
  %v3145 = vunpack.c.l.b16 %v1828
  %v3146 = vunpack.c.h.b16 %v1828
  %v3147 = vunpack.c.l.b16 %v1829
  %v3148 = vunpack.c.h.b16 %v1829
  %v3149 = vunpack.c.l.b16 %v1830
  %v3150 = vunpack.c.h.b16 %v1830
  %v3151 = vunpack.c.l.b16 %v1831
  %v3152 = vunpack.c.h.b16 %v1831
  %v3153 = vunpack.c.l.b16 %v1832
  %v3154 = vunpack.c.h.b16 %v1832
  %v3155 = vunpack.c.l.b16 %v1833
  %v3156 = vunpack.c.h.b16 %v1833
  %v3157 = vunpack.c.l.b16 %v1834
  %v3158 = vunpack.c.h.b16 %v1834
  %v3159 = vunpack.c.l.b16 %v1835
  %v3160 = vunpack.c.h.b16 %v1835
  %v3161 = vunpack.c.l.b16 %v1836
  %v3162 = vunpack.c.h.b16 %v1836
  %v3163 = vunpack.c.l.b16 %v1837
  %v3164 = vunpack.c.h.b16 %v1837
  %v3165 = vunpack.c.l.b16 %v1838
  %v3166 = vunpack.c.h.b16 %v1838
  %v3167 = vunpack.c.l.b16 %v1839
  %v3168 = vunpack.c.h.b16 %v1839
  %v3169 = vunpack.c.l.b16 %v1840
  %v3170 = vunpack.c.h.b16 %v1840
  %v3171 = vunpack.c.l.b16 %v1841
  %v3172 = vunpack.c.h.b16 %v1841
  %v3173 = vunpack.c.l.b16 %v1842
  %v3174 = vunpack.c.h.b16 %v1842
  %v3175 = vunpack.c.l.b16 %v1843
  %v3176 = vunpack.c.h.b16 %v1843
  %v3177 = vunpack.c.l.b16 %v1844
  %v3178 = vunpack.c.h.b16 %v1844
  %v3179 = vunpack.c.l.b16 %v1845
  %v3180 = vunpack.c.h.b16 %v1845
  %v3181 = vunpack.c.l.b16 %v1846
  %v3182 = vunpack.c.h.b16 %v1846
  %v3183 = vunpack.c.l.b16 %v1847
  %v3184 = vunpack.c.h.b16 %v1847
  %v3185 = vunpack.c.l.b16 %v1848
  %v3186 = vunpack.c.h.b16 %v1848
  %v3187 = vunpack.c.l.b16 %v1849
  %v3188 = vunpack.c.h.b16 %v1849
  %v3189 = vunpack.c.l.b16 %v1850
  %v3190 = vunpack.c.h.b16 %v1850
  %v3191 = vunpack.c.l.b16 %v1851
  %v3192 = vunpack.c.h.b16 %v1851
  %v3193 = vunpack.c.l.b16 %v1852
  %v3194 = vunpack.c.h.b16 %v1852
  %v3195 = vunpack.c.l.b16 %v1853
  %v3196 = vunpack.c.h.b16 %v1853
  %v3197 = vunpack.c.l.b16 %v1854
  %v3198 = vunpack.c.h.b16 %v1854
  %v3199 = vunpack.c.l.b16 %v1855
  %v3200 = vunpack.c.h.b16 %v1855
  %v3201 = vunpack.c.l.b16 %v1856
  %v3202 = vunpack.c.h.b16 %v1856
  %v3203 = vunpack.c.l.b16 %v1857
  %v3204 = vunpack.c.h.b16 %v1857
  %v3205 = vunpack.c.l.b16 %v1858
  %v3206 = vunpack.c.h.b16 %v1858
  %v3207 = vunpack.c.l.b16 %v1859
  %v3208 = vunpack.c.h.b16 %v1859
  %v3209 = vunpack.c.l.b16 %v1860
  %v3210 = vunpack.c.h.b16 %v1860
  %v3211 = vunpack.c.l.b16 %v1861
  %v3212 = vunpack.c.h.b16 %v1861
  %v3213 = vunpack.c.l.b16 %v1862
  %v3214 = vunpack.c.h.b16 %v1862
  %v3215 = vunpack.c.l.b16 %v1863
  %v3216 = vunpack.c.h.b16 %v1863
  %v3217 = vunpack.c.l.b16 %v1864
  %v3218 = vunpack.c.h.b16 %v1864
  %v3219 = vunpack.c.l.b16 %v1865
  %v3220 = vunpack.c.h.b16 %v1865
  %v3221 = vunpack.c.l.b16 %v1866
  %v3222 = vunpack.c.h.b16 %v1866
  %v3223 = vunpack.c.l.b16 %v1867
  %v3224 = vunpack.c.h.b16 %v1867
  %v3225 = vunpack.c.l.b16 %v1868
  %v3226 = vunpack.c.h.b16 %v1868
  %v3227 = vunpack.c.l.b16 %v1869
  %v3228 = vunpack.c.h.b16 %v1869
  %v3229 = vunpack.c.l.b16 %v1870
  %v3230 = vunpack.c.h.b16 %v1870
  %v3231 = vunpack.c.l.b16 %v1871
  %v3232 = vunpack.c.h.b16 %v1871
  %v3233 = vunpack.c.l.b16 %v1872
  %v3234 = vunpack.c.h.b16 %v1872
  %v3235 = vunpack.c.l.b16 %v1873
  %v3236 = vunpack.c.h.b16 %v1873
  %v3237 = vunpack.c.l.b16 %v1874
  %v3238 = vunpack.c.h.b16 %v1874
  %v3239 = vunpack.c.l.b16 %v1875
  %v3240 = vunpack.c.h.b16 %v1875
  %v3241 = vunpack.c.l.b16 %v1876
  %v3242 = vunpack.c.h.b16 %v1876
  %v3243 = vunpack.c.l.b16 %v1877
  %v3244 = vunpack.c.h.b16 %v1877
  %v3245 = vunpack.c.l.b16 %v1878
  %v3246 = vunpack.c.h.b16 %v1878
  %v3247 = vunpack.c.l.b16 %v1879
  %v3248 = vunpack.c.h.b16 %v1879
  %v3249 = vunpack.c.l.b16 %v1880
  %v3250 = vunpack.c.h.b16 %v1880
  %v3251 = vunpack.c.l.b16 %v1881
  %v3252 = vunpack.c.h.b16 %v1881
  %v3253 = vunpack.c.l.b16 %v1882
  %v3254 = vunpack.c.h.b16 %v1882
  %v3255 = vunpack.c.l.b16 %v1883
  %v3256 = vunpack.c.h.b16 %v1883
  %v3257 = vunpack.c.l.b16 %v1884
  %v3258 = vunpack.c.h.b16 %v1884
  %v3259 = vunpack.c.l.b16 %v1885
  %v3260 = vunpack.c.h.b16 %v1885
  %v3261 = vunpack.c.l.b16 %v1886
  %v3262 = vunpack.c.h.b16 %v1886
  %v3263 = vunpack.c.l.b16 %v1887
  %v3264 = vunpack.c.h.b16 %v1887
  %v3265 = vunpack.c.l.b16 %v1888
  %v3266 = vunpack.c.h.b16 %v1888
  %v3267 = vunpack.c.l.b16 %v1889
  %v3268 = vunpack.c.h.b16 %v1889
  %v3269 = vunpack.c.l.b16 %v1890
  %v3270 = vunpack.c.h.b16 %v1890
  %v3271 = vunpack.c.l.b16 %v1891
  %v3272 = vunpack.c.h.b16 %v1891
  %v3273 = vunpack.c.l.b16 %v1892
  %v3274 = vunpack.c.h.b16 %v1892
  %v3275 = vunpack.c.l.b16 %v1893
  %v3276 = vunpack.c.h.b16 %v1893
  %v3277 = vunpack.c.l.b16 %v1894
  %v3278 = vunpack.c.h.b16 %v1894
  %v3279 = vunpack.c.l.b16 %v1895
  %v3280 = vunpack.c.h.b16 %v1895
  %v3281 = vunpack.c.l.b16 %v1896
  %v3282 = vunpack.c.h.b16 %v1896
  %v3283 = vunpack.c.l.b16 %v1897
  %v3284 = vunpack.c.h.b16 %v1897
  %v3285 = vunpack.c.l.b16 %v1898
  %v3286 = vunpack.c.h.b16 %v1898
  %v3287 = vunpack.c.l.b16 %v1899
  %v3288 = vunpack.c.h.b16 %v1899
  %v3289 = vunpack.c.l.b16 %v1900
  %v3290 = vunpack.c.h.b16 %v1900
  %v3291 = vunpack.c.l.b16 %v1901
  %v3292 = vunpack.c.h.b16 %v1901
  %v3293 = vunpack.c.l.b16 %v1902
  %v3294 = vunpack.c.h.b16 %v1902
  %v3295 = vunpack.c.l.b16 %v1903
  %v3296 = vunpack.c.h.b16 %v1903
  %v3297 = vunpack.c.l.b16 %v1904
  %v3298 = vunpack.c.h.b16 %v1904
  %v3299 = vunpack.c.l.b16 %v1905
  %v3300 = vunpack.c.h.b16 %v1905
  %v3301 = vunpack.c.l.b16 %v1906
  %v3302 = vunpack.c.h.b16 %v1906
  %v3303 = vunpack.c.l.b16 %v1907
  %v3304 = vunpack.c.h.b16 %v1907
  %v3305 = vunpack.c.l.b16 %v1908
  %v3306 = vunpack.c.h.b16 %v1908
  %v3307 = vunpack.c.l.b16 %v1909
  %v3308 = vunpack.c.h.b16 %v1909
  %v3309 = vunpack.c.l.b16 %v1910
  %v3310 = vunpack.c.h.b16 %v1910
  %v3311 = vunpack.c.l.b16 %v1911
  %v3312 = vunpack.c.h.b16 %v1911
  %v3313 = vunpack.c.l.b16 %v1912
  %v3314 = vunpack.c.h.b16 %v1912
  %v3315 = vunpack.c.l.b16 %v1913
  %v3316 = vunpack.c.h.b16 %v1913
  %v3317 = vunpack.c.l.b16 %v1914
  %v3318 = vunpack.c.h.b16 %v1914
  %v3319 = vunpack.c.l.b16 %v1915
  %v3320 = vunpack.c.h.b16 %v1915
  %v3321 = vunpack.c.l.b16 %v1916
  %v3322 = vunpack.c.h.b16 %v1916
  %v3323 = vunpack.c.l.b16 %v1917
  %v3324 = vunpack.c.h.b16 %v1917
  %v3325 = vunpack.c.l.b16 %v1918
  %v3326 = vunpack.c.h.b16 %v1918
  %v3327 = vunpack.c.l.b16 %v1919
  %v3328 = vunpack.c.h.b16 %v1919
  %v3329 = vunpack.c.l.b16 %v1920
  %v3330 = vunpack.c.h.b16 %v1920
  %v3331 = vunpack.c.l.b16 %v1921
  %v3332 = vunpack.c.h.b16 %v1921
  %v3333 = vunpack.c.l.b16 %v1922
  %v3334 = vunpack.c.h.b16 %v1922
  %v3335 = vunpack.c.l.b16 %v1923
  %v3336 = vunpack.c.h.b16 %v1923
  %v3337 = vunpack.c.l.b16 %v1924
  %v3338 = vunpack.c.h.b16 %v1924
  %v3339 = vunpack.c.l.b16 %v1925
  %v3340 = vunpack.c.h.b16 %v1925
  %v3341 = vunpack.c.l.b16 %v1926
  %v3342 = vunpack.c.h.b16 %v1926
  %v3343 = vunpack.c.l.b16 %v1927
  %v3344 = vunpack.c.h.b16 %v1927
  %v3345 = vunpack.c.l.b16 %v1928
  %v3346 = vunpack.c.h.b16 %v1928
  %v3347 = vunpack.c.l.b16 %v1929
  %v3348 = vunpack.c.h.b16 %v1929
  %v3349 = vunpack.c.l.b16 %v1930
  %v3350 = vunpack.c.h.b16 %v1930
  %v3351 = vunpack.c.l.b16 %v1931
  %v3352 = vunpack.c.h.b16 %v1931
  %v3353 = vunpack.c.l.b16 %v1932
  %v3354 = vunpack.c.h.b16 %v1932
  %v3355 = vunpack.c.l.b16 %v1933
  %v3356 = vunpack.c.h.b16 %v1933
  %v3357 = vunpack.c.l.b16 %v1934
  %v3358 = vunpack.c.h.b16 %v1934
  %v3359 = vunpack.c.l.b16 %v1935
  %v3360 = vunpack.c.h.b16 %v1935
  %v3361 = vunpack.c.l.b16 %v1936
  %v3362 = vunpack.c.h.b16 %v1936
  %v3363 = vunpack.c.l.b16 %v1937
  %v3364 = vunpack.c.h.b16 %v1937
  %v3365 = vunpack.c.l.b16 %v1938
  %v3366 = vunpack.c.h.b16 %v1938
  %v3367 = vunpack.c.l.b16 %v1939
  %v3368 = vunpack.c.h.b16 %v1939
  %v3369 = vunpack.c.l.b16 %v1940
  %v3370 = vunpack.c.h.b16 %v1940
  %v3371 = vunpack.c.l.b16 %v1941
  %v3372 = vunpack.c.h.b16 %v1941
  %v3373 = vunpack.c.l.b16 %v1942
  %v3374 = vunpack.c.h.b16 %v1942
  %v3375 = vunpack.c.l.b16 %v1943
  %v3376 = vunpack.c.h.b16 %v1943
  %v3377 = vunpack.c.l.b16 %v1944
  %v3378 = vunpack.c.h.b16 %v1944
  %v3379 = vunpack.c.l.b16 %v1945
  %v3380 = vunpack.c.h.b16 %v1945
  %v3381 = vunpack.c.l.b16 %v1946
  %v3382 = vunpack.c.h.b16 %v1946
  %v3383 = vunpack.c.l.b16 %v1947
  %v3384 = vunpack.c.h.b16 %v1947
  %v3385 = vunpack.c.l.b16 %v1948
  %v3386 = vunpack.c.h.b16 %v1948
  %v3387 = vunpack.c.l.b16 %v1949
  %v3388 = vunpack.c.h.b16 %v1949
  %v3389 = vunpack.c.l.b16 %v1950
  %v3390 = vunpack.c.h.b16 %v1950
  %v3391 = vunpack.c.l.b16 %v1951
  %v3392 = vunpack.c.h.b16 %v1951
  %v3393 = vunpack.c.l.b16 %v1952
  %v3394 = vunpack.c.h.b16 %v1952
  %v3395 = vunpack.c.l.b16 %v1953
  %v3396 = vunpack.c.h.b16 %v1953
  %v3397 = vunpack.c.l.b16 %v1954
  %v3398 = vunpack.c.h.b16 %v1954
  %v3399 = vunpack.c.l.b16 %v1955
  %v3400 = vunpack.c.h.b16 %v1955
  %v3401 = vunpack.c.l.b16 %v1956
  %v3402 = vunpack.c.h.b16 %v1956
  %v3403 = vunpack.c.l.b16 %v1957
  %v3404 = vunpack.c.h.b16 %v1957
  %v3405 = vunpack.c.l.b16 %v1958
  %v3406 = vunpack.c.h.b16 %v1958
  %v3407 = vunpack.c.l.b16 %v1959
  %v3408 = vunpack.c.h.b16 %v1959
  %v3409 = vunpack.c.l.b16 %v1960
  %v3410 = vunpack.c.h.b16 %v1960
  %v3411 = vunpack.c.l.b16 %v1961
  %v3412 = vunpack.c.h.b16 %v1961
  %v3413 = vunpack.c.l.b16 %v1962
  %v3414 = vunpack.c.h.b16 %v1962
  %v3415 = vunpack.c.l.b16 %v1963
  %v3416 = vunpack.c.h.b16 %v1963
  %v3417 = vunpack.c.l.b16 %v1964
  %v3418 = vunpack.c.h.b16 %v1964
  %v3419 = vunpack.c.l.b16 %v1965
  %v3420 = vunpack.c.h.b16 %v1965
  %v3421 = vunpack.c.l.b16 %v1966
  %v3422 = vunpack.c.h.b16 %v1966
  %v3423 = vunpack.c.l.b16 %v1967
  %v3424 = vunpack.c.h.b16 %v1967
  %v3425 = vunpack.c.l.b16 %v1968
  %v3426 = vunpack.c.h.b16 %v1968
  %v3427 = vunpack.c.l.b16 %v1969
  %v3428 = vunpack.c.h.b16 %v1969
  %v3429 = vunpack.c.l.b16 %v1970
  %v3430 = vunpack.c.h.b16 %v1970
  %v3431 = vunpack.c.l.b16 %v1971
  %v3432 = vunpack.c.h.b16 %v1971
  %v3433 = vunpack.c.l.b16 %v1972
  %v3434 = vunpack.c.h.b16 %v1972
  %v3435 = vunpack.c.l.b16 %v1973
  %v3436 = vunpack.c.h.b16 %v1973
  %v3437 = vunpack.c.l.b16 %v1974
  %v3438 = vunpack.c.h.b16 %v1974
  %v3439 = vunpack.c.l.b16 %v1975
  %v3440 = vunpack.c.h.b16 %v1975
  %v3441 = vunpack.c.l.b16 %v1976
  %v3442 = vunpack.c.h.b16 %v1976
  %v3443 = vunpack.c.l.b16 %v1977
  %v3444 = vunpack.c.h.b16 %v1977
  %v3445 = vunpack.c.l.b16 %v1978
  %v3446 = vunpack.c.h.b16 %v1978
  %v3447 = vunpack.c.l.b16 %v1979
  %v3448 = vunpack.c.h.b16 %v1979
  %v3449 = vunpack.c.l.b16 %v1980
  %v3450 = vunpack.c.h.b16 %v1980
  %v3451 = vunpack.c.l.b16 %v1981
  %v3452 = vunpack.c.h.b16 %v1981
  %v3453 = vunpack.c.l.b16 %v1982
  %v3454 = vunpack.c.h.b16 %v1982
  %v3455 = vunpack.c.l.b16 %v1983
  %v3456 = vunpack.c.h.b16 %v1983
  %v3457 = vunpack.c.l.b16 %v1984
  %v3458 = vunpack.c.h.b16 %v1984
  %v3459 = vunpack.c.l.b16 %v1985
  %v3460 = vunpack.c.h.b16 %v1985
  %v3461 = vunpack.c.l.b16 %v1986
  %v3462 = vunpack.c.h.b16 %v1986
  %v3463 = vunpack.c.l.b16 %v1987
  %v3464 = vunpack.c.h.b16 %v1987
  %v3465 = vunpack.c.l.b16 %v1988
  %v3466 = vunpack.c.h.b16 %v1988
  %v3467 = vunpack.c.l.b16 %v1989
  %v3468 = vunpack.c.h.b16 %v1989
  %v3469 = vunpack.c.l.b16 %v1990
  %v3470 = vunpack.c.h.b16 %v1990
  %v3471 = vunpack.c.l.b16 %v1991
  %v3472 = vunpack.c.h.b16 %v1991
  %v3473 = vunpack.c.l.b16 %v1992
  %v3474 = vunpack.c.h.b16 %v1992
  %v3475 = vunpack.c.l.b16 %v1993
  %v3476 = vunpack.c.h.b16 %v1993
  %v3477 = vunpack.c.l.b16 %v1994
  %v3478 = vunpack.c.h.b16 %v1994
  %v3479 = vunpack.c.l.b16 %v1995
  %v3480 = vunpack.c.h.b16 %v1995
  %v3481 = vunpack.c.l.b16 %v1996
  %v3482 = vunpack.c.h.b16 %v1996
  %v3483 = vunpack.c.l.b16 %v1997
  %v3484 = vunpack.c.h.b16 %v1997
  %v3485 = vunpack.c.l.b16 %v1998
  %v3486 = vunpack.c.h.b16 %v1998
  %v3487 = vunpack.c.l.b16 %v1999
  %v3488 = vunpack.c.h.b16 %v1999
  %v3489 = vunpack.c.l.b16 %v2000
  %v3490 = vunpack.c.h.b16 %v2000
  %v3491 = vunpack.c.l.b16 %v2001
  %v3492 = vunpack.c.h.b16 %v2001
  %v3493 = vunpack.c.l.b16 %v2002
  %v3494 = vunpack.c.h.b16 %v2002
  %v3495 = vunpack.c.l.b16 %v2003
  %v3496 = vunpack.c.h.b16 %v2003
  %v3497 = vunpack.c.l.b16 %v2004
  %v3498 = vunpack.c.h.b16 %v2004
  %v3499 = vunpack.c.l.b16 %v2005
  %v3500 = vunpack.c.h.b16 %v2005
  %v3501 = vunpack.c.l.b16 %v2006
  %v3502 = vunpack.c.h.b16 %v2006
  %v3503 = vunpack.c.l.b16 %v2007
  %v3504 = vunpack.c.h.b16 %v2007
  %v3505 = vunpack.c.l.b16 %v2008
  %v3506 = vunpack.c.h.b16 %v2008
  %v3507 = vunpack.c.l.b16 %v2009
  %v3508 = vunpack.c.h.b16 %v2009
  %v3509 = vunpack.c.l.b16 %v2010
  %v3510 = vunpack.c.h.b16 %v2010
  %v3511 = vunpack.c.l.b16 %v2011
  %v3512 = vunpack.c.h.b16 %v2011
  %v3513 = vunpack.c.l.b16 %v2012
  %v3514 = vunpack.c.h.b16 %v2012
  %v3515 = vunpack.c.l.b16 %v2013
  %v3516 = vunpack.c.h.b16 %v2013
  %v3517 = vunpack.c.l.b16 %v2014
  %v3518 = vunpack.c.h.b16 %v2014
  %v3519 = vunpack.c.l.b16 %v2015
  %v3520 = vunpack.c.h.b16 %v2015
  %v3521 = vunpack.c.l.b16 %v2016
  %v3522 = vunpack.c.h.b16 %v2016
  %v3523 = vunpack.c.l.b16 %v2017
  %v3524 = vunpack.c.h.b16 %v2017
  %v3525 = vunpack.c.l.b16 %v2018
  %v3526 = vunpack.c.h.b16 %v2018
  %v3527 = vunpack.c.l.b16 %v2019
  %v3528 = vunpack.c.h.b16 %v2019
  %v3529 = vunpack.c.l.b16 %v2020
  %v3530 = vunpack.c.h.b16 %v2020
  %v3531 = vunpack.c.l.b16 %v2021
  %v3532 = vunpack.c.h.b16 %v2021
  %v3533 = vunpack.c.l.b16 %v2022
  %v3534 = vunpack.c.h.b16 %v2022
  %v3535 = vunpack.c.l.b16 %v2023
  %v3536 = vunpack.c.h.b16 %v2023
  %v3537 = vunpack.c.l.b16 %v2024
  %v3538 = vunpack.c.h.b16 %v2024
  %v3539 = vunpack.c.l.b16 %v2025
  %v3540 = vunpack.c.h.b16 %v2025
  %v3541 = vunpack.c.l.b16 %v2026
  %v3542 = vunpack.c.h.b16 %v2026
  %v3543 = vunpack.c.l.b16 %v2027
  %v3544 = vunpack.c.h.b16 %v2027
  %v3545 = vunpack.c.l.b16 %v2028
  %v3546 = vunpack.c.h.b16 %v2028
  %v3547 = vunpack.c.l.b16 %v2029
  %v3548 = vunpack.c.h.b16 %v2029
  %v3549 = vunpack.c.l.b16 %v2030
  %v3550 = vunpack.c.h.b16 %v2030
  %v3551 = vunpack.c.l.b16 %v2031
  %v3552 = vunpack.c.h.b16 %v2031
  %v3553 = vunpack.c.l.b16 %v2032
  %v3554 = vunpack.c.h.b16 %v2032
  %v3555 = vunpack.c.l.b16 %v2033
  %v3556 = vunpack.c.h.b16 %v2033
  %v3557 = vunpack.c.l.b16 %v2034
  %v3558 = vunpack.c.h.b16 %v2034
  %v3559 = vunpack.c.l.b16 %v2035
  %v3560 = vunpack.c.h.b16 %v2035
  %v3561 = vunpack.c.l.b16 %v2036
  %v3562 = vunpack.c.h.b16 %v2036
  %v3563 = vunpack.c.l.b16 %v2037
  %v3564 = vunpack.c.h.b16 %v2037
  %v3565 = vunpack.c.l.b16 %v2038
  %v3566 = vunpack.c.h.b16 %v2038
  %v3567 = vunpack.c.l.b16 %v2039
  %v3568 = vunpack.c.h.b16 %v2039
  %v3569 = vunpack.c.l.b16 %v2040
  %v3570 = vunpack.c.h.b16 %v2040
  %v3571 = vunpack.c.l.b16 %v2041
  %v3572 = vunpack.c.h.b16 %v2041
  %v3573 = vunpack.c.l.b16 %v2042
  %v3574 = vunpack.c.h.b16 %v2042
  %v3575 = vunpack.c.l.b16 %v2043
  %v3576 = vunpack.c.h.b16 %v2043
  %v3577 = vunpack.c.l.b16 %v2044
  %v3578 = vunpack.c.h.b16 %v2044
  %v3579 = vunpack.c.l.b16 %v2045
  %v3580 = vunpack.c.h.b16 %v2045
  %v3581 = vunpack.c.l.b16 %v2046
  %v3582 = vunpack.c.h.b16 %v2046
  %v3583 = vunpack.c.l.b16 %v2047
  %v3584 = vunpack.c.h.b16 %v2047
  %v3585 = vunpack.c.l.b16 %v2048
  %v3586 = vunpack.c.h.b16 %v2048
  %v3587 = vunpack.c.l.b16 %v2049
  %v3588 = vunpack.c.h.b16 %v2049
  %v3589 = vunpack.c.l.b16 %v2050
  %v3590 = vunpack.c.h.b16 %v2050
  %v3591 = vunpack.c.l.b16 %v2051
  %v3592 = vunpack.c.h.b16 %v2051
  %v3593 = vunpack.c.l.b16 %v2052
  %v3594 = vunpack.c.h.b16 %v2052
  %v3595 = vunpack.c.l.b16 %v2053
  %v3596 = vunpack.c.h.b16 %v2053
  %v3597 = vunpack.c.l.b16 %v2054
  %v3598 = vunpack.c.h.b16 %v2054
  %v3599 = vunpack.c.l.b16 %v2055
  %v3600 = vunpack.c.h.b16 %v2055
  %v3601 = vunpack.c.l.b16 %v2056
  %v3602 = vunpack.c.h.b16 %v2056
  %v3603 = vunpack.c.l.b16 %v2057
  %v3604 = vunpack.c.h.b16 %v2057
  %v3605 = vunpack.c.l.b16 %v2058
  %v3606 = vunpack.c.h.b16 %v2058
  %v3607 = vunpack.c.l.b16 %v2059
  %v3608 = vunpack.c.h.b16 %v2059
  %v3609 = vunpack.c.l.b16 %v2060
  %v3610 = vunpack.c.h.b16 %v2060
  %v3611 = vunpack.c.l.b16 %v2061
  %v3612 = vunpack.c.h.b16 %v2061
  %v3613 = vunpack.c.l.b16 %v2062
  %v3614 = vunpack.c.h.b16 %v2062
  %v3615 = vunpack.c.l.b16 %v2063
  %v3616 = vunpack.c.h.b16 %v2063
  %v3617 = vunpack.c.l.b16 %v2064
  %v3618 = vunpack.c.h.b16 %v2064
  %v3619 = vunpack.c.l.b16 %v2065
  %v3620 = vunpack.c.h.b16 %v2065
  %v3621 = vunpack.c.l.b16 %v2066
  %v3622 = vunpack.c.h.b16 %v2066
  %v3623 = vunpack.c.l.b16 %v2067
  %v3624 = vunpack.c.h.b16 %v2067
  %v3625 = vunpack.c.l.b16 %v2068
  %v3626 = vunpack.c.h.b16 %v2068
  %v3627 = vunpack.c.l.b16 %v2069
  %v3628 = vunpack.c.h.b16 %v2069
  %v3629 = vunpack.c.l.b16 %v2070
  %v3630 = vunpack.c.h.b16 %v2070
  %v3631 = vunpack.c.l.b16 %v2071
  %v3632 = vunpack.c.h.b16 %v2071
  %v3633 = vunpack.c.l.b16 %v2072
  %v3634 = vunpack.c.h.b16 %v2072
  %v3635 = vunpack.c.l.b16 %v2073
  %v3636 = vunpack.c.h.b16 %v2073
  %v3637 = vunpack.c.l.b16 %v2074
  %v3638 = vunpack.c.h.b16 %v2074
  %v3639 = vunpack.c.l.b16 %v2075
  %v3640 = vunpack.c.h.b16 %v2075
  %v3641 = vunpack.c.l.b16 %v2076
  %v3642 = vunpack.c.h.b16 %v2076
  %v3643 = vunpack.c.l.b16 %v2077
  %v3644 = vunpack.c.h.b16 %v2077
  %v3645 = vunpack.c.l.b16 %v2078
  %v3646 = vunpack.c.h.b16 %v2078
  %v3647 = vunpack.c.l.b16 %v2079
  %v3648 = vunpack.c.h.b16 %v2079
  %v3649 = vunpack.c.l.b16 %v2080
  %v3650 = vunpack.c.h.b16 %v2080
  %v3651 = vunpack.c.l.b16 %v2081
  %v3652 = vunpack.c.h.b16 %v2081
  %v3653 = vunpack.c.l.b16 %v2082
  %v3654 = vunpack.c.h.b16 %v2082
  %v3655 = vunpack.c.l.b16 %v2083
  %v3656 = vunpack.c.h.b16 %v2083
  %v3657 = vunpack.c.l.b16 %v2084
  %v3658 = vunpack.c.h.b16 %v2084
  %v3659 = vunpack.c.l.b16 %v2085
  %v3660 = vunpack.c.h.b16 %v2085
  %v3661 = vunpack.c.l.b16 %v2086
  %v3662 = vunpack.c.h.b16 %v2086
  %v3663 = vunpack.c.l.b16 %v2087
  %v3664 = vunpack.c.h.b16 %v2087
  %v3665 = vunpack.c.l.b16 %v2088
  %v3666 = vunpack.c.h.b16 %v2088
  %v3667 = vpack.c.b16 %v2651, %v2643
  %v3668 = vpack.c.b16 %v2652, %v2644
  %v3669 = vpack.c.b16 %v2653, %v2645
  %v3670 = vpack.c.b16 %v2654, %v2646
  %v3671 = vpack.c.b16 %v2655, %v2647
  %v3672 = vpack.c.b16 %v2656, %v2648
  %v3673 = vpack.c.b16 %v2657, %v2649
  %v3674 = vpack.c.b16 %v2658, %v2650
  %v3675 = vpack.c.b16 %v2667, %v2659
  %v3676 = vpack.c.b16 %v2668, %v2660
  %v3677 = vpack.c.b16 %v2669, %v2661
  %v3678 = vpack.c.b16 %v2670, %v2662
  %v3679 = vpack.c.b16 %v2671, %v2663
  %v3680 = vpack.c.b16 %v2672, %v2664
  %v3681 = vpack.c.b16 %v2673, %v2665
  %v3682 = vpack.c.b16 %v2674, %v2666
  %v3683 = vpack.c.b16 %v2683, %v2675
  %v3684 = vpack.c.b16 %v2684, %v2676
  %v3685 = vpack.c.b16 %v2685, %v2677
  %v3686 = vpack.c.b16 %v2686, %v2678
  %v3687 = vpack.c.b16 %v2687, %v2679
  %v3688 = vpack.c.b16 %v2688, %v2680
  %v3689 = vpack.c.b16 %v2689, %v2681
  %v3690 = vpack.c.b16 %v2690, %v2682
  %v3691 = vpack.c.b16 %v2699, %v2691
  %v3692 = vpack.c.b16 %v2700, %v2692
  %v3693 = vpack.c.b16 %v2701, %v2693
  %v3694 = vpack.c.b16 %v2702, %v2694
  %v3695 = vpack.c.b16 %v2703, %v2695
  %v3696 = vpack.c.b16 %v2704, %v2696
  %v3697 = vpack.c.b16 %v2705, %v2697
  %v3698 = vpack.c.b16 %v2706, %v2698
  %v3699 = vpack.c.b16 %v2715, %v2707
  %v3700 = vpack.c.b16 %v2716, %v2708
  %v3701 = vpack.c.b16 %v2717, %v2709
  %v3702 = vpack.c.b16 %v2718, %v2710
  %v3703 = vpack.c.b16 %v2719, %v2711
  %v3704 = vpack.c.b16 %v2720, %v2712
  %v3705 = vpack.c.b16 %v2721, %v2713
  %v3706 = vpack.c.b16 %v2722, %v2714
  %v3707 = vpack.c.b16 %v2731, %v2723
  %v3708 = vpack.c.b16 %v2732, %v2724
  %v3709 = vpack.c.b16 %v2733, %v2725
  %v3710 = vpack.c.b16 %v2734, %v2726
  %v3711 = vpack.c.b16 %v2735, %v2727
  %v3712 = vpack.c.b16 %v2736, %v2728
  %v3713 = vpack.c.b16 %v2737, %v2729
  %v3714 = vpack.c.b16 %v2738, %v2730
  %v3715 = vpack.c.b16 %v2747, %v2739
  %v3716 = vpack.c.b16 %v2748, %v2740
  %v3717 = vpack.c.b16 %v2749, %v2741
  %v3718 = vpack.c.b16 %v2750, %v2742
  %v3719 = vpack.c.b16 %v2751, %v2743
  %v3720 = vpack.c.b16 %v2752, %v2744
  %v3721 = vpack.c.b16 %v2753, %v2745
  %v3722 = vpack.c.b16 %v2754, %v2746
  %v3723 = vpack.c.b16 %v2763, %v2755
  %v3724 = vpack.c.b16 %v2764, %v2756
  %v3725 = vpack.c.b16 %v2765, %v2757
  %v3726 = vpack.c.b16 %v2766, %v2758
  %v3727 = vpack.c.b16 %v2767, %v2759
  %v3728 = vpack.c.b16 %v2768, %v2760
  %v3729 = vpack.c.b16 %v2769, %v2761
  %v3730 = vpack.c.b16 %v2770, %v2762
  %v3731 = vpack.c.b16 %v2779, %v2771
  %v3732 = vpack.c.b16 %v2780, %v2772
  %v3733 = vpack.c.b16 %v2781, %v2773
  %v3734 = vpack.c.b16 %v2782, %v2774
  %v3735 = vpack.c.b16 %v2783, %v2775
  %v3736 = vpack.c.b16 %v2784, %v2776
  %v3737 = vpack.c.b16 %v2785, %v2777
  %v3738 = vpack.c.b16 %v2786, %v2778
  %v3739 = vpack.c.b16 %v2795, %v2787
  %v3740 = vpack.c.b16 %v2796, %v2788
  %v3741 = vpack.c.b16 %v2797, %v2789
  %v3742 = vpack.c.b16 %v2798, %v2790
  %v3743 = vpack.c.b16 %v2799, %v2791
  %v3744 = vpack.c.b16 %v2800, %v2792
  %v3745 = vpack.c.b16 %v2801, %v2793
  %v3746 = vpack.c.b16 %v2802, %v2794
  %v3747 = vpack.c.b16 %v2811, %v2803
  %v3748 = vpack.c.b16 %v2812, %v2804
  %v3749 = vpack.c.b16 %v2813, %v2805
  %v3750 = vpack.c.b16 %v2814, %v2806
  %v3751 = vpack.c.b16 %v2815, %v2807
  %v3752 = vpack.c.b16 %v2816, %v2808
  %v3753 = vpack.c.b16 %v2817, %v2809
  %v3754 = vpack.c.b16 %v2818, %v2810
  %v3755 = vpack.c.b16 %v2827, %v2819
  %v3756 = vpack.c.b16 %v2828, %v2820
  %v3757 = vpack.c.b16 %v2829, %v2821
  %v3758 = vpack.c.b16 %v2830, %v2822
  %v3759 = vpack.c.b16 %v2831, %v2823
  %v3760 = vpack.c.b16 %v2832, %v2824
  %v3761 = vpack.c.b16 %v2833, %v2825
  %v3762 = vpack.c.b16 %v2834, %v2826
  %v3763 = vpack.c.b16 %v2843, %v2835
  %v3764 = vpack.c.b16 %v2844, %v2836
  %v3765 = vpack.c.b16 %v2845, %v2837
  %v3766 = vpack.c.b16 %v2846, %v2838
  %v3767 = vpack.c.b16 %v2847, %v2839
  %v3768 = vpack.c.b16 %v2848, %v2840
  %v3769 = vpack.c.b16 %v2849, %v2841
  %v3770 = vpack.c.b16 %v2850, %v2842
  %v3771 = vpack.c.b16 %v2859, %v2851
  %v3772 = vpack.c.b16 %v2860, %v2852
  %v3773 = vpack.c.b16 %v2861, %v2853
  %v3774 = vpack.c.b16 %v2862, %v2854
  %v3775 = vpack.c.b16 %v2863, %v2855
  %v3776 = vpack.c.b16 %v2864, %v2856
  %v3777 = vpack.c.b16 %v2865, %v2857
  %v3778 = vpack.c.b16 %v2866, %v2858
  %v3779 = vpack.c.b16 %v2875, %v2867
  %v3780 = vpack.c.b16 %v2876, %v2868
  %v3781 = vpack.c.b16 %v2877, %v2869
  %v3782 = vpack.c.b16 %v2878, %v2870
  %v3783 = vpack.c.b16 %v2879, %v2871
  %v3784 = vpack.c.b16 %v2880, %v2872
  %v3785 = vpack.c.b16 %v2881, %v2873
  %v3786 = vpack.c.b16 %v2882, %v2874
  %v3787 = vpack.c.b16 %v2891, %v2883
  %v3788 = vpack.c.b16 %v2892, %v2884
  %v3789 = vpack.c.b16 %v2893, %v2885
  %v3790 = vpack.c.b16 %v2894, %v2886
  %v3791 = vpack.c.b16 %v2895, %v2887
  %v3792 = vpack.c.b16 %v2896, %v2888
  %v3793 = vpack.c.b16 %v2897, %v2889
  %v3794 = vpack.c.b16 %v2898, %v2890
  %v3795 = vpack.c.b16 %v2907, %v2899
  %v3796 = vpack.c.b16 %v2908, %v2900
  %v3797 = vpack.c.b16 %v2909, %v2901
  %v3798 = vpack.c.b16 %v2910, %v2902
  %v3799 = vpack.c.b16 %v2911, %v2903
  %v3800 = vpack.c.b16 %v2912, %v2904
  %v3801 = vpack.c.b16 %v2913, %v2905
  %v3802 = vpack.c.b16 %v2914, %v2906
  %v3803 = vpack.c.b16 %v2923, %v2915
  %v3804 = vpack.c.b16 %v2924, %v2916
  %v3805 = vpack.c.b16 %v2925, %v2917
  %v3806 = vpack.c.b16 %v2926, %v2918
  %v3807 = vpack.c.b16 %v2927, %v2919
  %v3808 = vpack.c.b16 %v2928, %v2920
  %v3809 = vpack.c.b16 %v2929, %v2921
  %v3810 = vpack.c.b16 %v2930, %v2922
  %v3811 = vpack.c.b16 %v2939, %v2931
  %v3812 = vpack.c.b16 %v2940, %v2932
  %v3813 = vpack.c.b16 %v2941, %v2933
  %v3814 = vpack.c.b16 %v2942, %v2934
  %v3815 = vpack.c.b16 %v2943, %v2935
  %v3816 = vpack.c.b16 %v2944, %v2936
  %v3817 = vpack.c.b16 %v2945, %v2937
  %v3818 = vpack.c.b16 %v2946, %v2938
  %v3819 = vpack.c.b16 %v2955, %v2947
  %v3820 = vpack.c.b16 %v2956, %v2948
  %v3821 = vpack.c.b16 %v2957, %v2949
  %v3822 = vpack.c.b16 %v2958, %v2950
  %v3823 = vpack.c.b16 %v2959, %v2951
  %v3824 = vpack.c.b16 %v2960, %v2952
  %v3825 = vpack.c.b16 %v2961, %v2953
  %v3826 = vpack.c.b16 %v2962, %v2954
  %v3827 = vpack.c.b16 %v2971, %v2963
  %v3828 = vpack.c.b16 %v2972, %v2964
  %v3829 = vpack.c.b16 %v2973, %v2965
  %v3830 = vpack.c.b16 %v2974, %v2966
  %v3831 = vpack.c.b16 %v2975, %v2967
  %v3832 = vpack.c.b16 %v2976, %v2968
  %v3833 = vpack.c.b16 %v2977, %v2969
  %v3834 = vpack.c.b16 %v2978, %v2970
  %v3835 = vpack.c.b16 %v2987, %v2979
  %v3836 = vpack.c.b16 %v2988, %v2980
  %v3837 = vpack.c.b16 %v2989, %v2981
  %v3838 = vpack.c.b16 %v2990, %v2982
  %v3839 = vpack.c.b16 %v2991, %v2983
  %v3840 = vpack.c.b16 %v2992, %v2984
  %v3841 = vpack.c.b16 %v2993, %v2985
  %v3842 = vpack.c.b16 %v2994, %v2986
  %v3843 = vpack.c.b16 %v3003, %v2995
  %v3844 = vpack.c.b16 %v3004, %v2996
  %v3845 = vpack.c.b16 %v3005, %v2997
  %v3846 = vpack.c.b16 %v3006, %v2998
  %v3847 = vpack.c.b16 %v3007, %v2999
  %v3848 = vpack.c.b16 %v3008, %v3000
  %v3849 = vpack.c.b16 %v3009, %v3001
  %v3850 = vpack.c.b16 %v3010, %v3002
  %v3851 = vpack.c.b16 %v3019, %v3011
  %v3852 = vpack.c.b16 %v3020, %v3012
  %v3853 = vpack.c.b16 %v3021, %v3013
  %v3854 = vpack.c.b16 %v3022, %v3014
  %v3855 = vpack.c.b16 %v3023, %v3015
  %v3856 = vpack.c.b16 %v3024, %v3016
  %v3857 = vpack.c.b16 %v3025, %v3017
  %v3858 = vpack.c.b16 %v3026, %v3018
  %v3859 = vpack.c.b16 %v3035, %v3027
  %v3860 = vpack.c.b16 %v3036, %v3028
  %v3861 = vpack.c.b16 %v3037, %v3029
  %v3862 = vpack.c.b16 %v3038, %v3030
  %v3863 = vpack.c.b16 %v3039, %v3031
  %v3864 = vpack.c.b16 %v3040, %v3032
  %v3865 = vpack.c.b16 %v3041, %v3033
  %v3866 = vpack.c.b16 %v3042, %v3034
  %v3867 = vpack.c.b16 %v3051, %v3043
  %v3868 = vpack.c.b16 %v3052, %v3044
  %v3869 = vpack.c.b16 %v3053, %v3045
  %v3870 = vpack.c.b16 %v3054, %v3046
  %v3871 = vpack.c.b16 %v3055, %v3047
  %v3872 = vpack.c.b16 %v3056, %v3048
  %v3873 = vpack.c.b16 %v3057, %v3049
  %v3874 = vpack.c.b16 %v3058, %v3050
  %v3875 = vpack.c.b16 %v3067, %v3059
  %v3876 = vpack.c.b16 %v3068, %v3060
  %v3877 = vpack.c.b16 %v3069, %v3061
  %v3878 = vpack.c.b16 %v3070, %v3062
  %v3879 = vpack.c.b16 %v3071, %v3063
  %v3880 = vpack.c.b16 %v3072, %v3064
  %v3881 = vpack.c.b16 %v3073, %v3065
  %v3882 = vpack.c.b16 %v3074, %v3066
  %v3883 = vpack.c.b16 %v3083, %v3075
  %v3884 = vpack.c.b16 %v3084, %v3076
  %v3885 = vpack.c.b16 %v3085, %v3077
  %v3886 = vpack.c.b16 %v3086, %v3078
  %v3887 = vpack.c.b16 %v3087, %v3079
  %v3888 = vpack.c.b16 %v3088, %v3080
  %v3889 = vpack.c.b16 %v3089, %v3081
  %v3890 = vpack.c.b16 %v3090, %v3082
  %v3891 = vpack.c.b16 %v3099, %v3091
  %v3892 = vpack.c.b16 %v3100, %v3092
  %v3893 = vpack.c.b16 %v3101, %v3093
  %v3894 = vpack.c.b16 %v3102, %v3094
  %v3895 = vpack.c.b16 %v3103, %v3095
  %v3896 = vpack.c.b16 %v3104, %v3096
  %v3897 = vpack.c.b16 %v3105, %v3097
  %v3898 = vpack.c.b16 %v3106, %v3098
  %v3899 = vpack.c.b16 %v3115, %v3107
  %v3900 = vpack.c.b16 %v3116, %v3108
  %v3901 = vpack.c.b16 %v3117, %v3109
  %v3902 = vpack.c.b16 %v3118, %v3110
  %v3903 = vpack.c.b16 %v3119, %v3111
  %v3904 = vpack.c.b16 %v3120, %v3112
  %v3905 = vpack.c.b16 %v3121, %v3113
  %v3906 = vpack.c.b16 %v3122, %v3114
  %v3907 = vpack.c.b16 %v3131, %v3123
  %v3908 = vpack.c.b16 %v3132, %v3124
  %v3909 = vpack.c.b16 %v3133, %v3125
  %v3910 = vpack.c.b16 %v3134, %v3126
  %v3911 = vpack.c.b16 %v3135, %v3127
  %v3912 = vpack.c.b16 %v3136, %v3128
  %v3913 = vpack.c.b16 %v3137, %v3129
  %v3914 = vpack.c.b16 %v3138, %v3130
  %v3915 = vpack.c.b16 %v3147, %v3139
  %v3916 = vpack.c.b16 %v3148, %v3140
  %v3917 = vpack.c.b16 %v3149, %v3141
  %v3918 = vpack.c.b16 %v3150, %v3142
  %v3919 = vpack.c.b16 %v3151, %v3143
  %v3920 = vpack.c.b16 %v3152, %v3144
  %v3921 = vpack.c.b16 %v3153, %v3145
  %v3922 = vpack.c.b16 %v3154, %v3146
  %v3923 = vpack.c.b16 %v3163, %v3155
  %v3924 = vpack.c.b16 %v3164, %v3156
  %v3925 = vpack.c.b16 %v3165, %v3157
  %v3926 = vpack.c.b16 %v3166, %v3158
  %v3927 = vpack.c.b16 %v3167, %v3159
  %v3928 = vpack.c.b16 %v3168, %v3160
  %v3929 = vpack.c.b16 %v3169, %v3161
  %v3930 = vpack.c.b16 %v3170, %v3162
  %v3931 = vpack.c.b16 %v3179, %v3171
  %v3932 = vpack.c.b16 %v3180, %v3172
  %v3933 = vpack.c.b16 %v3181, %v3173
  %v3934 = vpack.c.b16 %v3182, %v3174
  %v3935 = vpack.c.b16 %v3183, %v3175
  %v3936 = vpack.c.b16 %v3184, %v3176
  %v3937 = vpack.c.b16 %v3185, %v3177
  %v3938 = vpack.c.b16 %v3186, %v3178
  %v3939 = vpack.c.b16 %v3195, %v3187
  %v3940 = vpack.c.b16 %v3196, %v3188
  %v3941 = vpack.c.b16 %v3197, %v3189
  %v3942 = vpack.c.b16 %v3198, %v3190
  %v3943 = vpack.c.b16 %v3199, %v3191
  %v3944 = vpack.c.b16 %v3200, %v3192
  %v3945 = vpack.c.b16 %v3201, %v3193
  %v3946 = vpack.c.b16 %v3202, %v3194
  %v3947 = vpack.c.b16 %v3211, %v3203
  %v3948 = vpack.c.b16 %v3212, %v3204
  %v3949 = vpack.c.b16 %v3213, %v3205
  %v3950 = vpack.c.b16 %v3214, %v3206
  %v3951 = vpack.c.b16 %v3215, %v3207
  %v3952 = vpack.c.b16 %v3216, %v3208
  %v3953 = vpack.c.b16 %v3217, %v3209
  %v3954 = vpack.c.b16 %v3218, %v3210
  %v3955 = vpack.c.b16 %v3227, %v3219
  %v3956 = vpack.c.b16 %v3228, %v3220
  %v3957 = vpack.c.b16 %v3229, %v3221
  %v3958 = vpack.c.b16 %v3230, %v3222
  %v3959 = vpack.c.b16 %v3231, %v3223
  %v3960 = vpack.c.b16 %v3232, %v3224
  %v3961 = vpack.c.b16 %v3233, %v3225
  %v3962 = vpack.c.b16 %v3234, %v3226
  %v3963 = vpack.c.b16 %v3243, %v3235
  %v3964 = vpack.c.b16 %v3244, %v3236
  %v3965 = vpack.c.b16 %v3245, %v3237
  %v3966 = vpack.c.b16 %v3246, %v3238
  %v3967 = vpack.c.b16 %v3247, %v3239
  %v3968 = vpack.c.b16 %v3248, %v3240
  %v3969 = vpack.c.b16 %v3249, %v3241
  %v3970 = vpack.c.b16 %v3250, %v3242
  %v3971 = vpack.c.b16 %v3259, %v3251
  %v3972 = vpack.c.b16 %v3260, %v3252
  %v3973 = vpack.c.b16 %v3261, %v3253
  %v3974 = vpack.c.b16 %v3262, %v3254
  %v3975 = vpack.c.b16 %v3263, %v3255
  %v3976 = vpack.c.b16 %v3264, %v3256
  %v3977 = vpack.c.b16 %v3265, %v3257
  %v3978 = vpack.c.b16 %v3266, %v3258
  %v3979 = vpack.c.b16 %v3275, %v3267
  %v3980 = vpack.c.b16 %v3276, %v3268
  %v3981 = vpack.c.b16 %v3277, %v3269
  %v3982 = vpack.c.b16 %v3278, %v3270
  %v3983 = vpack.c.b16 %v3279, %v3271
  %v3984 = vpack.c.b16 %v3280, %v3272
  %v3985 = vpack.c.b16 %v3281, %v3273
  %v3986 = vpack.c.b16 %v3282, %v3274
  %v3987 = vpack.c.b16 %v3291, %v3283
  %v3988 = vpack.c.b16 %v3292, %v3284
  %v3989 = vpack.c.b16 %v3293, %v3285
  %v3990 = vpack.c.b16 %v3294, %v3286
  %v3991 = vpack.c.b16 %v3295, %v3287
  %v3992 = vpack.c.b16 %v3296, %v3288
  %v3993 = vpack.c.b16 %v3297, %v3289
  %v3994 = vpack.c.b16 %v3298, %v3290
  %v3995 = vpack.c.b16 %v3307, %v3299
  %v3996 = vpack.c.b16 %v3308, %v3300
  %v3997 = vpack.c.b16 %v3309, %v3301
  %v3998 = vpack.c.b16 %v3310, %v3302
  %v3999 = vpack.c.b16 %v3311, %v3303
  %v4000 = vpack.c.b16 %v3312, %v3304
  %v4001 = vpack.c.b16 %v3313, %v3305
  %v4002 = vpack.c.b16 %v3314, %v3306
  %v4003 = vpack.c.b16 %v3323, %v3315
  %v4004 = vpack.c.b16 %v3324, %v3316
  %v4005 = vpack.c.b16 %v3325, %v3317
  %v4006 = vpack.c.b16 %v3326, %v3318
  %v4007 = vpack.c.b16 %v3327, %v3319
  %v4008 = vpack.c.b16 %v3328, %v3320
  %v4009 = vpack.c.b16 %v3329, %v3321
  %v4010 = vpack.c.b16 %v3330, %v3322
  %v4011 = vpack.c.b16 %v3339, %v3331
  %v4012 = vpack.c.b16 %v3340, %v3332
  %v4013 = vpack.c.b16 %v3341, %v3333
  %v4014 = vpack.c.b16 %v3342, %v3334
  %v4015 = vpack.c.b16 %v3343, %v3335
  %v4016 = vpack.c.b16 %v3344, %v3336
  %v4017 = vpack.c.b16 %v3345, %v3337
  %v4018 = vpack.c.b16 %v3346, %v3338
  %v4019 = vpack.c.b16 %v3355, %v3347
  %v4020 = vpack.c.b16 %v3356, %v3348
  %v4021 = vpack.c.b16 %v3357, %v3349
  %v4022 = vpack.c.b16 %v3358, %v3350
  %v4023 = vpack.c.b16 %v3359, %v3351
  %v4024 = vpack.c.b16 %v3360, %v3352
  %v4025 = vpack.c.b16 %v3361, %v3353
  %v4026 = vpack.c.b16 %v3362, %v3354
  %v4027 = vpack.c.b16 %v3371, %v3363
  %v4028 = vpack.c.b16 %v3372, %v3364
  %v4029 = vpack.c.b16 %v3373, %v3365
  %v4030 = vpack.c.b16 %v3374, %v3366
  %v4031 = vpack.c.b16 %v3375, %v3367
  %v4032 = vpack.c.b16 %v3376, %v3368
  %v4033 = vpack.c.b16 %v3377, %v3369
  %v4034 = vpack.c.b16 %v3378, %v3370
  %v4035 = vpack.c.b16 %v3387, %v3379
  %v4036 = vpack.c.b16 %v3388, %v3380
  %v4037 = vpack.c.b16 %v3389, %v3381
  %v4038 = vpack.c.b16 %v3390, %v3382
  %v4039 = vpack.c.b16 %v3391, %v3383
  %v4040 = vpack.c.b16 %v3392, %v3384
  %v4041 = vpack.c.b16 %v3393, %v3385
  %v4042 = vpack.c.b16 %v3394, %v3386
  %v4043 = vpack.c.b16 %v3403, %v3395
  %v4044 = vpack.c.b16 %v3404, %v3396
  %v4045 = vpack.c.b16 %v3405, %v3397
  %v4046 = vpack.c.b16 %v3406, %v3398
  %v4047 = vpack.c.b16 %v3407, %v3399
  %v4048 = vpack.c.b16 %v3408, %v3400
  %v4049 = vpack.c.b16 %v3409, %v3401
  %v4050 = vpack.c.b16 %v3410, %v3402
  %v4051 = vpack.c.b16 %v3419, %v3411
  %v4052 = vpack.c.b16 %v3420, %v3412
  %v4053 = vpack.c.b16 %v3421, %v3413
  %v4054 = vpack.c.b16 %v3422, %v3414
  %v4055 = vpack.c.b16 %v3423, %v3415
  %v4056 = vpack.c.b16 %v3424, %v3416
  %v4057 = vpack.c.b16 %v3425, %v3417
  %v4058 = vpack.c.b16 %v3426, %v3418
  %v4059 = vpack.c.b16 %v3435, %v3427
  %v4060 = vpack.c.b16 %v3436, %v3428
  %v4061 = vpack.c.b16 %v3437, %v3429
  %v4062 = vpack.c.b16 %v3438, %v3430
  %v4063 = vpack.c.b16 %v3439, %v3431
  %v4064 = vpack.c.b16 %v3440, %v3432
  %v4065 = vpack.c.b16 %v3441, %v3433
  %v4066 = vpack.c.b16 %v3442, %v3434
  %v4067 = vpack.c.b16 %v3451, %v3443
  %v4068 = vpack.c.b16 %v3452, %v3444
  %v4069 = vpack.c.b16 %v3453, %v3445
  %v4070 = vpack.c.b16 %v3454, %v3446
  %v4071 = vpack.c.b16 %v3455, %v3447
  %v4072 = vpack.c.b16 %v3456, %v3448
  %v4073 = vpack.c.b16 %v3457, %v3449
  %v4074 = vpack.c.b16 %v3458, %v3450
  %v4075 = vpack.c.b16 %v3467, %v3459
  %v4076 = vpack.c.b16 %v3468, %v3460
  %v4077 = vpack.c.b16 %v3469, %v3461
  %v4078 = vpack.c.b16 %v3470, %v3462
  %v4079 = vpack.c.b16 %v3471, %v3463
  %v4080 = vpack.c.b16 %v3472, %v3464
  %v4081 = vpack.c.b16 %v3473, %v3465
  %v4082 = vpack.c.b16 %v3474, %v3466
  %v4083 = vpack.c.b16 %v3483, %v3475
  %v4084 = vpack.c.b16 %v3484, %v3476
  %v4085 = vpack.c.b16 %v3485, %v3477
  %v4086 = vpack.c.b16 %v3486, %v3478
  %v4087 = vpack.c.b16 %v3487, %v3479
  %v4088 = vpack.c.b16 %v3488, %v3480
  %v4089 = vpack.c.b16 %v3489, %v3481
  %v4090 = vpack.c.b16 %v3490, %v3482
  %v4091 = vpack.c.b16 %v3499, %v3491
  %v4092 = vpack.c.b16 %v3500, %v3492
  %v4093 = vpack.c.b16 %v3501, %v3493
  %v4094 = vpack.c.b16 %v3502, %v3494
  %v4095 = vpack.c.b16 %v3503, %v3495
  %v4096 = vpack.c.b16 %v3504, %v3496
  %v4097 = vpack.c.b16 %v3505, %v3497
  %v4098 = vpack.c.b16 %v3506, %v3498
  %v4099 = vpack.c.b16 %v3515, %v3507
  %v4100 = vpack.c.b16 %v3516, %v3508
  %v4101 = vpack.c.b16 %v3517, %v3509
  %v4102 = vpack.c.b16 %v3518, %v3510
  %v4103 = vpack.c.b16 %v3519, %v3511
  %v4104 = vpack.c.b16 %v3520, %v3512
  %v4105 = vpack.c.b16 %v3521, %v3513
  %v4106 = vpack.c.b16 %v3522, %v3514
  %v4107 = vpack.c.b16 %v3531, %v3523
  %v4108 = vpack.c.b16 %v3532, %v3524
  %v4109 = vpack.c.b16 %v3533, %v3525
  %v4110 = vpack.c.b16 %v3534, %v3526
  %v4111 = vpack.c.b16 %v3535, %v3527
  %v4112 = vpack.c.b16 %v3536, %v3528
  %v4113 = vpack.c.b16 %v3537, %v3529
  %v4114 = vpack.c.b16 %v3538, %v3530
  %v4115 = vpack.c.b16 %v3547, %v3539
  %v4116 = vpack.c.b16 %v3548, %v3540
  %v4117 = vpack.c.b16 %v3549, %v3541
  %v4118 = vpack.c.b16 %v3550, %v3542
  %v4119 = vpack.c.b16 %v3551, %v3543
  %v4120 = vpack.c.b16 %v3552, %v3544
  %v4121 = vpack.c.b16 %v3553, %v3545
  %v4122 = vpack.c.b16 %v3554, %v3546
  %v4123 = vpack.c.b16 %v3563, %v3555
  %v4124 = vpack.c.b16 %v3564, %v3556
  %v4125 = vpack.c.b16 %v3565, %v3557
  %v4126 = vpack.c.b16 %v3566, %v3558
  %v4127 = vpack.c.b16 %v3567, %v3559
  %v4128 = vpack.c.b16 %v3568, %v3560
  %v4129 = vpack.c.b16 %v3569, %v3561
  %v4130 = vpack.c.b16 %v3570, %v3562
  %v4131 = vpack.c.b16 %v3579, %v3571
  %v4132 = vpack.c.b16 %v3580, %v3572
  %v4133 = vpack.c.b16 %v3581, %v3573
  %v4134 = vpack.c.b16 %v3582, %v3574
  %v4135 = vpack.c.b16 %v3583, %v3575
  %v4136 = vpack.c.b16 %v3584, %v3576
  %v4137 = vpack.c.b16 %v3585, %v3577
  %v4138 = vpack.c.b16 %v3586, %v3578
  %v4139 = vpack.c.b16 %v3595, %v3587
  %v4140 = vpack.c.b16 %v3596, %v3588
  %v4141 = vpack.c.b16 %v3597, %v3589
  %v4142 = vpack.c.b16 %v3598, %v3590
  %v4143 = vpack.c.b16 %v3599, %v3591
  %v4144 = vpack.c.b16 %v3600, %v3592
  %v4145 = vpack.c.b16 %v3601, %v3593
  %v4146 = vpack.c.b16 %v3602, %v3594
  %v4147 = vpack.c.b16 %v3611, %v3603
  %v4148 = vpack.c.b16 %v3612, %v3604
  %v4149 = vpack.c.b16 %v3613, %v3605
  %v4150 = vpack.c.b16 %v3614, %v3606
  %v4151 = vpack.c.b16 %v3615, %v3607
  %v4152 = vpack.c.b16 %v3616, %v3608
  %v4153 = vpack.c.b16 %v3617, %v3609
  %v4154 = vpack.c.b16 %v3618, %v3610
  %v4155 = vpack.c.b16 %v3627, %v3619
  %v4156 = vpack.c.b16 %v3628, %v3620
  %v4157 = vpack.c.b16 %v3629, %v3621
  %v4158 = vpack.c.b16 %v3630, %v3622
  %v4159 = vpack.c.b16 %v3631, %v3623
  %v4160 = vpack.c.b16 %v3632, %v3624
  %v4161 = vpack.c.b16 %v3633, %v3625
  %v4162 = vpack.c.b16 %v3634, %v3626
  %v4163 = vpack.c.b16 %v3643, %v3635
  %v4164 = vpack.c.b16 %v3644, %v3636
  %v4165 = vpack.c.b16 %v3645, %v3637
  %v4166 = vpack.c.b16 %v3646, %v3638
  %v4167 = vpack.c.b16 %v3647, %v3639
  %v4168 = vpack.c.b16 %v3648, %v3640
  %v4169 = vpack.c.b16 %v3649, %v3641
  %v4170 = vpack.c.b16 %v3650, %v3642
  %v4171 = vpack.c.b16 %v3659, %v3651
  %v4172 = vpack.c.b16 %v3660, %v3652
  %v4173 = vpack.c.b16 %v3661, %v3653
  %v4174 = vpack.c.b16 %v3662, %v3654
  %v4175 = vpack.c.b16 %v3663, %v3655
  %v4176 = vpack.c.b16 %v3664, %v3656
  %v4177 = vpack.c.b16 %v3665, %v3657
  %v4178 = vpack.c.b16 %v3666, %v3658
  %4691 = vmatprep.subr.bf16.mxu0 %v3668
  %4692 = vmatpush1.bf16.msra.mxu0 %v3667
  %4693 = vmatprep.subr.bf16.mxu0 %v3676
  %4694 = vmatpush1.bf16.msra.mxu0 %v3675
  %4695 = vmatprep.subr.bf16.mxu0 %v3684
  %4696 = vmatpush1.bf16.msra.mxu0 %v3683
  %4697 = vmatprep.subr.bf16.mxu0 %v3692
  %4698 = vmatpush1.bf16.msra.mxu0 %v3691
  %4699 = vmatprep.subr.bf16.mxu0 %v3700
  %4700 = vmatpush1.bf16.msra.mxu0 %v3699
  %4701 = vmatprep.subr.bf16.mxu0 %v3708
  %4702 = vmatpush1.bf16.msra.mxu0 %v3707
  %4703 = vmatprep.subr.bf16.mxu0 %v3716
  %4704 = vmatpush1.bf16.msra.mxu0 %v3715
  %4705 = vmatprep.subr.bf16.mxu0 %v3724
  %4706 = vmatpush1.bf16.msra.mxu0 %v3723
  %4707 = vmatprep.subr.bf16.mxu0 %v3732
  %4708 = vmatpush1.bf16.msra.mxu0 %v3731
  %4709 = vmatprep.subr.bf16.mxu0 %v3740
  %4710 = vmatpush1.bf16.msra.mxu0 %v3739
  %4711 = vmatprep.subr.bf16.mxu0 %v3748
  %4712 = vmatpush1.bf16.msra.mxu0 %v3747
  %4713 = vmatprep.subr.bf16.mxu0 %v3756
  %4714 = vmatpush1.bf16.msra.mxu0 %v3755
  %4715 = vmatprep.subr.bf16.mxu0 %v3764
  %4716 = vmatpush1.bf16.msra.mxu0 %v3763
  %4717 = vmatprep.subr.bf16.mxu0 %v3772
  %4718 = vmatpush1.bf16.msra.mxu0 %v3771
  %4719 = vmatprep.subr.bf16.mxu0 %v3780
  %4720 = vmatpush1.bf16.msra.mxu0 %v3779
  %4721 = vmatprep.subr.bf16.mxu0 %v3788
  %4722 = vmatpush1.bf16.msra.mxu0 %v3787
  %4723 = vmatprep.mubr.bf16.mxu0 %v1514
  %4724 = vmatmul.mubr.bf16.gmra.mrb[0].mxu0 %v1513
  %v4725 = vpop.f32.mrb[0].mxu0
  %v4726 = vadd.f32 %v2094, %v4725
  %v4727 = vpop.f32.mrb[0].mxu0
  %v4728 = vadd.f32 %v2098, %v4727
  %v4729 = vpop.f32.mrb[0].mxu0
  %v4730 = vadd.f32 %v2094, %v4729
  %v4731 = vpop.f32.mrb[0].mxu0
  %v4732 = vadd.f32 %v2098, %v4731
  %4733 = vmatprep.mubr.bf16.mxu0 %v1522
  %4734 = vmatmul.mubr.bf16.gmra.mrb[0].mxu0 %v1521
  %v4735 = vpop.f32.mrb[0].mxu0
  %v4736 = vadd.f32 %v2094, %v4735
  %v4737 = vpop.f32.mrb[0].mxu0
  %v4738 = vadd.f32 %v2098, %v4737
  %v4739 = vpop.f32.mrb[0].mxu0
  %v4740 = vadd.f32 %v2094, %v4739
  %v4741 = vpop.f32.mrb[0].mxu0
  %v4742 = vadd.f32 %v2098, %v4741
  %4743 = vmatprep.mubr.bf16.mxu0 %v1530
  %4744 = vmatmul.mubr.bf16.gmra.mrb[0].mxu0 %v1529
  %v4745 = vpop.f32.mrb[0].mxu0
  %v4746 = vadd.f32 %v2094, %v4745
  %v4747 = vpop.f32.mrb[0].mxu0
  %v4748 = vadd.f32 %v2098, %v4747
  %v4749 = vpop.f32.mrb[0].mxu0
  %v4750 = vadd.f32 %v2094, %v4749
  %v4751 = vpop.f32.mrb[0].mxu0
  %v4752 = vadd.f32 %v2098, %v4751
  %4753 = vmatprep.mubr.bf16.mxu0 %v1538
  %4754 = vmatmul.mubr.bf16.gmra.mrb[0].mxu0 %v1537
  %v4755 = vpop.f32.mrb[0].mxu0
  %v4756 = vadd.f32 %v2094, %v4755
  %v4757 = vpop.f32.mrb[0].mxu0
  %v4758 = vadd.f32 %v2098, %v4757
  %v4759 = vpop.f32.mrb[0].mxu0
  %v4760 = vadd.f32 %v2094, %v4759
  %v4761 = vpop.f32.mrb[0].mxu0
  %v4762 = vadd.f32 %v2098, %v4761
  %4763 = vmatprep.mubr.bf16.mxu0 %v1546
  %4764 = vmatmul.mubr.bf16.gmra.mrb[0].mxu0 %v1545
  %v4765 = vpop.f32.mrb[0].mxu0
  %v4766 = vadd.f32 %v2094, %v4765
  %v4767 = vpop.f32.mrb[0].mxu0
  %v4768 = vadd.f32 %v2098, %v4767
  %v4769 = vpop.f32.mrb[0].mxu0
  %v4770 = vadd.f32 %v2094, %v4769
  %v4771 = vpop.f32.mrb[0].mxu0
  %v4772 = vadd.f32 %v2098, %v4771
  %4773 = vmatprep.mubr.bf16.mxu0 %v1554
  %4774 = vmatmul.mubr.bf16.gmra.mrb[0].mxu0 %v1553
  %v4775 = vpop.f32.mrb[0].mxu0
  %v4776 = vadd.f32 %v2094, %v4775
  %v4777 = vpop.f32.mrb[0].mxu0
  %v4778 = vadd.f32 %v2098, %v4777
  %v4779 = vpop.f32.mrb[0].mxu0
  %v4780 = vadd.f32 %v2094, %v4779
  %v4781 = vpop.f32.mrb[0].mxu0
  %v4782 = vadd.f32 %v2098, %v4781
  %4783 = vmatprep.mubr.bf16.mxu0 %v1562
  %4784 = vmatmul.mubr.bf16.gmra.mrb[0].mxu0 %v1561
  %v4785 = vpop.f32.mrb[0].mxu0
  %v4786 = vadd.f32 %v2094, %v4785
  %v4787 = vpop.f32.mrb[0].mxu0
  %v4788 = vadd.f32 %v2098, %v4787
  %v4789 = vpop.f32.mrb[0].mxu0
  %v4790 = vadd.f32 %v2094, %v4789
  %v4791 = vpop.f32.mrb[0].mxu0
  %v4792 = vadd.f32 %v2098, %v4791
  %4793 = vmatprep.mubr.bf16.mxu0 %v1570
  %4794 = vmatmul.mubr.bf16.gmra.mrb[0].mxu0 %v1569
  %v4795 = vpop.f32.mrb[0].mxu0
  %v4796 = vadd.f32 %v2094, %v4795
  %v4797 = vpop.f32.mrb[0].mxu0
  %v4798 = vadd.f32 %v2098, %v4797
  %v4799 = vpop.f32.mrb[0].mxu0
  %v4800 = vadd.f32 %v2094, %v4799
  %v4801 = vpop.f32.mrb[0].mxu0
  %v4802 = vadd.f32 %v2098, %v4801
  %4803 = vdwg.mxu0
  %4804 = vmatprep.subr.bf16.mxu0 %v3796
  %4805 = vmatpush1.bf16.msra.mxu0 %v3795
  %4806 = vmatprep.subr.bf16.mxu0 %v3804
  %4807 = vmatpush1.bf16.msra.mxu0 %v3803
  %4808 = vmatprep.subr.bf16.mxu0 %v3812
  %4809 = vmatpush1.bf16.msra.mxu0 %v3811
  %4810 = vmatprep.subr.bf16.mxu0 %v3820
  %4811 = vmatpush1.bf16.msra.mxu0 %v3819
  %4812 = vmatprep.subr.bf16.mxu0 %v3828
  %4813 = vmatpush1.bf16.msra.mxu0 %v3827
  %4814 = vmatprep.subr.bf16.mxu0 %v3836
  %4815 = vmatpush1.bf16.msra.mxu0 %v3835
  %4816 = vmatprep.subr.bf16.mxu0 %v3844
  %4817 = vmatpush1.bf16.msra.mxu0 %v3843
  %4818 = vmatprep.subr.bf16.mxu0 %v3852
  %4819 = vmatpush1.bf16.msra.mxu0 %v3851
  %4820 = vmatprep.subr.bf16.mxu0 %v3860
  %4821 = vmatpush1.bf16.msra.mxu0 %v3859
  %4822 = vmatprep.subr.bf16.mxu0 %v3868
  %4823 = vmatpush1.bf16.msra.mxu0 %v3867
  %4824 = vmatprep.subr.bf16.mxu0 %v3876
  %4825 = vmatpush1.bf16.msra.mxu0 %v3875
  %4826 = vmatprep.subr.bf16.mxu0 %v3884
  %4827 = vmatpush1.bf16.msra.mxu0 %v3883
  %4828 = vmatprep.subr.bf16.mxu0 %v3892
  %4829 = vmatpush1.bf16.msra.mxu0 %v3891
  %4830 = vmatprep.subr.bf16.mxu0 %v3900
  %4831 = vmatpush1.bf16.msra.mxu0 %v3899
  %4832 = vmatprep.subr.bf16.mxu0 %v3908
  %4833 = vmatpush1.bf16.msra.mxu0 %v3907
  %4834 = vmatprep.subr.bf16.mxu0 %v3916
  %4835 = vmatpush1.bf16.msra.mxu0 %v3915
  %4836 = vmatprep.mubr.bf16.mxu0 %v1516
  %4837 = vmatmul.mubr.bf16.gmra.mrb[0].mxu0 %v1515
  %v4838 = vpop.f32.mrb[0].mxu0
  %v4839 = vadd.f32 %v4726, %v4838
  %v4840 = vpop.f32.mrb[0].mxu0
  %v4841 = vadd.f32 %v4728, %v4840
  %v4842 = vpop.f32.mrb[0].mxu0
  %v4843 = vadd.f32 %v4730, %v4842
  %v4844 = vpop.f32.mrb[0].mxu0
  %v4845 = vadd.f32 %v4732, %v4844
  %4846 = vmatprep.mubr.bf16.mxu0 %v1524
  %4847 = vmatmul.mubr.bf16.gmra.mrb[0].mxu0 %v1523
  %v4848 = vpop.f32.mrb[0].mxu0
  %v4849 = vadd.f32 %v4736, %v4848
  %v4850 = vpop.f32.mrb[0].mxu0
  %v4851 = vadd.f32 %v4738, %v4850
  %v4852 = vpop.f32.mrb[0].mxu0
  %v4853 = vadd.f32 %v4740, %v4852
  %v4854 = vpop.f32.mrb[0].mxu0
  %v4855 = vadd.f32 %v4742, %v4854
  %4856 = vmatprep.mubr.bf16.mxu0 %v1532
  %4857 = vmatmul.mubr.bf16.gmra.mrb[0].mxu0 %v1531
  %v4858 = vpop.f32.mrb[0].mxu0
  %v4859 = vadd.f32 %v4746, %v4858
  %v4860 = vpop.f32.mrb[0].mxu0
  %v4861 = vadd.f32 %v4748, %v4860
  %v4862 = vpop.f32.mrb[0].mxu0
  %v4863 = vadd.f32 %v4750, %v4862
  %v4864 = vpop.f32.mrb[0].mxu0
  %v4865 = vadd.f32 %v4752, %v4864
  %4866 = vmatprep.mubr.bf16.mxu0 %v1540
  %4867 = vmatmul.mubr.bf16.gmra.mrb[0].mxu0 %v1539
  %v4868 = vpop.f32.mrb[0].mxu0
  %v4869 = vadd.f32 %v4756, %v4868
  %v4870 = vpop.f32.mrb[0].mxu0
  %v4871 = vadd.f32 %v4758, %v4870
  %v4872 = vpop.f32.mrb[0].mxu0
  %v4873 = vadd.f32 %v4760, %v4872
  %v4874 = vpop.f32.mrb[0].mxu0
  %v4875 = vadd.f32 %v4762, %v4874
  %4876 = vmatprep.mubr.bf16.mxu0 %v1548
  %4877 = vmatmul.mubr.bf16.gmra.mrb[0].mxu0 %v1547
  %v4878 = vpop.f32.mrb[0].mxu0
  %v4879 = vadd.f32 %v4766, %v4878
  %v4880 = vpop.f32.mrb[0].mxu0
  %v4881 = vadd.f32 %v4768, %v4880
  %v4882 = vpop.f32.mrb[0].mxu0
  %v4883 = vadd.f32 %v4770, %v4882
  %v4884 = vpop.f32.mrb[0].mxu0
  %v4885 = vadd.f32 %v4772, %v4884
  %4886 = vmatprep.mubr.bf16.mxu0 %v1556
  %4887 = vmatmul.mubr.bf16.gmra.mrb[0].mxu0 %v1555
  %v4888 = vpop.f32.mrb[0].mxu0
  %v4889 = vadd.f32 %v4776, %v4888
  %v4890 = vpop.f32.mrb[0].mxu0
  %v4891 = vadd.f32 %v4778, %v4890
  %v4892 = vpop.f32.mrb[0].mxu0
  %v4893 = vadd.f32 %v4780, %v4892
  %v4894 = vpop.f32.mrb[0].mxu0
  %v4895 = vadd.f32 %v4782, %v4894
  %4896 = vmatprep.mubr.bf16.mxu0 %v1564
  %4897 = vmatmul.mubr.bf16.gmra.mrb[0].mxu0 %v1563
  %v4898 = vpop.f32.mrb[0].mxu0
  %v4899 = vadd.f32 %v4786, %v4898
  %v4900 = vpop.f32.mrb[0].mxu0
  %v4901 = vadd.f32 %v4788, %v4900
  %v4902 = vpop.f32.mrb[0].mxu0
  %v4903 = vadd.f32 %v4790, %v4902
  %v4904 = vpop.f32.mrb[0].mxu0
  %v4905 = vadd.f32 %v4792, %v4904
  %4906 = vmatprep.mubr.bf16.mxu0 %v1572
  %4907 = vmatmul.mubr.bf16.gmra.mrb[0].mxu0 %v1571
  %v4908 = vpop.f32.mrb[0].mxu0
  %v4909 = vadd.f32 %v4796, %v4908
  %v4910 = vpop.f32.mrb[0].mxu0
  %v4911 = vadd.f32 %v4798, %v4910
  %v4912 = vpop.f32.mrb[0].mxu0
  %v4913 = vadd.f32 %v4800, %v4912
  %v4914 = vpop.f32.mrb[0].mxu0
  %v4915 = vadd.f32 %v4802, %v4914
  %4916 = vdwg.mxu0
  %4917 = vmatprep.subr.bf16.mxu0 %v3924
  %4918 = vmatpush1.bf16.msra.mxu0 %v3923
  %4919 = vmatprep.subr.bf16.mxu0 %v3932
  %4920 = vmatpush1.bf16.msra.mxu0 %v3931
  %4921 = vmatprep.subr.bf16.mxu0 %v3940
  %4922 = vmatpush1.bf16.msra.mxu0 %v3939
  %4923 = vmatprep.subr.bf16.mxu0 %v3948
  %4924 = vmatpush1.bf16.msra.mxu0 %v3947
  %4925 = vmatprep.subr.bf16.mxu0 %v3956
  %4926 = vmatpush1.bf16.msra.mxu0 %v3955
  %4927 = vmatprep.subr.bf16.mxu0 %v3964
  %4928 = vmatpush1.bf16.msra.mxu0 %v3963
  %4929 = vmatprep.subr.bf16.mxu0 %v3972
  %4930 = vmatpush1.bf16.msra.mxu0 %v3971
  %4931 = vmatprep.subr.bf16.mxu0 %v3980
  %4932 = vmatpush1.bf16.msra.mxu0 %v3979
  %4933 = vmatprep.subr.bf16.mxu0 %v3988
  %4934 = vmatpush1.bf16.msra.mxu0 %v3987
  %4935 = vmatprep.subr.bf16.mxu0 %v3996
  %4936 = vmatpush1.bf16.msra.mxu0 %v3995
  %4937 = vmatprep.subr.bf16.mxu0 %v4004
  %4938 = vmatpush1.bf16.msra.mxu0 %v4003
  %4939 = vmatprep.subr.bf16.mxu0 %v4012
  %4940 = vmatpush1.bf16.msra.mxu0 %v4011
  %4941 = vmatprep.subr.bf16.mxu0 %v4020
  %4942 = vmatpush1.bf16.msra.mxu0 %v4019
  %4943 = vmatprep.subr.bf16.mxu0 %v4028
  %4944 = vmatpush1.bf16.msra.mxu0 %v4027
  %4945 = vmatprep.subr.bf16.mxu0 %v4036
  %4946 = vmatpush1.bf16.msra.mxu0 %v4035
  %4947 = vmatprep.subr.bf16.mxu0 %v4044
  %4948 = vmatpush1.bf16.msra.mxu0 %v4043
  %4949 = vmatprep.mubr.bf16.mxu0 %v1518
  %4950 = vmatmul.mubr.bf16.gmra.mrb[0].mxu0 %v1517
  %v4951 = vpop.f32.mrb[0].mxu0
  %v4952 = vadd.f32 %v4839, %v4951
  %v4953 = vpop.f32.mrb[0].mxu0
  %v4954 = vadd.f32 %v4841, %v4953
  %v4955 = vpop.f32.mrb[0].mxu0
  %v4956 = vadd.f32 %v4843, %v4955
  %v4957 = vpop.f32.mrb[0].mxu0
  %v4958 = vadd.f32 %v4845, %v4957
  %4959 = vmatprep.mubr.bf16.mxu0 %v1526
  %4960 = vmatmul.mubr.bf16.gmra.mrb[0].mxu0 %v1525
  %v4961 = vpop.f32.mrb[0].mxu0
  %v4962 = vadd.f32 %v4849, %v4961
  %v4963 = vpop.f32.mrb[0].mxu0
  %v4964 = vadd.f32 %v4851, %v4963
  %v4965 = vpop.f32.mrb[0].mxu0
  %v4966 = vadd.f32 %v4853, %v4965
  %v4967 = vpop.f32.mrb[0].mxu0
  %v4968 = vadd.f32 %v4855, %v4967
  %4969 = vmatprep.mubr.bf16.mxu0 %v1534
  %4970 = vmatmul.mubr.bf16.gmra.mrb[0].mxu0 %v1533
  %v4971 = vpop.f32.mrb[0].mxu0
  %v4972 = vadd.f32 %v4859, %v4971
  %v4973 = vpop.f32.mrb[0].mxu0
  %v4974 = vadd.f32 %v4861, %v4973
  %v4975 = vpop.f32.mrb[0].mxu0
  %v4976 = vadd.f32 %v4863, %v4975
  %v4977 = vpop.f32.mrb[0].mxu0
  %v4978 = vadd.f32 %v4865, %v4977
  %4979 = vmatprep.mubr.bf16.mxu0 %v1542
  %4980 = vmatmul.mubr.bf16.gmra.mrb[0].mxu0 %v1541
  %v4981 = vpop.f32.mrb[0].mxu0
  %v4982 = vadd.f32 %v4869, %v4981
  %v4983 = vpop.f32.mrb[0].mxu0
  %v4984 = vadd.f32 %v4871, %v4983
  %v4985 = vpop.f32.mrb[0].mxu0
  %v4986 = vadd.f32 %v4873, %v4985
  %v4987 = vpop.f32.mrb[0].mxu0
  %v4988 = vadd.f32 %v4875, %v4987
  %4989 = vmatprep.mubr.bf16.mxu0 %v1550
  %4990 = vmatmul.mubr.bf16.gmra.mrb[0].mxu0 %v1549
  %v4991 = vpop.f32.mrb[0].mxu0
  %v4992 = vadd.f32 %v4879, %v4991
  %v4993 = vpop.f32.mrb[0].mxu0
  %v4994 = vadd.f32 %v4881, %v4993
  %v4995 = vpop.f32.mrb[0].mxu0
  %v4996 = vadd.f32 %v4883, %v4995
  %v4997 = vpop.f32.mrb[0].mxu0
  %v4998 = vadd.f32 %v4885, %v4997
  %4999 = vmatprep.mubr.bf16.mxu0 %v1558
  %5000 = vmatmul.mubr.bf16.gmra.mrb[0].mxu0 %v1557
  %v5001 = vpop.f32.mrb[0].mxu0
  %v5002 = vadd.f32 %v4889, %v5001
  %v5003 = vpop.f32.mrb[0].mxu0
  %v5004 = vadd.f32 %v4891, %v5003
  %v5005 = vpop.f32.mrb[0].mxu0
  %v5006 = vadd.f32 %v4893, %v5005
  %v5007 = vpop.f32.mrb[0].mxu0
  %v5008 = vadd.f32 %v4895, %v5007
  %5009 = vmatprep.mubr.bf16.mxu0 %v1566
  %5010 = vmatmul.mubr.bf16.gmra.mrb[0].mxu0 %v1565
  %v5011 = vpop.f32.mrb[0].mxu0
  %v5012 = vadd.f32 %v4899, %v5011
  %v5013 = vpop.f32.mrb[0].mxu0
  %v5014 = vadd.f32 %v4901, %v5013
  %v5015 = vpop.f32.mrb[0].mxu0
  %v5016 = vadd.f32 %v4903, %v5015
  %v5017 = vpop.f32.mrb[0].mxu0
  %v5018 = vadd.f32 %v4905, %v5017
  %5019 = vmatprep.mubr.bf16.mxu0 %v1574
  %5020 = vmatmul.mubr.bf16.gmra.mrb[0].mxu0 %v1573
  %v5021 = vpop.f32.mrb[0].mxu0
  %v5022 = vadd.f32 %v4909, %v5021
  %v5023 = vpop.f32.mrb[0].mxu0
  %v5024 = vadd.f32 %v4911, %v5023
  %v5025 = vpop.f32.mrb[0].mxu0
  %v5026 = vadd.f32 %v4913, %v5025
  %v5027 = vpop.f32.mrb[0].mxu0
  %v5028 = vadd.f32 %v4915, %v5027
  %5029 = vdwg.mxu0
  %5030 = vmatprep.subr.bf16.mxu0 %v4052
  %5031 = vmatpush1.bf16.msra.mxu0 %v4051
  %5032 = vmatprep.subr.bf16.mxu0 %v4060
  %5033 = vmatpush1.bf16.msra.mxu0 %v4059
  %5034 = vmatprep.subr.bf16.mxu0 %v4068
  %5035 = vmatpush1.bf16.msra.mxu0 %v4067
  %5036 = vmatprep.subr.bf16.mxu0 %v4076
  %5037 = vmatpush1.bf16.msra.mxu0 %v4075
  %5038 = vmatprep.subr.bf16.mxu0 %v4084
  %5039 = vmatpush1.bf16.msra.mxu0 %v4083
  %5040 = vmatprep.subr.bf16.mxu0 %v4092
  %5041 = vmatpush1.bf16.msra.mxu0 %v4091
  %5042 = vmatprep.subr.bf16.mxu0 %v4100
  %5043 = vmatpush1.bf16.msra.mxu0 %v4099
  %5044 = vmatprep.subr.bf16.mxu0 %v4108
  %5045 = vmatpush1.bf16.msra.mxu0 %v4107
  %5046 = vmatprep.subr.bf16.mxu0 %v4116
  %5047 = vmatpush1.bf16.msra.mxu0 %v4115
  %5048 = vmatprep.subr.bf16.mxu0 %v4124
  %5049 = vmatpush1.bf16.msra.mxu0 %v4123
  %5050 = vmatprep.subr.bf16.mxu0 %v4132
  %5051 = vmatpush1.bf16.msra.mxu0 %v4131
  %5052 = vmatprep.subr.bf16.mxu0 %v4140
  %5053 = vmatpush1.bf16.msra.mxu0 %v4139
  %5054 = vmatprep.subr.bf16.mxu0 %v4148
  %5055 = vmatpush1.bf16.msra.mxu0 %v4147
  %5056 = vmatprep.subr.bf16.mxu0 %v4156
  %5057 = vmatpush1.bf16.msra.mxu0 %v4155
  %5058 = vmatprep.subr.bf16.mxu0 %v4164
  %5059 = vmatpush1.bf16.msra.mxu0 %v4163
  %5060 = vmatprep.subr.bf16.mxu0 %v4172
  %5061 = vmatpush1.bf16.msra.mxu0 %v4171
  %5062 = vmatprep.mubr.bf16.mxu0 %v1520
  %5063 = vmatmul.mubr.bf16.gmra.mrb[0].mxu0 %v1519
  %v5064 = vpop.f32.mrb[0].mxu0
  %v5065 = vadd.f32 %v4952, %v5064
  %v5066 = vpop.f32.mrb[0].mxu0
  %v5067 = vadd.f32 %v4954, %v5066
  %v5068 = vpop.f32.mrb[0].mxu0
  %v5069 = vadd.f32 %v4956, %v5068
  %v5070 = vpop.f32.mrb[0].mxu0
  %v5071 = vadd.f32 %v4958, %v5070
  %5072 = vmatprep.mubr.bf16.mxu0 %v1528
  %5073 = vmatmul.mubr.bf16.gmra.mrb[0].mxu0 %v1527
  %v5074 = vpop.f32.mrb[0].mxu0
  %v5075 = vadd.f32 %v4962, %v5074
  %v5076 = vpop.f32.mrb[0].mxu0
  %v5077 = vadd.f32 %v4964, %v5076
  %v5078 = vpop.f32.mrb[0].mxu0
  %v5079 = vadd.f32 %v4966, %v5078
  %v5080 = vpop.f32.mrb[0].mxu0
  %v5081 = vadd.f32 %v4968, %v5080
  %5082 = vmatprep.mubr.bf16.mxu0 %v1536
  %5083 = vmatmul.mubr.bf16.gmra.mrb[0].mxu0 %v1535
  %v5084 = vpop.f32.mrb[0].mxu0
  %v5085 = vadd.f32 %v4972, %v5084
  %v5086 = vpop.f32.mrb[0].mxu0
  %v5087 = vadd.f32 %v4974, %v5086
  %v5088 = vpop.f32.mrb[0].mxu0
  %v5089 = vadd.f32 %v4976, %v5088
  %v5090 = vpop.f32.mrb[0].mxu0
  %v5091 = vadd.f32 %v4978, %v5090
  %5092 = vmatprep.mubr.bf16.mxu0 %v1544
  %5093 = vmatmul.mubr.bf16.gmra.mrb[0].mxu0 %v1543
  %v5094 = vpop.f32.mrb[0].mxu0
  %v5095 = vadd.f32 %v4982, %v5094
  %v5096 = vpop.f32.mrb[0].mxu0
  %v5097 = vadd.f32 %v4984, %v5096
  %v5098 = vpop.f32.mrb[0].mxu0
  %v5099 = vadd.f32 %v4986, %v5098
  %v5100 = vpop.f32.mrb[0].mxu0
  %v5101 = vadd.f32 %v4988, %v5100
  %5102 = vmatprep.mubr.bf16.mxu0 %v1552
  %5103 = vmatmul.mubr.bf16.gmra.mrb[0].mxu0 %v1551
  %v5104 = vpop.f32.mrb[0].mxu0
  %v5105 = vadd.f32 %v4992, %v5104
  %v5106 = vpop.f32.mrb[0].mxu0
  %v5107 = vadd.f32 %v4994, %v5106
  %v5108 = vpop.f32.mrb[0].mxu0
  %v5109 = vadd.f32 %v4996, %v5108
  %v5110 = vpop.f32.mrb[0].mxu0
  %v5111 = vadd.f32 %v4998, %v5110
  %5112 = vmatprep.mubr.bf16.mxu0 %v1560
  %5113 = vmatmul.mubr.bf16.gmra.mrb[0].mxu0 %v1559
  %v5114 = vpop.f32.mrb[0].mxu0
  %v5115 = vadd.f32 %v5002, %v5114
  %v5116 = vpop.f32.mrb[0].mxu0
  %v5117 = vadd.f32 %v5004, %v5116
  %v5118 = vpop.f32.mrb[0].mxu0
  %v5119 = vadd.f32 %v5006, %v5118
  %v5120 = vpop.f32.mrb[0].mxu0
  %v5121 = vadd.f32 %v5008, %v5120
  %5122 = vmatprep.mubr.bf16.mxu0 %v1568
  %5123 = vmatmul.mubr.bf16.gmra.mrb[0].mxu0 %v1567
  %v5124 = vpop.f32.mrb[0].mxu0
  %v5125 = vadd.f32 %v5012, %v5124
  %v5126 = vpop.f32.mrb[0].mxu0
  %v5127 = vadd.f32 %v5014, %v5126
  %v5128 = vpop.f32.mrb[0].mxu0
  %v5129 = vadd.f32 %v5016, %v5128
  %v5130 = vpop.f32.mrb[0].mxu0
  %v5131 = vadd.f32 %v5018, %v5130
  %5132 = vmatprep.mubr.bf16.mxu0 %v1576
  %5133 = vmatmul.mubr.bf16.gmra.mrb[0].mxu0 %v1575
  %v5134 = vpop.f32.mrb[0].mxu0
  %v5135 = vadd.f32 %v5022, %v5134
  %v5136 = vpop.f32.mrb[0].mxu0
  %v5137 = vadd.f32 %v5024, %v5136
  %v5138 = vpop.f32.mrb[0].mxu0
  %v5139 = vadd.f32 %v5026, %v5138
  %v5140 = vpop.f32.mrb[0].mxu0
  %v5141 = vadd.f32 %v5028, %v5140
  %5142 = vdwg.mxu0
  %5143 = vmatprep.subr.bf16.mxu0 %v3670
  %5144 = vmatpush1.bf16.msra.mxu0 %v3669
  %5145 = vmatprep.subr.bf16.mxu0 %v3678
  %5146 = vmatpush1.bf16.msra.mxu0 %v3677
  %5147 = vmatprep.subr.bf16.mxu0 %v3686
  %5148 = vmatpush1.bf16.msra.mxu0 %v3685
  %5149 = vmatprep.subr.bf16.mxu0 %v3694
  %5150 = vmatpush1.bf16.msra.mxu0 %v3693
  %5151 = vmatprep.subr.bf16.mxu0 %v3702
  %5152 = vmatpush1.bf16.msra.mxu0 %v3701
  %5153 = vmatprep.subr.bf16.mxu0 %v3710
  %5154 = vmatpush1.bf16.msra.mxu0 %v3709
  %5155 = vmatprep.subr.bf16.mxu0 %v3718
  %5156 = vmatpush1.bf16.msra.mxu0 %v3717
  %5157 = vmatprep.subr.bf16.mxu0 %v3726
  %5158 = vmatpush1.bf16.msra.mxu0 %v3725
  %5159 = vmatprep.subr.bf16.mxu0 %v3734
  %5160 = vmatpush1.bf16.msra.mxu0 %v3733
  %5161 = vmatprep.subr.bf16.mxu0 %v3742
  %5162 = vmatpush1.bf16.msra.mxu0 %v3741
  %5163 = vmatprep.subr.bf16.mxu0 %v3750
  %5164 = vmatpush1.bf16.msra.mxu0 %v3749
  %5165 = vmatprep.subr.bf16.mxu0 %v3758
  %5166 = vmatpush1.bf16.msra.mxu0 %v3757
  %5167 = vmatprep.subr.bf16.mxu0 %v3766
  %5168 = vmatpush1.bf16.msra.mxu0 %v3765
  %5169 = vmatprep.subr.bf16.mxu0 %v3774
  %5170 = vmatpush1.bf16.msra.mxu0 %v3773
  %5171 = vmatprep.subr.bf16.mxu0 %v3782
  %5172 = vmatpush1.bf16.msra.mxu0 %v3781
  %5173 = vmatprep.subr.bf16.mxu0 %v3790
  %5174 = vmatpush1.bf16.msra.mxu0 %v3789
  %5175 = vmatprep.mubr.bf16.mxu0 %v1514
  %5176 = vmatmul.mubr.bf16.gmra.mrb[0].mxu0 %v1513
  %v5177 = vpop.f32.mrb[0].mxu0
  %v5178 = vadd.f32 %v2102, %v5177
  %v5179 = vpop.f32.mrb[0].mxu0
  %v5180 = vadd.f32 %v2106, %v5179
  %v5181 = vpop.f32.mrb[0].mxu0
  %v5182 = vadd.f32 %v2102, %v5181
  %v5183 = vpop.f32.mrb[0].mxu0
  %v5184 = vadd.f32 %v2106, %v5183
  %5185 = vmatprep.mubr.bf16.mxu0 %v1522
  %5186 = vmatmul.mubr.bf16.gmra.mrb[0].mxu0 %v1521
  %v5187 = vpop.f32.mrb[0].mxu0
  %v5188 = vadd.f32 %v2102, %v5187
  %v5189 = vpop.f32.mrb[0].mxu0
  %v5190 = vadd.f32 %v2106, %v5189
  %v5191 = vpop.f32.mrb[0].mxu0
  %v5192 = vadd.f32 %v2102, %v5191
  %v5193 = vpop.f32.mrb[0].mxu0
  %v5194 = vadd.f32 %v2106, %v5193
  %5195 = vmatprep.mubr.bf16.mxu0 %v1530
  %5196 = vmatmul.mubr.bf16.gmra.mrb[0].mxu0 %v1529
  %v5197 = vpop.f32.mrb[0].mxu0
  %v5198 = vadd.f32 %v2102, %v5197
  %v5199 = vpop.f32.mrb[0].mxu0
  %v5200 = vadd.f32 %v2106, %v5199
  %v5201 = vpop.f32.mrb[0].mxu0
  %v5202 = vadd.f32 %v2102, %v5201
  %v5203 = vpop.f32.mrb[0].mxu0
  %v5204 = vadd.f32 %v2106, %v5203
  %5205 = vmatprep.mubr.bf16.mxu0 %v1538
  %5206 = vmatmul.mubr.bf16.gmra.mrb[0].mxu0 %v1537
  %v5207 = vpop.f32.mrb[0].mxu0
  %v5208 = vadd.f32 %v2102, %v5207
  %v5209 = vpop.f32.mrb[0].mxu0
  %v5210 = vadd.f32 %v2106, %v5209
  %v5211 = vpop.f32.mrb[0].mxu0
  %v5212 = vadd.f32 %v2102, %v5211
  %v5213 = vpop.f32.mrb[0].mxu0
  %v5214 = vadd.f32 %v2106, %v5213
  %5215 = vmatprep.mubr.bf16.mxu0 %v1546
  %5216 = vmatmul.mubr.bf16.gmra.mrb[0].mxu0 %v1545
  %v5217 = vpop.f32.mrb[0].mxu0
  %v5218 = vadd.f32 %v2102, %v5217
  %v5219 = vpop.f32.mrb[0].mxu0
  %v5220 = vadd.f32 %v2106, %v5219
  %v5221 = vpop.f32.mrb[0].mxu0
  %v5222 = vadd.f32 %v2102, %v5221
  %v5223 = vpop.f32.mrb[0].mxu0
  %v5224 = vadd.f32 %v2106, %v5223
  %5225 = vmatprep.mubr.bf16.mxu0 %v1554
  %5226 = vmatmul.mubr.bf16.gmra.mrb[0].mxu0 %v1553
  %v5227 = vpop.f32.mrb[0].mxu0
  %v5228 = vadd.f32 %v2102, %v5227
  %v5229 = vpop.f32.mrb[0].mxu0
  %v5230 = vadd.f32 %v2106, %v5229
  %v5231 = vpop.f32.mrb[0].mxu0
  %v5232 = vadd.f32 %v2102, %v5231
  %v5233 = vpop.f32.mrb[0].mxu0
  %v5234 = vadd.f32 %v2106, %v5233
  %5235 = vmatprep.mubr.bf16.mxu0 %v1562
  %5236 = vmatmul.mubr.bf16.gmra.mrb[0].mxu0 %v1561
  %v5237 = vpop.f32.mrb[0].mxu0
  %v5238 = vadd.f32 %v2102, %v5237
  %v5239 = vpop.f32.mrb[0].mxu0
  %v5240 = vadd.f32 %v2106, %v5239
  %v5241 = vpop.f32.mrb[0].mxu0
  %v5242 = vadd.f32 %v2102, %v5241
  %v5243 = vpop.f32.mrb[0].mxu0
  %v5244 = vadd.f32 %v2106, %v5243
  %5245 = vmatprep.mubr.bf16.mxu0 %v1570
  %5246 = vmatmul.mubr.bf16.gmra.mrb[0].mxu0 %v1569
  %v5247 = vpop.f32.mrb[0].mxu0
  %v5248 = vadd.f32 %v2102, %v5247
  %v5249 = vpop.f32.mrb[0].mxu0
  %v5250 = vadd.f32 %v2106, %v5249
  %v5251 = vpop.f32.mrb[0].mxu0
  %v5252 = vadd.f32 %v2102, %v5251
  %v5253 = vpop.f32.mrb[0].mxu0
  %v5254 = vadd.f32 %v2106, %v5253
  %5255 = vdwg.mxu0
  %5256 = vmatprep.subr.bf16.mxu0 %v3798
  %5257 = vmatpush1.bf16.msra.mxu0 %v3797
  %5258 = vmatprep.subr.bf16.mxu0 %v3806
  %5259 = vmatpush1.bf16.msra.mxu0 %v3805
  %5260 = vmatprep.subr.bf16.mxu0 %v3814
  %5261 = vmatpush1.bf16.msra.mxu0 %v3813
  %5262 = vmatprep.subr.bf16.mxu0 %v3822
  %5263 = vmatpush1.bf16.msra.mxu0 %v3821
  %5264 = vmatprep.subr.bf16.mxu0 %v3830
  %5265 = vmatpush1.bf16.msra.mxu0 %v3829
  %5266 = vmatprep.subr.bf16.mxu0 %v3838
  %5267 = vmatpush1.bf16.msra.mxu0 %v3837
  %5268 = vmatprep.subr.bf16.mxu0 %v3846
  %5269 = vmatpush1.bf16.msra.mxu0 %v3845
  %5270 = vmatprep.subr.bf16.mxu0 %v3854
  %5271 = vmatpush1.bf16.msra.mxu0 %v3853
  %5272 = vmatprep.subr.bf16.mxu0 %v3862
  %5273 = vmatpush1.bf16.msra.mxu0 %v3861
  %5274 = vmatprep.subr.bf16.mxu0 %v3870
  %5275 = vmatpush1.bf16.msra.mxu0 %v3869
  %5276 = vmatprep.subr.bf16.mxu0 %v3878
  %5277 = vmatpush1.bf16.msra.mxu0 %v3877
  %5278 = vmatprep.subr.bf16.mxu0 %v3886
  %5279 = vmatpush1.bf16.msra.mxu0 %v3885
  %5280 = vmatprep.subr.bf16.mxu0 %v3894
  %5281 = vmatpush1.bf16.msra.mxu0 %v3893
  %5282 = vmatprep.subr.bf16.mxu0 %v3902
  %5283 = vmatpush1.bf16.msra.mxu0 %v3901
  %5284 = vmatprep.subr.bf16.mxu0 %v3910
  %5285 = vmatpush1.bf16.msra.mxu0 %v3909
  %5286 = vmatprep.subr.bf16.mxu0 %v3918
  %5287 = vmatpush1.bf16.msra.mxu0 %v3917
  %5288 = vmatprep.mubr.bf16.mxu0 %v1516
  %5289 = vmatmul.mubr.bf16.gmra.mrb[0].mxu0 %v1515
  %v5290 = vpop.f32.mrb[0].mxu0
  %v5291 = vadd.f32 %v5178, %v5290
  %v5292 = vpop.f32.mrb[0].mxu0
  %v5293 = vadd.f32 %v5180, %v5292
  %v5294 = vpop.f32.mrb[0].mxu0
  %v5295 = vadd.f32 %v5182, %v5294
  %v5296 = vpop.f32.mrb[0].mxu0
  %v5297 = vadd.f32 %v5184, %v5296
  %5298 = vmatprep.mubr.bf16.mxu0 %v1524
  %5299 = vmatmul.mubr.bf16.gmra.mrb[0].mxu0 %v1523
  %v5300 = vpop.f32.mrb[0].mxu0
  %v5301 = vadd.f32 %v5188, %v5300
  %v5302 = vpop.f32.mrb[0].mxu0
  %v5303 = vadd.f32 %v5190, %v5302
  %v5304 = vpop.f32.mrb[0].mxu0
  %v5305 = vadd.f32 %v5192, %v5304
  %v5306 = vpop.f32.mrb[0].mxu0
  %v5307 = vadd.f32 %v5194, %v5306
  %5308 = vmatprep.mubr.bf16.mxu0 %v1532
  %5309 = vmatmul.mubr.bf16.gmra.mrb[0].mxu0 %v1531
  %v5310 = vpop.f32.mrb[0].mxu0
  %v5311 = vadd.f32 %v5198, %v5310
  %v5312 = vpop.f32.mrb[0].mxu0
  %v5313 = vadd.f32 %v5200, %v5312
  %v5314 = vpop.f32.mrb[0].mxu0
  %v5315 = vadd.f32 %v5202, %v5314
  %v5316 = vpop.f32.mrb[0].mxu0
  %v5317 = vadd.f32 %v5204, %v5316
  %5318 = vmatprep.mubr.bf16.mxu0 %v1540
  %5319 = vmatmul.mubr.bf16.gmra.mrb[0].mxu0 %v1539
  %v5320 = vpop.f32.mrb[0].mxu0
  %v5321 = vadd.f32 %v5208, %v5320
  %v5322 = vpop.f32.mrb[0].mxu0
  %v5323 = vadd.f32 %v5210, %v5322
  %v5324 = vpop.f32.mrb[0].mxu0
  %v5325 = vadd.f32 %v5212, %v5324
  %v5326 = vpop.f32.mrb[0].mxu0
  %v5327 = vadd.f32 %v5214, %v5326
  %5328 = vmatprep.mubr.bf16.mxu0 %v1548
  %5329 = vmatmul.mubr.bf16.gmra.mrb[0].mxu0 %v1547
  %v5330 = vpop.f32.mrb[0].mxu0
  %v5331 = vadd.f32 %v5218, %v5330
  %v5332 = vpop.f32.mrb[0].mxu0
  %v5333 = vadd.f32 %v5220, %v5332
  %v5334 = vpop.f32.mrb[0].mxu0
  %v5335 = vadd.f32 %v5222, %v5334
  %v5336 = vpop.f32.mrb[0].mxu0
  %v5337 = vadd.f32 %v5224, %v5336
  %5338 = vmatprep.mubr.bf16.mxu0 %v1556
  %5339 = vmatmul.mubr.bf16.gmra.mrb[0].mxu0 %v1555
  %v5340 = vpop.f32.mrb[0].mxu0
  %v5341 = vadd.f32 %v5228, %v5340
  %v5342 = vpop.f32.mrb[0].mxu0
  %v5343 = vadd.f32 %v5230, %v5342
  %v5344 = vpop.f32.mrb[0].mxu0
  %v5345 = vadd.f32 %v5232, %v5344
  %v5346 = vpop.f32.mrb[0].mxu0
  %v5347 = vadd.f32 %v5234, %v5346
  %5348 = vmatprep.mubr.bf16.mxu0 %v1564
  %5349 = vmatmul.mubr.bf16.gmra.mrb[0].mxu0 %v1563
  %v5350 = vpop.f32.mrb[0].mxu0
  %v5351 = vadd.f32 %v5238, %v5350
  %v5352 = vpop.f32.mrb[0].mxu0
  %v5353 = vadd.f32 %v5240, %v5352
  %v5354 = vpop.f32.mrb[0].mxu0
  %v5355 = vadd.f32 %v5242, %v5354
  %v5356 = vpop.f32.mrb[0].mxu0
  %v5357 = vadd.f32 %v5244, %v5356
  %5358 = vmatprep.mubr.bf16.mxu0 %v1572
  %5359 = vmatmul.mubr.bf16.gmra.mrb[0].mxu0 %v1571
  %v5360 = vpop.f32.mrb[0].mxu0
  %v5361 = vadd.f32 %v5248, %v5360
  %v5362 = vpop.f32.mrb[0].mxu0
  %v5363 = vadd.f32 %v5250, %v5362
  %v5364 = vpop.f32.mrb[0].mxu0
  %v5365 = vadd.f32 %v5252, %v5364
  %v5366 = vpop.f32.mrb[0].mxu0
  %v5367 = vadd.f32 %v5254, %v5366
  %5368 = vdwg.mxu0
  %5369 = vmatprep.subr.bf16.mxu0 %v3926
  %5370 = vmatpush1.bf16.msra.mxu0 %v3925
  %5371 = vmatprep.subr.bf16.mxu0 %v3934
  %5372 = vmatpush1.bf16.msra.mxu0 %v3933
  %5373 = vmatprep.subr.bf16.mxu0 %v3942
  %5374 = vmatpush1.bf16.msra.mxu0 %v3941
  %5375 = vmatprep.subr.bf16.mxu0 %v3950
  %5376 = vmatpush1.bf16.msra.mxu0 %v3949
  %5377 = vmatprep.subr.bf16.mxu0 %v3958
  %5378 = vmatpush1.bf16.msra.mxu0 %v3957
  %5379 = vmatprep.subr.bf16.mxu0 %v3966
  %5380 = vmatpush1.bf16.msra.mxu0 %v3965
  %5381 = vmatprep.subr.bf16.mxu0 %v3974
  %5382 = vmatpush1.bf16.msra.mxu0 %v3973
  %5383 = vmatprep.subr.bf16.mxu0 %v3982
  %5384 = vmatpush1.bf16.msra.mxu0 %v3981
  %5385 = vmatprep.subr.bf16.mxu0 %v3990
  %5386 = vmatpush1.bf16.msra.mxu0 %v3989
  %5387 = vmatprep.subr.bf16.mxu0 %v3998
  %5388 = vmatpush1.bf16.msra.mxu0 %v3997
  %5389 = vmatprep.subr.bf16.mxu0 %v4006
  %5390 = vmatpush1.bf16.msra.mxu0 %v4005
  %5391 = vmatprep.subr.bf16.mxu0 %v4014
  %5392 = vmatpush1.bf16.msra.mxu0 %v4013
  %5393 = vmatprep.subr.bf16.mxu0 %v4022
  %5394 = vmatpush1.bf16.msra.mxu0 %v4021
  %5395 = vmatprep.subr.bf16.mxu0 %v4030
  %5396 = vmatpush1.bf16.msra.mxu0 %v4029
  %5397 = vmatprep.subr.bf16.mxu0 %v4038
  %5398 = vmatpush1.bf16.msra.mxu0 %v4037
  %5399 = vmatprep.subr.bf16.mxu0 %v4046
  %5400 = vmatpush1.bf16.msra.mxu0 %v4045
  %5401 = vmatprep.mubr.bf16.mxu0 %v1518
  %5402 = vmatmul.mubr.bf16.gmra.mrb[0].mxu0 %v1517
  %v5403 = vpop.f32.mrb[0].mxu0
  %v5404 = vadd.f32 %v5291, %v5403
  %v5405 = vpop.f32.mrb[0].mxu0
  %v5406 = vadd.f32 %v5293, %v5405
  %v5407 = vpop.f32.mrb[0].mxu0
  %v5408 = vadd.f32 %v5295, %v5407
  %v5409 = vpop.f32.mrb[0].mxu0
  %v5410 = vadd.f32 %v5297, %v5409
  %5411 = vmatprep.mubr.bf16.mxu0 %v1526
  %5412 = vmatmul.mubr.bf16.gmra.mrb[0].mxu0 %v1525
  %v5413 = vpop.f32.mrb[0].mxu0
  %v5414 = vadd.f32 %v5301, %v5413
  %v5415 = vpop.f32.mrb[0].mxu0
  %v5416 = vadd.f32 %v5303, %v5415
  %v5417 = vpop.f32.mrb[0].mxu0
  %v5418 = vadd.f32 %v5305, %v5417
  %v5419 = vpop.f32.mrb[0].mxu0
  %v5420 = vadd.f32 %v5307, %v5419
  %5421 = vmatprep.mubr.bf16.mxu0 %v1534
  %5422 = vmatmul.mubr.bf16.gmra.mrb[0].mxu0 %v1533
  %v5423 = vpop.f32.mrb[0].mxu0
  %v5424 = vadd.f32 %v5311, %v5423
  %v5425 = vpop.f32.mrb[0].mxu0
  %v5426 = vadd.f32 %v5313, %v5425
  %v5427 = vpop.f32.mrb[0].mxu0
  %v5428 = vadd.f32 %v5315, %v5427
  %v5429 = vpop.f32.mrb[0].mxu0
  %v5430 = vadd.f32 %v5317, %v5429
  %5431 = vmatprep.mubr.bf16.mxu0 %v1542
  %5432 = vmatmul.mubr.bf16.gmra.mrb[0].mxu0 %v1541
  %v5433 = vpop.f32.mrb[0].mxu0
  %v5434 = vadd.f32 %v5321, %v5433
  %v5435 = vpop.f32.mrb[0].mxu0
  %v5436 = vadd.f32 %v5323, %v5435
  %v5437 = vpop.f32.mrb[0].mxu0
  %v5438 = vadd.f32 %v5325, %v5437
  %v5439 = vpop.f32.mrb[0].mxu0
  %v5440 = vadd.f32 %v5327, %v5439
  %5441 = vmatprep.mubr.bf16.mxu0 %v1550
  %5442 = vmatmul.mubr.bf16.gmra.mrb[0].mxu0 %v1549
  %v5443 = vpop.f32.mrb[0].mxu0
  %v5444 = vadd.f32 %v5331, %v5443
  %v5445 = vpop.f32.mrb[0].mxu0
  %v5446 = vadd.f32 %v5333, %v5445
  %v5447 = vpop.f32.mrb[0].mxu0
  %v5448 = vadd.f32 %v5335, %v5447
  %v5449 = vpop.f32.mrb[0].mxu0
  %v5450 = vadd.f32 %v5337, %v5449
  %5451 = vmatprep.mubr.bf16.mxu0 %v1558
  %5452 = vmatmul.mubr.bf16.gmra.mrb[0].mxu0 %v1557
  %v5453 = vpop.f32.mrb[0].mxu0
  %v5454 = vadd.f32 %v5341, %v5453
  %v5455 = vpop.f32.mrb[0].mxu0
  %v5456 = vadd.f32 %v5343, %v5455
  %v5457 = vpop.f32.mrb[0].mxu0
  %v5458 = vadd.f32 %v5345, %v5457
  %v5459 = vpop.f32.mrb[0].mxu0
  %v5460 = vadd.f32 %v5347, %v5459
  %5461 = vmatprep.mubr.bf16.mxu0 %v1566
  %5462 = vmatmul.mubr.bf16.gmra.mrb[0].mxu0 %v1565
  %v5463 = vpop.f32.mrb[0].mxu0
  %v5464 = vadd.f32 %v5351, %v5463
  %v5465 = vpop.f32.mrb[0].mxu0
  %v5466 = vadd.f32 %v5353, %v5465
  %v5467 = vpop.f32.mrb[0].mxu0
  %v5468 = vadd.f32 %v5355, %v5467
  %v5469 = vpop.f32.mrb[0].mxu0
  %v5470 = vadd.f32 %v5357, %v5469
  %5471 = vmatprep.mubr.bf16.mxu0 %v1574
  %5472 = vmatmul.mubr.bf16.gmra.mrb[0].mxu0 %v1573
  %v5473 = vpop.f32.mrb[0].mxu0
  %v5474 = vadd.f32 %v5361, %v5473
  %v5475 = vpop.f32.mrb[0].mxu0
  %v5476 = vadd.f32 %v5363, %v5475
  %v5477 = vpop.f32.mrb[0].mxu0
  %v5478 = vadd.f32 %v5365, %v5477
  %v5479 = vpop.f32.mrb[0].mxu0
  %v5480 = vadd.f32 %v5367, %v5479
  %5481 = vdwg.mxu0
  %5482 = vmatprep.subr.bf16.mxu0 %v4054
  %5483 = vmatpush1.bf16.msra.mxu0 %v4053
  %5484 = vmatprep.subr.bf16.mxu0 %v4062
  %5485 = vmatpush1.bf16.msra.mxu0 %v4061
  %5486 = vmatprep.subr.bf16.mxu0 %v4070
  %5487 = vmatpush1.bf16.msra.mxu0 %v4069
  %5488 = vmatprep.subr.bf16.mxu0 %v4078
  %5489 = vmatpush1.bf16.msra.mxu0 %v4077
  %5490 = vmatprep.subr.bf16.mxu0 %v4086
  %5491 = vmatpush1.bf16.msra.mxu0 %v4085
  %5492 = vmatprep.subr.bf16.mxu0 %v4094
  %5493 = vmatpush1.bf16.msra.mxu0 %v4093
  %5494 = vmatprep.subr.bf16.mxu0 %v4102
  %5495 = vmatpush1.bf16.msra.mxu0 %v4101
  %5496 = vmatprep.subr.bf16.mxu0 %v4110
  %5497 = vmatpush1.bf16.msra.mxu0 %v4109
  %5498 = vmatprep.subr.bf16.mxu0 %v4118
  %5499 = vmatpush1.bf16.msra.mxu0 %v4117
  %5500 = vmatprep.subr.bf16.mxu0 %v4126
  %5501 = vmatpush1.bf16.msra.mxu0 %v4125
  %5502 = vmatprep.subr.bf16.mxu0 %v4134
  %5503 = vmatpush1.bf16.msra.mxu0 %v4133
  %5504 = vmatprep.subr.bf16.mxu0 %v4142
  %5505 = vmatpush1.bf16.msra.mxu0 %v4141
  %5506 = vmatprep.subr.bf16.mxu0 %v4150
  %5507 = vmatpush1.bf16.msra.mxu0 %v4149
  %5508 = vmatprep.subr.bf16.mxu0 %v4158
  %5509 = vmatpush1.bf16.msra.mxu0 %v4157
  %5510 = vmatprep.subr.bf16.mxu0 %v4166
  %5511 = vmatpush1.bf16.msra.mxu0 %v4165
  %5512 = vmatprep.subr.bf16.mxu0 %v4174
  %5513 = vmatpush1.bf16.msra.mxu0 %v4173
  %5514 = vmatprep.mubr.bf16.mxu0 %v1520
  %5515 = vmatmul.mubr.bf16.gmra.mrb[0].mxu0 %v1519
  %v5516 = vpop.f32.mrb[0].mxu0
  %v5517 = vadd.f32 %v5404, %v5516
  %v5518 = vpop.f32.mrb[0].mxu0
  %v5519 = vadd.f32 %v5406, %v5518
  %v5520 = vpop.f32.mrb[0].mxu0
  %v5521 = vadd.f32 %v5408, %v5520
  %v5522 = vpop.f32.mrb[0].mxu0
  %v5523 = vadd.f32 %v5410, %v5522
  %5524 = vmatprep.mubr.bf16.mxu0 %v1528
  %5525 = vmatmul.mubr.bf16.gmra.mrb[0].mxu0 %v1527
  %v5526 = vpop.f32.mrb[0].mxu0
  %v5527 = vadd.f32 %v5414, %v5526
  %v5528 = vpop.f32.mrb[0].mxu0
  %v5529 = vadd.f32 %v5416, %v5528
  %v5530 = vpop.f32.mrb[0].mxu0
  %v5531 = vadd.f32 %v5418, %v5530
  %v5532 = vpop.f32.mrb[0].mxu0
  %v5533 = vadd.f32 %v5420, %v5532
  %5534 = vmatprep.mubr.bf16.mxu0 %v1536
  %5535 = vmatmul.mubr.bf16.gmra.mrb[0].mxu0 %v1535
  %v5536 = vpop.f32.mrb[0].mxu0
  %v5537 = vadd.f32 %v5424, %v5536
  %v5538 = vpop.f32.mrb[0].mxu0
  %v5539 = vadd.f32 %v5426, %v5538
  %v5540 = vpop.f32.mrb[0].mxu0
  %v5541 = vadd.f32 %v5428, %v5540
  %v5542 = vpop.f32.mrb[0].mxu0
  %v5543 = vadd.f32 %v5430, %v5542
  %5544 = vmatprep.mubr.bf16.mxu0 %v1544
  %5545 = vmatmul.mubr.bf16.gmra.mrb[0].mxu0 %v1543
  %v5546 = vpop.f32.mrb[0].mxu0
  %v5547 = vadd.f32 %v5434, %v5546
  %v5548 = vpop.f32.mrb[0].mxu0
  %v5549 = vadd.f32 %v5436, %v5548
  %v5550 = vpop.f32.mrb[0].mxu0
  %v5551 = vadd.f32 %v5438, %v5550
  %v5552 = vpop.f32.mrb[0].mxu0
  %v5553 = vadd.f32 %v5440, %v5552
  %5554 = vmatprep.mubr.bf16.mxu0 %v1552
  %5555 = vmatmul.mubr.bf16.gmra.mrb[0].mxu0 %v1551
  %v5556 = vpop.f32.mrb[0].mxu0
  %v5557 = vadd.f32 %v5444, %v5556
  %v5558 = vpop.f32.mrb[0].mxu0
  %v5559 = vadd.f32 %v5446, %v5558
  %v5560 = vpop.f32.mrb[0].mxu0
  %v5561 = vadd.f32 %v5448, %v5560
  %v5562 = vpop.f32.mrb[0].mxu0
  %v5563 = vadd.f32 %v5450, %v5562
  %5564 = vmatprep.mubr.bf16.mxu0 %v1560
  %5565 = vmatmul.mubr.bf16.gmra.mrb[0].mxu0 %v1559
  %v5566 = vpop.f32.mrb[0].mxu0
  %v5567 = vadd.f32 %v5454, %v5566
  %v5568 = vpop.f32.mrb[0].mxu0
  %v5569 = vadd.f32 %v5456, %v5568
  %v5570 = vpop.f32.mrb[0].mxu0
  %v5571 = vadd.f32 %v5458, %v5570
  %v5572 = vpop.f32.mrb[0].mxu0
  %v5573 = vadd.f32 %v5460, %v5572
  %5574 = vmatprep.mubr.bf16.mxu0 %v1568
  %5575 = vmatmul.mubr.bf16.gmra.mrb[0].mxu0 %v1567
  %v5576 = vpop.f32.mrb[0].mxu0
  %v5577 = vadd.f32 %v5464, %v5576
  %v5578 = vpop.f32.mrb[0].mxu0
  %v5579 = vadd.f32 %v5466, %v5578
  %v5580 = vpop.f32.mrb[0].mxu0
  %v5581 = vadd.f32 %v5468, %v5580
  %v5582 = vpop.f32.mrb[0].mxu0
  %v5583 = vadd.f32 %v5470, %v5582
  %5584 = vmatprep.mubr.bf16.mxu0 %v1576
  %5585 = vmatmul.mubr.bf16.gmra.mrb[0].mxu0 %v1575
  %v5586 = vpop.f32.mrb[0].mxu0
  %v5587 = vadd.f32 %v5474, %v5586
  %v5588 = vpop.f32.mrb[0].mxu0
  %v5589 = vadd.f32 %v5476, %v5588
  %v5590 = vpop.f32.mrb[0].mxu0
  %v5591 = vadd.f32 %v5478, %v5590
  %v5592 = vpop.f32.mrb[0].mxu0
  %v5593 = vadd.f32 %v5480, %v5592
  %5594 = vdwg.mxu0
  %5595 = vmatprep.subr.bf16.mxu0 %v3672
  %5596 = vmatpush1.bf16.msra.mxu0 %v3671
  %5597 = vmatprep.subr.bf16.mxu0 %v3680
  %5598 = vmatpush1.bf16.msra.mxu0 %v3679
  %5599 = vmatprep.subr.bf16.mxu0 %v3688
  %5600 = vmatpush1.bf16.msra.mxu0 %v3687
  %5601 = vmatprep.subr.bf16.mxu0 %v3696
  %5602 = vmatpush1.bf16.msra.mxu0 %v3695
  %5603 = vmatprep.subr.bf16.mxu0 %v3704
  %5604 = vmatpush1.bf16.msra.mxu0 %v3703
  %5605 = vmatprep.subr.bf16.mxu0 %v3712
  %5606 = vmatpush1.bf16.msra.mxu0 %v3711
  %5607 = vmatprep.subr.bf16.mxu0 %v3720
  %5608 = vmatpush1.bf16.msra.mxu0 %v3719
  %5609 = vmatprep.subr.bf16.mxu0 %v3728
  %5610 = vmatpush1.bf16.msra.mxu0 %v3727
  %5611 = vmatprep.subr.bf16.mxu0 %v3736
  %5612 = vmatpush1.bf16.msra.mxu0 %v3735
  %5613 = vmatprep.subr.bf16.mxu0 %v3744
  %5614 = vmatpush1.bf16.msra.mxu0 %v3743
  %5615 = vmatprep.subr.bf16.mxu0 %v3752
  %5616 = vmatpush1.bf16.msra.mxu0 %v3751
  %5617 = vmatprep.subr.bf16.mxu0 %v3760
  %5618 = vmatpush1.bf16.msra.mxu0 %v3759
  %5619 = vmatprep.subr.bf16.mxu0 %v3768
  %5620 = vmatpush1.bf16.msra.mxu0 %v3767
  %5621 = vmatprep.subr.bf16.mxu0 %v3776
  %5622 = vmatpush1.bf16.msra.mxu0 %v3775
  %5623 = vmatprep.subr.bf16.mxu0 %v3784
  %5624 = vmatpush1.bf16.msra.mxu0 %v3783
  %5625 = vmatprep.subr.bf16.mxu0 %v3792
  %5626 = vmatpush1.bf16.msra.mxu0 %v3791
  %5627 = vmatprep.mubr.bf16.mxu0 %v1514
  %5628 = vmatmul.mubr.bf16.gmra.mrb[0].mxu0 %v1513
  %v5629 = vpop.f32.mrb[0].mxu0
  %v5630 = vadd.f32 %v2110, %v5629
  %v5631 = vpop.f32.mrb[0].mxu0
  %v5632 = vadd.f32 %v2114, %v5631
  %v5633 = vpop.f32.mrb[0].mxu0
  %v5634 = vadd.f32 %v2110, %v5633
  %v5635 = vpop.f32.mrb[0].mxu0
  %v5636 = vadd.f32 %v2114, %v5635
  %5637 = vmatprep.mubr.bf16.mxu0 %v1522
  %5638 = vmatmul.mubr.bf16.gmra.mrb[0].mxu0 %v1521
  %v5639 = vpop.f32.mrb[0].mxu0
  %v5640 = vadd.f32 %v2110, %v5639
  %v5641 = vpop.f32.mrb[0].mxu0
  %v5642 = vadd.f32 %v2114, %v5641
  %v5643 = vpop.f32.mrb[0].mxu0
  %v5644 = vadd.f32 %v2110, %v5643
  %v5645 = vpop.f32.mrb[0].mxu0
  %v5646 = vadd.f32 %v2114, %v5645
  %5647 = vmatprep.mubr.bf16.mxu0 %v1530
  %5648 = vmatmul.mubr.bf16.gmra.mrb[0].mxu0 %v1529
  %v5649 = vpop.f32.mrb[0].mxu0
  %v5650 = vadd.f32 %v2110, %v5649
  %v5651 = vpop.f32.mrb[0].mxu0
  %v5652 = vadd.f32 %v2114, %v5651
  %v5653 = vpop.f32.mrb[0].mxu0
  %v5654 = vadd.f32 %v2110, %v5653
  %v5655 = vpop.f32.mrb[0].mxu0
  %v5656 = vadd.f32 %v2114, %v5655
  %5657 = vmatprep.mubr.bf16.mxu0 %v1538
  %5658 = vmatmul.mubr.bf16.gmra.mrb[0].mxu0 %v1537
  %v5659 = vpop.f32.mrb[0].mxu0
  %v5660 = vadd.f32 %v2110, %v5659
  %v5661 = vpop.f32.mrb[0].mxu0
  %v5662 = vadd.f32 %v2114, %v5661
  %v5663 = vpop.f32.mrb[0].mxu0
  %v5664 = vadd.f32 %v2110, %v5663
  %v5665 = vpop.f32.mrb[0].mxu0
  %v5666 = vadd.f32 %v2114, %v5665
  %5667 = vmatprep.mubr.bf16.mxu0 %v1546
  %5668 = vmatmul.mubr.bf16.gmra.mrb[0].mxu0 %v1545
  %v5669 = vpop.f32.mrb[0].mxu0
  %v5670 = vadd.f32 %v2110, %v5669
  %v5671 = vpop.f32.mrb[0].mxu0
  %v5672 = vadd.f32 %v2114, %v5671
  %v5673 = vpop.f32.mrb[0].mxu0
  %v5674 = vadd.f32 %v2110, %v5673
  %v5675 = vpop.f32.mrb[0].mxu0
  %v5676 = vadd.f32 %v2114, %v5675
  %5677 = vmatprep.mubr.bf16.mxu0 %v1554
  %5678 = vmatmul.mubr.bf16.gmra.mrb[0].mxu0 %v1553
  %v5679 = vpop.f32.mrb[0].mxu0
  %v5680 = vadd.f32 %v2110, %v5679
  %v5681 = vpop.f32.mrb[0].mxu0
  %v5682 = vadd.f32 %v2114, %v5681
  %v5683 = vpop.f32.mrb[0].mxu0
  %v5684 = vadd.f32 %v2110, %v5683
  %v5685 = vpop.f32.mrb[0].mxu0
  %v5686 = vadd.f32 %v2114, %v5685
  %5687 = vmatprep.mubr.bf16.mxu0 %v1562
  %5688 = vmatmul.mubr.bf16.gmra.mrb[0].mxu0 %v1561
  %v5689 = vpop.f32.mrb[0].mxu0
  %v5690 = vadd.f32 %v2110, %v5689
  %v5691 = vpop.f32.mrb[0].mxu0
  %v5692 = vadd.f32 %v2114, %v5691
  %v5693 = vpop.f32.mrb[0].mxu0
  %v5694 = vadd.f32 %v2110, %v5693
  %v5695 = vpop.f32.mrb[0].mxu0
  %v5696 = vadd.f32 %v2114, %v5695
  %5697 = vmatprep.mubr.bf16.mxu0 %v1570
  %5698 = vmatmul.mubr.bf16.gmra.mrb[0].mxu0 %v1569
  %v5699 = vpop.f32.mrb[0].mxu0
  %v5700 = vadd.f32 %v2110, %v5699
  %v5701 = vpop.f32.mrb[0].mxu0
  %v5702 = vadd.f32 %v2114, %v5701
  %v5703 = vpop.f32.mrb[0].mxu0
  %v5704 = vadd.f32 %v2110, %v5703
  %v5705 = vpop.f32.mrb[0].mxu0
  %v5706 = vadd.f32 %v2114, %v5705
  %5707 = vdwg.mxu0
  %5708 = vmatprep.subr.bf16.mxu0 %v3800
  %5709 = vmatpush1.bf16.msra.mxu0 %v3799
  %5710 = vmatprep.subr.bf16.mxu0 %v3808
  %5711 = vmatpush1.bf16.msra.mxu0 %v3807
  %5712 = vmatprep.subr.bf16.mxu0 %v3816
  %5713 = vmatpush1.bf16.msra.mxu0 %v3815
  %5714 = vmatprep.subr.bf16.mxu0 %v3824
  %5715 = vmatpush1.bf16.msra.mxu0 %v3823
  %5716 = vmatprep.subr.bf16.mxu0 %v3832
  %5717 = vmatpush1.bf16.msra.mxu0 %v3831
  %5718 = vmatprep.subr.bf16.mxu0 %v3840
  %5719 = vmatpush1.bf16.msra.mxu0 %v3839
  %5720 = vmatprep.subr.bf16.mxu0 %v3848
  %5721 = vmatpush1.bf16.msra.mxu0 %v3847
  %5722 = vmatprep.subr.bf16.mxu0 %v3856
  %5723 = vmatpush1.bf16.msra.mxu0 %v3855
  %5724 = vmatprep.subr.bf16.mxu0 %v3864
  %5725 = vmatpush1.bf16.msra.mxu0 %v3863
  %5726 = vmatprep.subr.bf16.mxu0 %v3872
  %5727 = vmatpush1.bf16.msra.mxu0 %v3871
  %5728 = vmatprep.subr.bf16.mxu0 %v3880
  %5729 = vmatpush1.bf16.msra.mxu0 %v3879
  %5730 = vmatprep.subr.bf16.mxu0 %v3888
  %5731 = vmatpush1.bf16.msra.mxu0 %v3887
  %5732 = vmatprep.subr.bf16.mxu0 %v3896
  %5733 = vmatpush1.bf16.msra.mxu0 %v3895
  %5734 = vmatprep.subr.bf16.mxu0 %v3904
  %5735 = vmatpush1.bf16.msra.mxu0 %v3903
  %5736 = vmatprep.subr.bf16.mxu0 %v3912
  %5737 = vmatpush1.bf16.msra.mxu0 %v3911
  %5738 = vmatprep.subr.bf16.mxu0 %v3920
  %5739 = vmatpush1.bf16.msra.mxu0 %v3919
  %5740 = vmatprep.mubr.bf16.mxu0 %v1516
  %5741 = vmatmul.mubr.bf16.gmra.mrb[0].mxu0 %v1515
  %v5742 = vpop.f32.mrb[0].mxu0
  %v5743 = vadd.f32 %v5630, %v5742
  %v5744 = vpop.f32.mrb[0].mxu0
  %v5745 = vadd.f32 %v5632, %v5744
  %v5746 = vpop.f32.mrb[0].mxu0
  %v5747 = vadd.f32 %v5634, %v5746
  %v5748 = vpop.f32.mrb[0].mxu0
  %v5749 = vadd.f32 %v5636, %v5748
  %5750 = vmatprep.mubr.bf16.mxu0 %v1524
  %5751 = vmatmul.mubr.bf16.gmra.mrb[0].mxu0 %v1523
  %v5752 = vpop.f32.mrb[0].mxu0
  %v5753 = vadd.f32 %v5640, %v5752
  %v5754 = vpop.f32.mrb[0].mxu0
  %v5755 = vadd.f32 %v5642, %v5754
  %v5756 = vpop.f32.mrb[0].mxu0
  %v5757 = vadd.f32 %v5644, %v5756
  %v5758 = vpop.f32.mrb[0].mxu0
  %v5759 = vadd.f32 %v5646, %v5758
  %5760 = vmatprep.mubr.bf16.mxu0 %v1532
  %5761 = vmatmul.mubr.bf16.gmra.mrb[0].mxu0 %v1531
  %v5762 = vpop.f32.mrb[0].mxu0
  %v5763 = vadd.f32 %v5650, %v5762
  %v5764 = vpop.f32.mrb[0].mxu0
  %v5765 = vadd.f32 %v5652, %v5764
  %v5766 = vpop.f32.mrb[0].mxu0
  %v5767 = vadd.f32 %v5654, %v5766
  %v5768 = vpop.f32.mrb[0].mxu0
  %v5769 = vadd.f32 %v5656, %v5768
  %5770 = vmatprep.mubr.bf16.mxu0 %v1540
  %5771 = vmatmul.mubr.bf16.gmra.mrb[0].mxu0 %v1539
  %v5772 = vpop.f32.mrb[0].mxu0
  %v5773 = vadd.f32 %v5660, %v5772
  %v5774 = vpop.f32.mrb[0].mxu0
  %v5775 = vadd.f32 %v5662, %v5774
  %v5776 = vpop.f32.mrb[0].mxu0
  %v5777 = vadd.f32 %v5664, %v5776
  %v5778 = vpop.f32.mrb[0].mxu0
  %v5779 = vadd.f32 %v5666, %v5778
  %5780 = vmatprep.mubr.bf16.mxu0 %v1548
  %5781 = vmatmul.mubr.bf16.gmra.mrb[0].mxu0 %v1547
  %v5782 = vpop.f32.mrb[0].mxu0
  %v5783 = vadd.f32 %v5670, %v5782
  %v5784 = vpop.f32.mrb[0].mxu0
  %v5785 = vadd.f32 %v5672, %v5784
  %v5786 = vpop.f32.mrb[0].mxu0
  %v5787 = vadd.f32 %v5674, %v5786
  %v5788 = vpop.f32.mrb[0].mxu0
  %v5789 = vadd.f32 %v5676, %v5788
  %5790 = vmatprep.mubr.bf16.mxu0 %v1556
  %5791 = vmatmul.mubr.bf16.gmra.mrb[0].mxu0 %v1555
  %v5792 = vpop.f32.mrb[0].mxu0
  %v5793 = vadd.f32 %v5680, %v5792
  %v5794 = vpop.f32.mrb[0].mxu0
  %v5795 = vadd.f32 %v5682, %v5794
  %v5796 = vpop.f32.mrb[0].mxu0
  %v5797 = vadd.f32 %v5684, %v5796
  %v5798 = vpop.f32.mrb[0].mxu0
  %v5799 = vadd.f32 %v5686, %v5798
  %5800 = vmatprep.mubr.bf16.mxu0 %v1564
  %5801 = vmatmul.mubr.bf16.gmra.mrb[0].mxu0 %v1563
  %v5802 = vpop.f32.mrb[0].mxu0
  %v5803 = vadd.f32 %v5690, %v5802
  %v5804 = vpop.f32.mrb[0].mxu0
  %v5805 = vadd.f32 %v5692, %v5804
  %v5806 = vpop.f32.mrb[0].mxu0
  %v5807 = vadd.f32 %v5694, %v5806
  %v5808 = vpop.f32.mrb[0].mxu0
  %v5809 = vadd.f32 %v5696, %v5808
  %5810 = vmatprep.mubr.bf16.mxu0 %v1572
  %5811 = vmatmul.mubr.bf16.gmra.mrb[0].mxu0 %v1571
  %v5812 = vpop.f32.mrb[0].mxu0
  %v5813 = vadd.f32 %v5700, %v5812
  %v5814 = vpop.f32.mrb[0].mxu0
  %v5815 = vadd.f32 %v5702, %v5814
  %v5816 = vpop.f32.mrb[0].mxu0
  %v5817 = vadd.f32 %v5704, %v5816
  %v5818 = vpop.f32.mrb[0].mxu0
  %v5819 = vadd.f32 %v5706, %v5818
  %5820 = vdwg.mxu0
  %5821 = vmatprep.subr.bf16.mxu0 %v3928
  %5822 = vmatpush1.bf16.msra.mxu0 %v3927
  %5823 = vmatprep.subr.bf16.mxu0 %v3936
  %5824 = vmatpush1.bf16.msra.mxu0 %v3935
  %5825 = vmatprep.subr.bf16.mxu0 %v3944
  %5826 = vmatpush1.bf16.msra.mxu0 %v3943
  %5827 = vmatprep.subr.bf16.mxu0 %v3952
  %5828 = vmatpush1.bf16.msra.mxu0 %v3951
  %5829 = vmatprep.subr.bf16.mxu0 %v3960
  %5830 = vmatpush1.bf16.msra.mxu0 %v3959
  %5831 = vmatprep.subr.bf16.mxu0 %v3968
  %5832 = vmatpush1.bf16.msra.mxu0 %v3967
  %5833 = vmatprep.subr.bf16.mxu0 %v3976
  %5834 = vmatpush1.bf16.msra.mxu0 %v3975
  %5835 = vmatprep.subr.bf16.mxu0 %v3984
  %5836 = vmatpush1.bf16.msra.mxu0 %v3983
  %5837 = vmatprep.subr.bf16.mxu0 %v3992
  %5838 = vmatpush1.bf16.msra.mxu0 %v3991
  %5839 = vmatprep.subr.bf16.mxu0 %v4000
  %5840 = vmatpush1.bf16.msra.mxu0 %v3999
  %5841 = vmatprep.subr.bf16.mxu0 %v4008
  %5842 = vmatpush1.bf16.msra.mxu0 %v4007
  %5843 = vmatprep.subr.bf16.mxu0 %v4016
  %5844 = vmatpush1.bf16.msra.mxu0 %v4015
  %5845 = vmatprep.subr.bf16.mxu0 %v4024
  %5846 = vmatpush1.bf16.msra.mxu0 %v4023
  %5847 = vmatprep.subr.bf16.mxu0 %v4032
  %5848 = vmatpush1.bf16.msra.mxu0 %v4031
  %5849 = vmatprep.subr.bf16.mxu0 %v4040
  %5850 = vmatpush1.bf16.msra.mxu0 %v4039
  %5851 = vmatprep.subr.bf16.mxu0 %v4048
  %5852 = vmatpush1.bf16.msra.mxu0 %v4047
  %5853 = vmatprep.mubr.bf16.mxu0 %v1518
  %5854 = vmatmul.mubr.bf16.gmra.mrb[0].mxu0 %v1517
  %v5855 = vpop.f32.mrb[0].mxu0
  %v5856 = vadd.f32 %v5743, %v5855
  %v5857 = vpop.f32.mrb[0].mxu0
  %v5858 = vadd.f32 %v5745, %v5857
  %v5859 = vpop.f32.mrb[0].mxu0
  %v5860 = vadd.f32 %v5747, %v5859
  %v5861 = vpop.f32.mrb[0].mxu0
  %v5862 = vadd.f32 %v5749, %v5861
  %5863 = vmatprep.mubr.bf16.mxu0 %v1526
  %5864 = vmatmul.mubr.bf16.gmra.mrb[0].mxu0 %v1525
  %v5865 = vpop.f32.mrb[0].mxu0
  %v5866 = vadd.f32 %v5753, %v5865
  %v5867 = vpop.f32.mrb[0].mxu0
  %v5868 = vadd.f32 %v5755, %v5867
  %v5869 = vpop.f32.mrb[0].mxu0
  %v5870 = vadd.f32 %v5757, %v5869
  %v5871 = vpop.f32.mrb[0].mxu0
  %v5872 = vadd.f32 %v5759, %v5871
  %5873 = vmatprep.mubr.bf16.mxu0 %v1534
  %5874 = vmatmul.mubr.bf16.gmra.mrb[0].mxu0 %v1533
  %v5875 = vpop.f32.mrb[0].mxu0
  %v5876 = vadd.f32 %v5763, %v5875
  %v5877 = vpop.f32.mrb[0].mxu0
  %v5878 = vadd.f32 %v5765, %v5877
  %v5879 = vpop.f32.mrb[0].mxu0
  %v5880 = vadd.f32 %v5767, %v5879
  %v5881 = vpop.f32.mrb[0].mxu0
  %v5882 = vadd.f32 %v5769, %v5881
  %5883 = vmatprep.mubr.bf16.mxu0 %v1542
  %5884 = vmatmul.mubr.bf16.gmra.mrb[0].mxu0 %v1541
  %v5885 = vpop.f32.mrb[0].mxu0
  %v5886 = vadd.f32 %v5773, %v5885
  %v5887 = vpop.f32.mrb[0].mxu0
  %v5888 = vadd.f32 %v5775, %v5887
  %v5889 = vpop.f32.mrb[0].mxu0
  %v5890 = vadd.f32 %v5777, %v5889
  %v5891 = vpop.f32.mrb[0].mxu0
  %v5892 = vadd.f32 %v5779, %v5891
  %5893 = vmatprep.mubr.bf16.mxu0 %v1550
  %5894 = vmatmul.mubr.bf16.gmra.mrb[0].mxu0 %v1549
  %v5895 = vpop.f32.mrb[0].mxu0
  %v5896 = vadd.f32 %v5783, %v5895
  %v5897 = vpop.f32.mrb[0].mxu0
  %v5898 = vadd.f32 %v5785, %v5897
  %v5899 = vpop.f32.mrb[0].mxu0
  %v5900 = vadd.f32 %v5787, %v5899
  %v5901 = vpop.f32.mrb[0].mxu0
  %v5902 = vadd.f32 %v5789, %v5901
  %5903 = vmatprep.mubr.bf16.mxu0 %v1558
  %5904 = vmatmul.mubr.bf16.gmra.mrb[0].mxu0 %v1557
  %v5905 = vpop.f32.mrb[0].mxu0
  %v5906 = vadd.f32 %v5793, %v5905
  %v5907 = vpop.f32.mrb[0].mxu0
  %v5908 = vadd.f32 %v5795, %v5907
  %v5909 = vpop.f32.mrb[0].mxu0
  %v5910 = vadd.f32 %v5797, %v5909
  %v5911 = vpop.f32.mrb[0].mxu0
  %v5912 = vadd.f32 %v5799, %v5911
  %5913 = vmatprep.mubr.bf16.mxu0 %v1566
  %5914 = vmatmul.mubr.bf16.gmra.mrb[0].mxu0 %v1565
  %v5915 = vpop.f32.mrb[0].mxu0
  %v5916 = vadd.f32 %v5803, %v5915
  %v5917 = vpop.f32.mrb[0].mxu0
  %v5918 = vadd.f32 %v5805, %v5917
  %v5919 = vpop.f32.mrb[0].mxu0
  %v5920 = vadd.f32 %v5807, %v5919
  %v5921 = vpop.f32.mrb[0].mxu0
  %v5922 = vadd.f32 %v5809, %v5921
  %5923 = vmatprep.mubr.bf16.mxu0 %v1574
  %5924 = vmatmul.mubr.bf16.gmra.mrb[0].mxu0 %v1573
  %v5925 = vpop.f32.mrb[0].mxu0
  %v5926 = vadd.f32 %v5813, %v5925
  %v5927 = vpop.f32.mrb[0].mxu0
  %v5928 = vadd.f32 %v5815, %v5927
  %v5929 = vpop.f32.mrb[0].mxu0
  %v5930 = vadd.f32 %v5817, %v5929
  %v5931 = vpop.f32.mrb[0].mxu0
  %v5932 = vadd.f32 %v5819, %v5931
  %5933 = vdwg.mxu0
  %5934 = vmatprep.subr.bf16.mxu0 %v4056
  %5935 = vmatpush1.bf16.msra.mxu0 %v4055
  %5936 = vmatprep.subr.bf16.mxu0 %v4064
  %5937 = vmatpush1.bf16.msra.mxu0 %v4063
  %5938 = vmatprep.subr.bf16.mxu0 %v4072
  %5939 = vmatpush1.bf16.msra.mxu0 %v4071
  %5940 = vmatprep.subr.bf16.mxu0 %v4080
  %5941 = vmatpush1.bf16.msra.mxu0 %v4079
  %5942 = vmatprep.subr.bf16.mxu0 %v4088
  %5943 = vmatpush1.bf16.msra.mxu0 %v4087
  %5944 = vmatprep.subr.bf16.mxu0 %v4096
  %5945 = vmatpush1.bf16.msra.mxu0 %v4095
  %5946 = vmatprep.subr.bf16.mxu0 %v4104
  %5947 = vmatpush1.bf16.msra.mxu0 %v4103
  %5948 = vmatprep.subr.bf16.mxu0 %v4112
  %5949 = vmatpush1.bf16.msra.mxu0 %v4111
  %5950 = vmatprep.subr.bf16.mxu0 %v4120
  %5951 = vmatpush1.bf16.msra.mxu0 %v4119
  %5952 = vmatprep.subr.bf16.mxu0 %v4128
  %5953 = vmatpush1.bf16.msra.mxu0 %v4127
  %5954 = vmatprep.subr.bf16.mxu0 %v4136
  %5955 = vmatpush1.bf16.msra.mxu0 %v4135
  %5956 = vmatprep.subr.bf16.mxu0 %v4144
  %5957 = vmatpush1.bf16.msra.mxu0 %v4143
  %5958 = vmatprep.subr.bf16.mxu0 %v4152
  %5959 = vmatpush1.bf16.msra.mxu0 %v4151
  %5960 = vmatprep.subr.bf16.mxu0 %v4160
  %5961 = vmatpush1.bf16.msra.mxu0 %v4159
  %5962 = vmatprep.subr.bf16.mxu0 %v4168
  %5963 = vmatpush1.bf16.msra.mxu0 %v4167
  %5964 = vmatprep.subr.bf16.mxu0 %v4176
  %5965 = vmatpush1.bf16.msra.mxu0 %v4175
  %5966 = vmatprep.mubr.bf16.mxu0 %v1520
  %5967 = vmatmul.mubr.bf16.gmra.mrb[0].mxu0 %v1519
  %v5968 = vpop.f32.mrb[0].mxu0
  %v5969 = vadd.f32 %v5856, %v5968
  %v5970 = vpop.f32.mrb[0].mxu0
  %v5971 = vadd.f32 %v5858, %v5970
  %v5972 = vpop.f32.mrb[0].mxu0
  %v5973 = vadd.f32 %v5860, %v5972
  %v5974 = vpop.f32.mrb[0].mxu0
  %v5975 = vadd.f32 %v5862, %v5974
  %5976 = vmatprep.mubr.bf16.mxu0 %v1528
  %5977 = vmatmul.mubr.bf16.gmra.mrb[0].mxu0 %v1527
  %v5978 = vpop.f32.mrb[0].mxu0
  %v5979 = vadd.f32 %v5866, %v5978
  %v5980 = vpop.f32.mrb[0].mxu0
  %v5981 = vadd.f32 %v5868, %v5980
  %v5982 = vpop.f32.mrb[0].mxu0
  %v5983 = vadd.f32 %v5870, %v5982
  %v5984 = vpop.f32.mrb[0].mxu0
  %v5985 = vadd.f32 %v5872, %v5984
  %5986 = vmatprep.mubr.bf16.mxu0 %v1536
  %5987 = vmatmul.mubr.bf16.gmra.mrb[0].mxu0 %v1535
  %v5988 = vpop.f32.mrb[0].mxu0
  %v5989 = vadd.f32 %v5876, %v5988
  %v5990 = vpop.f32.mrb[0].mxu0
  %v5991 = vadd.f32 %v5878, %v5990
  %v5992 = vpop.f32.mrb[0].mxu0
  %v5993 = vadd.f32 %v5880, %v5992
  %v5994 = vpop.f32.mrb[0].mxu0
  %v5995 = vadd.f32 %v5882, %v5994
  %5996 = vmatprep.mubr.bf16.mxu0 %v1544
  %5997 = vmatmul.mubr.bf16.gmra.mrb[0].mxu0 %v1543
  %v5998 = vpop.f32.mrb[0].mxu0
  %v5999 = vadd.f32 %v5886, %v5998
  %v6000 = vpop.f32.mrb[0].mxu0
  %v6001 = vadd.f32 %v5888, %v6000
  %v6002 = vpop.f32.mrb[0].mxu0
  %v6003 = vadd.f32 %v5890, %v6002
  %v6004 = vpop.f32.mrb[0].mxu0
  %v6005 = vadd.f32 %v5892, %v6004
  %6006 = vmatprep.mubr.bf16.mxu0 %v1552
  %6007 = vmatmul.mubr.bf16.gmra.mrb[0].mxu0 %v1551
  %v6008 = vpop.f32.mrb[0].mxu0
  %v6009 = vadd.f32 %v5896, %v6008
  %v6010 = vpop.f32.mrb[0].mxu0
  %v6011 = vadd.f32 %v5898, %v6010
  %v6012 = vpop.f32.mrb[0].mxu0
  %v6013 = vadd.f32 %v5900, %v6012
  %v6014 = vpop.f32.mrb[0].mxu0
  %v6015 = vadd.f32 %v5902, %v6014
  %6016 = vmatprep.mubr.bf16.mxu0 %v1560
  %6017 = vmatmul.mubr.bf16.gmra.mrb[0].mxu0 %v1559
  %v6018 = vpop.f32.mrb[0].mxu0
  %v6019 = vadd.f32 %v5906, %v6018
  %v6020 = vpop.f32.mrb[0].mxu0
  %v6021 = vadd.f32 %v5908, %v6020
  %v6022 = vpop.f32.mrb[0].mxu0
  %v6023 = vadd.f32 %v5910, %v6022
  %v6024 = vpop.f32.mrb[0].mxu0
  %v6025 = vadd.f32 %v5912, %v6024
  %6026 = vmatprep.mubr.bf16.mxu0 %v1568
  %6027 = vmatmul.mubr.bf16.gmra.mrb[0].mxu0 %v1567
  %v6028 = vpop.f32.mrb[0].mxu0
  %v6029 = vadd.f32 %v5916, %v6028
  %v6030 = vpop.f32.mrb[0].mxu0
  %v6031 = vadd.f32 %v5918, %v6030
  %v6032 = vpop.f32.mrb[0].mxu0
  %v6033 = vadd.f32 %v5920, %v6032
  %v6034 = vpop.f32.mrb[0].mxu0
  %v6035 = vadd.f32 %v5922, %v6034
  %6036 = vmatprep.mubr.bf16.mxu0 %v1576
  %6037 = vmatmul.mubr.bf16.gmra.mrb[0].mxu0 %v1575
  %v6038 = vpop.f32.mrb[0].mxu0
  %v6039 = vadd.f32 %v5926, %v6038
  %v6040 = vpop.f32.mrb[0].mxu0
  %v6041 = vadd.f32 %v5928, %v6040
  %v6042 = vpop.f32.mrb[0].mxu0
  %v6043 = vadd.f32 %v5930, %v6042
  %v6044 = vpop.f32.mrb[0].mxu0
  %v6045 = vadd.f32 %v5932, %v6044
  %6046 = vdwg.mxu0
  %6047 = vmatprep.subr.bf16.mxu0 %v3674
  %6048 = vmatpush1.bf16.msra.mxu0 %v3673
  %6049 = vmatprep.subr.bf16.mxu0 %v3682
  %6050 = vmatpush1.bf16.msra.mxu0 %v3681
  %6051 = vmatprep.subr.bf16.mxu0 %v3690
  %6052 = vmatpush1.bf16.msra.mxu0 %v3689
  %6053 = vmatprep.subr.bf16.mxu0 %v3698
  %6054 = vmatpush1.bf16.msra.mxu0 %v3697
  %6055 = vmatprep.subr.bf16.mxu0 %v3706
  %6056 = vmatpush1.bf16.msra.mxu0 %v3705
  %6057 = vmatprep.subr.bf16.mxu0 %v3714
  %6058 = vmatpush1.bf16.msra.mxu0 %v3713
  %6059 = vmatprep.subr.bf16.mxu0 %v3722
  %6060 = vmatpush1.bf16.msra.mxu0 %v3721
  %6061 = vmatprep.subr.bf16.mxu0 %v3730
  %6062 = vmatpush1.bf16.msra.mxu0 %v3729
  %6063 = vmatprep.subr.bf16.mxu0 %v3738
  %6064 = vmatpush1.bf16.msra.mxu0 %v3737
  %6065 = vmatprep.subr.bf16.mxu0 %v3746
  %6066 = vmatpush1.bf16.msra.mxu0 %v3745
  %6067 = vmatprep.subr.bf16.mxu0 %v3754
  %6068 = vmatpush1.bf16.msra.mxu0 %v3753
  %6069 = vmatprep.subr.bf16.mxu0 %v3762
  %6070 = vmatpush1.bf16.msra.mxu0 %v3761
  %6071 = vmatprep.subr.bf16.mxu0 %v3770
  %6072 = vmatpush1.bf16.msra.mxu0 %v3769
  %6073 = vmatprep.subr.bf16.mxu0 %v3778
  %6074 = vmatpush1.bf16.msra.mxu0 %v3777
  %6075 = vmatprep.subr.bf16.mxu0 %v3786
  %6076 = vmatpush1.bf16.msra.mxu0 %v3785
  %6077 = vmatprep.subr.bf16.mxu0 %v3794
  %6078 = vmatpush1.bf16.msra.mxu0 %v3793
  %6079 = vmatprep.mubr.bf16.mxu0 %v1514
  %6080 = vmatmul.mubr.bf16.gmra.mrb[0].mxu0 %v1513
  %v6081 = vpop.f32.mrb[0].mxu0
  %v6082 = vadd.f32 %v2118, %v6081
  %v6083 = vpop.f32.mrb[0].mxu0
  %v6084 = vadd.f32 %v2122, %v6083
  %v6085 = vpop.f32.mrb[0].mxu0
  %v6086 = vadd.f32 %v2118, %v6085
  %v6087 = vpop.f32.mrb[0].mxu0
  %v6088 = vadd.f32 %v2122, %v6087
  %6089 = vmatprep.mubr.bf16.mxu0 %v1522
  %6090 = vmatmul.mubr.bf16.gmra.mrb[0].mxu0 %v1521
  %v6091 = vpop.f32.mrb[0].mxu0
  %v6092 = vadd.f32 %v2118, %v6091
  %v6093 = vpop.f32.mrb[0].mxu0
  %v6094 = vadd.f32 %v2122, %v6093
  %v6095 = vpop.f32.mrb[0].mxu0
  %v6096 = vadd.f32 %v2118, %v6095
  %v6097 = vpop.f32.mrb[0].mxu0
  %v6098 = vadd.f32 %v2122, %v6097
  %6099 = vmatprep.mubr.bf16.mxu0 %v1530
  %6100 = vmatmul.mubr.bf16.gmra.mrb[0].mxu0 %v1529
  %v6101 = vpop.f32.mrb[0].mxu0
  %v6102 = vadd.f32 %v2118, %v6101
  %v6103 = vpop.f32.mrb[0].mxu0
  %v6104 = vadd.f32 %v2122, %v6103
  %v6105 = vpop.f32.mrb[0].mxu0
  %v6106 = vadd.f32 %v2118, %v6105
  %v6107 = vpop.f32.mrb[0].mxu0
  %v6108 = vadd.f32 %v2122, %v6107
  %6109 = vmatprep.mubr.bf16.mxu0 %v1538
  %6110 = vmatmul.mubr.bf16.gmra.mrb[0].mxu0 %v1537
  %v6111 = vpop.f32.mrb[0].mxu0
  %v6112 = vadd.f32 %v2118, %v6111
  %v6113 = vpop.f32.mrb[0].mxu0
  %v6114 = vadd.f32 %v2122, %v6113
  %v6115 = vpop.f32.mrb[0].mxu0
  %v6116 = vadd.f32 %v2118, %v6115
  %v6117 = vpop.f32.mrb[0].mxu0
  %v6118 = vadd.f32 %v2122, %v6117
  %6119 = vmatprep.mubr.bf16.mxu0 %v1546
  %6120 = vmatmul.mubr.bf16.gmra.mrb[0].mxu0 %v1545
  %v6121 = vpop.f32.mrb[0].mxu0
  %v6122 = vadd.f32 %v2118, %v6121
  %v6123 = vpop.f32.mrb[0].mxu0
  %v6124 = vadd.f32 %v2122, %v6123
  %v6125 = vpop.f32.mrb[0].mxu0
  %v6126 = vadd.f32 %v2118, %v6125
  %v6127 = vpop.f32.mrb[0].mxu0
  %v6128 = vadd.f32 %v2122, %v6127
  %6129 = vmatprep.mubr.bf16.mxu0 %v1554
  %6130 = vmatmul.mubr.bf16.gmra.mrb[0].mxu0 %v1553
  %v6131 = vpop.f32.mrb[0].mxu0
  %v6132 = vadd.f32 %v2118, %v6131
  %v6133 = vpop.f32.mrb[0].mxu0
  %v6134 = vadd.f32 %v2122, %v6133
  %v6135 = vpop.f32.mrb[0].mxu0
  %v6136 = vadd.f32 %v2118, %v6135
  %v6137 = vpop.f32.mrb[0].mxu0
  %v6138 = vadd.f32 %v2122, %v6137
  %6139 = vmatprep.mubr.bf16.mxu0 %v1562
  %6140 = vmatmul.mubr.bf16.gmra.mrb[0].mxu0 %v1561
  %v6141 = vpop.f32.mrb[0].mxu0
  %v6142 = vadd.f32 %v2118, %v6141
  %v6143 = vpop.f32.mrb[0].mxu0
  %v6144 = vadd.f32 %v2122, %v6143
  %v6145 = vpop.f32.mrb[0].mxu0
  %v6146 = vadd.f32 %v2118, %v6145
  %v6147 = vpop.f32.mrb[0].mxu0
  %v6148 = vadd.f32 %v2122, %v6147
  %6149 = vmatprep.mubr.bf16.mxu0 %v1570
  %6150 = vmatmul.mubr.bf16.gmra.mrb[0].mxu0 %v1569
  %v6151 = vpop.f32.mrb[0].mxu0
  %v6152 = vadd.f32 %v2118, %v6151
  %v6153 = vpop.f32.mrb[0].mxu0
  %v6154 = vadd.f32 %v2122, %v6153
  %v6155 = vpop.f32.mrb[0].mxu0
  %v6156 = vadd.f32 %v2118, %v6155
  %v6157 = vpop.f32.mrb[0].mxu0
  %v6158 = vadd.f32 %v2122, %v6157
  %6159 = vdwg.mxu0
  %6160 = vmatprep.subr.bf16.mxu0 %v3802
  %6161 = vmatpush1.bf16.msra.mxu0 %v3801
  %6162 = vmatprep.subr.bf16.mxu0 %v3810
  %6163 = vmatpush1.bf16.msra.mxu0 %v3809
  %6164 = vmatprep.subr.bf16.mxu0 %v3818
  %6165 = vmatpush1.bf16.msra.mxu0 %v3817
  %6166 = vmatprep.subr.bf16.mxu0 %v3826
  %6167 = vmatpush1.bf16.msra.mxu0 %v3825
  %6168 = vmatprep.subr.bf16.mxu0 %v3834
  %6169 = vmatpush1.bf16.msra.mxu0 %v3833
  %6170 = vmatprep.subr.bf16.mxu0 %v3842
  %6171 = vmatpush1.bf16.msra.mxu0 %v3841
  %6172 = vmatprep.subr.bf16.mxu0 %v3850
  %6173 = vmatpush1.bf16.msra.mxu0 %v3849
  %6174 = vmatprep.subr.bf16.mxu0 %v3858
  %6175 = vmatpush1.bf16.msra.mxu0 %v3857
  %6176 = vmatprep.subr.bf16.mxu0 %v3866
  %6177 = vmatpush1.bf16.msra.mxu0 %v3865
  %6178 = vmatprep.subr.bf16.mxu0 %v3874
  %6179 = vmatpush1.bf16.msra.mxu0 %v3873
  %6180 = vmatprep.subr.bf16.mxu0 %v3882
  %6181 = vmatpush1.bf16.msra.mxu0 %v3881
  %6182 = vmatprep.subr.bf16.mxu0 %v3890
  %6183 = vmatpush1.bf16.msra.mxu0 %v3889
  %6184 = vmatprep.subr.bf16.mxu0 %v3898
  %6185 = vmatpush1.bf16.msra.mxu0 %v3897
  %6186 = vmatprep.subr.bf16.mxu0 %v3906
  %6187 = vmatpush1.bf16.msra.mxu0 %v3905
  %6188 = vmatprep.subr.bf16.mxu0 %v3914
  %6189 = vmatpush1.bf16.msra.mxu0 %v3913
  %6190 = vmatprep.subr.bf16.mxu0 %v3922
  %6191 = vmatpush1.bf16.msra.mxu0 %v3921
  %6192 = vmatprep.mubr.bf16.mxu0 %v1516
  %6193 = vmatmul.mubr.bf16.gmra.mrb[0].mxu0 %v1515
  %v6194 = vpop.f32.mrb[0].mxu0
  %v6195 = vadd.f32 %v6082, %v6194
  %v6196 = vpop.f32.mrb[0].mxu0
  %v6197 = vadd.f32 %v6084, %v6196
  %v6198 = vpop.f32.mrb[0].mxu0
  %v6199 = vadd.f32 %v6086, %v6198
  %v6200 = vpop.f32.mrb[0].mxu0
  %v6201 = vadd.f32 %v6088, %v6200
  %6202 = vmatprep.mubr.bf16.mxu0 %v1524
  %6203 = vmatmul.mubr.bf16.gmra.mrb[0].mxu0 %v1523
  %v6204 = vpop.f32.mrb[0].mxu0
  %v6205 = vadd.f32 %v6092, %v6204
  %v6206 = vpop.f32.mrb[0].mxu0
  %v6207 = vadd.f32 %v6094, %v6206
  %v6208 = vpop.f32.mrb[0].mxu0
  %v6209 = vadd.f32 %v6096, %v6208
  %v6210 = vpop.f32.mrb[0].mxu0
  %v6211 = vadd.f32 %v6098, %v6210
  %6212 = vmatprep.mubr.bf16.mxu0 %v1532
  %6213 = vmatmul.mubr.bf16.gmra.mrb[0].mxu0 %v1531
  %v6214 = vpop.f32.mrb[0].mxu0
  %v6215 = vadd.f32 %v6102, %v6214
  %v6216 = vpop.f32.mrb[0].mxu0
  %v6217 = vadd.f32 %v6104, %v6216
  %v6218 = vpop.f32.mrb[0].mxu0
  %v6219 = vadd.f32 %v6106, %v6218
  %v6220 = vpop.f32.mrb[0].mxu0
  %v6221 = vadd.f32 %v6108, %v6220
  %6222 = vmatprep.mubr.bf16.mxu0 %v1540
  %6223 = vmatmul.mubr.bf16.gmra.mrb[0].mxu0 %v1539
  %v6224 = vpop.f32.mrb[0].mxu0
  %v6225 = vadd.f32 %v6112, %v6224
  %v6226 = vpop.f32.mrb[0].mxu0
  %v6227 = vadd.f32 %v6114, %v6226
  %v6228 = vpop.f32.mrb[0].mxu0
  %v6229 = vadd.f32 %v6116, %v6228
  %v6230 = vpop.f32.mrb[0].mxu0
  %v6231 = vadd.f32 %v6118, %v6230
  %6232 = vmatprep.mubr.bf16.mxu0 %v1548
  %6233 = vmatmul.mubr.bf16.gmra.mrb[0].mxu0 %v1547
  %v6234 = vpop.f32.mrb[0].mxu0
  %v6235 = vadd.f32 %v6122, %v6234
  %v6236 = vpop.f32.mrb[0].mxu0
  %v6237 = vadd.f32 %v6124, %v6236
  %v6238 = vpop.f32.mrb[0].mxu0
  %v6239 = vadd.f32 %v6126, %v6238
  %v6240 = vpop.f32.mrb[0].mxu0
  %v6241 = vadd.f32 %v6128, %v6240
  %6242 = vmatprep.mubr.bf16.mxu0 %v1556
  %6243 = vmatmul.mubr.bf16.gmra.mrb[0].mxu0 %v1555
  %v6244 = vpop.f32.mrb[0].mxu0
  %v6245 = vadd.f32 %v6132, %v6244
  %v6246 = vpop.f32.mrb[0].mxu0
  %v6247 = vadd.f32 %v6134, %v6246
  %v6248 = vpop.f32.mrb[0].mxu0
  %v6249 = vadd.f32 %v6136, %v6248
  %v6250 = vpop.f32.mrb[0].mxu0
  %v6251 = vadd.f32 %v6138, %v6250
  %6252 = vmatprep.mubr.bf16.mxu0 %v1564
  %6253 = vmatmul.mubr.bf16.gmra.mrb[0].mxu0 %v1563
  %v6254 = vpop.f32.mrb[0].mxu0
  %v6255 = vadd.f32 %v6142, %v6254
  %v6256 = vpop.f32.mrb[0].mxu0
  %v6257 = vadd.f32 %v6144, %v6256
  %v6258 = vpop.f32.mrb[0].mxu0
  %v6259 = vadd.f32 %v6146, %v6258
  %v6260 = vpop.f32.mrb[0].mxu0
  %v6261 = vadd.f32 %v6148, %v6260
  %6262 = vmatprep.mubr.bf16.mxu0 %v1572
  %6263 = vmatmul.mubr.bf16.gmra.mrb[0].mxu0 %v1571
  %v6264 = vpop.f32.mrb[0].mxu0
  %v6265 = vadd.f32 %v6152, %v6264
  %v6266 = vpop.f32.mrb[0].mxu0
  %v6267 = vadd.f32 %v6154, %v6266
  %v6268 = vpop.f32.mrb[0].mxu0
  %v6269 = vadd.f32 %v6156, %v6268
  %v6270 = vpop.f32.mrb[0].mxu0
  %v6271 = vadd.f32 %v6158, %v6270
  %6272 = vdwg.mxu0
  %6273 = vmatprep.subr.bf16.mxu0 %v3930
  %6274 = vmatpush1.bf16.msra.mxu0 %v3929
  %6275 = vmatprep.subr.bf16.mxu0 %v3938
  %6276 = vmatpush1.bf16.msra.mxu0 %v3937
  %6277 = vmatprep.subr.bf16.mxu0 %v3946
  %6278 = vmatpush1.bf16.msra.mxu0 %v3945
  %6279 = vmatprep.subr.bf16.mxu0 %v3954
  %6280 = vmatpush1.bf16.msra.mxu0 %v3953
  %6281 = vmatprep.subr.bf16.mxu0 %v3962
  %6282 = vmatpush1.bf16.msra.mxu0 %v3961
  %6283 = vmatprep.subr.bf16.mxu0 %v3970
  %6284 = vmatpush1.bf16.msra.mxu0 %v3969
  %6285 = vmatprep.subr.bf16.mxu0 %v3978
  %6286 = vmatpush1.bf16.msra.mxu0 %v3977
  %6287 = vmatprep.subr.bf16.mxu0 %v3986
  %6288 = vmatpush1.bf16.msra.mxu0 %v3985
  %6289 = vmatprep.subr.bf16.mxu0 %v3994
  %6290 = vmatpush1.bf16.msra.mxu0 %v3993
  %6291 = vmatprep.subr.bf16.mxu0 %v4002
  %6292 = vmatpush1.bf16.msra.mxu0 %v4001
  %6293 = vmatprep.subr.bf16.mxu0 %v4010
  %6294 = vmatpush1.bf16.msra.mxu0 %v4009
  %6295 = vmatprep.subr.bf16.mxu0 %v4018
  %6296 = vmatpush1.bf16.msra.mxu0 %v4017
  %6297 = vmatprep.subr.bf16.mxu0 %v4026
  %6298 = vmatpush1.bf16.msra.mxu0 %v4025
  %6299 = vmatprep.subr.bf16.mxu0 %v4034
  %6300 = vmatpush1.bf16.msra.mxu0 %v4033
  %6301 = vmatprep.subr.bf16.mxu0 %v4042
  %6302 = vmatpush1.bf16.msra.mxu0 %v4041
  %6303 = vmatprep.subr.bf16.mxu0 %v4050
  %6304 = vmatpush1.bf16.msra.mxu0 %v4049
  %6305 = vmatprep.mubr.bf16.mxu0 %v1518
  %6306 = vmatmul.mubr.bf16.gmra.mrb[0].mxu0 %v1517
  %v6307 = vpop.f32.mrb[0].mxu0
  %v6308 = vadd.f32 %v6195, %v6307
  %v6309 = vpop.f32.mrb[0].mxu0
  %v6310 = vadd.f32 %v6197, %v6309
  %v6311 = vpop.f32.mrb[0].mxu0
  %v6312 = vadd.f32 %v6199, %v6311
  %v6313 = vpop.f32.mrb[0].mxu0
  %v6314 = vadd.f32 %v6201, %v6313
  %6315 = vmatprep.mubr.bf16.mxu0 %v1526
  %6316 = vmatmul.mubr.bf16.gmra.mrb[0].mxu0 %v1525
  %v6317 = vpop.f32.mrb[0].mxu0
  %v6318 = vadd.f32 %v6205, %v6317
  %v6319 = vpop.f32.mrb[0].mxu0
  %v6320 = vadd.f32 %v6207, %v6319
  %v6321 = vpop.f32.mrb[0].mxu0
  %v6322 = vadd.f32 %v6209, %v6321
  %v6323 = vpop.f32.mrb[0].mxu0
  %v6324 = vadd.f32 %v6211, %v6323
  %6325 = vmatprep.mubr.bf16.mxu0 %v1534
  %6326 = vmatmul.mubr.bf16.gmra.mrb[0].mxu0 %v1533
  %v6327 = vpop.f32.mrb[0].mxu0
  %v6328 = vadd.f32 %v6215, %v6327
  %v6329 = vpop.f32.mrb[0].mxu0
  %v6330 = vadd.f32 %v6217, %v6329
  %v6331 = vpop.f32.mrb[0].mxu0
  %v6332 = vadd.f32 %v6219, %v6331
  %v6333 = vpop.f32.mrb[0].mxu0
  %v6334 = vadd.f32 %v6221, %v6333
  %6335 = vmatprep.mubr.bf16.mxu0 %v1542
  %6336 = vmatmul.mubr.bf16.gmra.mrb[0].mxu0 %v1541
  %v6337 = vpop.f32.mrb[0].mxu0
  %v6338 = vadd.f32 %v6225, %v6337
  %v6339 = vpop.f32.mrb[0].mxu0
  %v6340 = vadd.f32 %v6227, %v6339
  %v6341 = vpop.f32.mrb[0].mxu0
  %v6342 = vadd.f32 %v6229, %v6341
  %v6343 = vpop.f32.mrb[0].mxu0
  %v6344 = vadd.f32 %v6231, %v6343
  %6345 = vmatprep.mubr.bf16.mxu0 %v1550
  %6346 = vmatmul.mubr.bf16.gmra.mrb[0].mxu0 %v1549
  %v6347 = vpop.f32.mrb[0].mxu0
  %v6348 = vadd.f32 %v6235, %v6347
  %v6349 = vpop.f32.mrb[0].mxu0
  %v6350 = vadd.f32 %v6237, %v6349
  %v6351 = vpop.f32.mrb[0].mxu0
  %v6352 = vadd.f32 %v6239, %v6351
  %v6353 = vpop.f32.mrb[0].mxu0
  %v6354 = vadd.f32 %v6241, %v6353
  %6355 = vmatprep.mubr.bf16.mxu0 %v1558
  %6356 = vmatmul.mubr.bf16.gmra.mrb[0].mxu0 %v1557
  %v6357 = vpop.f32.mrb[0].mxu0
  %v6358 = vadd.f32 %v6245, %v6357
  %v6359 = vpop.f32.mrb[0].mxu0
  %v6360 = vadd.f32 %v6247, %v6359
  %v6361 = vpop.f32.mrb[0].mxu0
  %v6362 = vadd.f32 %v6249, %v6361
  %v6363 = vpop.f32.mrb[0].mxu0
  %v6364 = vadd.f32 %v6251, %v6363
  %6365 = vmatprep.mubr.bf16.mxu0 %v1566
  %6366 = vmatmul.mubr.bf16.gmra.mrb[0].mxu0 %v1565
  %v6367 = vpop.f32.mrb[0].mxu0
  %v6368 = vadd.f32 %v6255, %v6367
  %v6369 = vpop.f32.mrb[0].mxu0
  %v6370 = vadd.f32 %v6257, %v6369
  %v6371 = vpop.f32.mrb[0].mxu0
  %v6372 = vadd.f32 %v6259, %v6371
  %v6373 = vpop.f32.mrb[0].mxu0
  %v6374 = vadd.f32 %v6261, %v6373
  %6375 = vmatprep.mubr.bf16.mxu0 %v1574
  %6376 = vmatmul.mubr.bf16.gmra.mrb[0].mxu0 %v1573
  %v6377 = vpop.f32.mrb[0].mxu0
  %v6378 = vadd.f32 %v6265, %v6377
  %v6379 = vpop.f32.mrb[0].mxu0
  %v6380 = vadd.f32 %v6267, %v6379
  %v6381 = vpop.f32.mrb[0].mxu0
  %v6382 = vadd.f32 %v6269, %v6381
  %v6383 = vpop.f32.mrb[0].mxu0
  %v6384 = vadd.f32 %v6271, %v6383
  %6385 = vdwg.mxu0
  %6386 = vmatprep.subr.bf16.mxu0 %v4058
  %6387 = vmatpush1.bf16.msra.mxu0 %v4057
  %6388 = vmatprep.subr.bf16.mxu0 %v4066
  %6389 = vmatpush1.bf16.msra.mxu0 %v4065
  %6390 = vmatprep.subr.bf16.mxu0 %v4074
  %6391 = vmatpush1.bf16.msra.mxu0 %v4073
  %6392 = vmatprep.subr.bf16.mxu0 %v4082
  %6393 = vmatpush1.bf16.msra.mxu0 %v4081
  %6394 = vmatprep.subr.bf16.mxu0 %v4090
  %6395 = vmatpush1.bf16.msra.mxu0 %v4089
  %6396 = vmatprep.subr.bf16.mxu0 %v4098
  %6397 = vmatpush1.bf16.msra.mxu0 %v4097
  %6398 = vmatprep.subr.bf16.mxu0 %v4106
  %6399 = vmatpush1.bf16.msra.mxu0 %v4105
  %6400 = vmatprep.subr.bf16.mxu0 %v4114
  %6401 = vmatpush1.bf16.msra.mxu0 %v4113
  %6402 = vmatprep.subr.bf16.mxu0 %v4122
  %6403 = vmatpush1.bf16.msra.mxu0 %v4121
  %6404 = vmatprep.subr.bf16.mxu0 %v4130
  %6405 = vmatpush1.bf16.msra.mxu0 %v4129
  %6406 = vmatprep.subr.bf16.mxu0 %v4138
  %6407 = vmatpush1.bf16.msra.mxu0 %v4137
  %6408 = vmatprep.subr.bf16.mxu0 %v4146
  %6409 = vmatpush1.bf16.msra.mxu0 %v4145
  %6410 = vmatprep.subr.bf16.mxu0 %v4154
  %6411 = vmatpush1.bf16.msra.mxu0 %v4153
  %6412 = vmatprep.subr.bf16.mxu0 %v4162
  %6413 = vmatpush1.bf16.msra.mxu0 %v4161
  %6414 = vmatprep.subr.bf16.mxu0 %v4170
  %6415 = vmatpush1.bf16.msra.mxu0 %v4169
  %6416 = vmatprep.subr.bf16.mxu0 %v4178
  %6417 = vmatpush1.bf16.msra.mxu0 %v4177
  %6418 = vmatprep.mubr.bf16.mxu0 %v1520
  %6419 = vmatmul.mubr.bf16.gmra.mrb[0].mxu0 %v1519
  %v6420 = vpop.f32.mrb[0].mxu0
  %v6421 = vadd.f32 %v6308, %v6420
  %v6422 = vpop.f32.mrb[0].mxu0
  %v6423 = vadd.f32 %v6310, %v6422
  %v6424 = vpop.f32.mrb[0].mxu0
  %v6425 = vadd.f32 %v6312, %v6424
  %v6426 = vpop.f32.mrb[0].mxu0
  %v6427 = vadd.f32 %v6314, %v6426
  %6428 = vmatprep.mubr.bf16.mxu0 %v1528
  %6429 = vmatmul.mubr.bf16.gmra.mrb[0].mxu0 %v1527
  %v6430 = vpop.f32.mrb[0].mxu0
  %v6431 = vadd.f32 %v6318, %v6430
  %v6432 = vpop.f32.mrb[0].mxu0
  %v6433 = vadd.f32 %v6320, %v6432
  %v6434 = vpop.f32.mrb[0].mxu0
  %v6435 = vadd.f32 %v6322, %v6434
  %v6436 = vpop.f32.mrb[0].mxu0
  %v6437 = vadd.f32 %v6324, %v6436
  %6438 = vmatprep.mubr.bf16.mxu0 %v1536
  %6439 = vmatmul.mubr.bf16.gmra.mrb[0].mxu0 %v1535
  %v6440 = vpop.f32.mrb[0].mxu0
  %v6441 = vadd.f32 %v6328, %v6440
  %v6442 = vpop.f32.mrb[0].mxu0
  %v6443 = vadd.f32 %v6330, %v6442
  %v6444 = vpop.f32.mrb[0].mxu0
  %v6445 = vadd.f32 %v6332, %v6444
  %v6446 = vpop.f32.mrb[0].mxu0
  %v6447 = vadd.f32 %v6334, %v6446
  %6448 = vmatprep.mubr.bf16.mxu0 %v1544
  %6449 = vmatmul.mubr.bf16.gmra.mrb[0].mxu0 %v1543
  %v6450 = vpop.f32.mrb[0].mxu0
  %v6451 = vadd.f32 %v6338, %v6450
  %v6452 = vpop.f32.mrb[0].mxu0
  %v6453 = vadd.f32 %v6340, %v6452
  %v6454 = vpop.f32.mrb[0].mxu0
  %v6455 = vadd.f32 %v6342, %v6454
  %v6456 = vpop.f32.mrb[0].mxu0
  %v6457 = vadd.f32 %v6344, %v6456
  %6458 = vmatprep.mubr.bf16.mxu0 %v1552
  %6459 = vmatmul.mubr.bf16.gmra.mrb[0].mxu0 %v1551
  %v6460 = vpop.f32.mrb[0].mxu0
  %v6461 = vadd.f32 %v6348, %v6460
  %v6462 = vpop.f32.mrb[0].mxu0
  %v6463 = vadd.f32 %v6350, %v6462
  %v6464 = vpop.f32.mrb[0].mxu0
  %v6465 = vadd.f32 %v6352, %v6464
  %v6466 = vpop.f32.mrb[0].mxu0
  %v6467 = vadd.f32 %v6354, %v6466
  %6468 = vmatprep.mubr.bf16.mxu0 %v1560
  %6469 = vmatmul.mubr.bf16.gmra.mrb[0].mxu0 %v1559
  %v6470 = vpop.f32.mrb[0].mxu0
  %v6471 = vadd.f32 %v6358, %v6470
  %v6472 = vpop.f32.mrb[0].mxu0
  %v6473 = vadd.f32 %v6360, %v6472
  %v6474 = vpop.f32.mrb[0].mxu0
  %v6475 = vadd.f32 %v6362, %v6474
  %v6476 = vpop.f32.mrb[0].mxu0
  %v6477 = vadd.f32 %v6364, %v6476
  %6478 = vmatprep.mubr.bf16.mxu0 %v1568
  %6479 = vmatmul.mubr.bf16.gmra.mrb[0].mxu0 %v1567
  %v6480 = vpop.f32.mrb[0].mxu0
  %v6481 = vadd.f32 %v6368, %v6480
  %v6482 = vpop.f32.mrb[0].mxu0
  %v6483 = vadd.f32 %v6370, %v6482
  %v6484 = vpop.f32.mrb[0].mxu0
  %v6485 = vadd.f32 %v6372, %v6484
  %v6486 = vpop.f32.mrb[0].mxu0
  %v6487 = vadd.f32 %v6374, %v6486
  %6488 = vmatprep.mubr.bf16.mxu0 %v1576
  %6489 = vmatmul.mubr.bf16.gmra.mrb[0].mxu0 %v1575
  %v6490 = vpop.f32.mrb[0].mxu0
  %v6491 = vadd.f32 %v6378, %v6490
  %v6492 = vpop.f32.mrb[0].mxu0
  %v6493 = vadd.f32 %v6380, %v6492
  %v6494 = vpop.f32.mrb[0].mxu0
  %v6495 = vadd.f32 %v6382, %v6494
  %v6496 = vpop.f32.mrb[0].mxu0
  %v6497 = vadd.f32 %v6384, %v6496
  %6498 = vdwg.mxu0
  %v6499 = vmax.f32 %v5065, 0.0
  %v6500 = vmax.f32 %v5067, 0.0
  %v6501 = vmax.f32 %v5517, 0.0
  %v6502 = vmax.f32 %v5519, 0.0
  %v6503 = vmax.f32 %v5969, 0.0
  %v6504 = vmax.f32 %v5971, 0.0
  %v6505 = vmax.f32 %v6421, 0.0
  %v6506 = vmax.f32 %v6423, 0.0
  %v6507 = vmax.f32 %v5069, 0.0
  %v6508 = vmax.f32 %v5071, 0.0
  %v6509 = vmax.f32 %v5521, 0.0
  %v6510 = vmax.f32 %v5523, 0.0
  %v6511 = vmax.f32 %v5973, 0.0
  %v6512 = vmax.f32 %v5975, 0.0
  %v6513 = vmax.f32 %v6425, 0.0
  %v6514 = vmax.f32 %v6427, 0.0
  %v6515 = vmax.f32 %v5075, 0.0
  %v6516 = vmax.f32 %v5077, 0.0
  %v6517 = vmax.f32 %v5527, 0.0
  %v6518 = vmax.f32 %v5529, 0.0
  %v6519 = vmax.f32 %v5979, 0.0
  %v6520 = vmax.f32 %v5981, 0.0
  %v6521 = vmax.f32 %v6431, 0.0
  %v6522 = vmax.f32 %v6433, 0.0
  %v6523 = vmax.f32 %v5079, 0.0
  %v6524 = vmax.f32 %v5081, 0.0
  %v6525 = vmax.f32 %v5531, 0.0
  %v6526 = vmax.f32 %v5533, 0.0
  %v6527 = vmax.f32 %v5983, 0.0
  %v6528 = vmax.f32 %v5985, 0.0
  %v6529 = vmax.f32 %v6435, 0.0
  %v6530 = vmax.f32 %v6437, 0.0
  %v6531 = vmax.f32 %v5085, 0.0
  %v6532 = vmax.f32 %v5087, 0.0
  %v6533 = vmax.f32 %v5537, 0.0
  %v6534 = vmax.f32 %v5539, 0.0
  %v6535 = vmax.f32 %v5989, 0.0
  %v6536 = vmax.f32 %v5991, 0.0
  %v6537 = vmax.f32 %v6441, 0.0
  %v6538 = vmax.f32 %v6443, 0.0
  %v6539 = vmax.f32 %v5089, 0.0
  %v6540 = vmax.f32 %v5091, 0.0
  %v6541 = vmax.f32 %v5541, 0.0
  %v6542 = vmax.f32 %v5543, 0.0
  %v6543 = vmax.f32 %v5993, 0.0
  %v6544 = vmax.f32 %v5995, 0.0
  %v6545 = vmax.f32 %v6445, 0.0
  %v6546 = vmax.f32 %v6447, 0.0
  %v6547 = vmax.f32 %v5095, 0.0
  %v6548 = vmax.f32 %v5097, 0.0
  %v6549 = vmax.f32 %v5547, 0.0
  %v6550 = vmax.f32 %v5549, 0.0
  %v6551 = vmax.f32 %v5999, 0.0
  %v6552 = vmax.f32 %v6001, 0.0
  %v6553 = vmax.f32 %v6451, 0.0
  %v6554 = vmax.f32 %v6453, 0.0
  %v6555 = vmax.f32 %v5099, 0.0
  %v6556 = vmax.f32 %v5101, 0.0
  %v6557 = vmax.f32 %v5551, 0.0
  %v6558 = vmax.f32 %v5553, 0.0
  %v6559 = vmax.f32 %v6003, 0.0
  %v6560 = vmax.f32 %v6005, 0.0
  %v6561 = vmax.f32 %v6455, 0.0
  %v6562 = vmax.f32 %v6457, 0.0
  %v6563 = vmax.f32 %v5105, 0.0
  %v6564 = vmax.f32 %v5107, 0.0
  %v6565 = vmax.f32 %v5557, 0.0
  %v6566 = vmax.f32 %v5559, 0.0
  %v6567 = vmax.f32 %v6009, 0.0
  %v6568 = vmax.f32 %v6011, 0.0
  %v6569 = vmax.f32 %v6461, 0.0
  %v6570 = vmax.f32 %v6463, 0.0
  %v6571 = vmax.f32 %v5109, 0.0
  %v6572 = vmax.f32 %v5111, 0.0
  %v6573 = vmax.f32 %v5561, 0.0
  %v6574 = vmax.f32 %v5563, 0.0
  %v6575 = vmax.f32 %v6013, 0.0
  %v6576 = vmax.f32 %v6015, 0.0
  %v6577 = vmax.f32 %v6465, 0.0
  %v6578 = vmax.f32 %v6467, 0.0
  %v6579 = vmax.f32 %v5115, 0.0
  %v6580 = vmax.f32 %v5117, 0.0
  %v6581 = vmax.f32 %v5567, 0.0
  %v6582 = vmax.f32 %v5569, 0.0
  %v6583 = vmax.f32 %v6019, 0.0
  %v6584 = vmax.f32 %v6021, 0.0
  %v6585 = vmax.f32 %v6471, 0.0
  %v6586 = vmax.f32 %v6473, 0.0
  %v6587 = vmax.f32 %v5119, 0.0
  %v6588 = vmax.f32 %v5121, 0.0
  %v6589 = vmax.f32 %v5571, 0.0
  %v6590 = vmax.f32 %v5573, 0.0
  %v6591 = vmax.f32 %v6023, 0.0
  %v6592 = vmax.f32 %v6025, 0.0
  %v6593 = vmax.f32 %v6475, 0.0
  %v6594 = vmax.f32 %v6477, 0.0
  %v6595 = vmax.f32 %v5125, 0.0
  %v6596 = vmax.f32 %v5127, 0.0
  %v6597 = vmax.f32 %v5577, 0.0
  %v6598 = vmax.f32 %v5579, 0.0
  %v6599 = vmax.f32 %v6029, 0.0
  %v6600 = vmax.f32 %v6031, 0.0
  %v6601 = vmax.f32 %v6481, 0.0
  %v6602 = vmax.f32 %v6483, 0.0
  %v6603 = vmax.f32 %v5129, 0.0
  %v6604 = vmax.f32 %v5131, 0.0
  %v6605 = vmax.f32 %v5581, 0.0
  %v6606 = vmax.f32 %v5583, 0.0
  %v6607 = vmax.f32 %v6033, 0.0
  %v6608 = vmax.f32 %v6035, 0.0
  %v6609 = vmax.f32 %v6485, 0.0
  %v6610 = vmax.f32 %v6487, 0.0
  %v6611 = vmax.f32 %v5135, 0.0
  %v6612 = vmax.f32 %v5137, 0.0
  %v6613 = vmax.f32 %v5587, 0.0
  %v6614 = vmax.f32 %v5589, 0.0
  %v6615 = vmax.f32 %v6039, 0.0
  %v6616 = vmax.f32 %v6041, 0.0
  %v6617 = vmax.f32 %v6491, 0.0
  %v6618 = vmax.f32 %v6493, 0.0
  %v6619 = vmax.f32 %v5139, 0.0
  %v6620 = vmax.f32 %v5141, 0.0
  %v6621 = vmax.f32 %v5591, 0.0
  %v6622 = vmax.f32 %v5593, 0.0
  %v6623 = vmax.f32 %v6043, 0.0
  %v6624 = vmax.f32 %v6045, 0.0
  %v6625 = vmax.f32 %v6495, 0.0
  %v6626 = vmax.f32 %v6497, 0.0
  %v6627 = vpack.c.bf16 %v6507, %v6499
  %v6628 = vpack.c.bf16 %v6508, %v6500
  %v6629 = vpack.c.bf16 %v6509, %v6501
  %v6630 = vpack.c.bf16 %v6510, %v6502
  %v6631 = vpack.c.bf16 %v6511, %v6503
  %v6632 = vpack.c.bf16 %v6512, %v6504
  %v6633 = vpack.c.bf16 %v6513, %v6505
  %v6634 = vpack.c.bf16 %v6514, %v6506
  %v6635 = vpack.c.bf16 %v6523, %v6515
  %v6636 = vpack.c.bf16 %v6524, %v6516
  %v6637 = vpack.c.bf16 %v6525, %v6517
  %v6638 = vpack.c.bf16 %v6526, %v6518
  %v6639 = vpack.c.bf16 %v6527, %v6519
  %v6640 = vpack.c.bf16 %v6528, %v6520
  %v6641 = vpack.c.bf16 %v6529, %v6521
  %v6642 = vpack.c.bf16 %v6530, %v6522
  %v6643 = vpack.c.bf16 %v6539, %v6531
  %v6644 = vpack.c.bf16 %v6540, %v6532
  %v6645 = vpack.c.bf16 %v6541, %v6533
  %v6646 = vpack.c.bf16 %v6542, %v6534
  %v6647 = vpack.c.bf16 %v6543, %v6535
  %v6648 = vpack.c.bf16 %v6544, %v6536
  %v6649 = vpack.c.bf16 %v6545, %v6537
  %v6650 = vpack.c.bf16 %v6546, %v6538
  %v6651 = vpack.c.bf16 %v6555, %v6547
  %v6652 = vpack.c.bf16 %v6556, %v6548
  %v6653 = vpack.c.bf16 %v6557, %v6549
  %v6654 = vpack.c.bf16 %v6558, %v6550
  %v6655 = vpack.c.bf16 %v6559, %v6551
  %v6656 = vpack.c.bf16 %v6560, %v6552
  %v6657 = vpack.c.bf16 %v6561, %v6553
  %v6658 = vpack.c.bf16 %v6562, %v6554
  %v6659 = vpack.c.bf16 %v6571, %v6563
  %v6660 = vpack.c.bf16 %v6572, %v6564
  %v6661 = vpack.c.bf16 %v6573, %v6565
  %v6662 = vpack.c.bf16 %v6574, %v6566
  %v6663 = vpack.c.bf16 %v6575, %v6567
  %v6664 = vpack.c.bf16 %v6576, %v6568
  %v6665 = vpack.c.bf16 %v6577, %v6569
  %v6666 = vpack.c.bf16 %v6578, %v6570
  %v6667 = vpack.c.bf16 %v6587, %v6579
  %v6668 = vpack.c.bf16 %v6588, %v6580
  %v6669 = vpack.c.bf16 %v6589, %v6581
  %v6670 = vpack.c.bf16 %v6590, %v6582
  %v6671 = vpack.c.bf16 %v6591, %v6583
  %v6672 = vpack.c.bf16 %v6592, %v6584
  %v6673 = vpack.c.bf16 %v6593, %v6585
  %v6674 = vpack.c.bf16 %v6594, %v6586
  %v6675 = vpack.c.bf16 %v6603, %v6595
  %v6676 = vpack.c.bf16 %v6604, %v6596
  %v6677 = vpack.c.bf16 %v6605, %v6597
  %v6678 = vpack.c.bf16 %v6606, %v6598
  %v6679 = vpack.c.bf16 %v6607, %v6599
  %v6680 = vpack.c.bf16 %v6608, %v6600
  %v6681 = vpack.c.bf16 %v6609, %v6601
  %v6682 = vpack.c.bf16 %v6610, %v6602
  %v6683 = vpack.c.bf16 %v6619, %v6611
  %v6684 = vpack.c.bf16 %v6620, %v6612
  %v6685 = vpack.c.bf16 %v6621, %v6613
  %v6686 = vpack.c.bf16 %v6622, %v6614
  %v6687 = vpack.c.bf16 %v6623, %v6615
  %v6688 = vpack.c.bf16 %v6624, %v6616
  %v6689 = vpack.c.bf16 %v6625, %v6617
  %v6690 = vpack.c.bf16 %v6626, %v6618
  %v6691 = vld [vmem:[%s5] sm:$0xf]
  %v6692 = vld [vmem:[%s5 + $0x4] sm:$0xf]
  %v6693 = vld [vmem:[%s5 + $0x8] sm:$0xf]
  %v6694 = vld [vmem:[%s5 + $0xc] sm:$0xf]
  %v6695 = vld [vmem:[%s5 + $0x10] sm:$0xf]
  %v6696 = vld [vmem:[%s5 + $0x14] sm:$0xf]
  %v6697 = vld [vmem:[%s5 + $0x18] sm:$0xf]
  %v6698 = vld [vmem:[%s5 + $0x1c] sm:$0xf]
  %v6699 = vld [vmem:[%s5 + $0x20] sm:$0xf]
  %v6700 = vld [vmem:[%s5 + $0x24] sm:$0xf]
  %v6701 = vld [vmem:[%s5 + $0x28] sm:$0xf]
  %v6702 = vld [vmem:[%s5 + $0x2c] sm:$0xf]
  %v6703 = vld [vmem:[%s5 + $0x30] sm:$0xf]
  %v6704 = vld [vmem:[%s5 + $0x34] sm:$0xf]
  %v6705 = vld [vmem:[%s5 + $0x38] sm:$0xf]
  %v6706 = vld [vmem:[%s5 + $0x3c] sm:$0xf]
  %v6707 = vld [vmem:[%s5 + $0x40] sm:$0xf]
  %v6708 = vld [vmem:[%s5 + $0x44] sm:$0xf]
  %v6709 = vld [vmem:[%s5 + $0x48] sm:$0xf]
  %v6710 = vld [vmem:[%s5 + $0x4c] sm:$0xf]
  %v6711 = vld [vmem:[%s5 + $0x50] sm:$0xf]
  %v6712 = vld [vmem:[%s5 + $0x54] sm:$0xf]
  %v6713 = vld [vmem:[%s5 + $0x58] sm:$0xf]
  %v6714 = vld [vmem:[%s5 + $0x5c] sm:$0xf]
  %v6715 = vld [vmem:[%s5 + $0x60] sm:$0xf]
  %v6716 = vld [vmem:[%s5 + $0x64] sm:$0xf]
  %v6717 = vld [vmem:[%s5 + $0x68] sm:$0xf]
  %v6718 = vld [vmem:[%s5 + $0x6c] sm:$0xf]
  %v6719 = vld [vmem:[%s5 + $0x70] sm:$0xf]
  %v6720 = vld [vmem:[%s5 + $0x74] sm:$0xf]
  %v6721 = vld [vmem:[%s5 + $0x78] sm:$0xf]
  %v6722 = vld [vmem:[%s5 + $0x7c] sm:$0xf]
  %v6723 = vld [vmem:[%s5 + $0x80] sm:$0xf]
  %v6724 = vld [vmem:[%s5 + $0x84] sm:$0xf]
  %v6725 = vld [vmem:[%s5 + $0x88] sm:$0xf]
  %v6726 = vld [vmem:[%s5 + $0x8c] sm:$0xf]
  %v6727 = vld [vmem:[%s5 + $0x90] sm:$0xf]
  %v6728 = vld [vmem:[%s5 + $0x94] sm:$0xf]
  %v6729 = vld [vmem:[%s5 + $0x98] sm:$0xf]
  %v6730 = vld [vmem:[%s5 + $0x9c] sm:$0xf]
  %v6731 = vld [vmem:[%s5 + $0xa0] sm:$0xf]
  %v6732 = vld [vmem:[%s5 + $0xa4] sm:$0xf]
  %v6733 = vld [vmem:[%s5 + $0xa8] sm:$0xf]
  %v6734 = vld [vmem:[%s5 + $0xac] sm:$0xf]
  %v6735 = vld [vmem:[%s5 + $0xb0] sm:$0xf]
  %v6736 = vld [vmem:[%s5 + $0xb4] sm:$0xf]
  %v6737 = vld [vmem:[%s5 + $0xb8] sm:$0xf]
  %v6738 = vld [vmem:[%s5 + $0xbc] sm:$0xf]
  %v6739 = vld [vmem:[%s5 + $0xc0] sm:$0xf]
  %v6740 = vld [vmem:[%s5 + $0xc4] sm:$0xf]
  %v6741 = vld [vmem:[%s5 + $0xc8] sm:$0xf]
  %v6742 = vld [vmem:[%s5 + $0xcc] sm:$0xf]
  %v6743 = vld [vmem:[%s5 + $0xd0] sm:$0xf]
  %v6744 = vld [vmem:[%s5 + $0xd4] sm:$0xf]
  %v6745 = vld [vmem:[%s5 + $0xd8] sm:$0xf]
  %v6746 = vld [vmem:[%s5 + $0xdc] sm:$0xf]
  %v6747 = vld [vmem:[%s5 + $0xe0] sm:$0xf]
  %v6748 = vld [vmem:[%s5 + $0xe4] sm:$0xf]
  %v6749 = vld [vmem:[%s5 + $0xe8] sm:$0xf]
  %v6750 = vld [vmem:[%s5 + $0xec] sm:$0xf]
  %v6751 = vld [vmem:[%s5 + $0xf0] sm:$0xf]
  %v6752 = vld [vmem:[%s5 + $0xf4] sm:$0xf]
  %v6753 = vld [vmem:[%s5 + $0xf8] sm:$0xf]
  %v6754 = vld [vmem:[%s5 + $0xfc] sm:$0xf]
  %v6755 = vld [vmem:[%s5 + $0x100] sm:$0xf]
  %v6756 = vld [vmem:[%s5 + $0x104] sm:$0xf]
  %v6757 = vld [vmem:[%s5 + $0x108] sm:$0xf]
  %v6758 = vld [vmem:[%s5 + $0x10c] sm:$0xf]
  %v6759 = vld [vmem:[%s5 + $0x110] sm:$0xf]
  %v6760 = vld [vmem:[%s5 + $0x114] sm:$0xf]
  %v6761 = vld [vmem:[%s5 + $0x118] sm:$0xf]
  %v6762 = vld [vmem:[%s5 + $0x11c] sm:$0xf]
  %v6763 = vld [vmem:[%s5 + $0x120] sm:$0xf]
  %v6764 = vld [vmem:[%s5 + $0x124] sm:$0xf]
  %v6765 = vld [vmem:[%s5 + $0x128] sm:$0xf]
  %v6766 = vld [vmem:[%s5 + $0x12c] sm:$0xf]
  %v6767 = vld [vmem:[%s5 + $0x130] sm:$0xf]
  %v6768 = vld [vmem:[%s5 + $0x134] sm:$0xf]
  %v6769 = vld [vmem:[%s5 + $0x138] sm:$0xf]
  %v6770 = vld [vmem:[%s5 + $0x13c] sm:$0xf]
  %v6771 = vld [vmem:[%s5 + $0x140] sm:$0xf]
  %v6772 = vld [vmem:[%s5 + $0x144] sm:$0xf]
  %v6773 = vld [vmem:[%s5 + $0x148] sm:$0xf]
  %v6774 = vld [vmem:[%s5 + $0x14c] sm:$0xf]
  %v6775 = vld [vmem:[%s5 + $0x150] sm:$0xf]
  %v6776 = vld [vmem:[%s5 + $0x154] sm:$0xf]
  %v6777 = vld [vmem:[%s5 + $0x158] sm:$0xf]
  %v6778 = vld [vmem:[%s5 + $0x15c] sm:$0xf]
  %v6779 = vld [vmem:[%s5 + $0x160] sm:$0xf]
  %v6780 = vld [vmem:[%s5 + $0x164] sm:$0xf]
  %v6781 = vld [vmem:[%s5 + $0x168] sm:$0xf]
  %v6782 = vld [vmem:[%s5 + $0x16c] sm:$0xf]
  %v6783 = vld [vmem:[%s5 + $0x170] sm:$0xf]
  %v6784 = vld [vmem:[%s5 + $0x174] sm:$0xf]
  %v6785 = vld [vmem:[%s5 + $0x178] sm:$0xf]
  %v6786 = vld [vmem:[%s5 + $0x17c] sm:$0xf]
  %v6787 = vld [vmem:[%s5 + $0x180] sm:$0xf]
  %v6788 = vld [vmem:[%s5 + $0x184] sm:$0xf]
  %v6789 = vld [vmem:[%s5 + $0x188] sm:$0xf]
  %v6790 = vld [vmem:[%s5 + $0x18c] sm:$0xf]
  %v6791 = vld [vmem:[%s5 + $0x190] sm:$0xf]
  %v6792 = vld [vmem:[%s5 + $0x194] sm:$0xf]
  %v6793 = vld [vmem:[%s5 + $0x198] sm:$0xf]
  %v6794 = vld [vmem:[%s5 + $0x19c] sm:$0xf]
  %v6795 = vld [vmem:[%s5 + $0x1a0] sm:$0xf]
  %v6796 = vld [vmem:[%s5 + $0x1a4] sm:$0xf]
  %v6797 = vld [vmem:[%s5 + $0x1a8] sm:$0xf]
  %v6798 = vld [vmem:[%s5 + $0x1ac] sm:$0xf]
  %v6799 = vld [vmem:[%s5 + $0x1b0] sm:$0xf]
  %v6800 = vld [vmem:[%s5 + $0x1b4] sm:$0xf]
  %v6801 = vld [vmem:[%s5 + $0x1b8] sm:$0xf]
  %v6802 = vld [vmem:[%s5 + $0x1bc] sm:$0xf]
  %v6803 = vld [vmem:[%s5 + $0x1c0] sm:$0xf]
  %v6804 = vld [vmem:[%s5 + $0x1c4] sm:$0xf]
  %v6805 = vld [vmem:[%s5 + $0x1c8] sm:$0xf]
  %v6806 = vld [vmem:[%s5 + $0x1cc] sm:$0xf]
  %v6807 = vld [vmem:[%s5 + $0x1d0] sm:$0xf]
  %v6808 = vld [vmem:[%s5 + $0x1d4] sm:$0xf]
  %v6809 = vld [vmem:[%s5 + $0x1d8] sm:$0xf]
  %v6810 = vld [vmem:[%s5 + $0x1dc] sm:$0xf]
  %v6811 = vld [vmem:[%s5 + $0x1e0] sm:$0xf]
  %v6812 = vld [vmem:[%s5 + $0x1e4] sm:$0xf]
  %v6813 = vld [vmem:[%s5 + $0x1e8] sm:$0xf]
  %v6814 = vld [vmem:[%s5 + $0x1ec] sm:$0xf]
  %v6815 = vld [vmem:[%s5 + $0x1f0] sm:$0xf]
  %v6816 = vld [vmem:[%s5 + $0x1f4] sm:$0xf]
  %v6817 = vld [vmem:[%s5 + $0x1f8] sm:$0xf]
  %v6818 = vld [vmem:[%s5 + $0x1fc] sm:$0xf]
  %v6819 = vld [vmem:[%s6] sm:$0x1]
  %v6821 = vlaneseq
  %v6822 = vshrl.u32 %v6821, 7
  %v6823 = vsub.s32 0, %v6822
  %v6824 = vrot.slane %v6819, %v6823
  %v6954 = vunpack.c.l.b16 %v6691
  %v6955 = vunpack.c.l.b16 %v6692
  %v6956 = vunpack.c.l.b16 %v6693
  %v6957 = vunpack.c.l.b16 %v6694
  %v6958 = vunpack.c.l.b16 %v6695
  %v6959 = vunpack.c.l.b16 %v6696
  %v6960 = vunpack.c.l.b16 %v6697
  %v6961 = vunpack.c.l.b16 %v6698
  %v6962 = vunpack.c.l.b16 %v6699
  %v6963 = vunpack.c.l.b16 %v6700
  %v6964 = vunpack.c.l.b16 %v6701
  %v6965 = vunpack.c.l.b16 %v6702
  %v6966 = vunpack.c.l.b16 %v6703
  %v6967 = vunpack.c.l.b16 %v6704
  %v6968 = vunpack.c.l.b16 %v6705
  %v6969 = vunpack.c.l.b16 %v6706
  %v6970 = vunpack.c.l.b16 %v6707
  %v6971 = vunpack.c.l.b16 %v6708
  %v6972 = vunpack.c.l.b16 %v6709
  %v6973 = vunpack.c.l.b16 %v6710
  %v6974 = vunpack.c.l.b16 %v6711
  %v6975 = vunpack.c.l.b16 %v6712
  %v6976 = vunpack.c.l.b16 %v6713
  %v6977 = vunpack.c.l.b16 %v6714
  %v6978 = vunpack.c.l.b16 %v6715
  %v6979 = vunpack.c.l.b16 %v6716
  %v6980 = vunpack.c.l.b16 %v6717
  %v6981 = vunpack.c.l.b16 %v6718
  %v6982 = vunpack.c.l.b16 %v6719
  %v6983 = vunpack.c.l.b16 %v6720
  %v6984 = vunpack.c.l.b16 %v6721
  %v6985 = vunpack.c.l.b16 %v6722
  %v6986 = vunpack.c.l.b16 %v6723
  %v6987 = vunpack.c.l.b16 %v6724
  %v6988 = vunpack.c.l.b16 %v6725
  %v6989 = vunpack.c.l.b16 %v6726
  %v6990 = vunpack.c.l.b16 %v6727
  %v6991 = vunpack.c.l.b16 %v6728
  %v6992 = vunpack.c.l.b16 %v6729
  %v6993 = vunpack.c.l.b16 %v6730
  %v6994 = vunpack.c.l.b16 %v6731
  %v6995 = vunpack.c.l.b16 %v6732
  %v6996 = vunpack.c.l.b16 %v6733
  %v6997 = vunpack.c.l.b16 %v6734
  %v6998 = vunpack.c.l.b16 %v6735
  %v6999 = vunpack.c.l.b16 %v6736
  %v7000 = vunpack.c.l.b16 %v6737
  %v7001 = vunpack.c.l.b16 %v6738
  %v7002 = vunpack.c.l.b16 %v6739
  %v7003 = vunpack.c.l.b16 %v6740
  %v7004 = vunpack.c.l.b16 %v6741
  %v7005 = vunpack.c.l.b16 %v6742
  %v7006 = vunpack.c.l.b16 %v6743
  %v7007 = vunpack.c.l.b16 %v6744
  %v7008 = vunpack.c.l.b16 %v6745
  %v7009 = vunpack.c.l.b16 %v6746
  %v7010 = vunpack.c.l.b16 %v6747
  %v7011 = vunpack.c.l.b16 %v6748
  %v7012 = vunpack.c.l.b16 %v6749
  %v7013 = vunpack.c.l.b16 %v6750
  %v7014 = vunpack.c.l.b16 %v6751
  %v7015 = vunpack.c.l.b16 %v6752
  %v7016 = vunpack.c.l.b16 %v6753
  %v7017 = vunpack.c.l.b16 %v6754
  %v7018 = vunpack.c.l.b16 %v6755
  %v7019 = vunpack.c.l.b16 %v6756
  %v7020 = vunpack.c.l.b16 %v6757
  %v7021 = vunpack.c.l.b16 %v6758
  %v7022 = vunpack.c.l.b16 %v6759
  %v7023 = vunpack.c.l.b16 %v6760
  %v7024 = vunpack.c.l.b16 %v6761
  %v7025 = vunpack.c.l.b16 %v6762
  %v7026 = vunpack.c.l.b16 %v6763
  %v7027 = vunpack.c.l.b16 %v6764
  %v7028 = vunpack.c.l.b16 %v6765
  %v7029 = vunpack.c.l.b16 %v6766
  %v7030 = vunpack.c.l.b16 %v6767
  %v7031 = vunpack.c.l.b16 %v6768
  %v7032 = vunpack.c.l.b16 %v6769
  %v7033 = vunpack.c.l.b16 %v6770
  %v7034 = vunpack.c.l.b16 %v6771
  %v7035 = vunpack.c.l.b16 %v6772
  %v7036 = vunpack.c.l.b16 %v6773
  %v7037 = vunpack.c.l.b16 %v6774
  %v7038 = vunpack.c.l.b16 %v6775
  %v7039 = vunpack.c.l.b16 %v6776
  %v7040 = vunpack.c.l.b16 %v6777
  %v7041 = vunpack.c.l.b16 %v6778
  %v7042 = vunpack.c.l.b16 %v6779
  %v7043 = vunpack.c.l.b16 %v6780
  %v7044 = vunpack.c.l.b16 %v6781
  %v7045 = vunpack.c.l.b16 %v6782
  %v7046 = vunpack.c.l.b16 %v6783
  %v7047 = vunpack.c.l.b16 %v6784
  %v7048 = vunpack.c.l.b16 %v6785
  %v7049 = vunpack.c.l.b16 %v6786
  %v7050 = vunpack.c.l.b16 %v6787
  %v7051 = vunpack.c.l.b16 %v6788
  %v7052 = vunpack.c.l.b16 %v6789
  %v7053 = vunpack.c.l.b16 %v6790
  %v7054 = vunpack.c.l.b16 %v6791
  %v7055 = vunpack.c.l.b16 %v6792
  %v7056 = vunpack.c.l.b16 %v6793
  %v7057 = vunpack.c.l.b16 %v6794
  %v7058 = vunpack.c.l.b16 %v6795
  %v7059 = vunpack.c.l.b16 %v6796
  %v7060 = vunpack.c.l.b16 %v6797
  %v7061 = vunpack.c.l.b16 %v6798
  %v7062 = vunpack.c.l.b16 %v6799
  %v7063 = vunpack.c.l.b16 %v6800
  %v7064 = vunpack.c.l.b16 %v6801
  %v7065 = vunpack.c.l.b16 %v6802
  %v7066 = vunpack.c.l.b16 %v6803
  %v7067 = vunpack.c.l.b16 %v6804
  %v7068 = vunpack.c.l.b16 %v6805
  %v7069 = vunpack.c.l.b16 %v6806
  %v7070 = vunpack.c.l.b16 %v6807
  %v7071 = vunpack.c.l.b16 %v6808
  %v7072 = vunpack.c.l.b16 %v6809
  %v7073 = vunpack.c.l.b16 %v6810
  %v7074 = vunpack.c.l.b16 %v6811
  %v7075 = vunpack.c.l.b16 %v6812
  %v7076 = vunpack.c.l.b16 %v6813
  %v7077 = vunpack.c.l.b16 %v6814
  %v7078 = vunpack.c.l.b16 %v6815
  %v7079 = vunpack.c.l.b16 %v6816
  %v7080 = vunpack.c.l.b16 %v6817
  %v7081 = vunpack.c.l.b16 %v6818
  %v7082 = vpack.c.b16 %v6955, %v6954
  %v7083 = vpack.c.b16 %v6957, %v6956
  %v7084 = vpack.c.b16 %v6959, %v6958
  %v7085 = vpack.c.b16 %v6961, %v6960
  %v7086 = vpack.c.b16 %v6963, %v6962
  %v7087 = vpack.c.b16 %v6965, %v6964
  %v7088 = vpack.c.b16 %v6967, %v6966
  %v7089 = vpack.c.b16 %v6969, %v6968
  %v7090 = vpack.c.b16 %v6971, %v6970
  %v7091 = vpack.c.b16 %v6973, %v6972
  %v7092 = vpack.c.b16 %v6975, %v6974
  %v7093 = vpack.c.b16 %v6977, %v6976
  %v7094 = vpack.c.b16 %v6979, %v6978
  %v7095 = vpack.c.b16 %v6981, %v6980
  %v7096 = vpack.c.b16 %v6983, %v6982
  %v7097 = vpack.c.b16 %v6985, %v6984
  %v7098 = vpack.c.b16 %v6987, %v6986
  %v7099 = vpack.c.b16 %v6989, %v6988
  %v7100 = vpack.c.b16 %v6991, %v6990
  %v7101 = vpack.c.b16 %v6993, %v6992
  %v7102 = vpack.c.b16 %v6995, %v6994
  %v7103 = vpack.c.b16 %v6997, %v6996
  %v7104 = vpack.c.b16 %v6999, %v6998
  %v7105 = vpack.c.b16 %v7001, %v7000
  %v7106 = vpack.c.b16 %v7003, %v7002
  %v7107 = vpack.c.b16 %v7005, %v7004
  %v7108 = vpack.c.b16 %v7007, %v7006
  %v7109 = vpack.c.b16 %v7009, %v7008
  %v7110 = vpack.c.b16 %v7011, %v7010
  %v7111 = vpack.c.b16 %v7013, %v7012
  %v7112 = vpack.c.b16 %v7015, %v7014
  %v7113 = vpack.c.b16 %v7017, %v7016
  %v7114 = vpack.c.b16 %v7019, %v7018
  %v7115 = vpack.c.b16 %v7021, %v7020
  %v7116 = vpack.c.b16 %v7023, %v7022
  %v7117 = vpack.c.b16 %v7025, %v7024
  %v7118 = vpack.c.b16 %v7027, %v7026
  %v7119 = vpack.c.b16 %v7029, %v7028
  %v7120 = vpack.c.b16 %v7031, %v7030
  %v7121 = vpack.c.b16 %v7033, %v7032
  %v7122 = vpack.c.b16 %v7035, %v7034
  %v7123 = vpack.c.b16 %v7037, %v7036
  %v7124 = vpack.c.b16 %v7039, %v7038
  %v7125 = vpack.c.b16 %v7041, %v7040
  %v7126 = vpack.c.b16 %v7043, %v7042
  %v7127 = vpack.c.b16 %v7045, %v7044
  %v7128 = vpack.c.b16 %v7047, %v7046
  %v7129 = vpack.c.b16 %v7049, %v7048
  %v7130 = vpack.c.b16 %v7051, %v7050
  %v7131 = vpack.c.b16 %v7053, %v7052
  %v7132 = vpack.c.b16 %v7055, %v7054
  %v7133 = vpack.c.b16 %v7057, %v7056
  %v7134 = vpack.c.b16 %v7059, %v7058
  %v7135 = vpack.c.b16 %v7061, %v7060
  %v7136 = vpack.c.b16 %v7063, %v7062
  %v7137 = vpack.c.b16 %v7065, %v7064
  %v7138 = vpack.c.b16 %v7067, %v7066
  %v7139 = vpack.c.b16 %v7069, %v7068
  %v7140 = vpack.c.b16 %v7071, %v7070
  %v7141 = vpack.c.b16 %v7073, %v7072
  %v7142 = vpack.c.b16 %v7075, %v7074
  %v7143 = vpack.c.b16 %v7077, %v7076
  %v7144 = vpack.c.b16 %v7079, %v7078
  %v7145 = vpack.c.b16 %v7081, %v7080
  %7210 = vmatprep.subr.bf16.mxu0 0
  %7211 = vmatpush1.bf16.msra.mxu0 %v7082
  %7212 = vmatprep.subr.bf16.mxu0 0
  %7213 = vmatpush1.bf16.msra.mxu0 %v7083
  %7214 = vmatprep.subr.bf16.mxu0 0
  %7215 = vmatpush1.bf16.msra.mxu0 %v7084
  %7216 = vmatprep.subr.bf16.mxu0 0
  %7217 = vmatpush1.bf16.msra.mxu0 %v7085
  %7218 = vmatprep.subr.bf16.mxu0 0
  %7219 = vmatpush1.bf16.msra.mxu0 %v7086
  %7220 = vmatprep.subr.bf16.mxu0 0
  %7221 = vmatpush1.bf16.msra.mxu0 %v7087
  %7222 = vmatprep.subr.bf16.mxu0 0
  %7223 = vmatpush1.bf16.msra.mxu0 %v7088
  %7224 = vmatprep.subr.bf16.mxu0 0
  %7225 = vmatpush1.bf16.msra.mxu0 %v7089
  %7226 = vmatprep.subr.bf16.mxu0 0
  %7227 = vmatpush1.bf16.msra.mxu0 %v7090
  %7228 = vmatprep.subr.bf16.mxu0 0
  %7229 = vmatpush1.bf16.msra.mxu0 %v7091
  %7230 = vmatprep.subr.bf16.mxu0 0
  %7231 = vmatpush1.bf16.msra.mxu0 %v7092
  %7232 = vmatprep.subr.bf16.mxu0 0
  %7233 = vmatpush1.bf16.msra.mxu0 %v7093
  %7234 = vmatprep.subr.bf16.mxu0 0
  %7235 = vmatpush1.bf16.msra.mxu0 %v7094
  %7236 = vmatprep.subr.bf16.mxu0 0
  %7237 = vmatpush1.bf16.msra.mxu0 %v7095
  %7238 = vmatprep.subr.bf16.mxu0 0
  %7239 = vmatpush1.bf16.msra.mxu0 %v7096
  %7240 = vmatprep.subr.bf16.mxu0 0
  %7241 = vmatpush1.bf16.msra.mxu0 %v7097
  %7242 = vmatprep.mubr.bf16.mxu0 %v6628
  %7243 = vmatmul.mubr.bf16.gmra.mrb[0].mxu0 %v6627
  %v7244 = vpop.f32.mrb[0].mxu0
  %v7245 = vadd.f32 %v6824, %v7244
  %v7246 = vpop.f32.mrb[0].mxu0
  %v7247 = vpop.f32.mrb[0].mxu0
  %v7248 = vadd.f32 %v6824, %v7247
  %v7249 = vpop.f32.mrb[0].mxu0
  %7250 = vmatprep.mubr.bf16.mxu0 %v6636
  %7251 = vmatmul.mubr.bf16.gmra.mrb[0].mxu0 %v6635
  %v7252 = vpop.f32.mrb[0].mxu0
  %v7253 = vadd.f32 %v6824, %v7252
  %v7254 = vpop.f32.mrb[0].mxu0
  %v7255 = vpop.f32.mrb[0].mxu0
  %v7256 = vadd.f32 %v6824, %v7255
  %v7257 = vpop.f32.mrb[0].mxu0
  %7258 = vmatprep.mubr.bf16.mxu0 %v6644
  %7259 = vmatmul.mubr.bf16.gmra.mrb[0].mxu0 %v6643
  %v7260 = vpop.f32.mrb[0].mxu0
  %v7261 = vadd.f32 %v6824, %v7260
  %v7262 = vpop.f32.mrb[0].mxu0
  %v7263 = vpop.f32.mrb[0].mxu0
  %v7264 = vadd.f32 %v6824, %v7263
  %v7265 = vpop.f32.mrb[0].mxu0
  %7266 = vmatprep.mubr.bf16.mxu0 %v6652
  %7267 = vmatmul.mubr.bf16.gmra.mrb[0].mxu0 %v6651
  %v7268 = vpop.f32.mrb[0].mxu0
  %v7269 = vadd.f32 %v6824, %v7268
  %v7270 = vpop.f32.mrb[0].mxu0
  %v7271 = vpop.f32.mrb[0].mxu0
  %v7272 = vadd.f32 %v6824, %v7271
  %v7273 = vpop.f32.mrb[0].mxu0
  %7274 = vmatprep.mubr.bf16.mxu0 %v6660
  %7275 = vmatmul.mubr.bf16.gmra.mrb[0].mxu0 %v6659
  %v7276 = vpop.f32.mrb[0].mxu0
  %v7277 = vadd.f32 %v6824, %v7276
  %v7278 = vpop.f32.mrb[0].mxu0
  %v7279 = vpop.f32.mrb[0].mxu0
  %v7280 = vadd.f32 %v6824, %v7279
  %v7281 = vpop.f32.mrb[0].mxu0
  %7282 = vmatprep.mubr.bf16.mxu0 %v6668
  %7283 = vmatmul.mubr.bf16.gmra.mrb[0].mxu0 %v6667
  %v7284 = vpop.f32.mrb[0].mxu0
  %v7285 = vadd.f32 %v6824, %v7284
  %v7286 = vpop.f32.mrb[0].mxu0
  %v7287 = vpop.f32.mrb[0].mxu0
  %v7288 = vadd.f32 %v6824, %v7287
  %v7289 = vpop.f32.mrb[0].mxu0
  %7290 = vmatprep.mubr.bf16.mxu0 %v6676
  %7291 = vmatmul.mubr.bf16.gmra.mrb[0].mxu0 %v6675
  %v7292 = vpop.f32.mrb[0].mxu0
  %v7293 = vadd.f32 %v6824, %v7292
  %v7294 = vpop.f32.mrb[0].mxu0
  %v7295 = vpop.f32.mrb[0].mxu0
  %v7296 = vadd.f32 %v6824, %v7295
  %v7297 = vpop.f32.mrb[0].mxu0
  %7298 = vmatprep.mubr.bf16.mxu0 %v6684
  %7299 = vmatmul.mubr.bf16.gmra.mrb[0].mxu0 %v6683
  %v7300 = vpop.f32.mrb[0].mxu0
  %v7301 = vadd.f32 %v6824, %v7300
  %v7302 = vpop.f32.mrb[0].mxu0
  %v7303 = vpop.f32.mrb[0].mxu0
  %v7304 = vadd.f32 %v6824, %v7303
  %v7305 = vpop.f32.mrb[0].mxu0
  %7306 = vdwg.mxu0
  %7307 = vmatprep.subr.bf16.mxu0 0
  %7308 = vmatpush1.bf16.msra.mxu0 %v7098
  %7309 = vmatprep.subr.bf16.mxu0 0
  %7310 = vmatpush1.bf16.msra.mxu0 %v7099
  %7311 = vmatprep.subr.bf16.mxu0 0
  %7312 = vmatpush1.bf16.msra.mxu0 %v7100
  %7313 = vmatprep.subr.bf16.mxu0 0
  %7314 = vmatpush1.bf16.msra.mxu0 %v7101
  %7315 = vmatprep.subr.bf16.mxu0 0
  %7316 = vmatpush1.bf16.msra.mxu0 %v7102
  %7317 = vmatprep.subr.bf16.mxu0 0
  %7318 = vmatpush1.bf16.msra.mxu0 %v7103
  %7319 = vmatprep.subr.bf16.mxu0 0
  %7320 = vmatpush1.bf16.msra.mxu0 %v7104
  %7321 = vmatprep.subr.bf16.mxu0 0
  %7322 = vmatpush1.bf16.msra.mxu0 %v7105
  %7323 = vmatprep.subr.bf16.mxu0 0
  %7324 = vmatpush1.bf16.msra.mxu0 %v7106
  %7325 = vmatprep.subr.bf16.mxu0 0
  %7326 = vmatpush1.bf16.msra.mxu0 %v7107
  %7327 = vmatprep.subr.bf16.mxu0 0
  %7328 = vmatpush1.bf16.msra.mxu0 %v7108
  %7329 = vmatprep.subr.bf16.mxu0 0
  %7330 = vmatpush1.bf16.msra.mxu0 %v7109
  %7331 = vmatprep.subr.bf16.mxu0 0
  %7332 = vmatpush1.bf16.msra.mxu0 %v7110
  %7333 = vmatprep.subr.bf16.mxu0 0
  %7334 = vmatpush1.bf16.msra.mxu0 %v7111
  %7335 = vmatprep.subr.bf16.mxu0 0
  %7336 = vmatpush1.bf16.msra.mxu0 %v7112
  %7337 = vmatprep.subr.bf16.mxu0 0
  %7338 = vmatpush1.bf16.msra.mxu0 %v7113
  %7339 = vmatprep.mubr.bf16.mxu0 %v6630
  %7340 = vmatmul.mubr.bf16.gmra.mrb[0].mxu0 %v6629
  %v7341 = vpop.f32.mrb[0].mxu0
  %v7342 = vadd.f32 %v7245, %v7341
  %v7343 = vpop.f32.mrb[0].mxu0
  %v7344 = vpop.f32.mrb[0].mxu0
  %v7345 = vadd.f32 %v7248, %v7344
  %v7346 = vpop.f32.mrb[0].mxu0
  %7347 = vmatprep.mubr.bf16.mxu0 %v6638
  %7348 = vmatmul.mubr.bf16.gmra.mrb[0].mxu0 %v6637
  %v7349 = vpop.f32.mrb[0].mxu0
  %v7350 = vadd.f32 %v7253, %v7349
  %v7351 = vpop.f32.mrb[0].mxu0
  %v7352 = vpop.f32.mrb[0].mxu0
  %v7353 = vadd.f32 %v7256, %v7352
  %v7354 = vpop.f32.mrb[0].mxu0
  %7355 = vmatprep.mubr.bf16.mxu0 %v6646
  %7356 = vmatmul.mubr.bf16.gmra.mrb[0].mxu0 %v6645
  %v7357 = vpop.f32.mrb[0].mxu0
  %v7358 = vadd.f32 %v7261, %v7357
  %v7359 = vpop.f32.mrb[0].mxu0
  %v7360 = vpop.f32.mrb[0].mxu0
  %v7361 = vadd.f32 %v7264, %v7360
  %v7362 = vpop.f32.mrb[0].mxu0
  %7363 = vmatprep.mubr.bf16.mxu0 %v6654
  %7364 = vmatmul.mubr.bf16.gmra.mrb[0].mxu0 %v6653
  %v7365 = vpop.f32.mrb[0].mxu0
  %v7366 = vadd.f32 %v7269, %v7365
  %v7367 = vpop.f32.mrb[0].mxu0
  %v7368 = vpop.f32.mrb[0].mxu0
  %v7369 = vadd.f32 %v7272, %v7368
  %v7370 = vpop.f32.mrb[0].mxu0
  %7371 = vmatprep.mubr.bf16.mxu0 %v6662
  %7372 = vmatmul.mubr.bf16.gmra.mrb[0].mxu0 %v6661
  %v7373 = vpop.f32.mrb[0].mxu0
  %v7374 = vadd.f32 %v7277, %v7373
  %v7375 = vpop.f32.mrb[0].mxu0
  %v7376 = vpop.f32.mrb[0].mxu0
  %v7377 = vadd.f32 %v7280, %v7376
  %v7378 = vpop.f32.mrb[0].mxu0
  %7379 = vmatprep.mubr.bf16.mxu0 %v6670
  %7380 = vmatmul.mubr.bf16.gmra.mrb[0].mxu0 %v6669
  %v7381 = vpop.f32.mrb[0].mxu0
  %v7382 = vadd.f32 %v7285, %v7381
  %v7383 = vpop.f32.mrb[0].mxu0
  %v7384 = vpop.f32.mrb[0].mxu0
  %v7385 = vadd.f32 %v7288, %v7384
  %v7386 = vpop.f32.mrb[0].mxu0
  %7387 = vmatprep.mubr.bf16.mxu0 %v6678
  %7388 = vmatmul.mubr.bf16.gmra.mrb[0].mxu0 %v6677
  %v7389 = vpop.f32.mrb[0].mxu0
  %v7390 = vadd.f32 %v7293, %v7389
  %v7391 = vpop.f32.mrb[0].mxu0
  %v7392 = vpop.f32.mrb[0].mxu0
  %v7393 = vadd.f32 %v7296, %v7392
  %v7394 = vpop.f32.mrb[0].mxu0
  %7395 = vmatprep.mubr.bf16.mxu0 %v6686
  %7396 = vmatmul.mubr.bf16.gmra.mrb[0].mxu0 %v6685
  %v7397 = vpop.f32.mrb[0].mxu0
  %v7398 = vadd.f32 %v7301, %v7397
  %v7399 = vpop.f32.mrb[0].mxu0
  %v7400 = vpop.f32.mrb[0].mxu0
  %v7401 = vadd.f32 %v7304, %v7400
  %v7402 = vpop.f32.mrb[0].mxu0
  %7403 = vdwg.mxu0
  %7404 = vmatprep.subr.bf16.mxu0 0
  %7405 = vmatpush1.bf16.msra.mxu0 %v7114
  %7406 = vmatprep.subr.bf16.mxu0 0
  %7407 = vmatpush1.bf16.msra.mxu0 %v7115
  %7408 = vmatprep.subr.bf16.mxu0 0
  %7409 = vmatpush1.bf16.msra.mxu0 %v7116
  %7410 = vmatprep.subr.bf16.mxu0 0
  %7411 = vmatpush1.bf16.msra.mxu0 %v7117
  %7412 = vmatprep.subr.bf16.mxu0 0
  %7413 = vmatpush1.bf16.msra.mxu0 %v7118
  %7414 = vmatprep.subr.bf16.mxu0 0
  %7415 = vmatpush1.bf16.msra.mxu0 %v7119
  %7416 = vmatprep.subr.bf16.mxu0 0
  %7417 = vmatpush1.bf16.msra.mxu0 %v7120
  %7418 = vmatprep.subr.bf16.mxu0 0
  %7419 = vmatpush1.bf16.msra.mxu0 %v7121
  %7420 = vmatprep.subr.bf16.mxu0 0
  %7421 = vmatpush1.bf16.msra.mxu0 %v7122
  %7422 = vmatprep.subr.bf16.mxu0 0
  %7423 = vmatpush1.bf16.msra.mxu0 %v7123
  %7424 = vmatprep.subr.bf16.mxu0 0
  %7425 = vmatpush1.bf16.msra.mxu0 %v7124
  %7426 = vmatprep.subr.bf16.mxu0 0
  %7427 = vmatpush1.bf16.msra.mxu0 %v7125
  %7428 = vmatprep.subr.bf16.mxu0 0
  %7429 = vmatpush1.bf16.msra.mxu0 %v7126
  %7430 = vmatprep.subr.bf16.mxu0 0
  %7431 = vmatpush1.bf16.msra.mxu0 %v7127
  %7432 = vmatprep.subr.bf16.mxu0 0
  %7433 = vmatpush1.bf16.msra.mxu0 %v7128
  %7434 = vmatprep.subr.bf16.mxu0 0
  %7435 = vmatpush1.bf16.msra.mxu0 %v7129
  %7436 = vmatprep.mubr.bf16.mxu0 %v6632
  %7437 = vmatmul.mubr.bf16.gmra.mrb[0].mxu0 %v6631
  %v7438 = vpop.f32.mrb[0].mxu0
  %v7439 = vadd.f32 %v7342, %v7438
  %v7440 = vpop.f32.mrb[0].mxu0
  %v7441 = vpop.f32.mrb[0].mxu0
  %v7442 = vadd.f32 %v7345, %v7441
  %v7443 = vpop.f32.mrb[0].mxu0
  %7444 = vmatprep.mubr.bf16.mxu0 %v6640
  %7445 = vmatmul.mubr.bf16.gmra.mrb[0].mxu0 %v6639
  %v7446 = vpop.f32.mrb[0].mxu0
  %v7447 = vadd.f32 %v7350, %v7446
  %v7448 = vpop.f32.mrb[0].mxu0
  %v7449 = vpop.f32.mrb[0].mxu0
  %v7450 = vadd.f32 %v7353, %v7449
  %v7451 = vpop.f32.mrb[0].mxu0
  %7452 = vmatprep.mubr.bf16.mxu0 %v6648
  %7453 = vmatmul.mubr.bf16.gmra.mrb[0].mxu0 %v6647
  %v7454 = vpop.f32.mrb[0].mxu0
  %v7455 = vadd.f32 %v7358, %v7454
  %v7456 = vpop.f32.mrb[0].mxu0
  %v7457 = vpop.f32.mrb[0].mxu0
  %v7458 = vadd.f32 %v7361, %v7457
  %v7459 = vpop.f32.mrb[0].mxu0
  %7460 = vmatprep.mubr.bf16.mxu0 %v6656
  %7461 = vmatmul.mubr.bf16.gmra.mrb[0].mxu0 %v6655
  %v7462 = vpop.f32.mrb[0].mxu0
  %v7463 = vadd.f32 %v7366, %v7462
  %v7464 = vpop.f32.mrb[0].mxu0
  %v7465 = vpop.f32.mrb[0].mxu0
  %v7466 = vadd.f32 %v7369, %v7465
  %v7467 = vpop.f32.mrb[0].mxu0
  %7468 = vmatprep.mubr.bf16.mxu0 %v6664
  %7469 = vmatmul.mubr.bf16.gmra.mrb[0].mxu0 %v6663
  %v7470 = vpop.f32.mrb[0].mxu0
  %v7471 = vadd.f32 %v7374, %v7470
  %v7472 = vpop.f32.mrb[0].mxu0
  %v7473 = vpop.f32.mrb[0].mxu0
  %v7474 = vadd.f32 %v7377, %v7473
  %v7475 = vpop.f32.mrb[0].mxu0
  %7476 = vmatprep.mubr.bf16.mxu0 %v6672
  %7477 = vmatmul.mubr.bf16.gmra.mrb[0].mxu0 %v6671
  %v7478 = vpop.f32.mrb[0].mxu0
  %v7479 = vadd.f32 %v7382, %v7478
  %v7480 = vpop.f32.mrb[0].mxu0
  %v7481 = vpop.f32.mrb[0].mxu0
  %v7482 = vadd.f32 %v7385, %v7481
  %v7483 = vpop.f32.mrb[0].mxu0
  %7484 = vmatprep.mubr.bf16.mxu0 %v6680
  %7485 = vmatmul.mubr.bf16.gmra.mrb[0].mxu0 %v6679
  %v7486 = vpop.f32.mrb[0].mxu0
  %v7487 = vadd.f32 %v7390, %v7486
  %v7488 = vpop.f32.mrb[0].mxu0
  %v7489 = vpop.f32.mrb[0].mxu0
  %v7490 = vadd.f32 %v7393, %v7489
  %v7491 = vpop.f32.mrb[0].mxu0
  %7492 = vmatprep.mubr.bf16.mxu0 %v6688
  %7493 = vmatmul.mubr.bf16.gmra.mrb[0].mxu0 %v6687
  %v7494 = vpop.f32.mrb[0].mxu0
  %v7495 = vadd.f32 %v7398, %v7494
  %v7496 = vpop.f32.mrb[0].mxu0
  %v7497 = vpop.f32.mrb[0].mxu0
  %v7498 = vadd.f32 %v7401, %v7497
  %v7499 = vpop.f32.mrb[0].mxu0
  %7500 = vdwg.mxu0
  %7501 = vmatprep.subr.bf16.mxu0 0
  %7502 = vmatpush1.bf16.msra.mxu0 %v7130
  %7503 = vmatprep.subr.bf16.mxu0 0
  %7504 = vmatpush1.bf16.msra.mxu0 %v7131
  %7505 = vmatprep.subr.bf16.mxu0 0
  %7506 = vmatpush1.bf16.msra.mxu0 %v7132
  %7507 = vmatprep.subr.bf16.mxu0 0
  %7508 = vmatpush1.bf16.msra.mxu0 %v7133
  %7509 = vmatprep.subr.bf16.mxu0 0
  %7510 = vmatpush1.bf16.msra.mxu0 %v7134
  %7511 = vmatprep.subr.bf16.mxu0 0
  %7512 = vmatpush1.bf16.msra.mxu0 %v7135
  %7513 = vmatprep.subr.bf16.mxu0 0
  %7514 = vmatpush1.bf16.msra.mxu0 %v7136
  %7515 = vmatprep.subr.bf16.mxu0 0
  %7516 = vmatpush1.bf16.msra.mxu0 %v7137
  %7517 = vmatprep.subr.bf16.mxu0 0
  %7518 = vmatpush1.bf16.msra.mxu0 %v7138
  %7519 = vmatprep.subr.bf16.mxu0 0
  %7520 = vmatpush1.bf16.msra.mxu0 %v7139
  %7521 = vmatprep.subr.bf16.mxu0 0
  %7522 = vmatpush1.bf16.msra.mxu0 %v7140
  %7523 = vmatprep.subr.bf16.mxu0 0
  %7524 = vmatpush1.bf16.msra.mxu0 %v7141
  %7525 = vmatprep.subr.bf16.mxu0 0
  %7526 = vmatpush1.bf16.msra.mxu0 %v7142
  %7527 = vmatprep.subr.bf16.mxu0 0
  %7528 = vmatpush1.bf16.msra.mxu0 %v7143
  %7529 = vmatprep.subr.bf16.mxu0 0
  %7530 = vmatpush1.bf16.msra.mxu0 %v7144
  %7531 = vmatprep.subr.bf16.mxu0 0
  %7532 = vmatpush1.bf16.msra.mxu0 %v7145
  %7533 = vmatprep.mubr.bf16.mxu0 %v6634
  %7534 = vmatmul.mubr.bf16.gmra.mrb[0].mxu0 %v6633
  %v7535 = vpop.f32.mrb[0].mxu0
  %v7536 = vadd.f32 %v7439, %v7535
  %v7537 = vpop.f32.mrb[0].mxu0
  %v7538 = vpop.f32.mrb[0].mxu0
  %v7539 = vadd.f32 %v7442, %v7538
  %v7540 = vpop.f32.mrb[0].mxu0
  %7541 = vmatprep.mubr.bf16.mxu0 %v6642
  %7542 = vmatmul.mubr.bf16.gmra.mrb[0].mxu0 %v6641
  %v7543 = vpop.f32.mrb[0].mxu0
  %v7544 = vadd.f32 %v7447, %v7543
  %v7545 = vpop.f32.mrb[0].mxu0
  %v7546 = vpop.f32.mrb[0].mxu0
  %v7547 = vadd.f32 %v7450, %v7546
  %v7548 = vpop.f32.mrb[0].mxu0
  %7549 = vmatprep.mubr.bf16.mxu0 %v6650
  %7550 = vmatmul.mubr.bf16.gmra.mrb[0].mxu0 %v6649
  %v7551 = vpop.f32.mrb[0].mxu0
  %v7552 = vadd.f32 %v7455, %v7551
  %v7553 = vpop.f32.mrb[0].mxu0
  %v7554 = vpop.f32.mrb[0].mxu0
  %v7555 = vadd.f32 %v7458, %v7554
  %v7556 = vpop.f32.mrb[0].mxu0
  %7557 = vmatprep.mubr.bf16.mxu0 %v6658
  %7558 = vmatmul.mubr.bf16.gmra.mrb[0].mxu0 %v6657
  %v7559 = vpop.f32.mrb[0].mxu0
  %v7560 = vadd.f32 %v7463, %v7559
  %v7561 = vpop.f32.mrb[0].mxu0
  %v7562 = vpop.f32.mrb[0].mxu0
  %v7563 = vadd.f32 %v7466, %v7562
  %v7564 = vpop.f32.mrb[0].mxu0
  %7565 = vmatprep.mubr.bf16.mxu0 %v6666
  %7566 = vmatmul.mubr.bf16.gmra.mrb[0].mxu0 %v6665
  %v7567 = vpop.f32.mrb[0].mxu0
  %v7568 = vadd.f32 %v7471, %v7567
  %v7569 = vpop.f32.mrb[0].mxu0
  %v7570 = vpop.f32.mrb[0].mxu0
  %v7571 = vadd.f32 %v7474, %v7570
  %v7572 = vpop.f32.mrb[0].mxu0
  %7573 = vmatprep.mubr.bf16.mxu0 %v6674
  %7574 = vmatmul.mubr.bf16.gmra.mrb[0].mxu0 %v6673
  %v7575 = vpop.f32.mrb[0].mxu0
  %v7576 = vadd.f32 %v7479, %v7575
  %v7577 = vpop.f32.mrb[0].mxu0
  %v7578 = vpop.f32.mrb[0].mxu0
  %v7579 = vadd.f32 %v7482, %v7578
  %v7580 = vpop.f32.mrb[0].mxu0
  %7581 = vmatprep.mubr.bf16.mxu0 %v6682
  %7582 = vmatmul.mubr.bf16.gmra.mrb[0].mxu0 %v6681
  %v7583 = vpop.f32.mrb[0].mxu0
  %v7584 = vadd.f32 %v7487, %v7583
  %v7585 = vpop.f32.mrb[0].mxu0
  %v7586 = vpop.f32.mrb[0].mxu0
  %v7587 = vadd.f32 %v7490, %v7586
  %v7588 = vpop.f32.mrb[0].mxu0
  %7589 = vmatprep.mubr.bf16.mxu0 %v6690
  %7590 = vmatmul.mubr.bf16.gmra.mrb[0].mxu0 %v6689
  %v7591 = vpop.f32.mrb[0].mxu0
  %v7592 = vadd.f32 %v7495, %v7591
  %v7593 = vpop.f32.mrb[0].mxu0
  %v7594 = vpop.f32.mrb[0].mxu0
  %v7595 = vadd.f32 %v7498, %v7594
  %v7596 = vpop.f32.mrb[0].mxu0
  %7597 = vdwg.mxu0
  %7598 = vst [vmem:[%s7] sm:$0xff] %v7536
  %7599 = vst [vmem:[%s7 + $0x8] sm:$0xff] %v7539
  %7600 = vst [vmem:[%s7 + $0x10] sm:$0xff] %v7544
  %7601 = vst [vmem:[%s7 + $0x18] sm:$0xff] %v7547
  %7602 = vst [vmem:[%s7 + $0x20] sm:$0xff] %v7552
  %7603 = vst [vmem:[%s7 + $0x28] sm:$0xff] %v7555
  %7604 = vst [vmem:[%s7 + $0x30] sm:$0xff] %v7560
  %7605 = vst [vmem:[%s7 + $0x38] sm:$0xff] %v7563
  %7606 = vst [vmem:[%s7 + $0x40] sm:$0xff] %v7568
  %7607 = vst [vmem:[%s7 + $0x48] sm:$0xff] %v7571
  %7608 = vst [vmem:[%s7 + $0x50] sm:$0xff] %v7576
  %7609 = vst [vmem:[%s7 + $0x58] sm:$0xff] %v7579
  %7610 = vst [vmem:[%s7 + $0x60] sm:$0xff] %v7584
  %7611 = vst [vmem:[%s7 + $0x68] sm:$0xff] %v7587
  %7612 = vst [vmem:[%s7 + $0x70] sm:$0xff] %v7592
  %7613 = vst [vmem:[%s7 + $0x78] sm:$0xff] %v7595
  // Predicated region
  $region30: #{custom_predictor.1} parent=0 // pred_check
    _
  $region31: #{custom_predictor.1} parent=0 // pred_check_branch
    %7615 = sbr.rel (0) target = $region33
  $region32: #{custom_predictor.1} parent=0 // pred_region
    _
  $region33: #{custom_predictor.1} parent=0 // pred_fallthru
    _
  // Predicated region
  $region34: #{custom_predictor.1} parent=0 // pred_check
    _
  $region35: #{custom_predictor.1} parent=0 // pred_check_branch
    %7617 = sbr.rel (0) target = $region37
  $region36: #{custom_predictor.1} parent=0 // pred_region
    _
  $region37: #{custom_predictor.1} parent=0 // pred_fallthru
    _

</llo_original>
